<compile_context>
chip_gen: v6e
topology: v6e:2x2x1
jax: 0.10.0
libtpu: 0.0.40
codegen_flags: <defaults>
</compile_context>

<pallas_src>
from functools import partial

import numpy as np
import jax
import jax.numpy as jnp
from jax.experimental import pallas as pl
from jax.experimental.pallas import tpu as pltpu


# ----------------------------------------------------------------------------
# Fused kernel: conv1+bn1+relu -> conv2+bn2+relu -> conv3 -> decode (center rotation,
#               heading-bin gather).  Emits one packed lane-dense (TILE_M, 128) slab.
# ----------------------------------------------------------------------------
def fused_kernel(x_ref, geo_ref, w1_ref, s1_ref, b1_ref, w2_ref, s2_ref, b2_ref,
                 w3_ref, b3_ref, o_ref, *, nh):
    # ---- MLP (bf16 MXU inputs, f32 accumulation) ----
    x = x_ref[...]                                                       # (TM, 128) bf16
    h = jnp.dot(x, w1_ref[...], preferred_element_type=jnp.float32)      # conv1
    h = jnp.maximum(h * s1_ref[...] + b1_ref[...], 0.0)                  # bn1 + relu
    h = jnp.dot(h.astype(jnp.bfloat16), w2_ref[...],
                preferred_element_type=jnp.float32)                      # conv2
    h = jnp.maximum(h * s2_ref[...] + b2_ref[...], 0.0)                  # bn2 + relu
    net = jnp.dot(h.astype(jnp.bfloat16), w3_ref[...],
                  preferred_element_type=jnp.float32) + b3_ref[...]      # conv3 (padded 128)

    tm = net.shape[0]

    # ---- decode: rotate canonical local offsets into world space (rotz(mode_pose)) ----
    xyz = geo_ref[:, 0:3]                                                # (TM, 3)
    pose = geo_ref[:, 3:4]                                               # (TM, 1)
    c = jnp.cos(pose)
    s = jnp.sin(pose)
    lx = net[:, 2:3]
    ly = net[:, 3:4]
    lz = net[:, 4:5]
    center = xyz + jnp.concatenate([c * lx - s * ly, s * lx + c * ly, lz], axis=1)

    # ---- decode: angle2class(mode_pose, nh) then cyclic heading-bin gather (2D) ----
    two_pi = 2.0 * np.pi
    apc = two_pi / nh
    ang = jnp.mod(pose, two_pi)
    cls_f = jnp.floor(jnp.mod(ang + 0.5 * apc, two_pi) / apc)
    cls = jnp.clip(cls_f, 0.0, float(nh - 1)).astype(jnp.int32)          # (TM, 1)
    bins = jax.lax.broadcasted_iota(jnp.int32, (tm, nh), 1)              # (TM, nh)
    shift = bins - cls
    shift = jnp.where(shift < 0, shift + nh, shift)                      # (j - cls) % nh

    hs = net[:, 5:5 + nh]
    hrn = net[:, 5 + nh:5 + 2 * nh]
    hs_g = jnp.zeros_like(hs)
    hrn_g = jnp.zeros_like(hrn)
    for k in range(nh):                                                  # 2D select gather
        sel = shift == k
        hs_g = hs_g + jnp.where(sel, hs[:, k:k + 1], 0.0)
        hrn_g = hrn_g + jnp.where(sel, hrn[:, k:k + 1], 0.0)

    # ---- packed, lane-dense output slab ----
    o_ref[...] = net                       # objectness / size / sem already in place
    o_ref[:, 2:5] = center
    o_ref[:, 5:5 + nh] = hs_g
    o_ref[:, 5 + nh:5 + 2 * nh] = hrn_g


# ----------------------------------------------------------------------------
# Wrapper
# ----------------------------------------------------------------------------
def _round_up(x, m):
    return ((x + m - 1) // m) * m


def proposal_module_forward(xyz_agg, features, mode_pose, params, mean_size_arr,
                            nh, ns, nc, tile_m=None):
    """features: (B, 128, N) NCL as in PyTorch; xyz_agg: (B, N, 3); mode_pose: (B, N)."""
    B, C, N = features.shape
    M = B * N
    C3 = params["w3"].shape[1]
    C3P = 128
    assert C3 <= C3P

    # NCL -> (M, C) channels-last; matmul operands in bf16 (MXU-native)
    x = jnp.transpose(features, (0, 2, 1)).reshape(M, C).astype(jnp.bfloat16)
    geo = jnp.concatenate(
        [xyz_agg.reshape(M, 3), mode_pose.reshape(M, 1)], axis=1).astype(jnp.float32)

    if tile_m is None:
        tile_m = min(512, _round_up(M, 128))
    M_pad = _round_up(M, tile_m)
    if M_pad != M:
        x = jnp.pad(x, ((0, M_pad - M), (0, 0)))
        geo = jnp.pad(geo, ((0, M_pad - M), (0, 0)))

    # weights (bf16) and folded BN scale/shift (f32); conv3 zero-padded to 128 lanes
    w1 = params["w1"].astype(jnp.bfloat16)
    w2 = params["w2"].astype(jnp.bfloat16)
    w3 = jnp.pad(params["w3"], ((0, 0), (0, C3P - C3))).astype(jnp.bfloat16)
    b3 = jnp.pad(params["b3"], (0, C3P - C3)).reshape(1, C3P).astype(jnp.float32)
    s1 = params["s1"].reshape(1, C).astype(jnp.float32)
    b1 = params["bias1"].reshape(1, C).astype(jnp.float32)
    s2 = params["s2"].reshape(1, C).astype(jnp.float32)
    b2 = params["bias2"].reshape(1, C).astype(jnp.float32)

    grid = (M_pad // tile_m,)
    row_spec = lambda i: (i, 0)
    res_spec = lambda i: (0, 0)  # resident (weights / scales)

    packed = pl.pallas_call(
        partial(fused_kernel, nh=nh),
        grid=grid,
        in_specs=[
            pl.BlockSpec((tile_m, C), row_spec),      # x
            pl.BlockSpec((tile_m, 4), row_spec),      # xyz | pose
            pl.BlockSpec((C, 128), res_spec),         # w1
            pl.BlockSpec((1, 128), res_spec),         # s1
            pl.BlockSpec((1, 128), res_spec),         # b1
            pl.BlockSpec((128, 128), res_spec),       # w2
            pl.BlockSpec((1, 128), res_spec),         # s2
            pl.BlockSpec((1, 128), res_spec),         # b2
            pl.BlockSpec((128, C3P), res_spec),       # w3 (padded)
            pl.BlockSpec((1, C3P), res_spec),         # b3 (padded)
        ],
        out_specs=pl.BlockSpec((tile_m, C3P), row_spec),
        out_shape=jax.ShapeDtypeStruct((M_pad, C3P), jnp.float32),
        compiler_params=pltpu.CompilerParams(dimension_semantics=("parallel",)),
    )(x, geo, w1, s1, b1, w2, s2, b2, w3, b3)

    packed = packed[:M]

    # cheap XLA slices / scalings of the packed slab (no Pallas traffic needed)
    obj = packed[:, 0:2]
    ctr = packed[:, 2:5]
    hs = packed[:, 5:5 + nh]
    hrn = packed[:, 5 + nh:5 + 2 * nh]
    ss = packed[:, 5 + 2 * nh:5 + 2 * nh + ns]
    srn = packed[:, 5 + 2 * nh + ns:5 + 2 * nh + 4 * ns].reshape(B, N, ns, 3)
    sem = packed[:, 5 + 2 * nh + 4 * ns:5 + 2 * nh + 4 * ns + nc]

    end_points = {
        "aggregated_vote_xyz": xyz_agg,
        "objectness_scores": obj.reshape(B, N, 2),
        "center": ctr.reshape(B, N, 3),
        "heading_scores": hs.reshape(B, N, nh),
        "heading_residuals_normalized": hrn.reshape(B, N, nh),
        "heading_residuals": hrn.reshape(B, N, nh) * (np.pi / nh),
        "size_scores": ss.reshape(B, N, ns),
        "size_residuals_normalized": srn,
        "size_residuals": srn * mean_size_arr[None, None],
        "sem_cls_scores": sem.reshape(B, N, nc),
    }
    return end_points


# ----------------------------------------------------------------------------
# Pure-JAX f32 reference (mirrors the PyTorch forward) for a correctness check
# ----------------------------------------------------------------------------
def reference_forward(xyz_agg, features, mode_pose, params, mean_size_arr, nh, ns, nc):
    x = jnp.transpose(features, (0, 2, 1))                     # (B, N, 128)
    h = jnp.maximum(jnp.einsum("bnc,cd->bnd", x, params["w1"]) * params["s1"]
                    + params["bias1"], 0.0)
    h = jnp.maximum(jnp.einsum("bnc,cd->bnd", h, params["w2"]) * params["s2"]
                    + params["bias2"], 0.0)
    net = jnp.einsum("bnc,cd->bnd", h, params["w3"]) + params["b3"]

    obj = net[..., 0:2]
    c, s = jnp.cos(mode_pose), jnp.sin(mode_pose)
    wx = c * net[..., 2] - s * net[..., 3]
    wy = s * net[..., 2] + c * net[..., 3]
    wz = net[..., 4]
    center = xyz_agg + jnp.stack([wx, wy, wz], axis=-1)

    two_pi = 2.0 * np.pi
    apc = two_pi / nh
    cls = jnp.floor(jnp.mod(jnp.mod(mode_pose, two_pi) + 0.5 * apc, two_pi) / apc)
    cls = jnp.clip(cls, 0.0, float(nh - 1)).astype(jnp.int32)
    shifting = jnp.mod(jnp.arange(nh)[None, None, :] - cls[..., None], nh)
    hs = jnp.take_along_axis(net[..., 5:5 + nh], shifting, axis=2)
    hrn = jnp.take_along_axis(net[..., 5 + nh:5 + 2 * nh], shifting, axis=2)

    ss = net[..., 5 + 2 * nh:5 + 2 * nh + ns]
    srn = net[..., 5 + 2 * nh + ns:5 + 2 * nh + 4 * ns].reshape(*net.shape[:2], ns, 3)
    sem = net[..., 5 + 2 * nh + 4 * ns:]
    return {
        "objectness_scores": obj,
        "center": center,
        "heading_scores": hs,
        "heading_residuals_normalized": hrn,
        "heading_residuals": hrn * (np.pi / nh),
        "size_scores": ss,
        "size_residuals_normalized": srn,
        "size_residuals": srn * mean_size_arr[None, None],
        "sem_cls_scores": sem,
    }


# ----------------------------------------------------------------------------
# Main
# ----------------------------------------------------------------------------
if __name__ == "__main__":
    NUM_CLASS = 10
    NUM_HEADING_BIN = 12
    NUM_SIZE_CLUSTER = 10
    B = 2
    NUM_PROPOSAL = 16
    C_IN = 128
    C3 = 2 + 3 + NUM_HEADING_BIN * 2 + NUM_SIZE_CLUSTER * 4 + NUM_CLASS  # 79

    key = jax.random.PRNGKey(0)
    ks = jax.random.split(key, 20)

    # --- deterministic parameters (conv weights stored as (C_in, C_out) for matmul) ---
    w1 = 0.1 * jax.random.normal(ks[0], (C_IN, 128), jnp.float32)
    cb1 = 0.1 * jax.random.normal(ks[1], (128,), jnp.float32)
    w2 = 0.1 * jax.random.normal(ks[2], (128, 128), jnp.float32)
    cb2 = 0.1 * jax.random.normal(ks[3], (128,), jnp.float32)
    w3 = 0.1 * jax.random.normal(ks[4], (128, C3), jnp.float32)
    b3 = 0.1 * jax.random.normal(ks[5], (C3,), jnp.float32)

    def bn_params(k):
        kg, kb, km, kv = jax.random.split(k, 4)
        gamma = 1.0 + 0.1 * jax.random.normal(kg, (128,), jnp.float32)
        beta = 0.1 * jax.random.normal(kb, (128,), jnp.float32)
        mean = 0.1 * jax.random.normal(km, (128,), jnp.float32)
        var = 1.0 + 0.1 * jnp.abs(jax.random.normal(kv, (128,), jnp.float32))
        return gamma, beta, mean, var

    g1, be1, m1, v1 = bn_params(ks[6])
    g2, be2, m2, v2 = bn_params(ks[7])
    eps = 1e-5
    s1 = g1 / jnp.sqrt(v1 + eps)
    bias1 = (cb1 - m1) * s1 + be1     # folds conv bias + eval-mode BN
    s2 = g2 / jnp.sqrt(v2 + eps)
    bias2 = (cb2 - m2) * s2 + be2

    params = dict(w1=w1, s1=s1, bias1=bias1, w2=w2, s2=s2, bias2=bias2, w3=w3, b3=b3)

    mean_size_arr = 0.5 * jnp.abs(jax.random.normal(ks[8], (NUM_SIZE_CLUSTER, 3),
                                                    jnp.float32)) + 0.5

    # --- synthesized vote_aggregation outputs (see TODO above) ---
    xyz_agg = jax.random.normal(ks[9], (B, NUM_PROPOSAL, 3), jnp.float32)
    features = jax.random.normal(ks[10], (B, C_IN, NUM_PROPOSAL), jnp.float32)
    mode_pose = jax.random.uniform(ks[11], (B, NUM_PROPOSAL), jnp.float32,
                                   minval=0.0, maxval=2.0 * np.pi)

    out = proposal_module_forward(xyz_agg, features, mode_pose, params,
                                  mean_size_arr, NUM_HEADING_BIN,
                                  NUM_SIZE_CLUSTER, NUM_CLASS)
    jax.block_until_ready(out)

    ref = reference_forward(xyz_agg, features, mode_pose, params,
                            mean_size_arr, NUM_HEADING_BIN,
                            NUM_SIZE_CLUSTER, NUM_CLASS)
    # tolerance accounts for bf16 MXU matmul inputs (f32 accumulation) vs f32 reference
    for k in ref:
        np.testing.assert_allclose(np.asarray(out[k]), np.asarray(ref[k]),
                                   rtol=5e-2, atol=5e-2)

    print("KERNEL_OK")
</pallas_src>

<mosaic_0001>
module attributes {stable_mosaic.version = 11 : i64} {
  func.func @fused_kernel(%arg0: i32, %arg1: memref<128x128xbf16, #tpu.memory_space<vmem>>, %arg2: memref<128x4xf32, #tpu.memory_space<vmem>>, %arg3: memref<128x128xbf16, #tpu.memory_space<vmem>>, %arg4: memref<1x128xf32, #tpu.memory_space<vmem>>, %arg5: memref<1x128xf32, #tpu.memory_space<vmem>>, %arg6: memref<128x128xbf16, #tpu.memory_space<vmem>>, %arg7: memref<1x128xf32, #tpu.memory_space<vmem>>, %arg8: memref<1x128xf32, #tpu.memory_space<vmem>>, %arg9: memref<128x128xbf16, #tpu.memory_space<vmem>>, %arg10: memref<1x128xf32, #tpu.memory_space<vmem>>, %arg11: memref<128x128xf32, #tpu.memory_space<vmem>>) attributes {dimension_semantics = [#tpu.dimension_semantics<parallel>], iteration_bounds = array<i64: 1>, scalar_prefetch = 0 : i64, scratch_operands = 0 : i64, tpu.core_type = #tpu.core_type<tc>, window_params = [{transform_indices = @transform_0, window_bounds = array<i64: 128, 128>}, {transform_indices = @transform_1, window_bounds = array<i64: 128, 4>}, {pipeline_mode = #tpu.pipeline_mode<synchronous>, transform_indices = @transform_2, window_bounds = array<i64: 128, 128>}, {pipeline_mode = #tpu.pipeline_mode<synchronous>, transform_indices = @transform_3, window_bounds = array<i64: 1, 128>}, {pipeline_mode = #tpu.pipeline_mode<synchronous>, transform_indices = @transform_4, window_bounds = array<i64: 1, 128>}, {pipeline_mode = #tpu.pipeline_mode<synchronous>, transform_indices = @transform_5, window_bounds = array<i64: 128, 128>}, {pipeline_mode = #tpu.pipeline_mode<synchronous>, transform_indices = @transform_6, window_bounds = array<i64: 1, 128>}, {pipeline_mode = #tpu.pipeline_mode<synchronous>, transform_indices = @transform_7, window_bounds = array<i64: 1, 128>}, {pipeline_mode = #tpu.pipeline_mode<synchronous>, transform_indices = @transform_8, window_bounds = array<i64: 128, 128>}, {pipeline_mode = #tpu.pipeline_mode<synchronous>, transform_indices = @transform_9, window_bounds = array<i64: 1, 128>}, {transform_indices = @transform_10, window_bounds = array<i64: 128, 128>}]} {
    %c0 = arith.constant 0 : index
    %c0_0 = arith.constant 0 : index
    %0 = vector.load %arg1[%c0, %c0_0] : memref<128x128xbf16, #tpu.memory_space<vmem>>, vector<128x128xbf16>
    %c0_1 = arith.constant 0 : index
    %c0_2 = arith.constant 0 : index
    %1 = vector.load %arg3[%c0_1, %c0_2] : memref<128x128xbf16, #tpu.memory_space<vmem>>, vector<128x128xbf16>
    %cst = arith.constant dense<0.000000e+00> : vector<128x128xf32>
    %2 = tpu.matmul %0, %1, %cst {dimension_numbers = #tpu.dot_dimension_numbers<[1], [0], [0], [1], [0, 0, 1, 1], [], []>} : vector<128x128xbf16>, vector<128x128xbf16>, vector<128x128xf32> -> vector<128x128xf32>
    %c0_3 = arith.constant 0 : index
    %c0_4 = arith.constant 0 : index
    %3 = vector.load %arg4[%c0_3, %c0_4] : memref<1x128xf32, #tpu.memory_space<vmem>>, vector<1x128xf32>
    %4 = vector.broadcast %3 : vector<1x128xf32> to vector<128x128xf32>
    %5 = arith.mulf %2, %4 : vector<128x128xf32>
    %c0_5 = arith.constant 0 : index
    %c0_6 = arith.constant 0 : index
    %6 = vector.load %arg5[%c0_5, %c0_6] : memref<1x128xf32, #tpu.memory_space<vmem>>, vector<1x128xf32>
    %7 = vector.broadcast %6 : vector<1x128xf32> to vector<128x128xf32>
    %8 = arith.addf %5, %7 : vector<128x128xf32>
    %cst_7 = arith.constant 0.000000e+00 : f32
    %9 = vector.broadcast %cst_7 : f32 to vector<128x128xf32>
    %10 = arith.maximumf %8, %9 : vector<128x128xf32>
    %11 = arith.truncf %10 : vector<128x128xf32> to vector<128x128xbf16>
    %c0_8 = arith.constant 0 : index
    %c0_9 = arith.constant 0 : index
    %12 = vector.load %arg6[%c0_8, %c0_9] : memref<128x128xbf16, #tpu.memory_space<vmem>>, vector<128x128xbf16>
    %cst_10 = arith.constant dense<0.000000e+00> : vector<128x128xf32>
    %13 = tpu.matmul %11, %12, %cst_10 {dimension_numbers = #tpu.dot_dimension_numbers<[1], [0], [0], [1], [0, 0, 1, 1], [], []>} : vector<128x128xbf16>, vector<128x128xbf16>, vector<128x128xf32> -> vector<128x128xf32>
    %c0_11 = arith.constant 0 : index
    %c0_12 = arith.constant 0 : index
    %14 = vector.load %arg7[%c0_11, %c0_12] : memref<1x128xf32, #tpu.memory_space<vmem>>, vector<1x128xf32>
    %15 = vector.broadcast %14 : vector<1x128xf32> to vector<128x128xf32>
    %16 = arith.mulf %13, %15 : vector<128x128xf32>
    %c0_13 = arith.constant 0 : index
    %c0_14 = arith.constant 0 : index
    %17 = vector.load %arg8[%c0_13, %c0_14] : memref<1x128xf32, #tpu.memory_space<vmem>>, vector<1x128xf32>
    %18 = vector.broadcast %17 : vector<1x128xf32> to vector<128x128xf32>
    %19 = arith.addf %16, %18 : vector<128x128xf32>
    %cst_15 = arith.constant 0.000000e+00 : f32
    %20 = vector.broadcast %cst_15 : f32 to vector<128x128xf32>
    %21 = arith.maximumf %19, %20 : vector<128x128xf32>
    %22 = arith.truncf %21 : vector<128x128xf32> to vector<128x128xbf16>
    %c0_16 = arith.constant 0 : index
    %c0_17 = arith.constant 0 : index
    %23 = vector.load %arg9[%c0_16, %c0_17] : memref<128x128xbf16, #tpu.memory_space<vmem>>, vector<128x128xbf16>
    %cst_18 = arith.constant dense<0.000000e+00> : vector<128x128xf32>
    %24 = tpu.matmul %22, %23, %cst_18 {dimension_numbers = #tpu.dot_dimension_numbers<[1], [0], [0], [1], [0, 0, 1, 1], [], []>} : vector<128x128xbf16>, vector<128x128xbf16>, vector<128x128xf32> -> vector<128x128xf32>
    %c0_19 = arith.constant 0 : index
    %c0_20 = arith.constant 0 : index
    %25 = vector.load %arg10[%c0_19, %c0_20] : memref<1x128xf32, #tpu.memory_space<vmem>>, vector<1x128xf32>
    %26 = vector.broadcast %25 : vector<1x128xf32> to vector<128x128xf32>
    %27 = arith.addf %24, %26 : vector<128x128xf32>
    %c0_21 = arith.constant 0 : index
    %c0_22 = arith.constant 0 : index
    %28 = vector.load %arg2[%c0_21, %c0_22] : memref<128x4xf32, #tpu.memory_space<vmem>>, vector<128x3xf32>
    %c0_23 = arith.constant 0 : index
    %c3 = arith.constant 3 : index
    %29 = vector.load %arg2[%c0_23, %c3] : memref<128x4xf32, #tpu.memory_space<vmem>>, vector<128x1xf32>
    %30 = math.cos %29 : vector<128x1xf32>
    %31 = math.sin %29 : vector<128x1xf32>
    %32 = vector.extract_strided_slice %27 {offsets = [0, 2], sizes = [128, 1], strides = [1, 1]} : vector<128x128xf32> to vector<128x1xf32>
    %33 = vector.extract_strided_slice %27 {offsets = [0, 3], sizes = [128, 1], strides = [1, 1]} : vector<128x128xf32> to vector<128x1xf32>
    %34 = vector.extract_strided_slice %27 {offsets = [0, 4], sizes = [128, 1], strides = [1, 1]} : vector<128x128xf32> to vector<128x1xf32>
    %35 = arith.mulf %30, %32 : vector<128x1xf32>
    %36 = arith.mulf %31, %33 : vector<128x1xf32>
    %37 = arith.subf %35, %36 : vector<128x1xf32>
    %38 = arith.mulf %31, %32 : vector<128x1xf32>
    %39 = arith.mulf %30, %33 : vector<128x1xf32>
    %40 = arith.addf %38, %39 : vector<128x1xf32>
    %41 = tpu.concatenate %37, %40, %34 in 1 : vector<128x1xf32>, vector<128x1xf32>, vector<128x1xf32> -> vector<128x3xf32>
    %42 = arith.addf %28, %41 : vector<128x3xf32>
    %cst_24 = arith.constant 6.28318548 : f32
    %43 = vector.broadcast %cst_24 : f32 to vector<128x1xf32>
    %44 = arith.remf %29, %43 : vector<128x1xf32>
    %cst_25 = arith.constant 0.000000e+00 : f32
    %45 = vector.broadcast %cst_25 : f32 to vector<128x1xf32>
    %46 = arith.cmpf one, %44, %45 : vector<128x1xf32>
    %cst_26 = arith.constant 0.000000e+00 : f32
    %47 = vector.broadcast %cst_26 : f32 to vector<128x1xf32>
    %48 = arith.cmpf olt, %44, %47 : vector<128x1xf32>
    %cst_27 = arith.constant 0.000000e+00 : f32
    %49 = arith.cmpf olt, %cst_24, %cst_27 : f32
    %50 = vector.broadcast %49 : i1 to vector<128x1xi1>
    %51 = vector.broadcast %50 : vector<128x1xi1> to vector<128x1xi1>
    %52 = arith.xori %48, %51 : vector<128x1xi1>
    %53 = arith.andi %52, %46 : vector<128x1xi1>
    %54 = vector.broadcast %cst_24 : f32 to vector<128x1xf32>
    %55 = arith.addf %44, %54 : vector<128x1xf32>
    %56 = arith.select %53, %55, %44 : vector<128x1xi1>, vector<128x1xf32>
    %cst_28 = arith.constant 0.261799395 : f32
    %57 = vector.broadcast %cst_28 : f32 to vector<128x1xf32>
    %58 = arith.addf %56, %57 : vector<128x1xf32>
    %cst_29 = arith.constant 6.28318548 : f32
    %59 = vector.broadcast %cst_29 : f32 to vector<128x1xf32>
    %60 = arith.remf %58, %59 : vector<128x1xf32>
    %cst_30 = arith.constant 0.000000e+00 : f32
    %61 = vector.broadcast %cst_30 : f32 to vector<128x1xf32>
    %62 = arith.cmpf one, %60, %61 : vector<128x1xf32>
    %cst_31 = arith.constant 0.000000e+00 : f32
    %63 = vector.broadcast %cst_31 : f32 to vector<128x1xf32>
    %64 = arith.cmpf olt, %60, %63 : vector<128x1xf32>
    %cst_32 = arith.constant 0.000000e+00 : f32
    %65 = arith.cmpf olt, %cst_29, %cst_32 : f32
    %66 = vector.broadcast %65 : i1 to vector<128x1xi1>
    %67 = vector.broadcast %66 : vector<128x1xi1> to vector<128x1xi1>
    %68 = arith.xori %64, %67 : vector<128x1xi1>
    %69 = arith.andi %68, %62 : vector<128x1xi1>
    %70 = vector.broadcast %cst_29 : f32 to vector<128x1xf32>
    %71 = arith.addf %60, %70 : vector<128x1xf32>
    %72 = arith.select %69, %71, %60 : vector<128x1xi1>, vector<128x1xf32>
    %cst_33 = arith.constant 0.52359879 : f32
    %73 = vector.broadcast %cst_33 : f32 to vector<128x1xf32>
    %74 = arith.divf %72, %73 : vector<128x1xf32>
    %75 = math.floor %74 : vector<128x1xf32>
    %cst_34 = arith.constant 0.000000e+00 : f32
    %cst_35 = arith.constant 1.100000e+01 : f32
    %76 = vector.broadcast %cst_34 : f32 to vector<128x1xf32>
    %77 = arith.maximumf %76, %75 : vector<128x1xf32>
    %78 = vector.broadcast %cst_35 : f32 to vector<128x1xf32>
    %79 = arith.minimumf %78, %77 : vector<128x1xf32>
    %80 = arith.fptosi %79 : vector<128x1xf32> to vector<128x1xi32>
    %81 = tpu.iota {dimensions = array<i32: 1>} : vector<128x12xi32>
    %82 = vector.broadcast %80 : vector<128x1xi32> to vector<128x12xi32>
    %83 = arith.subi %81, %82 : vector<128x12xi32>
    %c0_i32 = arith.constant 0 : i32
    %84 = vector.broadcast %c0_i32 : i32 to vector<128x12xi32>
    %85 = arith.cmpi slt, %83, %84 : vector<128x12xi32>
    %c12_i32 = arith.constant 12 : i32
    %86 = vector.broadcast %c12_i32 : i32 to vector<128x12xi32>
    %87 = arith.addi %83, %86 : vector<128x12xi32>
    %88 = arith.select %85, %87, %83 : vector<128x12xi1>, vector<128x12xi32>
    %89 = vector.extract_strided_slice %27 {offsets = [0, 5], sizes = [128, 12], strides = [1, 1]} : vector<128x128xf32> to vector<128x12xf32>
    %90 = vector.extract_strided_slice %27 {offsets = [0, 17], sizes = [128, 12], strides = [1, 1]} : vector<128x128xf32> to vector<128x12xf32>
    %cst_36 = arith.constant 0.000000e+00 : f32
    %91 = vector.broadcast %cst_36 : f32 to vector<128x12xf32>
    %cst_37 = arith.constant 0.000000e+00 : f32
    %92 = vector.broadcast %cst_37 : f32 to vector<128x12xf32>
    %c0_i32_38 = arith.constant 0 : i32
    %93 = vector.broadcast %c0_i32_38 : i32 to vector<128x12xi32>
    %94 = arith.cmpi eq, %88, %93 : vector<128x12xi32>
    %95 = vector.extract_strided_slice %89 {offsets = [0, 0], sizes = [128, 1], strides = [1, 1]} : vector<128x12xf32> to vector<128x1xf32>
    %cst_39 = arith.constant 0.000000e+00 : f32
    %96 = vector.shape_cast %95 : vector<128x1xf32> to vector<128x1xf32>
    %97 = vector.broadcast %96 : vector<128x1xf32> to vector<128x12xf32>
    %98 = vector.broadcast %cst_39 : f32 to vector<128x12xf32>
    %99 = arith.select %94, %97, %98 : vector<128x12xi1>, vector<128x12xf32>
    %100 = arith.addf %91, %99 : vector<128x12xf32>
    %101 = vector.extract_strided_slice %90 {offsets = [0, 0], sizes = [128, 1], strides = [1, 1]} : vector<128x12xf32> to vector<128x1xf32>
    %cst_40 = arith.constant 0.000000e+00 : f32
    %102 = vector.shape_cast %101 : vector<128x1xf32> to vector<128x1xf32>
    %103 = vector.broadcast %102 : vector<128x1xf32> to vector<128x12xf32>
    %104 = vector.broadcast %cst_40 : f32 to vector<128x12xf32>
    %105 = arith.select %94, %103, %104 : vector<128x12xi1>, vector<128x12xf32>
    %106 = arith.addf %92, %105 : vector<128x12xf32>
    %c1_i32 = arith.constant 1 : i32
    %107 = vector.broadcast %c1_i32 : i32 to vector<128x12xi32>
    %108 = arith.cmpi eq, %88, %107 : vector<128x12xi32>
    %109 = vector.extract_strided_slice %89 {offsets = [0, 1], sizes = [128, 1], strides = [1, 1]} : vector<128x12xf32> to vector<128x1xf32>
    %cst_41 = arith.constant 0.000000e+00 : f32
    %110 = vector.shape_cast %109 : vector<128x1xf32> to vector<128x1xf32>
    %111 = vector.broadcast %110 : vector<128x1xf32> to vector<128x12xf32>
    %112 = vector.broadcast %cst_41 : f32 to vector<128x12xf32>
    %113 = arith.select %108, %111, %112 : vector<128x12xi1>, vector<128x12xf32>
    %114 = arith.addf %100, %113 : vector<128x12xf32>
    %115 = vector.extract_strided_slice %90 {offsets = [0, 1], sizes = [128, 1], strides = [1, 1]} : vector<128x12xf32> to vector<128x1xf32>
    %cst_42 = arith.constant 0.000000e+00 : f32
    %116 = vector.shape_cast %115 : vector<128x1xf32> to vector<128x1xf32>
    %117 = vector.broadcast %116 : vector<128x1xf32> to vector<128x12xf32>
    %118 = vector.broadcast %cst_42 : f32 to vector<128x12xf32>
    %119 = arith.select %108, %117, %118 : vector<128x12xi1>, vector<128x12xf32>
    %120 = arith.addf %106, %119 : vector<128x12xf32>
    %c2_i32 = arith.constant 2 : i32
    %121 = vector.broadcast %c2_i32 : i32 to vector<128x12xi32>
    %122 = arith.cmpi eq, %88, %121 : vector<128x12xi32>
    %123 = vector.extract_strided_slice %89 {offsets = [0, 2], sizes = [128, 1], strides = [1, 1]} : vector<128x12xf32> to vector<128x1xf32>
    %cst_43 = arith.constant 0.000000e+00 : f32
    %124 = vector.shape_cast %123 : vector<128x1xf32> to vector<128x1xf32>
    %125 = vector.broadcast %124 : vector<128x1xf32> to vector<128x12xf32>
    %126 = vector.broadcast %cst_43 : f32 to vector<128x12xf32>
    %127 = arith.select %122, %125, %126 : vector<128x12xi1>, vector<128x12xf32>
    %128 = arith.addf %114, %127 : vector<128x12xf32>
    %129 = vector.extract_strided_slice %90 {offsets = [0, 2], sizes = [128, 1], strides = [1, 1]} : vector<128x12xf32> to vector<128x1xf32>
    %cst_44 = arith.constant 0.000000e+00 : f32
    %130 = vector.shape_cast %129 : vector<128x1xf32> to vector<128x1xf32>
    %131 = vector.broadcast %130 : vector<128x1xf32> to vector<128x12xf32>
    %132 = vector.broadcast %cst_44 : f32 to vector<128x12xf32>
    %133 = arith.select %122, %131, %132 : vector<128x12xi1>, vector<128x12xf32>
    %134 = arith.addf %120, %133 : vector<128x12xf32>
    %c3_i32 = arith.constant 3 : i32
    %135 = vector.broadcast %c3_i32 : i32 to vector<128x12xi32>
    %136 = arith.cmpi eq, %88, %135 : vector<128x12xi32>
    %137 = vector.extract_strided_slice %89 {offsets = [0, 3], sizes = [128, 1], strides = [1, 1]} : vector<128x12xf32> to vector<128x1xf32>
    %cst_45 = arith.constant 0.000000e+00 : f32
    %138 = vector.shape_cast %137 : vector<128x1xf32> to vector<128x1xf32>
    %139 = vector.broadcast %138 : vector<128x1xf32> to vector<128x12xf32>
    %140 = vector.broadcast %cst_45 : f32 to vector<128x12xf32>
    %141 = arith.select %136, %139, %140 : vector<128x12xi1>, vector<128x12xf32>
    %142 = arith.addf %128, %141 : vector<128x12xf32>
    %143 = vector.extract_strided_slice %90 {offsets = [0, 3], sizes = [128, 1], strides = [1, 1]} : vector<128x12xf32> to vector<128x1xf32>
    %cst_46 = arith.constant 0.000000e+00 : f32
    %144 = vector.shape_cast %143 : vector<128x1xf32> to vector<128x1xf32>
    %145 = vector.broadcast %144 : vector<128x1xf32> to vector<128x12xf32>
    %146 = vector.broadcast %cst_46 : f32 to vector<128x12xf32>
    %147 = arith.select %136, %145, %146 : vector<128x12xi1>, vector<128x12xf32>
    %148 = arith.addf %134, %147 : vector<128x12xf32>
    %c4_i32 = arith.constant 4 : i32
    %149 = vector.broadcast %c4_i32 : i32 to vector<128x12xi32>
    %150 = arith.cmpi eq, %88, %149 : vector<128x12xi32>
    %151 = vector.extract_strided_slice %89 {offsets = [0, 4], sizes = [128, 1], strides = [1, 1]} : vector<128x12xf32> to vector<128x1xf32>
    %cst_47 = arith.constant 0.000000e+00 : f32
    %152 = vector.shape_cast %151 : vector<128x1xf32> to vector<128x1xf32>
    %153 = vector.broadcast %152 : vector<128x1xf32> to vector<128x12xf32>
    %154 = vector.broadcast %cst_47 : f32 to vector<128x12xf32>
    %155 = arith.select %150, %153, %154 : vector<128x12xi1>, vector<128x12xf32>
    %156 = arith.addf %142, %155 : vector<128x12xf32>
    %157 = vector.extract_strided_slice %90 {offsets = [0, 4], sizes = [128, 1], strides = [1, 1]} : vector<128x12xf32> to vector<128x1xf32>
    %cst_48 = arith.constant 0.000000e+00 : f32
    %158 = vector.shape_cast %157 : vector<128x1xf32> to vector<128x1xf32>
    %159 = vector.broadcast %158 : vector<128x1xf32> to vector<128x12xf32>
    %160 = vector.broadcast %cst_48 : f32 to vector<128x12xf32>
    %161 = arith.select %150, %159, %160 : vector<128x12xi1>, vector<128x12xf32>
    %162 = arith.addf %148, %161 : vector<128x12xf32>
    %c5_i32 = arith.constant 5 : i32
    %163 = vector.broadcast %c5_i32 : i32 to vector<128x12xi32>
    %164 = arith.cmpi eq, %88, %163 : vector<128x12xi32>
    %165 = vector.extract_strided_slice %89 {offsets = [0, 5], sizes = [128, 1], strides = [1, 1]} : vector<128x12xf32> to vector<128x1xf32>
    %cst_49 = arith.constant 0.000000e+00 : f32
    %166 = vector.shape_cast %165 : vector<128x1xf32> to vector<128x1xf32>
    %167 = vector.broadcast %166 : vector<128x1xf32> to vector<128x12xf32>
    %168 = vector.broadcast %cst_49 : f32 to vector<128x12xf32>
    %169 = arith.select %164, %167, %168 : vector<128x12xi1>, vector<128x12xf32>
    %170 = arith.addf %156, %169 : vector<128x12xf32>
    %171 = vector.extract_strided_slice %90 {offsets = [0, 5], sizes = [128, 1], strides = [1, 1]} : vector<128x12xf32> to vector<128x1xf32>
    %cst_50 = arith.constant 0.000000e+00 : f32
    %172 = vector.shape_cast %171 : vector<128x1xf32> to vector<128x1xf32>
    %173 = vector.broadcast %172 : vector<128x1xf32> to vector<128x12xf32>
    %174 = vector.broadcast %cst_50 : f32 to vector<128x12xf32>
    %175 = arith.select %164, %173, %174 : vector<128x12xi1>, vector<128x12xf32>
    %176 = arith.addf %162, %175 : vector<128x12xf32>
    %c6_i32 = arith.constant 6 : i32
    %177 = vector.broadcast %c6_i32 : i32 to vector<128x12xi32>
    %178 = arith.cmpi eq, %88, %177 : vector<128x12xi32>
    %179 = vector.extract_strided_slice %89 {offsets = [0, 6], sizes = [128, 1], strides = [1, 1]} : vector<128x12xf32> to vector<128x1xf32>
    %cst_51 = arith.constant 0.000000e+00 : f32
    %180 = vector.shape_cast %179 : vector<128x1xf32> to vector<128x1xf32>
    %181 = vector.broadcast %180 : vector<128x1xf32> to vector<128x12xf32>
    %182 = vector.broadcast %cst_51 : f32 to vector<128x12xf32>
    %183 = arith.select %178, %181, %182 : vector<128x12xi1>, vector<128x12xf32>
    %184 = arith.addf %170, %183 : vector<128x12xf32>
    %185 = vector.extract_strided_slice %90 {offsets = [0, 6], sizes = [128, 1], strides = [1, 1]} : vector<128x12xf32> to vector<128x1xf32>
    %cst_52 = arith.constant 0.000000e+00 : f32
    %186 = vector.shape_cast %185 : vector<128x1xf32> to vector<128x1xf32>
    %187 = vector.broadcast %186 : vector<128x1xf32> to vector<128x12xf32>
    %188 = vector.broadcast %cst_52 : f32 to vector<128x12xf32>
    %189 = arith.select %178, %187, %188 : vector<128x12xi1>, vector<128x12xf32>
    %190 = arith.addf %176, %189 : vector<128x12xf32>
    %c7_i32 = arith.constant 7 : i32
    %191 = vector.broadcast %c7_i32 : i32 to vector<128x12xi32>
    %192 = arith.cmpi eq, %88, %191 : vector<128x12xi32>
    %193 = vector.extract_strided_slice %89 {offsets = [0, 7], sizes = [128, 1], strides = [1, 1]} : vector<128x12xf32> to vector<128x1xf32>
    %cst_53 = arith.constant 0.000000e+00 : f32
    %194 = vector.shape_cast %193 : vector<128x1xf32> to vector<128x1xf32>
    %195 = vector.broadcast %194 : vector<128x1xf32> to vector<128x12xf32>
    %196 = vector.broadcast %cst_53 : f32 to vector<128x12xf32>
    %197 = arith.select %192, %195, %196 : vector<128x12xi1>, vector<128x12xf32>
    %198 = arith.addf %184, %197 : vector<128x12xf32>
    %199 = vector.extract_strided_slice %90 {offsets = [0, 7], sizes = [128, 1], strides = [1, 1]} : vector<128x12xf32> to vector<128x1xf32>
    %cst_54 = arith.constant 0.000000e+00 : f32
    %200 = vector.shape_cast %199 : vector<128x1xf32> to vector<128x1xf32>
    %201 = vector.broadcast %200 : vector<128x1xf32> to vector<128x12xf32>
    %202 = vector.broadcast %cst_54 : f32 to vector<128x12xf32>
    %203 = arith.select %192, %201, %202 : vector<128x12xi1>, vector<128x12xf32>
    %204 = arith.addf %190, %203 : vector<128x12xf32>
    %c8_i32 = arith.constant 8 : i32
    %205 = vector.broadcast %c8_i32 : i32 to vector<128x12xi32>
    %206 = arith.cmpi eq, %88, %205 : vector<128x12xi32>
    %207 = vector.extract_strided_slice %89 {offsets = [0, 8], sizes = [128, 1], strides = [1, 1]} : vector<128x12xf32> to vector<128x1xf32>
    %cst_55 = arith.constant 0.000000e+00 : f32
    %208 = vector.shape_cast %207 : vector<128x1xf32> to vector<128x1xf32>
    %209 = vector.broadcast %208 : vector<128x1xf32> to vector<128x12xf32>
    %210 = vector.broadcast %cst_55 : f32 to vector<128x12xf32>
    %211 = arith.select %206, %209, %210 : vector<128x12xi1>, vector<128x12xf32>
    %212 = arith.addf %198, %211 : vector<128x12xf32>
    %213 = vector.extract_strided_slice %90 {offsets = [0, 8], sizes = [128, 1], strides = [1, 1]} : vector<128x12xf32> to vector<128x1xf32>
    %cst_56 = arith.constant 0.000000e+00 : f32
    %214 = vector.shape_cast %213 : vector<128x1xf32> to vector<128x1xf32>
    %215 = vector.broadcast %214 : vector<128x1xf32> to vector<128x12xf32>
    %216 = vector.broadcast %cst_56 : f32 to vector<128x12xf32>
    %217 = arith.select %206, %215, %216 : vector<128x12xi1>, vector<128x12xf32>
    %218 = arith.addf %204, %217 : vector<128x12xf32>
    %c9_i32 = arith.constant 9 : i32
    %219 = vector.broadcast %c9_i32 : i32 to vector<128x12xi32>
    %220 = arith.cmpi eq, %88, %219 : vector<128x12xi32>
    %221 = vector.extract_strided_slice %89 {offsets = [0, 9], sizes = [128, 1], strides = [1, 1]} : vector<128x12xf32> to vector<128x1xf32>
    %cst_57 = arith.constant 0.000000e+00 : f32
    %222 = vector.shape_cast %221 : vector<128x1xf32> to vector<128x1xf32>
    %223 = vector.broadcast %222 : vector<128x1xf32> to vector<128x12xf32>
    %224 = vector.broadcast %cst_57 : f32 to vector<128x12xf32>
    %225 = arith.select %220, %223, %224 : vector<128x12xi1>, vector<128x12xf32>
    %226 = arith.addf %212, %225 : vector<128x12xf32>
    %227 = vector.extract_strided_slice %90 {offsets = [0, 9], sizes = [128, 1], strides = [1, 1]} : vector<128x12xf32> to vector<128x1xf32>
    %cst_58 = arith.constant 0.000000e+00 : f32
    %228 = vector.shape_cast %227 : vector<128x1xf32> to vector<128x1xf32>
    %229 = vector.broadcast %228 : vector<128x1xf32> to vector<128x12xf32>
    %230 = vector.broadcast %cst_58 : f32 to vector<128x12xf32>
    %231 = arith.select %220, %229, %230 : vector<128x12xi1>, vector<128x12xf32>
    %232 = arith.addf %218, %231 : vector<128x12xf32>
    %c10_i32 = arith.constant 10 : i32
    %233 = vector.broadcast %c10_i32 : i32 to vector<128x12xi32>
    %234 = arith.cmpi eq, %88, %233 : vector<128x12xi32>
    %235 = vector.extract_strided_slice %89 {offsets = [0, 10], sizes = [128, 1], strides = [1, 1]} : vector<128x12xf32> to vector<128x1xf32>
    %cst_59 = arith.constant 0.000000e+00 : f32
    %236 = vector.shape_cast %235 : vector<128x1xf32> to vector<128x1xf32>
    %237 = vector.broadcast %236 : vector<128x1xf32> to vector<128x12xf32>
    %238 = vector.broadcast %cst_59 : f32 to vector<128x12xf32>
    %239 = arith.select %234, %237, %238 : vector<128x12xi1>, vector<128x12xf32>
    %240 = arith.addf %226, %239 : vector<128x12xf32>
    %241 = vector.extract_strided_slice %90 {offsets = [0, 10], sizes = [128, 1], strides = [1, 1]} : vector<128x12xf32> to vector<128x1xf32>
    %cst_60 = arith.constant 0.000000e+00 : f32
    %242 = vector.shape_cast %241 : vector<128x1xf32> to vector<128x1xf32>
    %243 = vector.broadcast %242 : vector<128x1xf32> to vector<128x12xf32>
    %244 = vector.broadcast %cst_60 : f32 to vector<128x12xf32>
    %245 = arith.select %234, %243, %244 : vector<128x12xi1>, vector<128x12xf32>
    %246 = arith.addf %232, %245 : vector<128x12xf32>
    %c11_i32 = arith.constant 11 : i32
    %247 = vector.broadcast %c11_i32 : i32 to vector<128x12xi32>
    %248 = arith.cmpi eq, %88, %247 : vector<128x12xi32>
    %249 = vector.extract_strided_slice %89 {offsets = [0, 11], sizes = [128, 1], strides = [1, 1]} : vector<128x12xf32> to vector<128x1xf32>
    %cst_61 = arith.constant 0.000000e+00 : f32
    %250 = vector.shape_cast %249 : vector<128x1xf32> to vector<128x1xf32>
    %251 = vector.broadcast %250 : vector<128x1xf32> to vector<128x12xf32>
    %252 = vector.broadcast %cst_61 : f32 to vector<128x12xf32>
    %253 = arith.select %248, %251, %252 : vector<128x12xi1>, vector<128x12xf32>
    %254 = arith.addf %240, %253 : vector<128x12xf32>
    %255 = vector.extract_strided_slice %90 {offsets = [0, 11], sizes = [128, 1], strides = [1, 1]} : vector<128x12xf32> to vector<128x1xf32>
    %cst_62 = arith.constant 0.000000e+00 : f32
    %256 = vector.shape_cast %255 : vector<128x1xf32> to vector<128x1xf32>
    %257 = vector.broadcast %256 : vector<128x1xf32> to vector<128x12xf32>
    %258 = vector.broadcast %cst_62 : f32 to vector<128x12xf32>
    %259 = arith.select %248, %257, %258 : vector<128x12xi1>, vector<128x12xf32>
    %260 = arith.addf %246, %259 : vector<128x12xf32>
    %c0_63 = arith.constant 0 : index
    %c0_64 = arith.constant 0 : index
    %261 = vector.load %arg11[%c0_63, %c0_64] : memref<128x128xf32, #tpu.memory_space<vmem>>, vector<128x128xf32>
    tpu.vector_store %arg11[%c0_63, %c0_64], %27 {strides = array<i32>} : memref<128x128xf32, #tpu.memory_space<vmem>>, vector<128x128xf32>,
    %c0_65 = arith.constant 0 : index
    %c2 = arith.constant 2 : index
    %262 = vector.load %arg11[%c0_65, %c2] : memref<128x128xf32, #tpu.memory_space<vmem>>, vector<128x3xf32>
    tpu.vector_store %arg11[%c0_65, %c2], %42 {strides = array<i32>} : memref<128x128xf32, #tpu.memory_space<vmem>>, vector<128x3xf32>,
    %c0_66 = arith.constant 0 : index
    %c5 = arith.constant 5 : index
    %263 = vector.load %arg11[%c0_66, %c5] : memref<128x128xf32, #tpu.memory_space<vmem>>, vector<128x12xf32>
    tpu.vector_store %arg11[%c0_66, %c5], %254 {strides = array<i32>} : memref<128x128xf32, #tpu.memory_space<vmem>>, vector<128x12xf32>,
    %c0_67 = arith.constant 0 : index
    %c17 = arith.constant 17 : index
    %264 = vector.load %arg11[%c0_67, %c17] : memref<128x128xf32, #tpu.memory_space<vmem>>, vector<128x12xf32>
    tpu.vector_store %arg11[%c0_67, %c17], %260 {strides = array<i32>} : memref<128x128xf32, #tpu.memory_space<vmem>>, vector<128x12xf32>,
    return
  }
  func.func @transform_0(%arg0: i32) -> (i32, i32) {
    %c0_i32 = arith.constant 0 : i32
    %c0_i32_0 = arith.constant 0 : i32
    return %arg0, %c0_i32 : i32, i32
  }
  func.func @transform_1(%arg0: i32) -> (i32, i32) {
    %c0_i32 = arith.constant 0 : i32
    %c0_i32_0 = arith.constant 0 : i32
    return %arg0, %c0_i32 : i32, i32
  }
  func.func @transform_2(%arg0: i32) -> (i32, i32) {
    %c0_i32 = arith.constant 0 : i32
    %c0_i32_0 = arith.constant 0 : i32
    %c0_i32_1 = arith.constant 0 : i32
    return %c0_i32, %c0_i32_0 : i32, i32
  }
  func.func @transform_3(%arg0: i32) -> (i32, i32) {
    %c0_i32 = arith.constant 0 : i32
    %c0_i32_0 = arith.constant 0 : i32
    %c0_i32_1 = arith.constant 0 : i32
    return %c0_i32, %c0_i32_0 : i32, i32
  }
  func.func @transform_4(%arg0: i32) -> (i32, i32) {
    %c0_i32 = arith.constant 0 : i32
    %c0_i32_0 = arith.constant 0 : i32
    %c0_i32_1 = arith.constant 0 : i32
    return %c0_i32, %c0_i32_0 : i32, i32
  }
  func.func @transform_5(%arg0: i32) -> (i32, i32) {
    %c0_i32 = arith.constant 0 : i32
    %c0_i32_0 = arith.constant 0 : i32
    %c0_i32_1 = arith.constant 0 : i32
    return %c0_i32, %c0_i32_0 : i32, i32
  }
  func.func @transform_6(%arg0: i32) -> (i32, i32) {
    %c0_i32 = arith.constant 0 : i32
    %c0_i32_0 = arith.constant 0 : i32
    %c0_i32_1 = arith.constant 0 : i32
    return %c0_i32, %c0_i32_0 : i32, i32
  }
  func.func @transform_7(%arg0: i32) -> (i32, i32) {
    %c0_i32 = arith.constant 0 : i32
    %c0_i32_0 = arith.constant 0 : i32
    %c0_i32_1 = arith.constant 0 : i32
    return %c0_i32, %c0_i32_0 : i32, i32
  }
  func.func @transform_8(%arg0: i32) -> (i32, i32) {
    %c0_i32 = arith.constant 0 : i32
    %c0_i32_0 = arith.constant 0 : i32
    %c0_i32_1 = arith.constant 0 : i32
    return %c0_i32, %c0_i32_0 : i32, i32
  }
  func.func @transform_9(%arg0: i32) -> (i32, i32) {
    %c0_i32 = arith.constant 0 : i32
    %c0_i32_0 = arith.constant 0 : i32
    %c0_i32_1 = arith.constant 0 : i32
    return %c0_i32, %c0_i32_0 : i32, i32
  }
  func.func @transform_10(%arg0: i32) -> (i32, i32) {
    %c0_i32 = arith.constant 0 : i32
    %c0_i32_0 = arith.constant 0 : i32
    return %arg0, %c0_i32 : i32, i32
  }
}

</mosaic_0001>

<llo_original>
// kernel: tpu_custom_call.1
$region0: #{tpu_custom_call.1}
  #allocation0 [shape = 'u32[]', space=smem, size = 0x4, offset = 0x4, fixed_abs, tag = 'smem constant byte address 0x4 - core index']
  #allocation1 [shape = 'u32[144,128]{1,0:T(1,128)}', space=vmem, size = 0x12000, scoped, tag = 'internal scratch']
  %s0 = inlined_call_operand.vmem [shape: bf16[128,128], index: 0, kind: input, shape index: {}]
  %s1 = inlined_call_operand.vmem [shape: f32[128,4], index: 1, kind: input, shape index: {}]
  %s2 = inlined_call_operand.vmem [shape: bf16[128,128], index: 2, kind: input, shape index: {}]
  %s3 = inlined_call_operand.vmem [shape: f32[1,128], index: 3, kind: input, shape index: {}]
  %s4 = inlined_call_operand.vmem [shape: f32[1,128], index: 4, kind: input, shape index: {}]
  %s5 = inlined_call_operand.hbm [shape: bf16[128,128], index: 5, kind: input, shape index: {}]
  %s6 = inlined_call_operand.vmem [shape: f32[1,128], index: 6, kind: input, shape index: {}]
  %s7 = inlined_call_operand.vmem [shape: f32[1,128], index: 7, kind: input, shape index: {}]
  %s8 = inlined_call_operand.hbm [shape: bf16[128,128], index: 8, kind: input, shape index: {}]
  %s9 = inlined_call_operand.vmem [shape: f32[1,128], index: 9, kind: input, shape index: {}]
  %s10 = inlined_call_operand.hbm [shape: f32[128,128], index: 10, kind: output, shape index: {}]
  %s11 = sld [smem:[#allocation0]]
  $region58: #{tpu_custom_call.1} parent=0
    _
  %s13 = ssub.s32 1, %s11
  %s14 = scalar_select 0, %s13, %s11
  $region1: #{tpu_custom_call.1} parent=0
    #allocation2 [shape = 'u8[32768]{0}', space=vmem, size = 0x8000, scoped, tag = 'input window, operand 5, single buffered']
    #allocation3 [shape = 's32[1]{0}', space=sflag, size = 0x4, scoped, tag = 'scoped memory for tpu_custom_call.1']
    #allocation4 [shape = 's32[1]{0}', space=sflag, size = 0x4, scoped, tag = 'scoped memory for tpu_custom_call.1']
    #allocation5 [shape = 'u8[32768]{0}', space=vmem, size = 0x8000, scoped, tag = 'input window, operand 8, single buffered']
    #allocation6 [shape = 's32[1]{0}', space=sflag, size = 0x4, scoped, tag = 'scoped memory for tpu_custom_call.1']
    #allocation7 [shape = 'u8[65536]{0}', space=vmem, size = 0x10000, scoped, tag = 'output window, operand 0, single buffered']
    %15 = vsyncpa [#allocation3], 0
    %16 = vsyncpa [#allocation6], 0
    %17 = vsyncpa [#allocation4], 0
    // Predicated region
    $region2: #{tpu_custom_call.1} parent=1 // pred_check
      _
    $region3: #{tpu_custom_call.1} parent=1 // pred_check_branch
      %19 = sbr.rel (0) target = $region5
    $region4: #{tpu_custom_call.1} parent=1 // pred_region
      _
    $region5: #{tpu_custom_call.1} parent=1 // pred_fallthru
      _
    // Predicated region
    $region6: #{tpu_custom_call.1} parent=1 // pred_check
      _
    $region7: #{tpu_custom_call.1} parent=1 // pred_check_branch
      %21 = sbr.rel (0) target = $region9
    $region8: #{tpu_custom_call.1} parent=1 // pred_region
      _
    $region9: #{tpu_custom_call.1} parent=1 // pred_fallthru
      _
    // Predicated region
    $region10: #{tpu_custom_call.1} parent=1 // pred_check
      _
    $region11: #{tpu_custom_call.1} parent=1 // pred_check_branch
      %23 = sbr.rel (0) target = $region13
    $region12: #{tpu_custom_call.1} parent=1 // pred_region
      _
    $region13: #{tpu_custom_call.1} parent=1 // pred_fallthru
      _
    // Predicated region
    $region14: #{tpu_custom_call.1} parent=1 // pred_check
      _
    $region15: #{tpu_custom_call.1} parent=1 // pred_check_branch
      %25 = sbr.rel (0) target = $region17
    $region16: #{tpu_custom_call.1} parent=1 // pred_region
      _
    $region17: #{tpu_custom_call.1} parent=1 // pred_fallthru
      _
    // Predicated region
    $region18: #{tpu_custom_call.1} parent=1 // pred_check
      _
    $region19: #{tpu_custom_call.1} parent=1 // pred_check_branch
      %27 = sbr.rel (0) target = $region21
    $region20: #{tpu_custom_call.1} parent=1 // pred_region
      _
    $region21: #{tpu_custom_call.1} parent=1 // pred_fallthru
      _
    // Predicated region
    $region22: #{tpu_custom_call.1} parent=1 // pred_check
      _
    $region23: #{tpu_custom_call.1} parent=1 // pred_check_branch
      %29 = sbr.rel (0) target = $region25
    $region24: #{tpu_custom_call.1} parent=1 // pred_region
      %s31 = ssub.s32 1024, 1024
      %32 = vsyncadd [#allocation3], %s31
      %s33 = sshll.u32 [#allocation2], 4
      %s34 = int_to_ptr.vmem [resolvable:$true] %s33
      %39 = dma.hbm_to_vmem [thread:$0]  %s5, 1024, %s34, [#allocation3], 64, 64, 4
    $region25: #{tpu_custom_call.1} parent=1 // pred_fallthru
      _
    // Predicated region
    $region26: #{tpu_custom_call.1} parent=1 // pred_check
      _
    $region27: #{tpu_custom_call.1} parent=1 // pred_check_branch
      %41 = sbr.rel (0) target = $region29
    $region28: #{tpu_custom_call.1} parent=1 // pred_region
      _
    $region29: #{tpu_custom_call.1} parent=1 // pred_fallthru
      _
    // Predicated region
    $region30: #{tpu_custom_call.1} parent=1 // pred_check
      _
    $region31: #{tpu_custom_call.1} parent=1 // pred_check_branch
      %43 = sbr.rel (0) target = $region33
    $region32: #{tpu_custom_call.1} parent=1 // pred_region
      _
    $region33: #{tpu_custom_call.1} parent=1 // pred_fallthru
      _
    // Predicated region
    $region34: #{tpu_custom_call.1} parent=1 // pred_check
      _
    $region35: #{tpu_custom_call.1} parent=1 // pred_check_branch
      %45 = sbr.rel (0) target = $region37
    $region36: #{tpu_custom_call.1} parent=1 // pred_region
      %s47 = ssub.s32 1024, 1024
      %48 = vsyncadd [#allocation6], %s47
      %s49 = sshll.u32 [#allocation5], 4
      %s50 = int_to_ptr.vmem [resolvable:$true] %s49
      %55 = dma.hbm_to_vmem [thread:$0]  %s8, 1024, %s50, [#allocation6], 64, 64, 4
    $region37: #{tpu_custom_call.1} parent=1 // pred_fallthru
      _
    // Predicated region
    $region38: #{tpu_custom_call.1} parent=1 // pred_check
      _
    $region39: #{tpu_custom_call.1} parent=1 // pred_check_branch
      %57 = sbr.rel (0) target = $region41
    $region40: #{tpu_custom_call.1} parent=1 // pred_region
      _
    $region41: #{tpu_custom_call.1} parent=1 // pred_fallthru
      _
    // Predicated region
    $region42: #{tpu_custom_call.1} parent=1 // pred_check
      _
    $region43: #{tpu_custom_call.1} parent=1 // pred_check_branch
      %59 = sbr.rel (0) target = $region45
    $region44: #{tpu_custom_call.1} parent=1 // pred_region
      %60 = dma.done [#allocation3], 1024
    $region45: #{tpu_custom_call.1} parent=1 // pred_fallthru
      _
    // Predicated region
    $region46: #{tpu_custom_call.1} parent=1 // pred_check
      _
    $region47: #{tpu_custom_call.1} parent=1 // pred_check_branch
      %62 = sbr.rel (0) target = $region49
    $region48: #{tpu_custom_call.1} parent=1 // pred_region
      %63 = dma.done [#allocation6], 1024
    $region49: #{tpu_custom_call.1} parent=1 // pred_fallthru
      _
    %v65 = vld [vmem:[%s0] sm:$0xf]
    %v66 = vld [vmem:[%s0 + $0x4] sm:$0xf]
    %v67 = vld [vmem:[%s0 + $0x8] sm:$0xf]
    %v68 = vld [vmem:[%s0 + $0xc] sm:$0xf]
    %v69 = vld [vmem:[%s0 + $0x10] sm:$0xf]
    %v70 = vld [vmem:[%s0 + $0x14] sm:$0xf]
    %v71 = vld [vmem:[%s0 + $0x18] sm:$0xf]
    %v72 = vld [vmem:[%s0 + $0x1c] sm:$0xf]
    %v73 = vld [vmem:[%s0 + $0x20] sm:$0xf]
    %v74 = vld [vmem:[%s0 + $0x24] sm:$0xf]
    %v75 = vld [vmem:[%s0 + $0x28] sm:$0xf]
    %v76 = vld [vmem:[%s0 + $0x2c] sm:$0xf]
    %v77 = vld [vmem:[%s0 + $0x30] sm:$0xf]
    %v78 = vld [vmem:[%s0 + $0x34] sm:$0xf]
    %v79 = vld [vmem:[%s0 + $0x38] sm:$0xf]
    %v80 = vld [vmem:[%s0 + $0x3c] sm:$0xf]
    %v81 = vld [vmem:[%s2] sm:$0xf]
    %v82 = vld [vmem:[%s2 + $0x4] sm:$0xf]
    %v83 = vld [vmem:[%s2 + $0x8] sm:$0xf]
    %v84 = vld [vmem:[%s2 + $0xc] sm:$0xf]
    %v85 = vld [vmem:[%s2 + $0x10] sm:$0xf]
    %v86 = vld [vmem:[%s2 + $0x14] sm:$0xf]
    %v87 = vld [vmem:[%s2 + $0x18] sm:$0xf]
    %v88 = vld [vmem:[%s2 + $0x1c] sm:$0xf]
    %v89 = vld [vmem:[%s2 + $0x20] sm:$0xf]
    %v90 = vld [vmem:[%s2 + $0x24] sm:$0xf]
    %v91 = vld [vmem:[%s2 + $0x28] sm:$0xf]
    %v92 = vld [vmem:[%s2 + $0x2c] sm:$0xf]
    %v93 = vld [vmem:[%s2 + $0x30] sm:$0xf]
    %v94 = vld [vmem:[%s2 + $0x34] sm:$0xf]
    %v95 = vld [vmem:[%s2 + $0x38] sm:$0xf]
    %v96 = vld [vmem:[%s2 + $0x3c] sm:$0xf]
    %v113 = vunpack.c.l.b16 %v65
    %v114 = vunpack.c.l.b16 %v66
    %v115 = vunpack.c.l.b16 %v67
    %v116 = vunpack.c.l.b16 %v68
    %v117 = vunpack.c.l.b16 %v69
    %v118 = vunpack.c.l.b16 %v70
    %v119 = vunpack.c.l.b16 %v71
    %v120 = vunpack.c.l.b16 %v72
    %v121 = vunpack.c.l.b16 %v73
    %v122 = vunpack.c.l.b16 %v74
    %v123 = vunpack.c.l.b16 %v75
    %v124 = vunpack.c.l.b16 %v76
    %v125 = vunpack.c.l.b16 %v77
    %v126 = vunpack.c.l.b16 %v78
    %v127 = vunpack.c.l.b16 %v79
    %v128 = vunpack.c.l.b16 %v80
    %v129 = vpack.c.b16 %v114, %v113
    %v130 = vpack.c.b16 %v116, %v115
    %v131 = vpack.c.b16 %v118, %v117
    %v132 = vpack.c.b16 %v120, %v119
    %v133 = vpack.c.b16 %v122, %v121
    %v134 = vpack.c.b16 %v124, %v123
    %v135 = vpack.c.b16 %v126, %v125
    %v136 = vpack.c.b16 %v128, %v127
    %v161 = vunpack.c.l.b16 %v81
    %v162 = vunpack.c.l.b16 %v82
    %v163 = vunpack.c.l.b16 %v83
    %v164 = vunpack.c.l.b16 %v84
    %v165 = vunpack.c.l.b16 %v85
    %v166 = vunpack.c.l.b16 %v86
    %v167 = vunpack.c.l.b16 %v87
    %v168 = vunpack.c.l.b16 %v88
    %v169 = vunpack.c.l.b16 %v89
    %v170 = vunpack.c.l.b16 %v90
    %v171 = vunpack.c.l.b16 %v91
    %v172 = vunpack.c.l.b16 %v92
    %v173 = vunpack.c.l.b16 %v93
    %v174 = vunpack.c.l.b16 %v94
    %v175 = vunpack.c.l.b16 %v95
    %v176 = vunpack.c.l.b16 %v96
    %v177 = vpack.c.b16 %v162, %v161
    %v178 = vpack.c.b16 %v164, %v163
    %v179 = vpack.c.b16 %v166, %v165
    %v180 = vpack.c.b16 %v168, %v167
    %v181 = vpack.c.b16 %v170, %v169
    %v182 = vpack.c.b16 %v172, %v171
    %v183 = vpack.c.b16 %v174, %v173
    %v184 = vpack.c.b16 %v176, %v175
    %193 = vmatprep.subr.bf16.mxu0 0
    %194 = vmatpush1.bf16.msra.mxu0 %v184
    %195 = vmatprep.subr.bf16.mxu0 0
    %196 = vmatpush1.bf16.msra.mxu0 %v183
    %197 = vmatprep.subr.bf16.mxu0 0
    %198 = vmatpush1.bf16.msra.mxu0 %v182
    %199 = vmatprep.subr.bf16.mxu0 0
    %200 = vmatpush1.bf16.msra.mxu0 %v181
    %201 = vmatprep.subr.bf16.mxu0 0
    %202 = vmatpush1.bf16.msra.mxu0 %v180
    %203 = vmatprep.subr.bf16.mxu0 0
    %204 = vmatpush1.bf16.msra.mxu0 %v179
    %205 = vmatprep.subr.bf16.mxu0 0
    %206 = vmatpush1.bf16.msra.mxu0 %v178
    %207 = vmatprep.subr.bf16.mxu0 0
    %208 = vmatpush1.bf16.msra.mxu0 %v177
    %209 = vmatprep.subr.bf16.mxu0 0
    %210 = vmatpush2.bf16.msra.mxu0 0
    %211 = vmatprep.subr.bf16.mxu0 0
    %212 = vmatpush2.bf16.msra.mxu0 0
    %213 = vmatprep.subr.bf16.mxu0 0
    %214 = vmatpush2.bf16.msra.mxu0 0
    %215 = vmatprep.subr.bf16.mxu0 0
    %216 = vmatpush2.bf16.msra.mxu0 0
    %217 = vmatprep.subr.bf16.mxu0 0
    %218 = vmatpush2.bf16.msra.mxu0 0
    %219 = vmatprep.subr.bf16.mxu0 0
    %220 = vmatpush2.bf16.msra.mxu0 0
    %221 = vmatprep.subr.bf16.mxu0 0
    %222 = vmatpush2.bf16.msra.mxu0 0
    %223 = vmatprep.subr.bf16.mxu0 0
    %224 = vmatpush2.bf16.msra.mxu0 0
    %225 = vmatprep.mubr.bf16.mxu0 0
    %226 = vmatmul.mubr.bf16.gmra.mxu0 %v129
    %v227 = vpop.f32.mrf.mxu0
    %v228 = vadd.f32 0.0, %v227
    %v229 = vpop.f32.mrf.mxu0
    %v230 = vpop.f32.mrf.mxu0
    %v231 = vadd.f32 0.0, %v230
    %v232 = vpop.f32.mrf.mxu0
    %233 = vmatprep.mubr.bf16.mxu0 0
    %234 = vmatmul.mubr.bf16.gmra.mxu0 %v130
    %v235 = vpop.f32.mrf.mxu0
    %v236 = vadd.f32 0.0, %v235
    %v237 = vpop.f32.mrf.mxu0
    %v238 = vpop.f32.mrf.mxu0
    %v239 = vadd.f32 0.0, %v238
    %v240 = vpop.f32.mrf.mxu0
    %241 = vmatprep.mubr.bf16.mxu0 0
    %242 = vmatmul.mubr.bf16.gmra.mxu0 %v131
    %v243 = vpop.f32.mrf.mxu0
    %v244 = vadd.f32 0.0, %v243
    %v245 = vpop.f32.mrf.mxu0
    %v246 = vpop.f32.mrf.mxu0
    %v247 = vadd.f32 0.0, %v246
    %v248 = vpop.f32.mrf.mxu0
    %249 = vmatprep.mubr.bf16.mxu0 0
    %250 = vmatmul.mubr.bf16.gmra.mxu0 %v132
    %v251 = vpop.f32.mrf.mxu0
    %v252 = vadd.f32 0.0, %v251
    %v253 = vpop.f32.mrf.mxu0
    %v254 = vpop.f32.mrf.mxu0
    %v255 = vadd.f32 0.0, %v254
    %v256 = vpop.f32.mrf.mxu0
    %257 = vmatprep.mubr.bf16.mxu0 0
    %258 = vmatmul.mubr.bf16.gmra.mxu0 %v133
    %v259 = vpop.f32.mrf.mxu0
    %v260 = vadd.f32 0.0, %v259
    %v261 = vpop.f32.mrf.mxu0
    %v262 = vpop.f32.mrf.mxu0
    %v263 = vadd.f32 0.0, %v262
    %v264 = vpop.f32.mrf.mxu0
    %265 = vmatprep.mubr.bf16.mxu0 0
    %266 = vmatmul.mubr.bf16.gmra.mxu0 %v134
    %v267 = vpop.f32.mrf.mxu0
    %v268 = vadd.f32 0.0, %v267
    %v269 = vpop.f32.mrf.mxu0
    %v270 = vpop.f32.mrf.mxu0
    %v271 = vadd.f32 0.0, %v270
    %v272 = vpop.f32.mrf.mxu0
    %273 = vmatprep.mubr.bf16.mxu0 0
    %274 = vmatmul.mubr.bf16.gmra.mxu0 %v135
    %v275 = vpop.f32.mrf.mxu0
    %v276 = vadd.f32 0.0, %v275
    %v277 = vpop.f32.mrf.mxu0
    %v278 = vpop.f32.mrf.mxu0
    %v279 = vadd.f32 0.0, %v278
    %v280 = vpop.f32.mrf.mxu0
    %281 = vmatprep.mubr.bf16.mxu0 0
    %282 = vmatmul.mubr.bf16.gmra.mxu0 %v136
    %v283 = vpop.f32.mrf.mxu0
    %v284 = vadd.f32 0.0, %v283
    %v285 = vpop.f32.mrf.mxu0
    %v286 = vpop.f32.mrf.mxu0
    %v287 = vadd.f32 0.0, %v286
    %v288 = vpop.f32.mrf.mxu0
    %289 = vdwg.mxu0
    %v290 = vld [vmem:[%s3] sm:$0x1]
    %v292 = vlaneseq
    %v293 = vshrl.u32 %v292, 7
    %v294 = vsub.s32 0, %v293
    %v295 = vrot.slane %v290, %v294
    %v297 = vmul.f32 %v228, %v295
    %v298 = vmul.f32 %v231, %v295
    %v299 = vmul.f32 %v236, %v295
    %v300 = vmul.f32 %v239, %v295
    %v301 = vmul.f32 %v244, %v295
    %v302 = vmul.f32 %v247, %v295
    %v303 = vmul.f32 %v252, %v295
    %v304 = vmul.f32 %v255, %v295
    %v305 = vmul.f32 %v260, %v295
    %v306 = vmul.f32 %v263, %v295
    %v307 = vmul.f32 %v268, %v295
    %v308 = vmul.f32 %v271, %v295
    %v309 = vmul.f32 %v276, %v295
    %v310 = vmul.f32 %v279, %v295
    %v311 = vmul.f32 %v284, %v295
    %v312 = vmul.f32 %v287, %v295
    %v313 = vld [vmem:[%s4] sm:$0x1]
    %v315 = vlaneseq
    %v316 = vshrl.u32 %v315, 7
    %v317 = vsub.s32 0, %v316
    %v318 = vrot.slane %v313, %v317
    %v320 = vadd.f32 %v297, %v318
    %v321 = vadd.f32 %v298, %v318
    %v322 = vadd.f32 %v299, %v318
    %v323 = vadd.f32 %v300, %v318
    %v324 = vadd.f32 %v301, %v318
    %v325 = vadd.f32 %v302, %v318
    %v326 = vadd.f32 %v303, %v318
    %v327 = vadd.f32 %v304, %v318
    %v328 = vadd.f32 %v305, %v318
    %v329 = vadd.f32 %v306, %v318
    %v330 = vadd.f32 %v307, %v318
    %v331 = vadd.f32 %v308, %v318
    %v332 = vadd.f32 %v309, %v318
    %v333 = vadd.f32 %v310, %v318
    %v334 = vadd.f32 %v311, %v318
    %v335 = vadd.f32 %v312, %v318
    %v336 = vmax.f32 %v320, 0.0
    %v337 = vmax.f32 %v321, 0.0
    %v338 = vmax.f32 %v322, 0.0
    %v339 = vmax.f32 %v323, 0.0
    %v340 = vmax.f32 %v324, 0.0
    %v341 = vmax.f32 %v325, 0.0
    %v342 = vmax.f32 %v326, 0.0
    %v343 = vmax.f32 %v327, 0.0
    %v344 = vmax.f32 %v328, 0.0
    %v345 = vmax.f32 %v329, 0.0
    %v346 = vmax.f32 %v330, 0.0
    %v347 = vmax.f32 %v331, 0.0
    %v348 = vmax.f32 %v332, 0.0
    %v349 = vmax.f32 %v333, 0.0
    %v350 = vmax.f32 %v334, 0.0
    %v351 = vmax.f32 %v335, 0.0
    %v352 = vpack.c.bf16 %v337, %v336
    %v353 = vpack.c.bf16 %v339, %v338
    %v354 = vpack.c.bf16 %v341, %v340
    %v355 = vpack.c.bf16 %v343, %v342
    %v356 = vpack.c.bf16 %v345, %v344
    %v357 = vpack.c.bf16 %v347, %v346
    %v358 = vpack.c.bf16 %v349, %v348
    %v359 = vpack.c.bf16 %v351, %v350
    %v360 = vld [vmem:[#allocation2] sm:$0xf]
    %v361 = vld [vmem:[#allocation2 + $0x4] sm:$0xf]
    %v362 = vld [vmem:[#allocation2 + $0x8] sm:$0xf]
    %v363 = vld [vmem:[#allocation2 + $0xc] sm:$0xf]
    %v364 = vld [vmem:[#allocation2 + $0x10] sm:$0xf]
    %v365 = vld [vmem:[#allocation2 + $0x14] sm:$0xf]
    %v366 = vld [vmem:[#allocation2 + $0x18] sm:$0xf]
    %v367 = vld [vmem:[#allocation2 + $0x1c] sm:$0xf]
    %v368 = vld [vmem:[#allocation2 + $0x20] sm:$0xf]
    %v369 = vld [vmem:[#allocation2 + $0x24] sm:$0xf]
    %v370 = vld [vmem:[#allocation2 + $0x28] sm:$0xf]
    %v371 = vld [vmem:[#allocation2 + $0x2c] sm:$0xf]
    %v372 = vld [vmem:[#allocation2 + $0x30] sm:$0xf]
    %v373 = vld [vmem:[#allocation2 + $0x34] sm:$0xf]
    %v374 = vld [vmem:[#allocation2 + $0x38] sm:$0xf]
    %v375 = vld [vmem:[#allocation2 + $0x3c] sm:$0xf]
    %v392 = vunpack.c.l.b16 %v360
    %v393 = vunpack.c.l.b16 %v361
    %v394 = vunpack.c.l.b16 %v362
    %v395 = vunpack.c.l.b16 %v363
    %v396 = vunpack.c.l.b16 %v364
    %v397 = vunpack.c.l.b16 %v365
    %v398 = vunpack.c.l.b16 %v366
    %v399 = vunpack.c.l.b16 %v367
    %v400 = vunpack.c.l.b16 %v368
    %v401 = vunpack.c.l.b16 %v369
    %v402 = vunpack.c.l.b16 %v370
    %v403 = vunpack.c.l.b16 %v371
    %v404 = vunpack.c.l.b16 %v372
    %v405 = vunpack.c.l.b16 %v373
    %v406 = vunpack.c.l.b16 %v374
    %v407 = vunpack.c.l.b16 %v375
    %v408 = vpack.c.b16 %v393, %v392
    %v409 = vpack.c.b16 %v395, %v394
    %v410 = vpack.c.b16 %v397, %v396
    %v411 = vpack.c.b16 %v399, %v398
    %v412 = vpack.c.b16 %v401, %v400
    %v413 = vpack.c.b16 %v403, %v402
    %v414 = vpack.c.b16 %v405, %v404
    %v415 = vpack.c.b16 %v407, %v406
    %424 = vmatprep.subr.bf16.mxu0 0
    %425 = vmatpush1.bf16.msra.mxu0 %v415
    %426 = vmatprep.subr.bf16.mxu0 0
    %427 = vmatpush1.bf16.msra.mxu0 %v414
    %428 = vmatprep.subr.bf16.mxu0 0
    %429 = vmatpush1.bf16.msra.mxu0 %v413
    %430 = vmatprep.subr.bf16.mxu0 0
    %431 = vmatpush1.bf16.msra.mxu0 %v412
    %432 = vmatprep.subr.bf16.mxu0 0
    %433 = vmatpush1.bf16.msra.mxu0 %v411
    %434 = vmatprep.subr.bf16.mxu0 0
    %435 = vmatpush1.bf16.msra.mxu0 %v410
    %436 = vmatprep.subr.bf16.mxu0 0
    %437 = vmatpush1.bf16.msra.mxu0 %v409
    %438 = vmatprep.subr.bf16.mxu0 0
    %439 = vmatpush1.bf16.msra.mxu0 %v408
    %440 = vmatprep.subr.bf16.mxu0 0
    %441 = vmatpush2.bf16.msra.mxu0 0
    %442 = vmatprep.subr.bf16.mxu0 0
    %443 = vmatpush2.bf16.msra.mxu0 0
    %444 = vmatprep.subr.bf16.mxu0 0
    %445 = vmatpush2.bf16.msra.mxu0 0
    %446 = vmatprep.subr.bf16.mxu0 0
    %447 = vmatpush2.bf16.msra.mxu0 0
    %448 = vmatprep.subr.bf16.mxu0 0
    %449 = vmatpush2.bf16.msra.mxu0 0
    %450 = vmatprep.subr.bf16.mxu0 0
    %451 = vmatpush2.bf16.msra.mxu0 0
    %452 = vmatprep.subr.bf16.mxu0 0
    %453 = vmatpush2.bf16.msra.mxu0 0
    %454 = vmatprep.subr.bf16.mxu0 0
    %455 = vmatpush2.bf16.msra.mxu0 0
    %456 = vmatprep.mubr.bf16.mxu0 0
    %457 = vmatmul.mubr.bf16.gmra.mxu0 %v352
    %v458 = vpop.f32.mrf.mxu0
    %v459 = vadd.f32 0.0, %v458
    %v460 = vpop.f32.mrf.mxu0
    %v461 = vpop.f32.mrf.mxu0
    %v462 = vadd.f32 0.0, %v461
    %v463 = vpop.f32.mrf.mxu0
    %464 = vmatprep.mubr.bf16.mxu0 0
    %465 = vmatmul.mubr.bf16.gmra.mxu0 %v353
    %v466 = vpop.f32.mrf.mxu0
    %v467 = vadd.f32 0.0, %v466
    %v468 = vpop.f32.mrf.mxu0
    %v469 = vpop.f32.mrf.mxu0
    %v470 = vadd.f32 0.0, %v469
    %v471 = vpop.f32.mrf.mxu0
    %472 = vmatprep.mubr.bf16.mxu0 0
    %473 = vmatmul.mubr.bf16.gmra.mxu0 %v354
    %v474 = vpop.f32.mrf.mxu0
    %v475 = vadd.f32 0.0, %v474
    %v476 = vpop.f32.mrf.mxu0
    %v477 = vpop.f32.mrf.mxu0
    %v478 = vadd.f32 0.0, %v477
    %v479 = vpop.f32.mrf.mxu0
    %480 = vmatprep.mubr.bf16.mxu0 0
    %481 = vmatmul.mubr.bf16.gmra.mxu0 %v355
    %v482 = vpop.f32.mrf.mxu0
    %v483 = vadd.f32 0.0, %v482
    %v484 = vpop.f32.mrf.mxu0
    %v485 = vpop.f32.mrf.mxu0
    %v486 = vadd.f32 0.0, %v485
    %v487 = vpop.f32.mrf.mxu0
    %488 = vmatprep.mubr.bf16.mxu0 0
    %489 = vmatmul.mubr.bf16.gmra.mxu0 %v356
    %v490 = vpop.f32.mrf.mxu0
    %v491 = vadd.f32 0.0, %v490
    %v492 = vpop.f32.mrf.mxu0
    %v493 = vpop.f32.mrf.mxu0
    %v494 = vadd.f32 0.0, %v493
    %v495 = vpop.f32.mrf.mxu0
    %496 = vmatprep.mubr.bf16.mxu0 0
    %497 = vmatmul.mubr.bf16.gmra.mxu0 %v357
    %v498 = vpop.f32.mrf.mxu0
    %v499 = vadd.f32 0.0, %v498
    %v500 = vpop.f32.mrf.mxu0
    %v501 = vpop.f32.mrf.mxu0
    %v502 = vadd.f32 0.0, %v501
    %v503 = vpop.f32.mrf.mxu0
    %504 = vmatprep.mubr.bf16.mxu0 0
    %505 = vmatmul.mubr.bf16.gmra.mxu0 %v358
    %v506 = vpop.f32.mrf.mxu0
    %v507 = vadd.f32 0.0, %v506
    %v508 = vpop.f32.mrf.mxu0
    %v509 = vpop.f32.mrf.mxu0
    %v510 = vadd.f32 0.0, %v509
    %v511 = vpop.f32.mrf.mxu0
    %512 = vmatprep.mubr.bf16.mxu0 0
    %513 = vmatmul.mubr.bf16.gmra.mxu0 %v359
    %v514 = vpop.f32.mrf.mxu0
    %v515 = vadd.f32 0.0, %v514
    %v516 = vpop.f32.mrf.mxu0
    %v517 = vpop.f32.mrf.mxu0
    %v518 = vadd.f32 0.0, %v517
    %v519 = vpop.f32.mrf.mxu0
    %520 = vdwg.mxu0
    %v521 = vld [vmem:[%s6] sm:$0x1]
    %v523 = vlaneseq
    %v524 = vshrl.u32 %v523, 7
    %v525 = vsub.s32 0, %v524
    %v526 = vrot.slane %v521, %v525
    %v528 = vmul.f32 %v459, %v526
    %v529 = vmul.f32 %v462, %v526
    %v530 = vmul.f32 %v467, %v526
    %v531 = vmul.f32 %v470, %v526
    %v532 = vmul.f32 %v475, %v526
    %v533 = vmul.f32 %v478, %v526
    %v534 = vmul.f32 %v483, %v526
    %v535 = vmul.f32 %v486, %v526
    %v536 = vmul.f32 %v491, %v526
    %v537 = vmul.f32 %v494, %v526
    %v538 = vmul.f32 %v499, %v526
    %v539 = vmul.f32 %v502, %v526
    %v540 = vmul.f32 %v507, %v526
    %v541 = vmul.f32 %v510, %v526
    %v542 = vmul.f32 %v515, %v526
    %v543 = vmul.f32 %v518, %v526
    %v544 = vld [vmem:[%s7] sm:$0x1]
    %v546 = vlaneseq
    %v547 = vshrl.u32 %v546, 7
    %v548 = vsub.s32 0, %v547
    %v549 = vrot.slane %v544, %v548
    %v551 = vadd.f32 %v528, %v549
    %v552 = vadd.f32 %v529, %v549
    %v553 = vadd.f32 %v530, %v549
    %v554 = vadd.f32 %v531, %v549
    %v555 = vadd.f32 %v532, %v549
    %v556 = vadd.f32 %v533, %v549
    %v557 = vadd.f32 %v534, %v549
    %v558 = vadd.f32 %v535, %v549
    %v559 = vadd.f32 %v536, %v549
    %v560 = vadd.f32 %v537, %v549
    %v561 = vadd.f32 %v538, %v549
    %v562 = vadd.f32 %v539, %v549
    %v563 = vadd.f32 %v540, %v549
    %v564 = vadd.f32 %v541, %v549
    %v565 = vadd.f32 %v542, %v549
    %v566 = vadd.f32 %v543, %v549
    %v567 = vmax.f32 %v551, 0.0
    %v568 = vmax.f32 %v552, 0.0
    %v569 = vmax.f32 %v553, 0.0
    %v570 = vmax.f32 %v554, 0.0
    %v571 = vmax.f32 %v555, 0.0
    %v572 = vmax.f32 %v556, 0.0
    %v573 = vmax.f32 %v557, 0.0
    %v574 = vmax.f32 %v558, 0.0
    %v575 = vmax.f32 %v559, 0.0
    %v576 = vmax.f32 %v560, 0.0
    %v577 = vmax.f32 %v561, 0.0
    %v578 = vmax.f32 %v562, 0.0
    %v579 = vmax.f32 %v563, 0.0
    %v580 = vmax.f32 %v564, 0.0
    %v581 = vmax.f32 %v565, 0.0
    %v582 = vmax.f32 %v566, 0.0
    %v583 = vpack.c.bf16 %v568, %v567
    %v584 = vpack.c.bf16 %v570, %v569
    %v585 = vpack.c.bf16 %v572, %v571
    %v586 = vpack.c.bf16 %v574, %v573
    %v587 = vpack.c.bf16 %v576, %v575
    %v588 = vpack.c.bf16 %v578, %v577
    %v589 = vpack.c.bf16 %v580, %v579
    %v590 = vpack.c.bf16 %v582, %v581
    %v591 = vld [vmem:[#allocation5] sm:$0xf]
    %v592 = vld [vmem:[#allocation5 + $0x4] sm:$0xf]
    %v593 = vld [vmem:[#allocation5 + $0x8] sm:$0xf]
    %v594 = vld [vmem:[#allocation5 + $0xc] sm:$0xf]
    %v595 = vld [vmem:[#allocation5 + $0x10] sm:$0xf]
    %v596 = vld [vmem:[#allocation5 + $0x14] sm:$0xf]
    %v597 = vld [vmem:[#allocation5 + $0x18] sm:$0xf]
    %v598 = vld [vmem:[#allocation5 + $0x1c] sm:$0xf]
    %v599 = vld [vmem:[#allocation5 + $0x20] sm:$0xf]
    %v600 = vld [vmem:[#allocation5 + $0x24] sm:$0xf]
    %v601 = vld [vmem:[#allocation5 + $0x28] sm:$0xf]
    %v602 = vld [vmem:[#allocation5 + $0x2c] sm:$0xf]
    %v603 = vld [vmem:[#allocation5 + $0x30] sm:$0xf]
    %v604 = vld [vmem:[#allocation5 + $0x34] sm:$0xf]
    %v605 = vld [vmem:[#allocation5 + $0x38] sm:$0xf]
    %v606 = vld [vmem:[#allocation5 + $0x3c] sm:$0xf]
    %v607 = vld [vmem:[%s9] sm:$0x1]
    %v609 = vlaneseq
    %v610 = vshrl.u32 %v609, 7
    %v611 = vsub.s32 0, %v610
    %v612 = vrot.slane %v607, %v611
    %v630 = vunpack.c.l.b16 %v591
    %v631 = vunpack.c.l.b16 %v592
    %v632 = vunpack.c.l.b16 %v593
    %v633 = vunpack.c.l.b16 %v594
    %v634 = vunpack.c.l.b16 %v595
    %v635 = vunpack.c.l.b16 %v596
    %v636 = vunpack.c.l.b16 %v597
    %v637 = vunpack.c.l.b16 %v598
    %v638 = vunpack.c.l.b16 %v599
    %v639 = vunpack.c.l.b16 %v600
    %v640 = vunpack.c.l.b16 %v601
    %v641 = vunpack.c.l.b16 %v602
    %v642 = vunpack.c.l.b16 %v603
    %v643 = vunpack.c.l.b16 %v604
    %v644 = vunpack.c.l.b16 %v605
    %v645 = vunpack.c.l.b16 %v606
    %v646 = vpack.c.b16 %v631, %v630
    %v647 = vpack.c.b16 %v633, %v632
    %v648 = vpack.c.b16 %v635, %v634
    %v649 = vpack.c.b16 %v637, %v636
    %v650 = vpack.c.b16 %v639, %v638
    %v651 = vpack.c.b16 %v641, %v640
    %v652 = vpack.c.b16 %v643, %v642
    %v653 = vpack.c.b16 %v645, %v644
    %662 = vmatprep.subr.bf16.mxu0 0
    %663 = vmatpush1.bf16.msra.mxu0 %v653
    %664 = vmatprep.subr.bf16.mxu0 0
    %665 = vmatpush1.bf16.msra.mxu0 %v652
    %666 = vmatprep.subr.bf16.mxu0 0
    %667 = vmatpush1.bf16.msra.mxu0 %v651
    %668 = vmatprep.subr.bf16.mxu0 0
    %669 = vmatpush1.bf16.msra.mxu0 %v650
    %670 = vmatprep.subr.bf16.mxu0 0
    %671 = vmatpush1.bf16.msra.mxu0 %v649
    %672 = vmatprep.subr.bf16.mxu0 0
    %673 = vmatpush1.bf16.msra.mxu0 %v648
    %674 = vmatprep.subr.bf16.mxu0 0
    %675 = vmatpush1.bf16.msra.mxu0 %v647
    %676 = vmatprep.subr.bf16.mxu0 0
    %677 = vmatpush1.bf16.msra.mxu0 %v646
    %678 = vmatprep.subr.bf16.mxu0 0
    %679 = vmatpush2.bf16.msra.mxu0 0
    %680 = vmatprep.subr.bf16.mxu0 0
    %681 = vmatpush2.bf16.msra.mxu0 0
    %682 = vmatprep.subr.bf16.mxu0 0
    %683 = vmatpush2.bf16.msra.mxu0 0
    %684 = vmatprep.subr.bf16.mxu0 0
    %685 = vmatpush2.bf16.msra.mxu0 0
    %686 = vmatprep.subr.bf16.mxu0 0
    %687 = vmatpush2.bf16.msra.mxu0 0
    %688 = vmatprep.subr.bf16.mxu0 0
    %689 = vmatpush2.bf16.msra.mxu0 0
    %690 = vmatprep.subr.bf16.mxu0 0
    %691 = vmatpush2.bf16.msra.mxu0 0
    %692 = vmatprep.subr.bf16.mxu0 0
    %693 = vmatpush2.bf16.msra.mxu0 0
    %694 = vmatprep.mubr.bf16.mxu0 0
    %695 = vmatmul.mubr.bf16.gmra.mxu0 %v583
    %v696 = vpop.f32.mrf.mxu0
    %v697 = vadd.f32 %v612, %v696
    %v698 = vpop.f32.mrf.mxu0
    %v699 = vpop.f32.mrf.mxu0
    %v700 = vadd.f32 %v612, %v699
    %v701 = vpop.f32.mrf.mxu0
    %702 = vmatprep.mubr.bf16.mxu0 0
    %703 = vmatmul.mubr.bf16.gmra.mxu0 %v584
    %v704 = vpop.f32.mrf.mxu0
    %v705 = vadd.f32 %v612, %v704
    %v706 = vpop.f32.mrf.mxu0
    %v707 = vpop.f32.mrf.mxu0
    %v708 = vadd.f32 %v612, %v707
    %v709 = vpop.f32.mrf.mxu0
    %710 = vmatprep.mubr.bf16.mxu0 0
    %711 = vmatmul.mubr.bf16.gmra.mxu0 %v585
    %v712 = vpop.f32.mrf.mxu0
    %v713 = vadd.f32 %v612, %v712
    %v714 = vpop.f32.mrf.mxu0
    %v715 = vpop.f32.mrf.mxu0
    %v716 = vadd.f32 %v612, %v715
    %v717 = vpop.f32.mrf.mxu0
    %718 = vmatprep.mubr.bf16.mxu0 0
    %719 = vmatmul.mubr.bf16.gmra.mxu0 %v586
    %v720 = vpop.f32.mrf.mxu0
    %v721 = vadd.f32 %v612, %v720
    %v722 = vpop.f32.mrf.mxu0
    %v723 = vpop.f32.mrf.mxu0
    %v724 = vadd.f32 %v612, %v723
    %v725 = vpop.f32.mrf.mxu0
    %726 = vmatprep.mubr.bf16.mxu0 0
    %727 = vmatmul.mubr.bf16.gmra.mxu0 %v587
    %v728 = vpop.f32.mrf.mxu0
    %v729 = vadd.f32 %v612, %v728
    %v730 = vpop.f32.mrf.mxu0
    %v731 = vpop.f32.mrf.mxu0
    %v732 = vadd.f32 %v612, %v731
    %v733 = vpop.f32.mrf.mxu0
    %734 = vmatprep.mubr.bf16.mxu0 0
    %735 = vmatmul.mubr.bf16.gmra.mxu0 %v588
    %v736 = vpop.f32.mrf.mxu0
    %v737 = vadd.f32 %v612, %v736
    %v738 = vpop.f32.mrf.mxu0
    %v739 = vpop.f32.mrf.mxu0
    %v740 = vadd.f32 %v612, %v739
    %v741 = vpop.f32.mrf.mxu0
    %742 = vmatprep.mubr.bf16.mxu0 0
    %743 = vmatmul.mubr.bf16.gmra.mxu0 %v589
    %v744 = vpop.f32.mrf.mxu0
    %v745 = vadd.f32 %v612, %v744
    %v746 = vpop.f32.mrf.mxu0
    %v747 = vpop.f32.mrf.mxu0
    %v748 = vadd.f32 %v612, %v747
    %v749 = vpop.f32.mrf.mxu0
    %750 = vmatprep.mubr.bf16.mxu0 0
    %751 = vmatmul.mubr.bf16.gmra.mxu0 %v590
    %v752 = vpop.f32.mrf.mxu0
    %v753 = vadd.f32 %v612, %v752
    %v754 = vpop.f32.mrf.mxu0
    %v755 = vpop.f32.mrf.mxu0
    %v756 = vadd.f32 %v612, %v755
    %v757 = vpop.f32.mrf.mxu0
    %758 = vdwg.mxu0
    %v759 = vld [vmem:[%s1] sm:$0xff]
    %v760 = vld [vmem:[%s1 + $0x8] sm:$0xff]
    %v761 = vld [vmem:[%s1 + $0x10] sm:$0xff]
    %v762 = vld [vmem:[%s1 + $0x18] sm:$0xff]
    %v763 = vld [vmem:[%s1 + $0x20] sm:$0xff]
    %v764 = vld [vmem:[%s1 + $0x28] sm:$0xff]
    %v765 = vld [vmem:[%s1 + $0x30] sm:$0xff]
    %v766 = vld [vmem:[%s1 + $0x38] sm:$0xff]
    %v767 = vld [vmem:[%s1 + $0x40] sm:$0xff]
    %v768 = vld [vmem:[%s1 + $0x48] sm:$0xff]
    %v769 = vld [vmem:[%s1 + $0x50] sm:$0xff]
    %v770 = vld [vmem:[%s1 + $0x58] sm:$0xff]
    %v771 = vld [vmem:[%s1 + $0x60] sm:$0xff]
    %v772 = vld [vmem:[%s1 + $0x68] sm:$0xff]
    %v773 = vld [vmem:[%s1 + $0x70] sm:$0xff]
    %v774 = vld [vmem:[%s1 + $0x78] sm:$0xff]
    %v775 = vand.u32 2147483647, %v759
    %vm776 = vcmp.le.f32.partialorder %v775, 0.7853982
    %vm777 = vcmp.lt.s32.totalorder %v759, 0
    %v778 = vand.u32 %v759, 2139095040
    %v779 = vshrl.u32 %v778, 23
    %v780 = vsub.s32 %v779, 127
    %v781 = vand.u32 2147483647, %v759
    %v782 = vand.u32 %v781, 8388607
    %v783 = vor.u32 %v782, 8388608
    %v784 = vsub.s32 0, %v783
    %v785 = vadd.s32 %v780, 1
    %vm786 = vcmp.gt.s32.totalorder %v785, 0
    %v787 = vsel %vm786, %v785, 0
    %v788 = vshrl.u32 %v787, 5
    %v789 = vand.u32 %v787, 31
    %v790 = vsub.s32 32, %v789
    %v791 = vshrl.u32 683565275, %v790
    %v792 = vshll.u32 683565275, %v789
    %v793 = vshrl.u32 2475754826, %v790
    %v794 = vor.u32 %v792, %v793
    %v795 = vshll.u32 2475754826, %v789
    %v796 = vshrl.u32 2131351028, %v790
    %v797 = vor.u32 %v795, %v796
    %v798 = vshll.u32 2131351028, %v789
    %v799 = vshrl.u32 2102212464, %v790
    %v800 = vor.u32 %v798, %v799
    %v801 = vshll.u32 2102212464, %v789
    %v802 = vshrl.u32 920167782, %v790
    %v803 = vor.u32 %v801, %v802
    %v804 = vshll.u32 920167782, %v789
    %v805 = vshrl.u32 1326507024, %v790
    %v806 = vor.u32 %v804, %v805
    %vm807 = vcmp.lt.s32.totalorder %v788, 1
    %vm808 = vcmp.lt.s32.totalorder %v788, 2
    %vm809 = vcmp.lt.s32.totalorder %v788, 3
    %vm810 = vcmp.lt.s32.totalorder %v788, 4
    %v811 = vsel %vm807, %v791, %v794
    %v812 = vsel %vm810, %v800, 2102212464
    %v813 = vsel %vm809, %v797, %v812
    %v814 = vsel %vm808, %v811, %v813
    %v815 = vsel %vm807, %v794, %v797
    %v816 = vsel %vm810, %v803, 920167782
    %v817 = vsel %vm809, %v800, %v816
    %v818 = vsel %vm808, %v815, %v817
    %v819 = vsel %vm807, %v797, %v800
    %v820 = vsel %vm810, %v806, 1326507024
    %v821 = vsel %vm809, %v803, %v820
    %v822 = vsel %vm808, %v819, %v821
    %v823 = vshll.u32 %v783, 8
    %v824 = vmul.u32.u64.compose %v823, %v822
    %v825 = vextract.low.u32 %v824
    %v826 = vextract.high.u32 %v824
    %v827 = vmul.u32.u64.compose %v823, %v818
    %v828 = vextract.low.u32 %v827
    %v829 = vextract.high.u32 %v827
    %v830 = vmul.u32 %v823, %v814
    %v831 = vadd.s32 %v826, %v828
    %vm832 = vc.u32 %v826, %v828
    %v833 = vadd.s32 %v829, 1
    %v834 = vsel %vm832, %v833, %v829
    %v835 = vadd.s32 %v830, %v834
    %v836 = vadd.s32 %v835, 536870912
    %v837 = vshrl.u32 %v836, 30
    %v838 = vshll.u32 %v837, 30
    %v839 = vsub.s32 %v835, %v838
    %vm840 = vcmp.lt.s32.totalorder %v839, 0
    %v841 = vsub.s32 0, %v839
    %v842 = vsel %vm840, %v841, %v839
    %v843 = vclz %v842
    %v844 = vsub.s32 %v843, 2
    %vm845 = vcmp.gt.s32.totalorder 0, %v844
    %v846 = vsel %vm845, 0, %v844
    %v847 = vsub.s32 32, %v846
    %v848 = vshll.u32 %v839, %v846
    %v849 = vshrl.u32 %v831, %v847
    %v850 = vor.u32 %v848, %v849
    %v851 = vsub.s32 4294967266, %v846
    %v852 = vadd.s32 %v851, 127
    %v853 = vshll.u32 %v852, 23
    %v854 = vor.u32 4788187, %v853
    %v855 = vand.u32 2147483647, %v854
    %v857 = vcvt.s32.f32 %v850
    %v858 = vmul.f32 %v857, %v855
    %v859 = vxor.u32 %v858, 2147483648
    %v860 = vsel %vm777, %v859, %v858
    %v861 = vsub.s32 4, %v837
    %v862 = vsel %vm777, %v861, %v837
    %v863 = vsel %vm776, %v759, %v860
    %v864 = vsel %vm776, 0, %v862
    %v865 = vcosq.f32.pop %v863
    %v866 = vsinq.f32.pop %v863
    %vm867 = vweird.f32 %v759
    %v868 = vand.u32 %v864, 3
    %vm869 = vcmp.lt.s32.totalorder %v868, 2
    %vm870 = vcmp.eq.s32.totalorder %v868, 0
    %v871 = vxor.u32 %v866, 2147483648
    %v872 = vsel %vm870, %v865, %v871
    %vm873 = vcmp.eq.s32.totalorder %v868, 2
    %v874 = vxor.u32 %v865, 2147483648
    %v875 = vsel %vm873, %v874, %v866
    %v876 = vsel %vm869, %v872, %v875
    %v877 = vsel %vm867, nan, %v876
    %v878 = vand.u32 2147483647, %v760
    %vm879 = vcmp.le.f32.partialorder %v878, 0.7853982
    %vm880 = vcmp.lt.s32.totalorder %v760, 0
    %v881 = vand.u32 %v760, 2139095040
    %v882 = vshrl.u32 %v881, 23
    %v883 = vsub.s32 %v882, 127
    %v884 = vand.u32 2147483647, %v760
    %v885 = vand.u32 %v884, 8388607
    %v886 = vor.u32 %v885, 8388608
    %v887 = vsub.s32 0, %v886
    %v888 = vadd.s32 %v883, 1
    %vm889 = vcmp.gt.s32.totalorder %v888, 0
    %v890 = vsel %vm889, %v888, 0
    %v891 = vshrl.u32 %v890, 5
    %v892 = vand.u32 %v890, 31
    %v893 = vsub.s32 32, %v892
    %v894 = vshrl.u32 683565275, %v893
    %v895 = vshll.u32 683565275, %v892
    %v896 = vshrl.u32 2475754826, %v893
    %v897 = vor.u32 %v895, %v896
    %v898 = vshll.u32 2475754826, %v892
    %v899 = vshrl.u32 2131351028, %v893
    %v900 = vor.u32 %v898, %v899
    %v901 = vshll.u32 2131351028, %v892
    %v902 = vshrl.u32 2102212464, %v893
    %v903 = vor.u32 %v901, %v902
    %v904 = vshll.u32 2102212464, %v892
    %v905 = vshrl.u32 920167782, %v893
    %v906 = vor.u32 %v904, %v905
    %v907 = vshll.u32 920167782, %v892
    %v908 = vshrl.u32 1326507024, %v893
    %v909 = vor.u32 %v907, %v908
    %vm910 = vcmp.lt.s32.totalorder %v891, 1
    %vm911 = vcmp.lt.s32.totalorder %v891, 2
    %vm912 = vcmp.lt.s32.totalorder %v891, 3
    %vm913 = vcmp.lt.s32.totalorder %v891, 4
    %v914 = vsel %vm910, %v894, %v897
    %v915 = vsel %vm913, %v903, 2102212464
    %v916 = vsel %vm912, %v900, %v915
    %v917 = vsel %vm911, %v914, %v916
    %v918 = vsel %vm910, %v897, %v900
    %v919 = vsel %vm913, %v906, 920167782
    %v920 = vsel %vm912, %v903, %v919
    %v921 = vsel %vm911, %v918, %v920
    %v922 = vsel %vm910, %v900, %v903
    %v923 = vsel %vm913, %v909, 1326507024
    %v924 = vsel %vm912, %v906, %v923
    %v925 = vsel %vm911, %v922, %v924
    %v926 = vshll.u32 %v886, 8
    %v927 = vmul.u32.u64.compose %v926, %v925
    %v928 = vextract.low.u32 %v927
    %v929 = vextract.high.u32 %v927
    %v930 = vmul.u32.u64.compose %v926, %v921
    %v931 = vextract.low.u32 %v930
    %v932 = vextract.high.u32 %v930
    %v933 = vmul.u32 %v926, %v917
    %v934 = vadd.s32 %v929, %v931
    %vm935 = vc.u32 %v929, %v931
    %v936 = vadd.s32 %v932, 1
    %v937 = vsel %vm935, %v936, %v932
    %v938 = vadd.s32 %v933, %v937
    %v939 = vadd.s32 %v938, 536870912
    %v940 = vshrl.u32 %v939, 30
    %v941 = vshll.u32 %v940, 30
    %v942 = vsub.s32 %v938, %v941
    %vm943 = vcmp.lt.s32.totalorder %v942, 0
    %v944 = vsub.s32 0, %v942
    %v945 = vsel %vm943, %v944, %v942
    %v946 = vclz %v945
    %v947 = vsub.s32 %v946, 2
    %vm948 = vcmp.gt.s32.totalorder 0, %v947
    %v949 = vsel %vm948, 0, %v947
    %v950 = vsub.s32 32, %v949
    %v951 = vshll.u32 %v942, %v949
    %v952 = vshrl.u32 %v934, %v950
    %v953 = vor.u32 %v951, %v952
    %v954 = vsub.s32 4294967266, %v949
    %v955 = vadd.s32 %v954, 127
    %v956 = vshll.u32 %v955, 23
    %v957 = vor.u32 4788187, %v956
    %v958 = vand.u32 2147483647, %v957
    %v960 = vcvt.s32.f32 %v953
    %v961 = vmul.f32 %v960, %v958
    %v962 = vxor.u32 %v961, 2147483648
    %v963 = vsel %vm880, %v962, %v961
    %v964 = vsub.s32 4, %v940
    %v965 = vsel %vm880, %v964, %v940
    %v966 = vsel %vm879, %v760, %v963
    %v967 = vsel %vm879, 0, %v965
    %v968 = vcosq.f32.pop %v966
    %v969 = vsinq.f32.pop %v966
    %vm970 = vweird.f32 %v760
    %v971 = vand.u32 %v967, 3
    %vm972 = vcmp.lt.s32.totalorder %v971, 2
    %vm973 = vcmp.eq.s32.totalorder %v971, 0
    %v974 = vxor.u32 %v969, 2147483648
    %v975 = vsel %vm973, %v968, %v974
    %vm976 = vcmp.eq.s32.totalorder %v971, 2
    %v977 = vxor.u32 %v968, 2147483648
    %v978 = vsel %vm976, %v977, %v969
    %v979 = vsel %vm972, %v975, %v978
    %v980 = vsel %vm970, nan, %v979
    %v981 = vand.u32 2147483647, %v761
    %vm982 = vcmp.le.f32.partialorder %v981, 0.7853982
    %vm983 = vcmp.lt.s32.totalorder %v761, 0
    %v984 = vand.u32 %v761, 2139095040
    %v985 = vshrl.u32 %v984, 23
    %v986 = vsub.s32 %v985, 127
    %v987 = vand.u32 2147483647, %v761
    %v988 = vand.u32 %v987, 8388607
    %v989 = vor.u32 %v988, 8388608
    %v990 = vsub.s32 0, %v989
    %v991 = vadd.s32 %v986, 1
    %vm992 = vcmp.gt.s32.totalorder %v991, 0
    %v993 = vsel %vm992, %v991, 0
    %v994 = vshrl.u32 %v993, 5
    %v995 = vand.u32 %v993, 31
    %v996 = vsub.s32 32, %v995
    %v997 = vshrl.u32 683565275, %v996
    %v998 = vshll.u32 683565275, %v995
    %v999 = vshrl.u32 2475754826, %v996
    %v1000 = vor.u32 %v998, %v999
    %v1001 = vshll.u32 2475754826, %v995
    %v1002 = vshrl.u32 2131351028, %v996
    %v1003 = vor.u32 %v1001, %v1002
    %v1004 = vshll.u32 2131351028, %v995
    %v1005 = vshrl.u32 2102212464, %v996
    %v1006 = vor.u32 %v1004, %v1005
    %v1007 = vshll.u32 2102212464, %v995
    %v1008 = vshrl.u32 920167782, %v996
    %v1009 = vor.u32 %v1007, %v1008
    %v1010 = vshll.u32 920167782, %v995
    %v1011 = vshrl.u32 1326507024, %v996
    %v1012 = vor.u32 %v1010, %v1011
    %vm1013 = vcmp.lt.s32.totalorder %v994, 1
    %vm1014 = vcmp.lt.s32.totalorder %v994, 2
    %vm1015 = vcmp.lt.s32.totalorder %v994, 3
    %vm1016 = vcmp.lt.s32.totalorder %v994, 4
    %v1017 = vsel %vm1013, %v997, %v1000
    %v1018 = vsel %vm1016, %v1006, 2102212464
    %v1019 = vsel %vm1015, %v1003, %v1018
    %v1020 = vsel %vm1014, %v1017, %v1019
    %v1021 = vsel %vm1013, %v1000, %v1003
    %v1022 = vsel %vm1016, %v1009, 920167782
    %v1023 = vsel %vm1015, %v1006, %v1022
    %v1024 = vsel %vm1014, %v1021, %v1023
    %v1025 = vsel %vm1013, %v1003, %v1006
    %v1026 = vsel %vm1016, %v1012, 1326507024
    %v1027 = vsel %vm1015, %v1009, %v1026
    %v1028 = vsel %vm1014, %v1025, %v1027
    %v1029 = vshll.u32 %v989, 8
    %v1030 = vmul.u32.u64.compose %v1029, %v1028
    %v1031 = vextract.low.u32 %v1030
    %v1032 = vextract.high.u32 %v1030
    %v1033 = vmul.u32.u64.compose %v1029, %v1024
    %v1034 = vextract.low.u32 %v1033
    %v1035 = vextract.high.u32 %v1033
    %v1036 = vmul.u32 %v1029, %v1020
    %v1037 = vadd.s32 %v1032, %v1034
    %vm1038 = vc.u32 %v1032, %v1034
    %v1039 = vadd.s32 %v1035, 1
    %v1040 = vsel %vm1038, %v1039, %v1035
    %v1041 = vadd.s32 %v1036, %v1040
    %v1042 = vadd.s32 %v1041, 536870912
    %v1043 = vshrl.u32 %v1042, 30
    %v1044 = vshll.u32 %v1043, 30
    %v1045 = vsub.s32 %v1041, %v1044
    %vm1046 = vcmp.lt.s32.totalorder %v1045, 0
    %v1047 = vsub.s32 0, %v1045
    %v1048 = vsel %vm1046, %v1047, %v1045
    %v1049 = vclz %v1048
    %v1050 = vsub.s32 %v1049, 2
    %vm1051 = vcmp.gt.s32.totalorder 0, %v1050
    %v1052 = vsel %vm1051, 0, %v1050
    %v1053 = vsub.s32 32, %v1052
    %v1054 = vshll.u32 %v1045, %v1052
    %v1055 = vshrl.u32 %v1037, %v1053
    %v1056 = vor.u32 %v1054, %v1055
    %v1057 = vsub.s32 4294967266, %v1052
    %v1058 = vadd.s32 %v1057, 127
    %v1059 = vshll.u32 %v1058, 23
    %v1060 = vor.u32 4788187, %v1059
    %v1061 = vand.u32 2147483647, %v1060
    %v1063 = vcvt.s32.f32 %v1056
    %v1064 = vmul.f32 %v1063, %v1061
    %v1065 = vxor.u32 %v1064, 2147483648
    %v1066 = vsel %vm983, %v1065, %v1064
    %v1067 = vsub.s32 4, %v1043
    %v1068 = vsel %vm983, %v1067, %v1043
    %v1069 = vsel %vm982, %v761, %v1066
    %v1070 = vsel %vm982, 0, %v1068
    %v1071 = vcosq.f32.pop %v1069
    %v1072 = vsinq.f32.pop %v1069
    %vm1073 = vweird.f32 %v761
    %v1074 = vand.u32 %v1070, 3
    %vm1075 = vcmp.lt.s32.totalorder %v1074, 2
    %vm1076 = vcmp.eq.s32.totalorder %v1074, 0
    %v1077 = vxor.u32 %v1072, 2147483648
    %v1078 = vsel %vm1076, %v1071, %v1077
    %vm1079 = vcmp.eq.s32.totalorder %v1074, 2
    %v1080 = vxor.u32 %v1071, 2147483648
    %v1081 = vsel %vm1079, %v1080, %v1072
    %v1082 = vsel %vm1075, %v1078, %v1081
    %v1083 = vsel %vm1073, nan, %v1082
    %v1084 = vand.u32 2147483647, %v762
    %vm1085 = vcmp.le.f32.partialorder %v1084, 0.7853982
    %vm1086 = vcmp.lt.s32.totalorder %v762, 0
    %v1087 = vand.u32 %v762, 2139095040
    %v1088 = vshrl.u32 %v1087, 23
    %v1089 = vsub.s32 %v1088, 127
    %v1090 = vand.u32 2147483647, %v762
    %v1091 = vand.u32 %v1090, 8388607
    %v1092 = vor.u32 %v1091, 8388608
    %v1093 = vsub.s32 0, %v1092
    %v1094 = vadd.s32 %v1089, 1
    %vm1095 = vcmp.gt.s32.totalorder %v1094, 0
    %v1096 = vsel %vm1095, %v1094, 0
    %v1097 = vshrl.u32 %v1096, 5
    %v1098 = vand.u32 %v1096, 31
    %v1099 = vsub.s32 32, %v1098
    %v1100 = vshrl.u32 683565275, %v1099
    %v1101 = vshll.u32 683565275, %v1098
    %v1102 = vshrl.u32 2475754826, %v1099
    %v1103 = vor.u32 %v1101, %v1102
    %v1104 = vshll.u32 2475754826, %v1098
    %v1105 = vshrl.u32 2131351028, %v1099
    %v1106 = vor.u32 %v1104, %v1105
    %v1107 = vshll.u32 2131351028, %v1098
    %v1108 = vshrl.u32 2102212464, %v1099
    %v1109 = vor.u32 %v1107, %v1108
    %v1110 = vshll.u32 2102212464, %v1098
    %v1111 = vshrl.u32 920167782, %v1099
    %v1112 = vor.u32 %v1110, %v1111
    %v1113 = vshll.u32 920167782, %v1098
    %v1114 = vshrl.u32 1326507024, %v1099
    %v1115 = vor.u32 %v1113, %v1114
    %vm1116 = vcmp.lt.s32.totalorder %v1097, 1
    %vm1117 = vcmp.lt.s32.totalorder %v1097, 2
    %vm1118 = vcmp.lt.s32.totalorder %v1097, 3
    %vm1119 = vcmp.lt.s32.totalorder %v1097, 4
    %v1120 = vsel %vm1116, %v1100, %v1103
    %v1121 = vsel %vm1119, %v1109, 2102212464
    %v1122 = vsel %vm1118, %v1106, %v1121
    %v1123 = vsel %vm1117, %v1120, %v1122
    %v1124 = vsel %vm1116, %v1103, %v1106
    %v1125 = vsel %vm1119, %v1112, 920167782
    %v1126 = vsel %vm1118, %v1109, %v1125
    %v1127 = vsel %vm1117, %v1124, %v1126
    %v1128 = vsel %vm1116, %v1106, %v1109
    %v1129 = vsel %vm1119, %v1115, 1326507024
    %v1130 = vsel %vm1118, %v1112, %v1129
    %v1131 = vsel %vm1117, %v1128, %v1130
    %v1132 = vshll.u32 %v1092, 8
    %v1133 = vmul.u32.u64.compose %v1132, %v1131
    %v1134 = vextract.low.u32 %v1133
    %v1135 = vextract.high.u32 %v1133
    %v1136 = vmul.u32.u64.compose %v1132, %v1127
    %v1137 = vextract.low.u32 %v1136
    %v1138 = vextract.high.u32 %v1136
    %v1139 = vmul.u32 %v1132, %v1123
    %v1140 = vadd.s32 %v1135, %v1137
    %vm1141 = vc.u32 %v1135, %v1137
    %v1142 = vadd.s32 %v1138, 1
    %v1143 = vsel %vm1141, %v1142, %v1138
    %v1144 = vadd.s32 %v1139, %v1143
    %v1145 = vadd.s32 %v1144, 536870912
    %v1146 = vshrl.u32 %v1145, 30
    %v1147 = vshll.u32 %v1146, 30
    %v1148 = vsub.s32 %v1144, %v1147
    %vm1149 = vcmp.lt.s32.totalorder %v1148, 0
    %v1150 = vsub.s32 0, %v1148
    %v1151 = vsel %vm1149, %v1150, %v1148
    %v1152 = vclz %v1151
    %v1153 = vsub.s32 %v1152, 2
    %vm1154 = vcmp.gt.s32.totalorder 0, %v1153
    %v1155 = vsel %vm1154, 0, %v1153
    %v1156 = vsub.s32 32, %v1155
    %v1157 = vshll.u32 %v1148, %v1155
    %v1158 = vshrl.u32 %v1140, %v1156
    %v1159 = vor.u32 %v1157, %v1158
    %v1160 = vsub.s32 4294967266, %v1155
    %v1161 = vadd.s32 %v1160, 127
    %v1162 = vshll.u32 %v1161, 23
    %v1163 = vor.u32 4788187, %v1162
    %v1164 = vand.u32 2147483647, %v1163
    %v1166 = vcvt.s32.f32 %v1159
    %v1167 = vmul.f32 %v1166, %v1164
    %v1168 = vxor.u32 %v1167, 2147483648
    %v1169 = vsel %vm1086, %v1168, %v1167
    %v1170 = vsub.s32 4, %v1146
    %v1171 = vsel %vm1086, %v1170, %v1146
    %v1172 = vsel %vm1085, %v762, %v1169
    %v1173 = vsel %vm1085, 0, %v1171
    %v1174 = vcosq.f32.pop %v1172
    %v1175 = vsinq.f32.pop %v1172
    %vm1176 = vweird.f32 %v762
    %v1177 = vand.u32 %v1173, 3
    %vm1178 = vcmp.lt.s32.totalorder %v1177, 2
    %vm1179 = vcmp.eq.s32.totalorder %v1177, 0
    %v1180 = vxor.u32 %v1175, 2147483648
    %v1181 = vsel %vm1179, %v1174, %v1180
    %vm1182 = vcmp.eq.s32.totalorder %v1177, 2
    %v1183 = vxor.u32 %v1174, 2147483648
    %v1184 = vsel %vm1182, %v1183, %v1175
    %v1185 = vsel %vm1178, %v1181, %v1184
    %v1186 = vsel %vm1176, nan, %v1185
    %v1187 = vand.u32 2147483647, %v763
    %vm1188 = vcmp.le.f32.partialorder %v1187, 0.7853982
    %vm1189 = vcmp.lt.s32.totalorder %v763, 0
    %v1190 = vand.u32 %v763, 2139095040
    %v1191 = vshrl.u32 %v1190, 23
    %v1192 = vsub.s32 %v1191, 127
    %v1193 = vand.u32 2147483647, %v763
    %v1194 = vand.u32 %v1193, 8388607
    %v1195 = vor.u32 %v1194, 8388608
    %v1196 = vsub.s32 0, %v1195
    %v1197 = vadd.s32 %v1192, 1
    %vm1198 = vcmp.gt.s32.totalorder %v1197, 0
    %v1199 = vsel %vm1198, %v1197, 0
    %v1200 = vshrl.u32 %v1199, 5
    %v1201 = vand.u32 %v1199, 31
    %v1202 = vsub.s32 32, %v1201
    %v1203 = vshrl.u32 683565275, %v1202
    %v1204 = vshll.u32 683565275, %v1201
    %v1205 = vshrl.u32 2475754826, %v1202
    %v1206 = vor.u32 %v1204, %v1205
    %v1207 = vshll.u32 2475754826, %v1201
    %v1208 = vshrl.u32 2131351028, %v1202
    %v1209 = vor.u32 %v1207, %v1208
    %v1210 = vshll.u32 2131351028, %v1201
    %v1211 = vshrl.u32 2102212464, %v1202
    %v1212 = vor.u32 %v1210, %v1211
    %v1213 = vshll.u32 2102212464, %v1201
    %v1214 = vshrl.u32 920167782, %v1202
    %v1215 = vor.u32 %v1213, %v1214
    %v1216 = vshll.u32 920167782, %v1201
    %v1217 = vshrl.u32 1326507024, %v1202
    %v1218 = vor.u32 %v1216, %v1217
    %vm1219 = vcmp.lt.s32.totalorder %v1200, 1
    %vm1220 = vcmp.lt.s32.totalorder %v1200, 2
    %vm1221 = vcmp.lt.s32.totalorder %v1200, 3
    %vm1222 = vcmp.lt.s32.totalorder %v1200, 4
    %v1223 = vsel %vm1219, %v1203, %v1206
    %v1224 = vsel %vm1222, %v1212, 2102212464
    %v1225 = vsel %vm1221, %v1209, %v1224
    %v1226 = vsel %vm1220, %v1223, %v1225
    %v1227 = vsel %vm1219, %v1206, %v1209
    %v1228 = vsel %vm1222, %v1215, 920167782
    %v1229 = vsel %vm1221, %v1212, %v1228
    %v1230 = vsel %vm1220, %v1227, %v1229
    %v1231 = vsel %vm1219, %v1209, %v1212
    %v1232 = vsel %vm1222, %v1218, 1326507024
    %v1233 = vsel %vm1221, %v1215, %v1232
    %v1234 = vsel %vm1220, %v1231, %v1233
    %v1235 = vshll.u32 %v1195, 8
    %v1236 = vmul.u32.u64.compose %v1235, %v1234
    %v1237 = vextract.low.u32 %v1236
    %v1238 = vextract.high.u32 %v1236
    %v1239 = vmul.u32.u64.compose %v1235, %v1230
    %v1240 = vextract.low.u32 %v1239
    %v1241 = vextract.high.u32 %v1239
    %v1242 = vmul.u32 %v1235, %v1226
    %v1243 = vadd.s32 %v1238, %v1240
    %vm1244 = vc.u32 %v1238, %v1240
    %v1245 = vadd.s32 %v1241, 1
    %v1246 = vsel %vm1244, %v1245, %v1241
    %v1247 = vadd.s32 %v1242, %v1246
    %v1248 = vadd.s32 %v1247, 536870912
    %v1249 = vshrl.u32 %v1248, 30
    %v1250 = vshll.u32 %v1249, 30
    %v1251 = vsub.s32 %v1247, %v1250
    %vm1252 = vcmp.lt.s32.totalorder %v1251, 0
    %v1253 = vsub.s32 0, %v1251
    %v1254 = vsel %vm1252, %v1253, %v1251
    %v1255 = vclz %v1254
    %v1256 = vsub.s32 %v1255, 2
    %vm1257 = vcmp.gt.s32.totalorder 0, %v1256
    %v1258 = vsel %vm1257, 0, %v1256
    %v1259 = vsub.s32 32, %v1258
    %v1260 = vshll.u32 %v1251, %v1258
    %v1261 = vshrl.u32 %v1243, %v1259
    %v1262 = vor.u32 %v1260, %v1261
    %v1263 = vsub.s32 4294967266, %v1258
    %v1264 = vadd.s32 %v1263, 127
    %v1265 = vshll.u32 %v1264, 23
    %v1266 = vor.u32 4788187, %v1265
    %v1267 = vand.u32 2147483647, %v1266
    %v1269 = vcvt.s32.f32 %v1262
    %v1270 = vmul.f32 %v1269, %v1267
    %v1271 = vxor.u32 %v1270, 2147483648
    %v1272 = vsel %vm1189, %v1271, %v1270
    %v1273 = vsub.s32 4, %v1249
    %v1274 = vsel %vm1189, %v1273, %v1249
    %v1275 = vsel %vm1188, %v763, %v1272
    %v1276 = vsel %vm1188, 0, %v1274
    %v1277 = vcosq.f32.pop %v1275
    %v1278 = vsinq.f32.pop %v1275
    %vm1279 = vweird.f32 %v763
    %v1280 = vand.u32 %v1276, 3
    %vm1281 = vcmp.lt.s32.totalorder %v1280, 2
    %vm1282 = vcmp.eq.s32.totalorder %v1280, 0
    %v1283 = vxor.u32 %v1278, 2147483648
    %v1284 = vsel %vm1282, %v1277, %v1283
    %vm1285 = vcmp.eq.s32.totalorder %v1280, 2
    %v1286 = vxor.u32 %v1277, 2147483648
    %v1287 = vsel %vm1285, %v1286, %v1278
    %v1288 = vsel %vm1281, %v1284, %v1287
    %v1289 = vsel %vm1279, nan, %v1288
    %v1290 = vand.u32 2147483647, %v764
    %vm1291 = vcmp.le.f32.partialorder %v1290, 0.7853982
    %vm1292 = vcmp.lt.s32.totalorder %v764, 0
    %v1293 = vand.u32 %v764, 2139095040
    %v1294 = vshrl.u32 %v1293, 23
    %v1295 = vsub.s32 %v1294, 127
    %v1296 = vand.u32 2147483647, %v764
    %v1297 = vand.u32 %v1296, 8388607
    %v1298 = vor.u32 %v1297, 8388608
    %v1299 = vsub.s32 0, %v1298
    %v1300 = vadd.s32 %v1295, 1
    %vm1301 = vcmp.gt.s32.totalorder %v1300, 0
    %v1302 = vsel %vm1301, %v1300, 0
    %v1303 = vshrl.u32 %v1302, 5
    %v1304 = vand.u32 %v1302, 31
    %v1305 = vsub.s32 32, %v1304
    %v1306 = vshrl.u32 683565275, %v1305
    %v1307 = vshll.u32 683565275, %v1304
    %v1308 = vshrl.u32 2475754826, %v1305
    %v1309 = vor.u32 %v1307, %v1308
    %v1310 = vshll.u32 2475754826, %v1304
    %v1311 = vshrl.u32 2131351028, %v1305
    %v1312 = vor.u32 %v1310, %v1311
    %v1313 = vshll.u32 2131351028, %v1304
    %v1314 = vshrl.u32 2102212464, %v1305
    %v1315 = vor.u32 %v1313, %v1314
    %v1316 = vshll.u32 2102212464, %v1304
    %v1317 = vshrl.u32 920167782, %v1305
    %v1318 = vor.u32 %v1316, %v1317
    %v1319 = vshll.u32 920167782, %v1304
    %v1320 = vshrl.u32 1326507024, %v1305
    %v1321 = vor.u32 %v1319, %v1320
    %vm1322 = vcmp.lt.s32.totalorder %v1303, 1
    %vm1323 = vcmp.lt.s32.totalorder %v1303, 2
    %vm1324 = vcmp.lt.s32.totalorder %v1303, 3
    %vm1325 = vcmp.lt.s32.totalorder %v1303, 4
    %v1326 = vsel %vm1322, %v1306, %v1309
    %v1327 = vsel %vm1325, %v1315, 2102212464
    %v1328 = vsel %vm1324, %v1312, %v1327
    %v1329 = vsel %vm1323, %v1326, %v1328
    %v1330 = vsel %vm1322, %v1309, %v1312
    %v1331 = vsel %vm1325, %v1318, 920167782
    %v1332 = vsel %vm1324, %v1315, %v1331
    %v1333 = vsel %vm1323, %v1330, %v1332
    %v1334 = vsel %vm1322, %v1312, %v1315
    %v1335 = vsel %vm1325, %v1321, 1326507024
    %v1336 = vsel %vm1324, %v1318, %v1335
    %v1337 = vsel %vm1323, %v1334, %v1336
    %v1338 = vshll.u32 %v1298, 8
    %v1339 = vmul.u32.u64.compose %v1338, %v1337
    %v1340 = vextract.low.u32 %v1339
    %v1341 = vextract.high.u32 %v1339
    %v1342 = vmul.u32.u64.compose %v1338, %v1333
    %v1343 = vextract.low.u32 %v1342
    %v1344 = vextract.high.u32 %v1342
    %v1345 = vmul.u32 %v1338, %v1329
    %v1346 = vadd.s32 %v1341, %v1343
    %vm1347 = vc.u32 %v1341, %v1343
    %v1348 = vadd.s32 %v1344, 1
    %v1349 = vsel %vm1347, %v1348, %v1344
    %v1350 = vadd.s32 %v1345, %v1349
    %v1351 = vadd.s32 %v1350, 536870912
    %v1352 = vshrl.u32 %v1351, 30
    %v1353 = vshll.u32 %v1352, 30
    %v1354 = vsub.s32 %v1350, %v1353
    %vm1355 = vcmp.lt.s32.totalorder %v1354, 0
    %v1356 = vsub.s32 0, %v1354
    %v1357 = vsel %vm1355, %v1356, %v1354
    %v1358 = vclz %v1357
    %v1359 = vsub.s32 %v1358, 2
    %vm1360 = vcmp.gt.s32.totalorder 0, %v1359
    %v1361 = vsel %vm1360, 0, %v1359
    %v1362 = vsub.s32 32, %v1361
    %v1363 = vshll.u32 %v1354, %v1361
    %v1364 = vshrl.u32 %v1346, %v1362
    %v1365 = vor.u32 %v1363, %v1364
    %v1366 = vsub.s32 4294967266, %v1361
    %v1367 = vadd.s32 %v1366, 127
    %v1368 = vshll.u32 %v1367, 23
    %v1369 = vor.u32 4788187, %v1368
    %v1370 = vand.u32 2147483647, %v1369
    %v1372 = vcvt.s32.f32 %v1365
    %v1373 = vmul.f32 %v1372, %v1370
    %v1374 = vxor.u32 %v1373, 2147483648
    %v1375 = vsel %vm1292, %v1374, %v1373
    %v1376 = vsub.s32 4, %v1352
    %v1377 = vsel %vm1292, %v1376, %v1352
    %v1378 = vsel %vm1291, %v764, %v1375
    %v1379 = vsel %vm1291, 0, %v1377
    %v1380 = vcosq.f32.pop %v1378
    %v1381 = vsinq.f32.pop %v1378
    %vm1382 = vweird.f32 %v764
    %v1383 = vand.u32 %v1379, 3
    %vm1384 = vcmp.lt.s32.totalorder %v1383, 2
    %vm1385 = vcmp.eq.s32.totalorder %v1383, 0
    %v1386 = vxor.u32 %v1381, 2147483648
    %v1387 = vsel %vm1385, %v1380, %v1386
    %vm1388 = vcmp.eq.s32.totalorder %v1383, 2
    %v1389 = vxor.u32 %v1380, 2147483648
    %v1390 = vsel %vm1388, %v1389, %v1381
    %v1391 = vsel %vm1384, %v1387, %v1390
    %v1392 = vsel %vm1382, nan, %v1391
    %v1393 = vand.u32 2147483647, %v765
    %vm1394 = vcmp.le.f32.partialorder %v1393, 0.7853982
    %vm1395 = vcmp.lt.s32.totalorder %v765, 0
    %v1396 = vand.u32 %v765, 2139095040
    %v1397 = vshrl.u32 %v1396, 23
    %v1398 = vsub.s32 %v1397, 127
    %v1399 = vand.u32 2147483647, %v765
    %v1400 = vand.u32 %v1399, 8388607
    %v1401 = vor.u32 %v1400, 8388608
    %v1402 = vsub.s32 0, %v1401
    %v1403 = vadd.s32 %v1398, 1
    %vm1404 = vcmp.gt.s32.totalorder %v1403, 0
    %v1405 = vsel %vm1404, %v1403, 0
    %v1406 = vshrl.u32 %v1405, 5
    %v1407 = vand.u32 %v1405, 31
    %v1408 = vsub.s32 32, %v1407
    %v1409 = vshrl.u32 683565275, %v1408
    %v1410 = vshll.u32 683565275, %v1407
    %v1411 = vshrl.u32 2475754826, %v1408
    %v1412 = vor.u32 %v1410, %v1411
    %v1413 = vshll.u32 2475754826, %v1407
    %v1414 = vshrl.u32 2131351028, %v1408
    %v1415 = vor.u32 %v1413, %v1414
    %v1416 = vshll.u32 2131351028, %v1407
    %v1417 = vshrl.u32 2102212464, %v1408
    %v1418 = vor.u32 %v1416, %v1417
    %v1419 = vshll.u32 2102212464, %v1407
    %v1420 = vshrl.u32 920167782, %v1408
    %v1421 = vor.u32 %v1419, %v1420
    %v1422 = vshll.u32 920167782, %v1407
    %v1423 = vshrl.u32 1326507024, %v1408
    %v1424 = vor.u32 %v1422, %v1423
    %vm1425 = vcmp.lt.s32.totalorder %v1406, 1
    %vm1426 = vcmp.lt.s32.totalorder %v1406, 2
    %vm1427 = vcmp.lt.s32.totalorder %v1406, 3
    %vm1428 = vcmp.lt.s32.totalorder %v1406, 4
    %v1429 = vsel %vm1425, %v1409, %v1412
    %v1430 = vsel %vm1428, %v1418, 2102212464
    %v1431 = vsel %vm1427, %v1415, %v1430
    %v1432 = vsel %vm1426, %v1429, %v1431
    %v1433 = vsel %vm1425, %v1412, %v1415
    %v1434 = vsel %vm1428, %v1421, 920167782
    %v1435 = vsel %vm1427, %v1418, %v1434
    %v1436 = vsel %vm1426, %v1433, %v1435
    %v1437 = vsel %vm1425, %v1415, %v1418
    %v1438 = vsel %vm1428, %v1424, 1326507024
    %v1439 = vsel %vm1427, %v1421, %v1438
    %v1440 = vsel %vm1426, %v1437, %v1439
    %v1441 = vshll.u32 %v1401, 8
    %v1442 = vmul.u32.u64.compose %v1441, %v1440
    %v1443 = vextract.low.u32 %v1442
    %v1444 = vextract.high.u32 %v1442
    %v1445 = vmul.u32.u64.compose %v1441, %v1436
    %v1446 = vextract.low.u32 %v1445
    %v1447 = vextract.high.u32 %v1445
    %v1448 = vmul.u32 %v1441, %v1432
    %v1449 = vadd.s32 %v1444, %v1446
    %vm1450 = vc.u32 %v1444, %v1446
    %v1451 = vadd.s32 %v1447, 1
    %v1452 = vsel %vm1450, %v1451, %v1447
    %v1453 = vadd.s32 %v1448, %v1452
    %v1454 = vadd.s32 %v1453, 536870912
    %v1455 = vshrl.u32 %v1454, 30
    %v1456 = vshll.u32 %v1455, 30
    %v1457 = vsub.s32 %v1453, %v1456
    %vm1458 = vcmp.lt.s32.totalorder %v1457, 0
    %v1459 = vsub.s32 0, %v1457
    %v1460 = vsel %vm1458, %v1459, %v1457
    %v1461 = vclz %v1460
    %v1462 = vsub.s32 %v1461, 2
    %vm1463 = vcmp.gt.s32.totalorder 0, %v1462
    %v1464 = vsel %vm1463, 0, %v1462
    %v1465 = vsub.s32 32, %v1464
    %v1466 = vshll.u32 %v1457, %v1464
    %v1467 = vshrl.u32 %v1449, %v1465
    %v1468 = vor.u32 %v1466, %v1467
    %v1469 = vsub.s32 4294967266, %v1464
    %v1470 = vadd.s32 %v1469, 127
    %v1471 = vshll.u32 %v1470, 23
    %v1472 = vor.u32 4788187, %v1471
    %v1473 = vand.u32 2147483647, %v1472
    %v1475 = vcvt.s32.f32 %v1468
    %v1476 = vmul.f32 %v1475, %v1473
    %v1477 = vxor.u32 %v1476, 2147483648
    %v1478 = vsel %vm1395, %v1477, %v1476
    %v1479 = vsub.s32 4, %v1455
    %v1480 = vsel %vm1395, %v1479, %v1455
    %v1481 = vsel %vm1394, %v765, %v1478
    %v1482 = vsel %vm1394, 0, %v1480
    %v1483 = vcosq.f32.pop %v1481
    %v1484 = vsinq.f32.pop %v1481
    %vm1485 = vweird.f32 %v765
    %v1486 = vand.u32 %v1482, 3
    %vm1487 = vcmp.lt.s32.totalorder %v1486, 2
    %vm1488 = vcmp.eq.s32.totalorder %v1486, 0
    %v1489 = vxor.u32 %v1484, 2147483648
    %v1490 = vsel %vm1488, %v1483, %v1489
    %vm1491 = vcmp.eq.s32.totalorder %v1486, 2
    %v1492 = vxor.u32 %v1483, 2147483648
    %v1493 = vsel %vm1491, %v1492, %v1484
    %v1494 = vsel %vm1487, %v1490, %v1493
    %v1495 = vsel %vm1485, nan, %v1494
    %v1496 = vand.u32 2147483647, %v766
    %vm1497 = vcmp.le.f32.partialorder %v1496, 0.7853982
    %vm1498 = vcmp.lt.s32.totalorder %v766, 0
    %v1499 = vand.u32 %v766, 2139095040
    %v1500 = vshrl.u32 %v1499, 23
    %v1501 = vsub.s32 %v1500, 127
    %v1502 = vand.u32 2147483647, %v766
    %v1503 = vand.u32 %v1502, 8388607
    %v1504 = vor.u32 %v1503, 8388608
    %v1505 = vsub.s32 0, %v1504
    %v1506 = vadd.s32 %v1501, 1
    %vm1507 = vcmp.gt.s32.totalorder %v1506, 0
    %v1508 = vsel %vm1507, %v1506, 0
    %v1509 = vshrl.u32 %v1508, 5
    %v1510 = vand.u32 %v1508, 31
    %v1511 = vsub.s32 32, %v1510
    %v1512 = vshrl.u32 683565275, %v1511
    %v1513 = vshll.u32 683565275, %v1510
    %v1514 = vshrl.u32 2475754826, %v1511
    %v1515 = vor.u32 %v1513, %v1514
    %v1516 = vshll.u32 2475754826, %v1510
    %v1517 = vshrl.u32 2131351028, %v1511
    %v1518 = vor.u32 %v1516, %v1517
    %v1519 = vshll.u32 2131351028, %v1510
    %v1520 = vshrl.u32 2102212464, %v1511
    %v1521 = vor.u32 %v1519, %v1520
    %v1522 = vshll.u32 2102212464, %v1510
    %v1523 = vshrl.u32 920167782, %v1511
    %v1524 = vor.u32 %v1522, %v1523
    %v1525 = vshll.u32 920167782, %v1510
    %v1526 = vshrl.u32 1326507024, %v1511
    %v1527 = vor.u32 %v1525, %v1526
    %vm1528 = vcmp.lt.s32.totalorder %v1509, 1
    %vm1529 = vcmp.lt.s32.totalorder %v1509, 2
    %vm1530 = vcmp.lt.s32.totalorder %v1509, 3
    %vm1531 = vcmp.lt.s32.totalorder %v1509, 4
    %v1532 = vsel %vm1528, %v1512, %v1515
    %v1533 = vsel %vm1531, %v1521, 2102212464
    %v1534 = vsel %vm1530, %v1518, %v1533
    %v1535 = vsel %vm1529, %v1532, %v1534
    %v1536 = vsel %vm1528, %v1515, %v1518
    %v1537 = vsel %vm1531, %v1524, 920167782
    %v1538 = vsel %vm1530, %v1521, %v1537
    %v1539 = vsel %vm1529, %v1536, %v1538
    %v1540 = vsel %vm1528, %v1518, %v1521
    %v1541 = vsel %vm1531, %v1527, 1326507024
    %v1542 = vsel %vm1530, %v1524, %v1541
    %v1543 = vsel %vm1529, %v1540, %v1542
    %v1544 = vshll.u32 %v1504, 8
    %v1545 = vmul.u32.u64.compose %v1544, %v1543
    %v1546 = vextract.low.u32 %v1545
    %v1547 = vextract.high.u32 %v1545
    %v1548 = vmul.u32.u64.compose %v1544, %v1539
    %v1549 = vextract.low.u32 %v1548
    %v1550 = vextract.high.u32 %v1548
    %v1551 = vmul.u32 %v1544, %v1535
    %v1552 = vadd.s32 %v1547, %v1549
    %vm1553 = vc.u32 %v1547, %v1549
    %v1554 = vadd.s32 %v1550, 1
    %v1555 = vsel %vm1553, %v1554, %v1550
    %v1556 = vadd.s32 %v1551, %v1555
    %v1557 = vadd.s32 %v1556, 536870912
    %v1558 = vshrl.u32 %v1557, 30
    %v1559 = vshll.u32 %v1558, 30
    %v1560 = vsub.s32 %v1556, %v1559
    %vm1561 = vcmp.lt.s32.totalorder %v1560, 0
    %v1562 = vsub.s32 0, %v1560
    %v1563 = vsel %vm1561, %v1562, %v1560
    %v1564 = vclz %v1563
    %v1565 = vsub.s32 %v1564, 2
    %vm1566 = vcmp.gt.s32.totalorder 0, %v1565
    %v1567 = vsel %vm1566, 0, %v1565
    %v1568 = vsub.s32 32, %v1567
    %v1569 = vshll.u32 %v1560, %v1567
    %v1570 = vshrl.u32 %v1552, %v1568
    %v1571 = vor.u32 %v1569, %v1570
    %v1572 = vsub.s32 4294967266, %v1567
    %v1573 = vadd.s32 %v1572, 127
    %v1574 = vshll.u32 %v1573, 23
    %v1575 = vor.u32 4788187, %v1574
    %v1576 = vand.u32 2147483647, %v1575
    %v1578 = vcvt.s32.f32 %v1571
    %v1579 = vmul.f32 %v1578, %v1576
    %v1580 = vxor.u32 %v1579, 2147483648
    %v1581 = vsel %vm1498, %v1580, %v1579
    %v1582 = vsub.s32 4, %v1558
    %v1583 = vsel %vm1498, %v1582, %v1558
    %v1584 = vsel %vm1497, %v766, %v1581
    %v1585 = vsel %vm1497, 0, %v1583
    %v1586 = vcosq.f32.pop %v1584
    %v1587 = vsinq.f32.pop %v1584
    %vm1588 = vweird.f32 %v766
    %v1589 = vand.u32 %v1585, 3
    %vm1590 = vcmp.lt.s32.totalorder %v1589, 2
    %vm1591 = vcmp.eq.s32.totalorder %v1589, 0
    %v1592 = vxor.u32 %v1587, 2147483648
    %v1593 = vsel %vm1591, %v1586, %v1592
    %vm1594 = vcmp.eq.s32.totalorder %v1589, 2
    %v1595 = vxor.u32 %v1586, 2147483648
    %v1596 = vsel %vm1594, %v1595, %v1587
    %v1597 = vsel %vm1590, %v1593, %v1596
    %v1598 = vsel %vm1588, nan, %v1597
    %v1599 = vand.u32 2147483647, %v767
    %vm1600 = vcmp.le.f32.partialorder %v1599, 0.7853982
    %vm1601 = vcmp.lt.s32.totalorder %v767, 0
    %v1602 = vand.u32 %v767, 2139095040
    %v1603 = vshrl.u32 %v1602, 23
    %v1604 = vsub.s32 %v1603, 127
    %v1605 = vand.u32 2147483647, %v767
    %v1606 = vand.u32 %v1605, 8388607
    %v1607 = vor.u32 %v1606, 8388608
    %v1608 = vsub.s32 0, %v1607
    %v1609 = vadd.s32 %v1604, 1
    %vm1610 = vcmp.gt.s32.totalorder %v1609, 0
    %v1611 = vsel %vm1610, %v1609, 0
    %v1612 = vshrl.u32 %v1611, 5
    %v1613 = vand.u32 %v1611, 31
    %v1614 = vsub.s32 32, %v1613
    %v1615 = vshrl.u32 683565275, %v1614
    %v1616 = vshll.u32 683565275, %v1613
    %v1617 = vshrl.u32 2475754826, %v1614
    %v1618 = vor.u32 %v1616, %v1617
    %v1619 = vshll.u32 2475754826, %v1613
    %v1620 = vshrl.u32 2131351028, %v1614
    %v1621 = vor.u32 %v1619, %v1620
    %v1622 = vshll.u32 2131351028, %v1613
    %v1623 = vshrl.u32 2102212464, %v1614
    %v1624 = vor.u32 %v1622, %v1623
    %v1625 = vshll.u32 2102212464, %v1613
    %v1626 = vshrl.u32 920167782, %v1614
    %v1627 = vor.u32 %v1625, %v1626
    %v1628 = vshll.u32 920167782, %v1613
    %v1629 = vshrl.u32 1326507024, %v1614
    %v1630 = vor.u32 %v1628, %v1629
    %vm1631 = vcmp.lt.s32.totalorder %v1612, 1
    %vm1632 = vcmp.lt.s32.totalorder %v1612, 2
    %vm1633 = vcmp.lt.s32.totalorder %v1612, 3
    %vm1634 = vcmp.lt.s32.totalorder %v1612, 4
    %v1635 = vsel %vm1631, %v1615, %v1618
    %v1636 = vsel %vm1634, %v1624, 2102212464
    %v1637 = vsel %vm1633, %v1621, %v1636
    %v1638 = vsel %vm1632, %v1635, %v1637
    %v1639 = vsel %vm1631, %v1618, %v1621
    %v1640 = vsel %vm1634, %v1627, 920167782
    %v1641 = vsel %vm1633, %v1624, %v1640
    %v1642 = vsel %vm1632, %v1639, %v1641
    %v1643 = vsel %vm1631, %v1621, %v1624
    %v1644 = vsel %vm1634, %v1630, 1326507024
    %v1645 = vsel %vm1633, %v1627, %v1644
    %v1646 = vsel %vm1632, %v1643, %v1645
    %v1647 = vshll.u32 %v1607, 8
    %v1648 = vmul.u32.u64.compose %v1647, %v1646
    %v1649 = vextract.low.u32 %v1648
    %v1650 = vextract.high.u32 %v1648
    %v1651 = vmul.u32.u64.compose %v1647, %v1642
    %v1652 = vextract.low.u32 %v1651
    %v1653 = vextract.high.u32 %v1651
    %v1654 = vmul.u32 %v1647, %v1638
    %v1655 = vadd.s32 %v1650, %v1652
    %vm1656 = vc.u32 %v1650, %v1652
    %v1657 = vadd.s32 %v1653, 1
    %v1658 = vsel %vm1656, %v1657, %v1653
    %v1659 = vadd.s32 %v1654, %v1658
    %v1660 = vadd.s32 %v1659, 536870912
    %v1661 = vshrl.u32 %v1660, 30
    %v1662 = vshll.u32 %v1661, 30
    %v1663 = vsub.s32 %v1659, %v1662
    %vm1664 = vcmp.lt.s32.totalorder %v1663, 0
    %v1665 = vsub.s32 0, %v1663
    %v1666 = vsel %vm1664, %v1665, %v1663
    %v1667 = vclz %v1666
    %v1668 = vsub.s32 %v1667, 2
    %vm1669 = vcmp.gt.s32.totalorder 0, %v1668
    %v1670 = vsel %vm1669, 0, %v1668
    %v1671 = vsub.s32 32, %v1670
    %v1672 = vshll.u32 %v1663, %v1670
    %v1673 = vshrl.u32 %v1655, %v1671
    %v1674 = vor.u32 %v1672, %v1673
    %v1675 = vsub.s32 4294967266, %v1670
    %v1676 = vadd.s32 %v1675, 127
    %v1677 = vshll.u32 %v1676, 23
    %v1678 = vor.u32 4788187, %v1677
    %v1679 = vand.u32 2147483647, %v1678
    %v1681 = vcvt.s32.f32 %v1674
    %v1682 = vmul.f32 %v1681, %v1679
    %v1683 = vxor.u32 %v1682, 2147483648
    %v1684 = vsel %vm1601, %v1683, %v1682
    %v1685 = vsub.s32 4, %v1661
    %v1686 = vsel %vm1601, %v1685, %v1661
    %v1687 = vsel %vm1600, %v767, %v1684
    %v1688 = vsel %vm1600, 0, %v1686
    %v1689 = vcosq.f32.pop %v1687
    %v1690 = vsinq.f32.pop %v1687
    %vm1691 = vweird.f32 %v767
    %v1692 = vand.u32 %v1688, 3
    %vm1693 = vcmp.lt.s32.totalorder %v1692, 2
    %vm1694 = vcmp.eq.s32.totalorder %v1692, 0
    %v1695 = vxor.u32 %v1690, 2147483648
    %v1696 = vsel %vm1694, %v1689, %v1695
    %vm1697 = vcmp.eq.s32.totalorder %v1692, 2
    %v1698 = vxor.u32 %v1689, 2147483648
    %v1699 = vsel %vm1697, %v1698, %v1690
    %v1700 = vsel %vm1693, %v1696, %v1699
    %v1701 = vsel %vm1691, nan, %v1700
    %v1702 = vand.u32 2147483647, %v768
    %vm1703 = vcmp.le.f32.partialorder %v1702, 0.7853982
    %vm1704 = vcmp.lt.s32.totalorder %v768, 0
    %v1705 = vand.u32 %v768, 2139095040
    %v1706 = vshrl.u32 %v1705, 23
    %v1707 = vsub.s32 %v1706, 127
    %v1708 = vand.u32 2147483647, %v768
    %v1709 = vand.u32 %v1708, 8388607
    %v1710 = vor.u32 %v1709, 8388608
    %v1711 = vsub.s32 0, %v1710
    %v1712 = vadd.s32 %v1707, 1
    %vm1713 = vcmp.gt.s32.totalorder %v1712, 0
    %v1714 = vsel %vm1713, %v1712, 0
    %v1715 = vshrl.u32 %v1714, 5
    %v1716 = vand.u32 %v1714, 31
    %v1717 = vsub.s32 32, %v1716
    %v1718 = vshrl.u32 683565275, %v1717
    %v1719 = vshll.u32 683565275, %v1716
    %v1720 = vshrl.u32 2475754826, %v1717
    %v1721 = vor.u32 %v1719, %v1720
    %v1722 = vshll.u32 2475754826, %v1716
    %v1723 = vshrl.u32 2131351028, %v1717
    %v1724 = vor.u32 %v1722, %v1723
    %v1725 = vshll.u32 2131351028, %v1716
    %v1726 = vshrl.u32 2102212464, %v1717
    %v1727 = vor.u32 %v1725, %v1726
    %v1728 = vshll.u32 2102212464, %v1716
    %v1729 = vshrl.u32 920167782, %v1717
    %v1730 = vor.u32 %v1728, %v1729
    %v1731 = vshll.u32 920167782, %v1716
    %v1732 = vshrl.u32 1326507024, %v1717
    %v1733 = vor.u32 %v1731, %v1732
    %vm1734 = vcmp.lt.s32.totalorder %v1715, 1
    %vm1735 = vcmp.lt.s32.totalorder %v1715, 2
    %vm1736 = vcmp.lt.s32.totalorder %v1715, 3
    %vm1737 = vcmp.lt.s32.totalorder %v1715, 4
    %v1738 = vsel %vm1734, %v1718, %v1721
    %v1739 = vsel %vm1737, %v1727, 2102212464
    %v1740 = vsel %vm1736, %v1724, %v1739
    %v1741 = vsel %vm1735, %v1738, %v1740
    %v1742 = vsel %vm1734, %v1721, %v1724
    %v1743 = vsel %vm1737, %v1730, 920167782
    %v1744 = vsel %vm1736, %v1727, %v1743
    %v1745 = vsel %vm1735, %v1742, %v1744
    %v1746 = vsel %vm1734, %v1724, %v1727
    %v1747 = vsel %vm1737, %v1733, 1326507024
    %v1748 = vsel %vm1736, %v1730, %v1747
    %v1749 = vsel %vm1735, %v1746, %v1748
    %v1750 = vshll.u32 %v1710, 8
    %v1751 = vmul.u32.u64.compose %v1750, %v1749
    %v1752 = vextract.low.u32 %v1751
    %v1753 = vextract.high.u32 %v1751
    %v1754 = vmul.u32.u64.compose %v1750, %v1745
    %v1755 = vextract.low.u32 %v1754
    %v1756 = vextract.high.u32 %v1754
    %v1757 = vmul.u32 %v1750, %v1741
    %v1758 = vadd.s32 %v1753, %v1755
    %vm1759 = vc.u32 %v1753, %v1755
    %v1760 = vadd.s32 %v1756, 1
    %v1761 = vsel %vm1759, %v1760, %v1756
    %v1762 = vadd.s32 %v1757, %v1761
    %v1763 = vadd.s32 %v1762, 536870912
    %v1764 = vshrl.u32 %v1763, 30
    %v1765 = vshll.u32 %v1764, 30
    %v1766 = vsub.s32 %v1762, %v1765
    %vm1767 = vcmp.lt.s32.totalorder %v1766, 0
    %v1768 = vsub.s32 0, %v1766
    %v1769 = vsel %vm1767, %v1768, %v1766
    %v1770 = vclz %v1769
    %v1771 = vsub.s32 %v1770, 2
    %vm1772 = vcmp.gt.s32.totalorder 0, %v1771
    %v1773 = vsel %vm1772, 0, %v1771
    %v1774 = vsub.s32 32, %v1773
    %v1775 = vshll.u32 %v1766, %v1773
    %v1776 = vshrl.u32 %v1758, %v1774
    %v1777 = vor.u32 %v1775, %v1776
    %v1778 = vsub.s32 4294967266, %v1773
    %v1779 = vadd.s32 %v1778, 127
    %v1780 = vshll.u32 %v1779, 23
    %v1781 = vor.u32 4788187, %v1780
    %v1782 = vand.u32 2147483647, %v1781
    %v1784 = vcvt.s32.f32 %v1777
    %v1785 = vmul.f32 %v1784, %v1782
    %v1786 = vxor.u32 %v1785, 2147483648
    %v1787 = vsel %vm1704, %v1786, %v1785
    %v1788 = vsub.s32 4, %v1764
    %v1789 = vsel %vm1704, %v1788, %v1764
    %v1790 = vsel %vm1703, %v768, %v1787
    %v1791 = vsel %vm1703, 0, %v1789
    %v1792 = vcosq.f32.pop %v1790
    %v1793 = vsinq.f32.pop %v1790
    %vm1794 = vweird.f32 %v768
    %v1795 = vand.u32 %v1791, 3
    %vm1796 = vcmp.lt.s32.totalorder %v1795, 2
    %vm1797 = vcmp.eq.s32.totalorder %v1795, 0
    %v1798 = vxor.u32 %v1793, 2147483648
    %v1799 = vsel %vm1797, %v1792, %v1798
    %vm1800 = vcmp.eq.s32.totalorder %v1795, 2
    %v1801 = vxor.u32 %v1792, 2147483648
    %v1802 = vsel %vm1800, %v1801, %v1793
    %v1803 = vsel %vm1796, %v1799, %v1802
    %v1804 = vsel %vm1794, nan, %v1803
    %v1805 = vand.u32 2147483647, %v769
    %vm1806 = vcmp.le.f32.partialorder %v1805, 0.7853982
    %vm1807 = vcmp.lt.s32.totalorder %v769, 0
    %v1808 = vand.u32 %v769, 2139095040
    %v1809 = vshrl.u32 %v1808, 23
    %v1810 = vsub.s32 %v1809, 127
    %v1811 = vand.u32 2147483647, %v769
    %v1812 = vand.u32 %v1811, 8388607
    %v1813 = vor.u32 %v1812, 8388608
    %v1814 = vsub.s32 0, %v1813
    %v1815 = vadd.s32 %v1810, 1
    %vm1816 = vcmp.gt.s32.totalorder %v1815, 0
    %v1817 = vsel %vm1816, %v1815, 0
    %v1818 = vshrl.u32 %v1817, 5
    %v1819 = vand.u32 %v1817, 31
    %v1820 = vsub.s32 32, %v1819
    %v1821 = vshrl.u32 683565275, %v1820
    %v1822 = vshll.u32 683565275, %v1819
    %v1823 = vshrl.u32 2475754826, %v1820
    %v1824 = vor.u32 %v1822, %v1823
    %v1825 = vshll.u32 2475754826, %v1819
    %v1826 = vshrl.u32 2131351028, %v1820
    %v1827 = vor.u32 %v1825, %v1826
    %v1828 = vshll.u32 2131351028, %v1819
    %v1829 = vshrl.u32 2102212464, %v1820
    %v1830 = vor.u32 %v1828, %v1829
    %v1831 = vshll.u32 2102212464, %v1819
    %v1832 = vshrl.u32 920167782, %v1820
    %v1833 = vor.u32 %v1831, %v1832
    %v1834 = vshll.u32 920167782, %v1819
    %v1835 = vshrl.u32 1326507024, %v1820
    %v1836 = vor.u32 %v1834, %v1835
    %vm1837 = vcmp.lt.s32.totalorder %v1818, 1
    %vm1838 = vcmp.lt.s32.totalorder %v1818, 2
    %vm1839 = vcmp.lt.s32.totalorder %v1818, 3
    %vm1840 = vcmp.lt.s32.totalorder %v1818, 4
    %v1841 = vsel %vm1837, %v1821, %v1824
    %v1842 = vsel %vm1840, %v1830, 2102212464
    %v1843 = vsel %vm1839, %v1827, %v1842
    %v1844 = vsel %vm1838, %v1841, %v1843
    %v1845 = vsel %vm1837, %v1824, %v1827
    %v1846 = vsel %vm1840, %v1833, 920167782
    %v1847 = vsel %vm1839, %v1830, %v1846
    %v1848 = vsel %vm1838, %v1845, %v1847
    %v1849 = vsel %vm1837, %v1827, %v1830
    %v1850 = vsel %vm1840, %v1836, 1326507024
    %v1851 = vsel %vm1839, %v1833, %v1850
    %v1852 = vsel %vm1838, %v1849, %v1851
    %v1853 = vshll.u32 %v1813, 8
    %v1854 = vmul.u32.u64.compose %v1853, %v1852
    %v1855 = vextract.low.u32 %v1854
    %v1856 = vextract.high.u32 %v1854
    %v1857 = vmul.u32.u64.compose %v1853, %v1848
    %v1858 = vextract.low.u32 %v1857
    %v1859 = vextract.high.u32 %v1857
    %v1860 = vmul.u32 %v1853, %v1844
    %v1861 = vadd.s32 %v1856, %v1858
    %vm1862 = vc.u32 %v1856, %v1858
    %v1863 = vadd.s32 %v1859, 1
    %v1864 = vsel %vm1862, %v1863, %v1859
    %v1865 = vadd.s32 %v1860, %v1864
    %v1866 = vadd.s32 %v1865, 536870912
    %v1867 = vshrl.u32 %v1866, 30
    %v1868 = vshll.u32 %v1867, 30
    %v1869 = vsub.s32 %v1865, %v1868
    %vm1870 = vcmp.lt.s32.totalorder %v1869, 0
    %v1871 = vsub.s32 0, %v1869
    %v1872 = vsel %vm1870, %v1871, %v1869
    %v1873 = vclz %v1872
    %v1874 = vsub.s32 %v1873, 2
    %vm1875 = vcmp.gt.s32.totalorder 0, %v1874
    %v1876 = vsel %vm1875, 0, %v1874
    %v1877 = vsub.s32 32, %v1876
    %v1878 = vshll.u32 %v1869, %v1876
    %v1879 = vshrl.u32 %v1861, %v1877
    %v1880 = vor.u32 %v1878, %v1879
    %v1881 = vsub.s32 4294967266, %v1876
    %v1882 = vadd.s32 %v1881, 127
    %v1883 = vshll.u32 %v1882, 23
    %v1884 = vor.u32 4788187, %v1883
    %v1885 = vand.u32 2147483647, %v1884
    %v1887 = vcvt.s32.f32 %v1880
    %v1888 = vmul.f32 %v1887, %v1885
    %v1889 = vxor.u32 %v1888, 2147483648
    %v1890 = vsel %vm1807, %v1889, %v1888
    %v1891 = vsub.s32 4, %v1867
    %v1892 = vsel %vm1807, %v1891, %v1867
    %v1893 = vsel %vm1806, %v769, %v1890
    %v1894 = vsel %vm1806, 0, %v1892
    %v1895 = vcosq.f32.pop %v1893
    %v1896 = vsinq.f32.pop %v1893
    %vm1897 = vweird.f32 %v769
    %v1898 = vand.u32 %v1894, 3
    %vm1899 = vcmp.lt.s32.totalorder %v1898, 2
    %vm1900 = vcmp.eq.s32.totalorder %v1898, 0
    %v1901 = vxor.u32 %v1896, 2147483648
    %v1902 = vsel %vm1900, %v1895, %v1901
    %vm1903 = vcmp.eq.s32.totalorder %v1898, 2
    %v1904 = vxor.u32 %v1895, 2147483648
    %v1905 = vsel %vm1903, %v1904, %v1896
    %v1906 = vsel %vm1899, %v1902, %v1905
    %v1907 = vsel %vm1897, nan, %v1906
    %v1908 = vand.u32 2147483647, %v770
    %vm1909 = vcmp.le.f32.partialorder %v1908, 0.7853982
    %vm1910 = vcmp.lt.s32.totalorder %v770, 0
    %v1911 = vand.u32 %v770, 2139095040
    %v1912 = vshrl.u32 %v1911, 23
    %v1913 = vsub.s32 %v1912, 127
    %v1914 = vand.u32 2147483647, %v770
    %v1915 = vand.u32 %v1914, 8388607
    %v1916 = vor.u32 %v1915, 8388608
    %v1917 = vsub.s32 0, %v1916
    %v1918 = vadd.s32 %v1913, 1
    %vm1919 = vcmp.gt.s32.totalorder %v1918, 0
    %v1920 = vsel %vm1919, %v1918, 0
    %v1921 = vshrl.u32 %v1920, 5
    %v1922 = vand.u32 %v1920, 31
    %v1923 = vsub.s32 32, %v1922
    %v1924 = vshrl.u32 683565275, %v1923
    %v1925 = vshll.u32 683565275, %v1922
    %v1926 = vshrl.u32 2475754826, %v1923
    %v1927 = vor.u32 %v1925, %v1926
    %v1928 = vshll.u32 2475754826, %v1922
    %v1929 = vshrl.u32 2131351028, %v1923
    %v1930 = vor.u32 %v1928, %v1929
    %v1931 = vshll.u32 2131351028, %v1922
    %v1932 = vshrl.u32 2102212464, %v1923
    %v1933 = vor.u32 %v1931, %v1932
    %v1934 = vshll.u32 2102212464, %v1922
    %v1935 = vshrl.u32 920167782, %v1923
    %v1936 = vor.u32 %v1934, %v1935
    %v1937 = vshll.u32 920167782, %v1922
    %v1938 = vshrl.u32 1326507024, %v1923
    %v1939 = vor.u32 %v1937, %v1938
    %vm1940 = vcmp.lt.s32.totalorder %v1921, 1
    %vm1941 = vcmp.lt.s32.totalorder %v1921, 2
    %vm1942 = vcmp.lt.s32.totalorder %v1921, 3
    %vm1943 = vcmp.lt.s32.totalorder %v1921, 4
    %v1944 = vsel %vm1940, %v1924, %v1927
    %v1945 = vsel %vm1943, %v1933, 2102212464
    %v1946 = vsel %vm1942, %v1930, %v1945
    %v1947 = vsel %vm1941, %v1944, %v1946
    %v1948 = vsel %vm1940, %v1927, %v1930
    %v1949 = vsel %vm1943, %v1936, 920167782
    %v1950 = vsel %vm1942, %v1933, %v1949
    %v1951 = vsel %vm1941, %v1948, %v1950
    %v1952 = vsel %vm1940, %v1930, %v1933
    %v1953 = vsel %vm1943, %v1939, 1326507024
    %v1954 = vsel %vm1942, %v1936, %v1953
    %v1955 = vsel %vm1941, %v1952, %v1954
    %v1956 = vshll.u32 %v1916, 8
    %v1957 = vmul.u32.u64.compose %v1956, %v1955
    %v1958 = vextract.low.u32 %v1957
    %v1959 = vextract.high.u32 %v1957
    %v1960 = vmul.u32.u64.compose %v1956, %v1951
    %v1961 = vextract.low.u32 %v1960
    %v1962 = vextract.high.u32 %v1960
    %v1963 = vmul.u32 %v1956, %v1947
    %v1964 = vadd.s32 %v1959, %v1961
    %vm1965 = vc.u32 %v1959, %v1961
    %v1966 = vadd.s32 %v1962, 1
    %v1967 = vsel %vm1965, %v1966, %v1962
    %v1968 = vadd.s32 %v1963, %v1967
    %v1969 = vadd.s32 %v1968, 536870912
    %v1970 = vshrl.u32 %v1969, 30
    %v1971 = vshll.u32 %v1970, 30
    %v1972 = vsub.s32 %v1968, %v1971
    %vm1973 = vcmp.lt.s32.totalorder %v1972, 0
    %v1974 = vsub.s32 0, %v1972
    %v1975 = vsel %vm1973, %v1974, %v1972
    %v1976 = vclz %v1975
    %v1977 = vsub.s32 %v1976, 2
    %vm1978 = vcmp.gt.s32.totalorder 0, %v1977
    %v1979 = vsel %vm1978, 0, %v1977
    %v1980 = vsub.s32 32, %v1979
    %v1981 = vshll.u32 %v1972, %v1979
    %v1982 = vshrl.u32 %v1964, %v1980
    %v1983 = vor.u32 %v1981, %v1982
    %v1984 = vsub.s32 4294967266, %v1979
    %v1985 = vadd.s32 %v1984, 127
    %v1986 = vshll.u32 %v1985, 23
    %v1987 = vor.u32 4788187, %v1986
    %v1988 = vand.u32 2147483647, %v1987
    %v1990 = vcvt.s32.f32 %v1983
    %v1991 = vmul.f32 %v1990, %v1988
    %v1992 = vxor.u32 %v1991, 2147483648
    %v1993 = vsel %vm1910, %v1992, %v1991
    %v1994 = vsub.s32 4, %v1970
    %v1995 = vsel %vm1910, %v1994, %v1970
    %v1996 = vsel %vm1909, %v770, %v1993
    %v1997 = vsel %vm1909, 0, %v1995
    %v1998 = vcosq.f32.pop %v1996
    %v1999 = vsinq.f32.pop %v1996
    %vm2000 = vweird.f32 %v770
    %v2001 = vand.u32 %v1997, 3
    %vm2002 = vcmp.lt.s32.totalorder %v2001, 2
    %vm2003 = vcmp.eq.s32.totalorder %v2001, 0
    %v2004 = vxor.u32 %v1999, 2147483648
    %v2005 = vsel %vm2003, %v1998, %v2004
    %vm2006 = vcmp.eq.s32.totalorder %v2001, 2
    %v2007 = vxor.u32 %v1998, 2147483648
    %v2008 = vsel %vm2006, %v2007, %v1999
    %v2009 = vsel %vm2002, %v2005, %v2008
    %v2010 = vsel %vm2000, nan, %v2009
    %v2011 = vand.u32 2147483647, %v771
    %vm2012 = vcmp.le.f32.partialorder %v2011, 0.7853982
    %vm2013 = vcmp.lt.s32.totalorder %v771, 0
    %v2014 = vand.u32 %v771, 2139095040
    %v2015 = vshrl.u32 %v2014, 23
    %v2016 = vsub.s32 %v2015, 127
    %v2017 = vand.u32 2147483647, %v771
    %v2018 = vand.u32 %v2017, 8388607
    %v2019 = vor.u32 %v2018, 8388608
    %v2020 = vsub.s32 0, %v2019
    %v2021 = vadd.s32 %v2016, 1
    %vm2022 = vcmp.gt.s32.totalorder %v2021, 0
    %v2023 = vsel %vm2022, %v2021, 0
    %v2024 = vshrl.u32 %v2023, 5
    %v2025 = vand.u32 %v2023, 31
    %v2026 = vsub.s32 32, %v2025
    %v2027 = vshrl.u32 683565275, %v2026
    %v2028 = vshll.u32 683565275, %v2025
    %v2029 = vshrl.u32 2475754826, %v2026
    %v2030 = vor.u32 %v2028, %v2029
    %v2031 = vshll.u32 2475754826, %v2025
    %v2032 = vshrl.u32 2131351028, %v2026
    %v2033 = vor.u32 %v2031, %v2032
    %v2034 = vshll.u32 2131351028, %v2025
    %v2035 = vshrl.u32 2102212464, %v2026
    %v2036 = vor.u32 %v2034, %v2035
    %v2037 = vshll.u32 2102212464, %v2025
    %v2038 = vshrl.u32 920167782, %v2026
    %v2039 = vor.u32 %v2037, %v2038
    %v2040 = vshll.u32 920167782, %v2025
    %v2041 = vshrl.u32 1326507024, %v2026
    %v2042 = vor.u32 %v2040, %v2041
    %vm2043 = vcmp.lt.s32.totalorder %v2024, 1
    %vm2044 = vcmp.lt.s32.totalorder %v2024, 2
    %vm2045 = vcmp.lt.s32.totalorder %v2024, 3
    %vm2046 = vcmp.lt.s32.totalorder %v2024, 4
    %v2047 = vsel %vm2043, %v2027, %v2030
    %v2048 = vsel %vm2046, %v2036, 2102212464
    %v2049 = vsel %vm2045, %v2033, %v2048
    %v2050 = vsel %vm2044, %v2047, %v2049
    %v2051 = vsel %vm2043, %v2030, %v2033
    %v2052 = vsel %vm2046, %v2039, 920167782
    %v2053 = vsel %vm2045, %v2036, %v2052
    %v2054 = vsel %vm2044, %v2051, %v2053
    %v2055 = vsel %vm2043, %v2033, %v2036
    %v2056 = vsel %vm2046, %v2042, 1326507024
    %v2057 = vsel %vm2045, %v2039, %v2056
    %v2058 = vsel %vm2044, %v2055, %v2057
    %v2059 = vshll.u32 %v2019, 8
    %v2060 = vmul.u32.u64.compose %v2059, %v2058
    %v2061 = vextract.low.u32 %v2060
    %v2062 = vextract.high.u32 %v2060
    %v2063 = vmul.u32.u64.compose %v2059, %v2054
    %v2064 = vextract.low.u32 %v2063
    %v2065 = vextract.high.u32 %v2063
    %v2066 = vmul.u32 %v2059, %v2050
    %v2067 = vadd.s32 %v2062, %v2064
    %vm2068 = vc.u32 %v2062, %v2064
    %v2069 = vadd.s32 %v2065, 1
    %v2070 = vsel %vm2068, %v2069, %v2065
    %v2071 = vadd.s32 %v2066, %v2070
    %v2072 = vadd.s32 %v2071, 536870912
    %v2073 = vshrl.u32 %v2072, 30
    %v2074 = vshll.u32 %v2073, 30
    %v2075 = vsub.s32 %v2071, %v2074
    %vm2076 = vcmp.lt.s32.totalorder %v2075, 0
    %v2077 = vsub.s32 0, %v2075
    %v2078 = vsel %vm2076, %v2077, %v2075
    %v2079 = vclz %v2078
    %v2080 = vsub.s32 %v2079, 2
    %vm2081 = vcmp.gt.s32.totalorder 0, %v2080
    %v2082 = vsel %vm2081, 0, %v2080
    %v2083 = vsub.s32 32, %v2082
    %v2084 = vshll.u32 %v2075, %v2082
    %v2085 = vshrl.u32 %v2067, %v2083
    %v2086 = vor.u32 %v2084, %v2085
    %v2087 = vsub.s32 4294967266, %v2082
    %v2088 = vadd.s32 %v2087, 127
    %v2089 = vshll.u32 %v2088, 23
    %v2090 = vor.u32 4788187, %v2089
    %v2091 = vand.u32 2147483647, %v2090
    %v2093 = vcvt.s32.f32 %v2086
    %v2094 = vmul.f32 %v2093, %v2091
    %v2095 = vxor.u32 %v2094, 2147483648
    %v2096 = vsel %vm2013, %v2095, %v2094
    %v2097 = vsub.s32 4, %v2073
    %v2098 = vsel %vm2013, %v2097, %v2073
    %v2099 = vsel %vm2012, %v771, %v2096
    %v2100 = vsel %vm2012, 0, %v2098
    %v2101 = vcosq.f32.pop %v2099
    %v2102 = vsinq.f32.pop %v2099
    %vm2103 = vweird.f32 %v771
    %v2104 = vand.u32 %v2100, 3
    %vm2105 = vcmp.lt.s32.totalorder %v2104, 2
    %vm2106 = vcmp.eq.s32.totalorder %v2104, 0
    %v2107 = vxor.u32 %v2102, 2147483648
    %v2108 = vsel %vm2106, %v2101, %v2107
    %vm2109 = vcmp.eq.s32.totalorder %v2104, 2
    %v2110 = vxor.u32 %v2101, 2147483648
    %v2111 = vsel %vm2109, %v2110, %v2102
    %v2112 = vsel %vm2105, %v2108, %v2111
    %v2113 = vsel %vm2103, nan, %v2112
    %v2114 = vand.u32 2147483647, %v772
    %vm2115 = vcmp.le.f32.partialorder %v2114, 0.7853982
    %vm2116 = vcmp.lt.s32.totalorder %v772, 0
    %v2117 = vand.u32 %v772, 2139095040
    %v2118 = vshrl.u32 %v2117, 23
    %v2119 = vsub.s32 %v2118, 127
    %v2120 = vand.u32 2147483647, %v772
    %v2121 = vand.u32 %v2120, 8388607
    %v2122 = vor.u32 %v2121, 8388608
    %v2123 = vsub.s32 0, %v2122
    %v2124 = vadd.s32 %v2119, 1
    %vm2125 = vcmp.gt.s32.totalorder %v2124, 0
    %v2126 = vsel %vm2125, %v2124, 0
    %v2127 = vshrl.u32 %v2126, 5
    %v2128 = vand.u32 %v2126, 31
    %v2129 = vsub.s32 32, %v2128
    %v2130 = vshrl.u32 683565275, %v2129
    %v2131 = vshll.u32 683565275, %v2128
    %v2132 = vshrl.u32 2475754826, %v2129
    %v2133 = vor.u32 %v2131, %v2132
    %v2134 = vshll.u32 2475754826, %v2128
    %v2135 = vshrl.u32 2131351028, %v2129
    %v2136 = vor.u32 %v2134, %v2135
    %v2137 = vshll.u32 2131351028, %v2128
    %v2138 = vshrl.u32 2102212464, %v2129
    %v2139 = vor.u32 %v2137, %v2138
    %v2140 = vshll.u32 2102212464, %v2128
    %v2141 = vshrl.u32 920167782, %v2129
    %v2142 = vor.u32 %v2140, %v2141
    %v2143 = vshll.u32 920167782, %v2128
    %v2144 = vshrl.u32 1326507024, %v2129
    %v2145 = vor.u32 %v2143, %v2144
    %vm2146 = vcmp.lt.s32.totalorder %v2127, 1
    %vm2147 = vcmp.lt.s32.totalorder %v2127, 2
    %vm2148 = vcmp.lt.s32.totalorder %v2127, 3
    %vm2149 = vcmp.lt.s32.totalorder %v2127, 4
    %v2150 = vsel %vm2146, %v2130, %v2133
    %v2151 = vsel %vm2149, %v2139, 2102212464
    %v2152 = vsel %vm2148, %v2136, %v2151
    %v2153 = vsel %vm2147, %v2150, %v2152
    %v2154 = vsel %vm2146, %v2133, %v2136
    %v2155 = vsel %vm2149, %v2142, 920167782
    %v2156 = vsel %vm2148, %v2139, %v2155
    %v2157 = vsel %vm2147, %v2154, %v2156
    %v2158 = vsel %vm2146, %v2136, %v2139
    %v2159 = vsel %vm2149, %v2145, 1326507024
    %v2160 = vsel %vm2148, %v2142, %v2159
    %v2161 = vsel %vm2147, %v2158, %v2160
    %v2162 = vshll.u32 %v2122, 8
    %v2163 = vmul.u32.u64.compose %v2162, %v2161
    %v2164 = vextract.low.u32 %v2163
    %v2165 = vextract.high.u32 %v2163
    %v2166 = vmul.u32.u64.compose %v2162, %v2157
    %v2167 = vextract.low.u32 %v2166
    %v2168 = vextract.high.u32 %v2166
    %v2169 = vmul.u32 %v2162, %v2153
    %v2170 = vadd.s32 %v2165, %v2167
    %vm2171 = vc.u32 %v2165, %v2167
    %v2172 = vadd.s32 %v2168, 1
    %v2173 = vsel %vm2171, %v2172, %v2168
    %v2174 = vadd.s32 %v2169, %v2173
    %v2175 = vadd.s32 %v2174, 536870912
    %v2176 = vshrl.u32 %v2175, 30
    %v2177 = vshll.u32 %v2176, 30
    %v2178 = vsub.s32 %v2174, %v2177
    %vm2179 = vcmp.lt.s32.totalorder %v2178, 0
    %v2180 = vsub.s32 0, %v2178
    %v2181 = vsel %vm2179, %v2180, %v2178
    %v2182 = vclz %v2181
    %v2183 = vsub.s32 %v2182, 2
    %vm2184 = vcmp.gt.s32.totalorder 0, %v2183
    %v2185 = vsel %vm2184, 0, %v2183
    %v2186 = vsub.s32 32, %v2185
    %v2187 = vshll.u32 %v2178, %v2185
    %v2188 = vshrl.u32 %v2170, %v2186
    %v2189 = vor.u32 %v2187, %v2188
    %v2190 = vsub.s32 4294967266, %v2185
    %v2191 = vadd.s32 %v2190, 127
    %v2192 = vshll.u32 %v2191, 23
    %v2193 = vor.u32 4788187, %v2192
    %v2194 = vand.u32 2147483647, %v2193
    %v2196 = vcvt.s32.f32 %v2189
    %v2197 = vmul.f32 %v2196, %v2194
    %v2198 = vxor.u32 %v2197, 2147483648
    %v2199 = vsel %vm2116, %v2198, %v2197
    %v2200 = vsub.s32 4, %v2176
    %v2201 = vsel %vm2116, %v2200, %v2176
    %v2202 = vsel %vm2115, %v772, %v2199
    %v2203 = vsel %vm2115, 0, %v2201
    %v2204 = vcosq.f32.pop %v2202
    %v2205 = vsinq.f32.pop %v2202
    %vm2206 = vweird.f32 %v772
    %v2207 = vand.u32 %v2203, 3
    %vm2208 = vcmp.lt.s32.totalorder %v2207, 2
    %vm2209 = vcmp.eq.s32.totalorder %v2207, 0
    %v2210 = vxor.u32 %v2205, 2147483648
    %v2211 = vsel %vm2209, %v2204, %v2210
    %vm2212 = vcmp.eq.s32.totalorder %v2207, 2
    %v2213 = vxor.u32 %v2204, 2147483648
    %v2214 = vsel %vm2212, %v2213, %v2205
    %v2215 = vsel %vm2208, %v2211, %v2214
    %v2216 = vsel %vm2206, nan, %v2215
    %v2217 = vand.u32 2147483647, %v773
    %vm2218 = vcmp.le.f32.partialorder %v2217, 0.7853982
    %vm2219 = vcmp.lt.s32.totalorder %v773, 0
    %v2220 = vand.u32 %v773, 2139095040
    %v2221 = vshrl.u32 %v2220, 23
    %v2222 = vsub.s32 %v2221, 127
    %v2223 = vand.u32 2147483647, %v773
    %v2224 = vand.u32 %v2223, 8388607
    %v2225 = vor.u32 %v2224, 8388608
    %v2226 = vsub.s32 0, %v2225
    %v2227 = vadd.s32 %v2222, 1
    %vm2228 = vcmp.gt.s32.totalorder %v2227, 0
    %v2229 = vsel %vm2228, %v2227, 0
    %v2230 = vshrl.u32 %v2229, 5
    %v2231 = vand.u32 %v2229, 31
    %v2232 = vsub.s32 32, %v2231
    %v2233 = vshrl.u32 683565275, %v2232
    %v2234 = vshll.u32 683565275, %v2231
    %v2235 = vshrl.u32 2475754826, %v2232
    %v2236 = vor.u32 %v2234, %v2235
    %v2237 = vshll.u32 2475754826, %v2231
    %v2238 = vshrl.u32 2131351028, %v2232
    %v2239 = vor.u32 %v2237, %v2238
    %v2240 = vshll.u32 2131351028, %v2231
    %v2241 = vshrl.u32 2102212464, %v2232
    %v2242 = vor.u32 %v2240, %v2241
    %v2243 = vshll.u32 2102212464, %v2231
    %v2244 = vshrl.u32 920167782, %v2232
    %v2245 = vor.u32 %v2243, %v2244
    %v2246 = vshll.u32 920167782, %v2231
    %v2247 = vshrl.u32 1326507024, %v2232
    %v2248 = vor.u32 %v2246, %v2247
    %vm2249 = vcmp.lt.s32.totalorder %v2230, 1
    %vm2250 = vcmp.lt.s32.totalorder %v2230, 2
    %vm2251 = vcmp.lt.s32.totalorder %v2230, 3
    %vm2252 = vcmp.lt.s32.totalorder %v2230, 4
    %v2253 = vsel %vm2249, %v2233, %v2236
    %v2254 = vsel %vm2252, %v2242, 2102212464
    %v2255 = vsel %vm2251, %v2239, %v2254
    %v2256 = vsel %vm2250, %v2253, %v2255
    %v2257 = vsel %vm2249, %v2236, %v2239
    %v2258 = vsel %vm2252, %v2245, 920167782
    %v2259 = vsel %vm2251, %v2242, %v2258
    %v2260 = vsel %vm2250, %v2257, %v2259
    %v2261 = vsel %vm2249, %v2239, %v2242
    %v2262 = vsel %vm2252, %v2248, 1326507024
    %v2263 = vsel %vm2251, %v2245, %v2262
    %v2264 = vsel %vm2250, %v2261, %v2263
    %v2265 = vshll.u32 %v2225, 8
    %v2266 = vmul.u32.u64.compose %v2265, %v2264
    %v2267 = vextract.low.u32 %v2266
    %v2268 = vextract.high.u32 %v2266
    %v2269 = vmul.u32.u64.compose %v2265, %v2260
    %v2270 = vextract.low.u32 %v2269
    %v2271 = vextract.high.u32 %v2269
    %v2272 = vmul.u32 %v2265, %v2256
    %v2273 = vadd.s32 %v2268, %v2270
    %vm2274 = vc.u32 %v2268, %v2270
    %v2275 = vadd.s32 %v2271, 1
    %v2276 = vsel %vm2274, %v2275, %v2271
    %v2277 = vadd.s32 %v2272, %v2276
    %v2278 = vadd.s32 %v2277, 536870912
    %v2279 = vshrl.u32 %v2278, 30
    %v2280 = vshll.u32 %v2279, 30
    %v2281 = vsub.s32 %v2277, %v2280
    %vm2282 = vcmp.lt.s32.totalorder %v2281, 0
    %v2283 = vsub.s32 0, %v2281
    %v2284 = vsel %vm2282, %v2283, %v2281
    %v2285 = vclz %v2284
    %v2286 = vsub.s32 %v2285, 2
    %vm2287 = vcmp.gt.s32.totalorder 0, %v2286
    %v2288 = vsel %vm2287, 0, %v2286
    %v2289 = vsub.s32 32, %v2288
    %v2290 = vshll.u32 %v2281, %v2288
    %v2291 = vshrl.u32 %v2273, %v2289
    %v2292 = vor.u32 %v2290, %v2291
    %v2293 = vsub.s32 4294967266, %v2288
    %v2294 = vadd.s32 %v2293, 127
    %v2295 = vshll.u32 %v2294, 23
    %v2296 = vor.u32 4788187, %v2295
    %v2297 = vand.u32 2147483647, %v2296
    %v2299 = vcvt.s32.f32 %v2292
    %v2300 = vmul.f32 %v2299, %v2297
    %v2301 = vxor.u32 %v2300, 2147483648
    %v2302 = vsel %vm2219, %v2301, %v2300
    %v2303 = vsub.s32 4, %v2279
    %v2304 = vsel %vm2219, %v2303, %v2279
    %v2305 = vsel %vm2218, %v773, %v2302
    %v2306 = vsel %vm2218, 0, %v2304
    %v2307 = vcosq.f32.pop %v2305
    %v2308 = vsinq.f32.pop %v2305
    %vm2309 = vweird.f32 %v773
    %v2310 = vand.u32 %v2306, 3
    %vm2311 = vcmp.lt.s32.totalorder %v2310, 2
    %vm2312 = vcmp.eq.s32.totalorder %v2310, 0
    %v2313 = vxor.u32 %v2308, 2147483648
    %v2314 = vsel %vm2312, %v2307, %v2313
    %vm2315 = vcmp.eq.s32.totalorder %v2310, 2
    %v2316 = vxor.u32 %v2307, 2147483648
    %v2317 = vsel %vm2315, %v2316, %v2308
    %v2318 = vsel %vm2311, %v2314, %v2317
    %v2319 = vsel %vm2309, nan, %v2318
    %v2320 = vand.u32 2147483647, %v774
    %vm2321 = vcmp.le.f32.partialorder %v2320, 0.7853982
    %vm2322 = vcmp.lt.s32.totalorder %v774, 0
    %v2323 = vand.u32 %v774, 2139095040
    %v2324 = vshrl.u32 %v2323, 23
    %v2325 = vsub.s32 %v2324, 127
    %v2326 = vand.u32 2147483647, %v774
    %v2327 = vand.u32 %v2326, 8388607
    %v2328 = vor.u32 %v2327, 8388608
    %v2329 = vsub.s32 0, %v2328
    %v2330 = vadd.s32 %v2325, 1
    %vm2331 = vcmp.gt.s32.totalorder %v2330, 0
    %v2332 = vsel %vm2331, %v2330, 0
    %v2333 = vshrl.u32 %v2332, 5
    %v2334 = vand.u32 %v2332, 31
    %v2335 = vsub.s32 32, %v2334
    %v2336 = vshrl.u32 683565275, %v2335
    %v2337 = vshll.u32 683565275, %v2334
    %v2338 = vshrl.u32 2475754826, %v2335
    %v2339 = vor.u32 %v2337, %v2338
    %v2340 = vshll.u32 2475754826, %v2334
    %v2341 = vshrl.u32 2131351028, %v2335
    %v2342 = vor.u32 %v2340, %v2341
    %v2343 = vshll.u32 2131351028, %v2334
    %v2344 = vshrl.u32 2102212464, %v2335
    %v2345 = vor.u32 %v2343, %v2344
    %v2346 = vshll.u32 2102212464, %v2334
    %v2347 = vshrl.u32 920167782, %v2335
    %v2348 = vor.u32 %v2346, %v2347
    %v2349 = vshll.u32 920167782, %v2334
    %v2350 = vshrl.u32 1326507024, %v2335
    %v2351 = vor.u32 %v2349, %v2350
    %vm2352 = vcmp.lt.s32.totalorder %v2333, 1
    %vm2353 = vcmp.lt.s32.totalorder %v2333, 2
    %vm2354 = vcmp.lt.s32.totalorder %v2333, 3
    %vm2355 = vcmp.lt.s32.totalorder %v2333, 4
    %v2356 = vsel %vm2352, %v2336, %v2339
    %v2357 = vsel %vm2355, %v2345, 2102212464
    %v2358 = vsel %vm2354, %v2342, %v2357
    %v2359 = vsel %vm2353, %v2356, %v2358
    %v2360 = vsel %vm2352, %v2339, %v2342
    %v2361 = vsel %vm2355, %v2348, 920167782
    %v2362 = vsel %vm2354, %v2345, %v2361
    %v2363 = vsel %vm2353, %v2360, %v2362
    %v2364 = vsel %vm2352, %v2342, %v2345
    %v2365 = vsel %vm2355, %v2351, 1326507024
    %v2366 = vsel %vm2354, %v2348, %v2365
    %v2367 = vsel %vm2353, %v2364, %v2366
    %v2368 = vshll.u32 %v2328, 8
    %v2369 = vmul.u32.u64.compose %v2368, %v2367
    %v2370 = vextract.low.u32 %v2369
    %v2371 = vextract.high.u32 %v2369
    %v2372 = vmul.u32.u64.compose %v2368, %v2363
    %v2373 = vextract.low.u32 %v2372
    %v2374 = vextract.high.u32 %v2372
    %v2375 = vmul.u32 %v2368, %v2359
    %v2376 = vadd.s32 %v2371, %v2373
    %vm2377 = vc.u32 %v2371, %v2373
    %v2378 = vadd.s32 %v2374, 1
    %v2379 = vsel %vm2377, %v2378, %v2374
    %v2380 = vadd.s32 %v2375, %v2379
    %v2381 = vadd.s32 %v2380, 536870912
    %v2382 = vshrl.u32 %v2381, 30
    %v2383 = vshll.u32 %v2382, 30
    %v2384 = vsub.s32 %v2380, %v2383
    %vm2385 = vcmp.lt.s32.totalorder %v2384, 0
    %v2386 = vsub.s32 0, %v2384
    %v2387 = vsel %vm2385, %v2386, %v2384
    %v2388 = vclz %v2387
    %v2389 = vsub.s32 %v2388, 2
    %vm2390 = vcmp.gt.s32.totalorder 0, %v2389
    %v2391 = vsel %vm2390, 0, %v2389
    %v2392 = vsub.s32 32, %v2391
    %v2393 = vshll.u32 %v2384, %v2391
    %v2394 = vshrl.u32 %v2376, %v2392
    %v2395 = vor.u32 %v2393, %v2394
    %v2396 = vsub.s32 4294967266, %v2391
    %v2397 = vadd.s32 %v2396, 127
    %v2398 = vshll.u32 %v2397, 23
    %v2399 = vor.u32 4788187, %v2398
    %v2400 = vand.u32 2147483647, %v2399
    %v2402 = vcvt.s32.f32 %v2395
    %v2403 = vmul.f32 %v2402, %v2400
    %v2404 = vxor.u32 %v2403, 2147483648
    %v2405 = vsel %vm2322, %v2404, %v2403
    %v2406 = vsub.s32 4, %v2382
    %v2407 = vsel %vm2322, %v2406, %v2382
    %v2408 = vsel %vm2321, %v774, %v2405
    %v2409 = vsel %vm2321, 0, %v2407
    %v2410 = vcosq.f32.pop %v2408
    %v2411 = vsinq.f32.pop %v2408
    %vm2412 = vweird.f32 %v774
    %v2413 = vand.u32 %v2409, 3
    %vm2414 = vcmp.lt.s32.totalorder %v2413, 2
    %vm2415 = vcmp.eq.s32.totalorder %v2413, 0
    %v2416 = vxor.u32 %v2411, 2147483648
    %v2417 = vsel %vm2415, %v2410, %v2416
    %vm2418 = vcmp.eq.s32.totalorder %v2413, 2
    %v2419 = vxor.u32 %v2410, 2147483648
    %v2420 = vsel %vm2418, %v2419, %v2411
    %v2421 = vsel %vm2414, %v2417, %v2420
    %v2422 = vsel %vm2412, nan, %v2421
    %v2423 = vand.u32 2147483647, %v759
    %vm2424 = vcmp.le.f32.partialorder %v2423, 0.7853982
    %vm2425 = vcmp.lt.s32.totalorder %v759, 0
    %v2426 = vand.u32 %v759, 2139095040
    %v2427 = vshrl.u32 %v2426, 23
    %v2428 = vsub.s32 %v2427, 127
    %v2429 = vand.u32 2147483647, %v759
    %v2430 = vand.u32 %v2429, 8388607
    %v2431 = vor.u32 %v2430, 8388608
    %v2432 = vsub.s32 0, %v2431
    %v2433 = vadd.s32 %v2428, 1
    %vm2434 = vcmp.gt.s32.totalorder %v2433, 0
    %v2435 = vsel %vm2434, %v2433, 0
    %v2436 = vshrl.u32 %v2435, 5
    %v2437 = vand.u32 %v2435, 31
    %v2438 = vsub.s32 32, %v2437
    %v2439 = vshrl.u32 683565275, %v2438
    %v2440 = vshll.u32 683565275, %v2437
    %v2441 = vshrl.u32 2475754826, %v2438
    %v2442 = vor.u32 %v2440, %v2441
    %v2443 = vshll.u32 2475754826, %v2437
    %v2444 = vshrl.u32 2131351028, %v2438
    %v2445 = vor.u32 %v2443, %v2444
    %v2446 = vshll.u32 2131351028, %v2437
    %v2447 = vshrl.u32 2102212464, %v2438
    %v2448 = vor.u32 %v2446, %v2447
    %v2449 = vshll.u32 2102212464, %v2437
    %v2450 = vshrl.u32 920167782, %v2438
    %v2451 = vor.u32 %v2449, %v2450
    %v2452 = vshll.u32 920167782, %v2437
    %v2453 = vshrl.u32 1326507024, %v2438
    %v2454 = vor.u32 %v2452, %v2453
    %vm2455 = vcmp.lt.s32.totalorder %v2436, 1
    %vm2456 = vcmp.lt.s32.totalorder %v2436, 2
    %vm2457 = vcmp.lt.s32.totalorder %v2436, 3
    %vm2458 = vcmp.lt.s32.totalorder %v2436, 4
    %v2459 = vsel %vm2455, %v2439, %v2442
    %v2460 = vsel %vm2458, %v2448, 2102212464
    %v2461 = vsel %vm2457, %v2445, %v2460
    %v2462 = vsel %vm2456, %v2459, %v2461
    %v2463 = vsel %vm2455, %v2442, %v2445
    %v2464 = vsel %vm2458, %v2451, 920167782
    %v2465 = vsel %vm2457, %v2448, %v2464
    %v2466 = vsel %vm2456, %v2463, %v2465
    %v2467 = vsel %vm2455, %v2445, %v2448
    %v2468 = vsel %vm2458, %v2454, 1326507024
    %v2469 = vsel %vm2457, %v2451, %v2468
    %v2470 = vsel %vm2456, %v2467, %v2469
    %v2471 = vshll.u32 %v2431, 8
    %v2472 = vmul.u32.u64.compose %v2471, %v2470
    %v2473 = vextract.low.u32 %v2472
    %v2474 = vextract.high.u32 %v2472
    %v2475 = vmul.u32.u64.compose %v2471, %v2466
    %v2476 = vextract.low.u32 %v2475
    %v2477 = vextract.high.u32 %v2475
    %v2478 = vmul.u32 %v2471, %v2462
    %v2479 = vadd.s32 %v2474, %v2476
    %vm2480 = vc.u32 %v2474, %v2476
    %v2481 = vadd.s32 %v2477, 1
    %v2482 = vsel %vm2480, %v2481, %v2477
    %v2483 = vadd.s32 %v2478, %v2482
    %v2484 = vadd.s32 %v2483, 536870912
    %v2485 = vshrl.u32 %v2484, 30
    %v2486 = vshll.u32 %v2485, 30
    %v2487 = vsub.s32 %v2483, %v2486
    %vm2488 = vcmp.lt.s32.totalorder %v2487, 0
    %v2489 = vsub.s32 0, %v2487
    %v2490 = vsel %vm2488, %v2489, %v2487
    %v2491 = vclz %v2490
    %v2492 = vsub.s32 %v2491, 2
    %vm2493 = vcmp.gt.s32.totalorder 0, %v2492
    %v2494 = vsel %vm2493, 0, %v2492
    %v2495 = vsub.s32 32, %v2494
    %v2496 = vshll.u32 %v2487, %v2494
    %v2497 = vshrl.u32 %v2479, %v2495
    %v2498 = vor.u32 %v2496, %v2497
    %v2499 = vsub.s32 4294967266, %v2494
    %v2500 = vadd.s32 %v2499, 127
    %v2501 = vshll.u32 %v2500, 23
    %v2502 = vor.u32 4788187, %v2501
    %v2503 = vand.u32 2147483647, %v2502
    %v2505 = vcvt.s32.f32 %v2498
    %v2506 = vmul.f32 %v2505, %v2503
    %v2507 = vxor.u32 %v2506, 2147483648
    %v2508 = vsel %vm2425, %v2507, %v2506
    %v2509 = vsub.s32 4, %v2485
    %v2510 = vsel %vm2425, %v2509, %v2485
    %v2511 = vsel %vm2424, %v759, %v2508
    %v2512 = vsel %vm2424, 0, %v2510
    %v2513 = vcosq.f32.pop %v2511
    %v2514 = vsinq.f32.pop %v2511
    %vm2515 = vweird.f32 %v759
    %v2516 = vadd.s32 %v2512, 3
    %v2517 = vand.u32 %v2516, 3
    %vm2518 = vcmp.lt.s32.totalorder %v2517, 2
    %vm2519 = vcmp.eq.s32.totalorder %v2517, 0
    %v2520 = vxor.u32 %v2514, 2147483648
    %v2521 = vsel %vm2519, %v2513, %v2520
    %vm2522 = vcmp.eq.s32.totalorder %v2517, 2
    %v2523 = vxor.u32 %v2513, 2147483648
    %v2524 = vsel %vm2522, %v2523, %v2514
    %v2525 = vsel %vm2518, %v2521, %v2524
    %v2526 = vsel %vm2515, nan, %v2525
    %v2527 = vand.u32 2147483647, %v760
    %vm2528 = vcmp.le.f32.partialorder %v2527, 0.7853982
    %vm2529 = vcmp.lt.s32.totalorder %v760, 0
    %v2530 = vand.u32 %v760, 2139095040
    %v2531 = vshrl.u32 %v2530, 23
    %v2532 = vsub.s32 %v2531, 127
    %v2533 = vand.u32 2147483647, %v760
    %v2534 = vand.u32 %v2533, 8388607
    %v2535 = vor.u32 %v2534, 8388608
    %v2536 = vsub.s32 0, %v2535
    %v2537 = vadd.s32 %v2532, 1
    %vm2538 = vcmp.gt.s32.totalorder %v2537, 0
    %v2539 = vsel %vm2538, %v2537, 0
    %v2540 = vshrl.u32 %v2539, 5
    %v2541 = vand.u32 %v2539, 31
    %v2542 = vsub.s32 32, %v2541
    %v2543 = vshrl.u32 683565275, %v2542
    %v2544 = vshll.u32 683565275, %v2541
    %v2545 = vshrl.u32 2475754826, %v2542
    %v2546 = vor.u32 %v2544, %v2545
    %v2547 = vshll.u32 2475754826, %v2541
    %v2548 = vshrl.u32 2131351028, %v2542
    %v2549 = vor.u32 %v2547, %v2548
    %v2550 = vshll.u32 2131351028, %v2541
    %v2551 = vshrl.u32 2102212464, %v2542
    %v2552 = vor.u32 %v2550, %v2551
    %v2553 = vshll.u32 2102212464, %v2541
    %v2554 = vshrl.u32 920167782, %v2542
    %v2555 = vor.u32 %v2553, %v2554
    %v2556 = vshll.u32 920167782, %v2541
    %v2557 = vshrl.u32 1326507024, %v2542
    %v2558 = vor.u32 %v2556, %v2557
    %vm2559 = vcmp.lt.s32.totalorder %v2540, 1
    %vm2560 = vcmp.lt.s32.totalorder %v2540, 2
    %vm2561 = vcmp.lt.s32.totalorder %v2540, 3
    %vm2562 = vcmp.lt.s32.totalorder %v2540, 4
    %v2563 = vsel %vm2559, %v2543, %v2546
    %v2564 = vsel %vm2562, %v2552, 2102212464
    %v2565 = vsel %vm2561, %v2549, %v2564
    %v2566 = vsel %vm2560, %v2563, %v2565
    %v2567 = vsel %vm2559, %v2546, %v2549
    %v2568 = vsel %vm2562, %v2555, 920167782
    %v2569 = vsel %vm2561, %v2552, %v2568
    %v2570 = vsel %vm2560, %v2567, %v2569
    %v2571 = vsel %vm2559, %v2549, %v2552
    %v2572 = vsel %vm2562, %v2558, 1326507024
    %v2573 = vsel %vm2561, %v2555, %v2572
    %v2574 = vsel %vm2560, %v2571, %v2573
    %v2575 = vshll.u32 %v2535, 8
    %v2576 = vmul.u32.u64.compose %v2575, %v2574
    %v2577 = vextract.low.u32 %v2576
    %v2578 = vextract.high.u32 %v2576
    %v2579 = vmul.u32.u64.compose %v2575, %v2570
    %v2580 = vextract.low.u32 %v2579
    %v2581 = vextract.high.u32 %v2579
    %v2582 = vmul.u32 %v2575, %v2566
    %v2583 = vadd.s32 %v2578, %v2580
    %vm2584 = vc.u32 %v2578, %v2580
    %v2585 = vadd.s32 %v2581, 1
    %v2586 = vsel %vm2584, %v2585, %v2581
    %v2587 = vadd.s32 %v2582, %v2586
    %v2588 = vadd.s32 %v2587, 536870912
    %v2589 = vshrl.u32 %v2588, 30
    %v2590 = vshll.u32 %v2589, 30
    %v2591 = vsub.s32 %v2587, %v2590
    %vm2592 = vcmp.lt.s32.totalorder %v2591, 0
    %v2593 = vsub.s32 0, %v2591
    %v2594 = vsel %vm2592, %v2593, %v2591
    %v2595 = vclz %v2594
    %v2596 = vsub.s32 %v2595, 2
    %vm2597 = vcmp.gt.s32.totalorder 0, %v2596
    %v2598 = vsel %vm2597, 0, %v2596
    %v2599 = vsub.s32 32, %v2598
    %v2600 = vshll.u32 %v2591, %v2598
    %v2601 = vshrl.u32 %v2583, %v2599
    %v2602 = vor.u32 %v2600, %v2601
    %v2603 = vsub.s32 4294967266, %v2598
    %v2604 = vadd.s32 %v2603, 127
    %v2605 = vshll.u32 %v2604, 23
    %v2606 = vor.u32 4788187, %v2605
    %v2607 = vand.u32 2147483647, %v2606
    %v2609 = vcvt.s32.f32 %v2602
    %v2610 = vmul.f32 %v2609, %v2607
    %v2611 = vxor.u32 %v2610, 2147483648
    %v2612 = vsel %vm2529, %v2611, %v2610
    %v2613 = vsub.s32 4, %v2589
    %v2614 = vsel %vm2529, %v2613, %v2589
    %v2615 = vsel %vm2528, %v760, %v2612
    %v2616 = vsel %vm2528, 0, %v2614
    %v2617 = vcosq.f32.pop %v2615
    %v2618 = vsinq.f32.pop %v2615
    %vm2619 = vweird.f32 %v760
    %v2620 = vadd.s32 %v2616, 3
    %v2621 = vand.u32 %v2620, 3
    %vm2622 = vcmp.lt.s32.totalorder %v2621, 2
    %vm2623 = vcmp.eq.s32.totalorder %v2621, 0
    %v2624 = vxor.u32 %v2618, 2147483648
    %v2625 = vsel %vm2623, %v2617, %v2624
    %vm2626 = vcmp.eq.s32.totalorder %v2621, 2
    %v2627 = vxor.u32 %v2617, 2147483648
    %v2628 = vsel %vm2626, %v2627, %v2618
    %v2629 = vsel %vm2622, %v2625, %v2628
    %v2630 = vsel %vm2619, nan, %v2629
    %v2631 = vand.u32 2147483647, %v761
    %vm2632 = vcmp.le.f32.partialorder %v2631, 0.7853982
    %vm2633 = vcmp.lt.s32.totalorder %v761, 0
    %v2634 = vand.u32 %v761, 2139095040
    %v2635 = vshrl.u32 %v2634, 23
    %v2636 = vsub.s32 %v2635, 127
    %v2637 = vand.u32 2147483647, %v761
    %v2638 = vand.u32 %v2637, 8388607
    %v2639 = vor.u32 %v2638, 8388608
    %v2640 = vsub.s32 0, %v2639
    %v2641 = vadd.s32 %v2636, 1
    %vm2642 = vcmp.gt.s32.totalorder %v2641, 0
    %v2643 = vsel %vm2642, %v2641, 0
    %v2644 = vshrl.u32 %v2643, 5
    %v2645 = vand.u32 %v2643, 31
    %v2646 = vsub.s32 32, %v2645
    %v2647 = vshrl.u32 683565275, %v2646
    %v2648 = vshll.u32 683565275, %v2645
    %v2649 = vshrl.u32 2475754826, %v2646
    %v2650 = vor.u32 %v2648, %v2649
    %v2651 = vshll.u32 2475754826, %v2645
    %v2652 = vshrl.u32 2131351028, %v2646
    %v2653 = vor.u32 %v2651, %v2652
    %v2654 = vshll.u32 2131351028, %v2645
    %v2655 = vshrl.u32 2102212464, %v2646
    %v2656 = vor.u32 %v2654, %v2655
    %v2657 = vshll.u32 2102212464, %v2645
    %v2658 = vshrl.u32 920167782, %v2646
    %v2659 = vor.u32 %v2657, %v2658
    %v2660 = vshll.u32 920167782, %v2645
    %v2661 = vshrl.u32 1326507024, %v2646
    %v2662 = vor.u32 %v2660, %v2661
    %vm2663 = vcmp.lt.s32.totalorder %v2644, 1
    %vm2664 = vcmp.lt.s32.totalorder %v2644, 2
    %vm2665 = vcmp.lt.s32.totalorder %v2644, 3
    %vm2666 = vcmp.lt.s32.totalorder %v2644, 4
    %v2667 = vsel %vm2663, %v2647, %v2650
    %v2668 = vsel %vm2666, %v2656, 2102212464
    %v2669 = vsel %vm2665, %v2653, %v2668
    %v2670 = vsel %vm2664, %v2667, %v2669
    %v2671 = vsel %vm2663, %v2650, %v2653
    %v2672 = vsel %vm2666, %v2659, 920167782
    %v2673 = vsel %vm2665, %v2656, %v2672
    %v2674 = vsel %vm2664, %v2671, %v2673
    %v2675 = vsel %vm2663, %v2653, %v2656
    %v2676 = vsel %vm2666, %v2662, 1326507024
    %v2677 = vsel %vm2665, %v2659, %v2676
    %v2678 = vsel %vm2664, %v2675, %v2677
    %v2679 = vshll.u32 %v2639, 8
    %v2680 = vmul.u32.u64.compose %v2679, %v2678
    %v2681 = vextract.low.u32 %v2680
    %v2682 = vextract.high.u32 %v2680
    %v2683 = vmul.u32.u64.compose %v2679, %v2674
    %v2684 = vextract.low.u32 %v2683
    %v2685 = vextract.high.u32 %v2683
    %v2686 = vmul.u32 %v2679, %v2670
    %v2687 = vadd.s32 %v2682, %v2684
    %vm2688 = vc.u32 %v2682, %v2684
    %v2689 = vadd.s32 %v2685, 1
    %v2690 = vsel %vm2688, %v2689, %v2685
    %v2691 = vadd.s32 %v2686, %v2690
    %v2692 = vadd.s32 %v2691, 536870912
    %v2693 = vshrl.u32 %v2692, 30
    %v2694 = vshll.u32 %v2693, 30
    %v2695 = vsub.s32 %v2691, %v2694
    %vm2696 = vcmp.lt.s32.totalorder %v2695, 0
    %v2697 = vsub.s32 0, %v2695
    %v2698 = vsel %vm2696, %v2697, %v2695
    %v2699 = vclz %v2698
    %v2700 = vsub.s32 %v2699, 2
    %vm2701 = vcmp.gt.s32.totalorder 0, %v2700
    %v2702 = vsel %vm2701, 0, %v2700
    %v2703 = vsub.s32 32, %v2702
    %v2704 = vshll.u32 %v2695, %v2702
    %v2705 = vshrl.u32 %v2687, %v2703
    %v2706 = vor.u32 %v2704, %v2705
    %v2707 = vsub.s32 4294967266, %v2702
    %v2708 = vadd.s32 %v2707, 127
    %v2709 = vshll.u32 %v2708, 23
    %v2710 = vor.u32 4788187, %v2709
    %v2711 = vand.u32 2147483647, %v2710
    %v2713 = vcvt.s32.f32 %v2706
    %v2714 = vmul.f32 %v2713, %v2711
    %v2715 = vxor.u32 %v2714, 2147483648
    %v2716 = vsel %vm2633, %v2715, %v2714
    %v2717 = vsub.s32 4, %v2693
    %v2718 = vsel %vm2633, %v2717, %v2693
    %v2719 = vsel %vm2632, %v761, %v2716
    %v2720 = vsel %vm2632, 0, %v2718
    %v2721 = vcosq.f32.pop %v2719
    %v2722 = vsinq.f32.pop %v2719
    %vm2723 = vweird.f32 %v761
    %v2724 = vadd.s32 %v2720, 3
    %v2725 = vand.u32 %v2724, 3
    %vm2726 = vcmp.lt.s32.totalorder %v2725, 2
    %vm2727 = vcmp.eq.s32.totalorder %v2725, 0
    %v2728 = vxor.u32 %v2722, 2147483648
    %v2729 = vsel %vm2727, %v2721, %v2728
    %vm2730 = vcmp.eq.s32.totalorder %v2725, 2
    %v2731 = vxor.u32 %v2721, 2147483648
    %v2732 = vsel %vm2730, %v2731, %v2722
    %v2733 = vsel %vm2726, %v2729, %v2732
    %v2734 = vsel %vm2723, nan, %v2733
    %v2735 = vand.u32 2147483647, %v762
    %vm2736 = vcmp.le.f32.partialorder %v2735, 0.7853982
    %vm2737 = vcmp.lt.s32.totalorder %v762, 0
    %v2738 = vand.u32 %v762, 2139095040
    %v2739 = vshrl.u32 %v2738, 23
    %v2740 = vsub.s32 %v2739, 127
    %v2741 = vand.u32 2147483647, %v762
    %v2742 = vand.u32 %v2741, 8388607
    %v2743 = vor.u32 %v2742, 8388608
    %v2744 = vsub.s32 0, %v2743
    %v2745 = vadd.s32 %v2740, 1
    %vm2746 = vcmp.gt.s32.totalorder %v2745, 0
    %v2747 = vsel %vm2746, %v2745, 0
    %v2748 = vshrl.u32 %v2747, 5
    %v2749 = vand.u32 %v2747, 31
    %v2750 = vsub.s32 32, %v2749
    %v2751 = vshrl.u32 683565275, %v2750
    %v2752 = vshll.u32 683565275, %v2749
    %v2753 = vshrl.u32 2475754826, %v2750
    %v2754 = vor.u32 %v2752, %v2753
    %v2755 = vshll.u32 2475754826, %v2749
    %v2756 = vshrl.u32 2131351028, %v2750
    %v2757 = vor.u32 %v2755, %v2756
    %v2758 = vshll.u32 2131351028, %v2749
    %v2759 = vshrl.u32 2102212464, %v2750
    %v2760 = vor.u32 %v2758, %v2759
    %v2761 = vshll.u32 2102212464, %v2749
    %v2762 = vshrl.u32 920167782, %v2750
    %v2763 = vor.u32 %v2761, %v2762
    %v2764 = vshll.u32 920167782, %v2749
    %v2765 = vshrl.u32 1326507024, %v2750
    %v2766 = vor.u32 %v2764, %v2765
    %vm2767 = vcmp.lt.s32.totalorder %v2748, 1
    %vm2768 = vcmp.lt.s32.totalorder %v2748, 2
    %vm2769 = vcmp.lt.s32.totalorder %v2748, 3
    %vm2770 = vcmp.lt.s32.totalorder %v2748, 4
    %v2771 = vsel %vm2767, %v2751, %v2754
    %v2772 = vsel %vm2770, %v2760, 2102212464
    %v2773 = vsel %vm2769, %v2757, %v2772
    %v2774 = vsel %vm2768, %v2771, %v2773
    %v2775 = vsel %vm2767, %v2754, %v2757
    %v2776 = vsel %vm2770, %v2763, 920167782
    %v2777 = vsel %vm2769, %v2760, %v2776
    %v2778 = vsel %vm2768, %v2775, %v2777
    %v2779 = vsel %vm2767, %v2757, %v2760
    %v2780 = vsel %vm2770, %v2766, 1326507024
    %v2781 = vsel %vm2769, %v2763, %v2780
    %v2782 = vsel %vm2768, %v2779, %v2781
    %v2783 = vshll.u32 %v2743, 8
    %v2784 = vmul.u32.u64.compose %v2783, %v2782
    %v2785 = vextract.low.u32 %v2784
    %v2786 = vextract.high.u32 %v2784
    %v2787 = vmul.u32.u64.compose %v2783, %v2778
    %v2788 = vextract.low.u32 %v2787
    %v2789 = vextract.high.u32 %v2787
    %v2790 = vmul.u32 %v2783, %v2774
    %v2791 = vadd.s32 %v2786, %v2788
    %vm2792 = vc.u32 %v2786, %v2788
    %v2793 = vadd.s32 %v2789, 1
    %v2794 = vsel %vm2792, %v2793, %v2789
    %v2795 = vadd.s32 %v2790, %v2794
    %v2796 = vadd.s32 %v2795, 536870912
    %v2797 = vshrl.u32 %v2796, 30
    %v2798 = vshll.u32 %v2797, 30
    %v2799 = vsub.s32 %v2795, %v2798
    %vm2800 = vcmp.lt.s32.totalorder %v2799, 0
    %v2801 = vsub.s32 0, %v2799
    %v2802 = vsel %vm2800, %v2801, %v2799
    %v2803 = vclz %v2802
    %v2804 = vsub.s32 %v2803, 2
    %vm2805 = vcmp.gt.s32.totalorder 0, %v2804
    %v2806 = vsel %vm2805, 0, %v2804
    %v2807 = vsub.s32 32, %v2806
    %v2808 = vshll.u32 %v2799, %v2806
    %v2809 = vshrl.u32 %v2791, %v2807
    %v2810 = vor.u32 %v2808, %v2809
    %v2811 = vsub.s32 4294967266, %v2806
    %v2812 = vadd.s32 %v2811, 127
    %v2813 = vshll.u32 %v2812, 23
    %v2814 = vor.u32 4788187, %v2813
    %v2815 = vand.u32 2147483647, %v2814
    %v2817 = vcvt.s32.f32 %v2810
    %v2818 = vmul.f32 %v2817, %v2815
    %v2819 = vxor.u32 %v2818, 2147483648
    %v2820 = vsel %vm2737, %v2819, %v2818
    %v2821 = vsub.s32 4, %v2797
    %v2822 = vsel %vm2737, %v2821, %v2797
    %v2823 = vsel %vm2736, %v762, %v2820
    %v2824 = vsel %vm2736, 0, %v2822
    %v2825 = vcosq.f32.pop %v2823
    %v2826 = vsinq.f32.pop %v2823
    %vm2827 = vweird.f32 %v762
    %v2828 = vadd.s32 %v2824, 3
    %v2829 = vand.u32 %v2828, 3
    %vm2830 = vcmp.lt.s32.totalorder %v2829, 2
    %vm2831 = vcmp.eq.s32.totalorder %v2829, 0
    %v2832 = vxor.u32 %v2826, 2147483648
    %v2833 = vsel %vm2831, %v2825, %v2832
    %vm2834 = vcmp.eq.s32.totalorder %v2829, 2
    %v2835 = vxor.u32 %v2825, 2147483648
    %v2836 = vsel %vm2834, %v2835, %v2826
    %v2837 = vsel %vm2830, %v2833, %v2836
    %v2838 = vsel %vm2827, nan, %v2837
    %v2839 = vand.u32 2147483647, %v763
    %vm2840 = vcmp.le.f32.partialorder %v2839, 0.7853982
    %vm2841 = vcmp.lt.s32.totalorder %v763, 0
    %v2842 = vand.u32 %v763, 2139095040
    %v2843 = vshrl.u32 %v2842, 23
    %v2844 = vsub.s32 %v2843, 127
    %v2845 = vand.u32 2147483647, %v763
    %v2846 = vand.u32 %v2845, 8388607
    %v2847 = vor.u32 %v2846, 8388608
    %v2848 = vsub.s32 0, %v2847
    %v2849 = vadd.s32 %v2844, 1
    %vm2850 = vcmp.gt.s32.totalorder %v2849, 0
    %v2851 = vsel %vm2850, %v2849, 0
    %v2852 = vshrl.u32 %v2851, 5
    %v2853 = vand.u32 %v2851, 31
    %v2854 = vsub.s32 32, %v2853
    %v2855 = vshrl.u32 683565275, %v2854
    %v2856 = vshll.u32 683565275, %v2853
    %v2857 = vshrl.u32 2475754826, %v2854
    %v2858 = vor.u32 %v2856, %v2857
    %v2859 = vshll.u32 2475754826, %v2853
    %v2860 = vshrl.u32 2131351028, %v2854
    %v2861 = vor.u32 %v2859, %v2860
    %v2862 = vshll.u32 2131351028, %v2853
    %v2863 = vshrl.u32 2102212464, %v2854
    %v2864 = vor.u32 %v2862, %v2863
    %v2865 = vshll.u32 2102212464, %v2853
    %v2866 = vshrl.u32 920167782, %v2854
    %v2867 = vor.u32 %v2865, %v2866
    %v2868 = vshll.u32 920167782, %v2853
    %v2869 = vshrl.u32 1326507024, %v2854
    %v2870 = vor.u32 %v2868, %v2869
    %vm2871 = vcmp.lt.s32.totalorder %v2852, 1
    %vm2872 = vcmp.lt.s32.totalorder %v2852, 2
    %vm2873 = vcmp.lt.s32.totalorder %v2852, 3
    %vm2874 = vcmp.lt.s32.totalorder %v2852, 4
    %v2875 = vsel %vm2871, %v2855, %v2858
    %v2876 = vsel %vm2874, %v2864, 2102212464
    %v2877 = vsel %vm2873, %v2861, %v2876
    %v2878 = vsel %vm2872, %v2875, %v2877
    %v2879 = vsel %vm2871, %v2858, %v2861
    %v2880 = vsel %vm2874, %v2867, 920167782
    %v2881 = vsel %vm2873, %v2864, %v2880
    %v2882 = vsel %vm2872, %v2879, %v2881
    %v2883 = vsel %vm2871, %v2861, %v2864
    %v2884 = vsel %vm2874, %v2870, 1326507024
    %v2885 = vsel %vm2873, %v2867, %v2884
    %v2886 = vsel %vm2872, %v2883, %v2885
    %v2887 = vshll.u32 %v2847, 8
    %v2888 = vmul.u32.u64.compose %v2887, %v2886
    %v2889 = vextract.low.u32 %v2888
    %v2890 = vextract.high.u32 %v2888
    %v2891 = vmul.u32.u64.compose %v2887, %v2882
    %v2892 = vextract.low.u32 %v2891
    %v2893 = vextract.high.u32 %v2891
    %v2894 = vmul.u32 %v2887, %v2878
    %v2895 = vadd.s32 %v2890, %v2892
    %vm2896 = vc.u32 %v2890, %v2892
    %v2897 = vadd.s32 %v2893, 1
    %v2898 = vsel %vm2896, %v2897, %v2893
    %v2899 = vadd.s32 %v2894, %v2898
    %v2900 = vadd.s32 %v2899, 536870912
    %v2901 = vshrl.u32 %v2900, 30
    %v2902 = vshll.u32 %v2901, 30
    %v2903 = vsub.s32 %v2899, %v2902
    %vm2904 = vcmp.lt.s32.totalorder %v2903, 0
    %v2905 = vsub.s32 0, %v2903
    %v2906 = vsel %vm2904, %v2905, %v2903
    %v2907 = vclz %v2906
    %v2908 = vsub.s32 %v2907, 2
    %vm2909 = vcmp.gt.s32.totalorder 0, %v2908
    %v2910 = vsel %vm2909, 0, %v2908
    %v2911 = vsub.s32 32, %v2910
    %v2912 = vshll.u32 %v2903, %v2910
    %v2913 = vshrl.u32 %v2895, %v2911
    %v2914 = vor.u32 %v2912, %v2913
    %v2915 = vsub.s32 4294967266, %v2910
    %v2916 = vadd.s32 %v2915, 127
    %v2917 = vshll.u32 %v2916, 23
    %v2918 = vor.u32 4788187, %v2917
    %v2919 = vand.u32 2147483647, %v2918
    %v2921 = vcvt.s32.f32 %v2914
    %v2922 = vmul.f32 %v2921, %v2919
    %v2923 = vxor.u32 %v2922, 2147483648
    %v2924 = vsel %vm2841, %v2923, %v2922
    %v2925 = vsub.s32 4, %v2901
    %v2926 = vsel %vm2841, %v2925, %v2901
    %v2927 = vsel %vm2840, %v763, %v2924
    %v2928 = vsel %vm2840, 0, %v2926
    %v2929 = vcosq.f32.pop %v2927
    %v2930 = vsinq.f32.pop %v2927
    %vm2931 = vweird.f32 %v763
    %v2932 = vadd.s32 %v2928, 3
    %v2933 = vand.u32 %v2932, 3
    %vm2934 = vcmp.lt.s32.totalorder %v2933, 2
    %vm2935 = vcmp.eq.s32.totalorder %v2933, 0
    %v2936 = vxor.u32 %v2930, 2147483648
    %v2937 = vsel %vm2935, %v2929, %v2936
    %vm2938 = vcmp.eq.s32.totalorder %v2933, 2
    %v2939 = vxor.u32 %v2929, 2147483648
    %v2940 = vsel %vm2938, %v2939, %v2930
    %v2941 = vsel %vm2934, %v2937, %v2940
    %v2942 = vsel %vm2931, nan, %v2941
    %v2943 = vand.u32 2147483647, %v764
    %vm2944 = vcmp.le.f32.partialorder %v2943, 0.7853982
    %vm2945 = vcmp.lt.s32.totalorder %v764, 0
    %v2946 = vand.u32 %v764, 2139095040
    %v2947 = vshrl.u32 %v2946, 23
    %v2948 = vsub.s32 %v2947, 127
    %v2949 = vand.u32 2147483647, %v764
    %v2950 = vand.u32 %v2949, 8388607
    %v2951 = vor.u32 %v2950, 8388608
    %v2952 = vsub.s32 0, %v2951
    %v2953 = vadd.s32 %v2948, 1
    %vm2954 = vcmp.gt.s32.totalorder %v2953, 0
    %v2955 = vsel %vm2954, %v2953, 0
    %v2956 = vshrl.u32 %v2955, 5
    %v2957 = vand.u32 %v2955, 31
    %v2958 = vsub.s32 32, %v2957
    %v2959 = vshrl.u32 683565275, %v2958
    %v2960 = vshll.u32 683565275, %v2957
    %v2961 = vshrl.u32 2475754826, %v2958
    %v2962 = vor.u32 %v2960, %v2961
    %v2963 = vshll.u32 2475754826, %v2957
    %v2964 = vshrl.u32 2131351028, %v2958
    %v2965 = vor.u32 %v2963, %v2964
    %v2966 = vshll.u32 2131351028, %v2957
    %v2967 = vshrl.u32 2102212464, %v2958
    %v2968 = vor.u32 %v2966, %v2967
    %v2969 = vshll.u32 2102212464, %v2957
    %v2970 = vshrl.u32 920167782, %v2958
    %v2971 = vor.u32 %v2969, %v2970
    %v2972 = vshll.u32 920167782, %v2957
    %v2973 = vshrl.u32 1326507024, %v2958
    %v2974 = vor.u32 %v2972, %v2973
    %vm2975 = vcmp.lt.s32.totalorder %v2956, 1
    %vm2976 = vcmp.lt.s32.totalorder %v2956, 2
    %vm2977 = vcmp.lt.s32.totalorder %v2956, 3
    %vm2978 = vcmp.lt.s32.totalorder %v2956, 4
    %v2979 = vsel %vm2975, %v2959, %v2962
    %v2980 = vsel %vm2978, %v2968, 2102212464
    %v2981 = vsel %vm2977, %v2965, %v2980
    %v2982 = vsel %vm2976, %v2979, %v2981
    %v2983 = vsel %vm2975, %v2962, %v2965
    %v2984 = vsel %vm2978, %v2971, 920167782
    %v2985 = vsel %vm2977, %v2968, %v2984
    %v2986 = vsel %vm2976, %v2983, %v2985
    %v2987 = vsel %vm2975, %v2965, %v2968
    %v2988 = vsel %vm2978, %v2974, 1326507024
    %v2989 = vsel %vm2977, %v2971, %v2988
    %v2990 = vsel %vm2976, %v2987, %v2989
    %v2991 = vshll.u32 %v2951, 8
    %v2992 = vmul.u32.u64.compose %v2991, %v2990
    %v2993 = vextract.low.u32 %v2992
    %v2994 = vextract.high.u32 %v2992
    %v2995 = vmul.u32.u64.compose %v2991, %v2986
    %v2996 = vextract.low.u32 %v2995
    %v2997 = vextract.high.u32 %v2995
    %v2998 = vmul.u32 %v2991, %v2982
    %v2999 = vadd.s32 %v2994, %v2996
    %vm3000 = vc.u32 %v2994, %v2996
    %v3001 = vadd.s32 %v2997, 1
    %v3002 = vsel %vm3000, %v3001, %v2997
    %v3003 = vadd.s32 %v2998, %v3002
    %v3004 = vadd.s32 %v3003, 536870912
    %v3005 = vshrl.u32 %v3004, 30
    %v3006 = vshll.u32 %v3005, 30
    %v3007 = vsub.s32 %v3003, %v3006
    %vm3008 = vcmp.lt.s32.totalorder %v3007, 0
    %v3009 = vsub.s32 0, %v3007
    %v3010 = vsel %vm3008, %v3009, %v3007
    %v3011 = vclz %v3010
    %v3012 = vsub.s32 %v3011, 2
    %vm3013 = vcmp.gt.s32.totalorder 0, %v3012
    %v3014 = vsel %vm3013, 0, %v3012
    %v3015 = vsub.s32 32, %v3014
    %v3016 = vshll.u32 %v3007, %v3014
    %v3017 = vshrl.u32 %v2999, %v3015
    %v3018 = vor.u32 %v3016, %v3017
    %v3019 = vsub.s32 4294967266, %v3014
    %v3020 = vadd.s32 %v3019, 127
    %v3021 = vshll.u32 %v3020, 23
    %v3022 = vor.u32 4788187, %v3021
    %v3023 = vand.u32 2147483647, %v3022
    %v3025 = vcvt.s32.f32 %v3018
    %v3026 = vmul.f32 %v3025, %v3023
    %v3027 = vxor.u32 %v3026, 2147483648
    %v3028 = vsel %vm2945, %v3027, %v3026
    %v3029 = vsub.s32 4, %v3005
    %v3030 = vsel %vm2945, %v3029, %v3005
    %v3031 = vsel %vm2944, %v764, %v3028
    %v3032 = vsel %vm2944, 0, %v3030
    %v3033 = vcosq.f32.pop %v3031
    %v3034 = vsinq.f32.pop %v3031
    %vm3035 = vweird.f32 %v764
    %v3036 = vadd.s32 %v3032, 3
    %v3037 = vand.u32 %v3036, 3
    %vm3038 = vcmp.lt.s32.totalorder %v3037, 2
    %vm3039 = vcmp.eq.s32.totalorder %v3037, 0
    %v3040 = vxor.u32 %v3034, 2147483648
    %v3041 = vsel %vm3039, %v3033, %v3040
    %vm3042 = vcmp.eq.s32.totalorder %v3037, 2
    %v3043 = vxor.u32 %v3033, 2147483648
    %v3044 = vsel %vm3042, %v3043, %v3034
    %v3045 = vsel %vm3038, %v3041, %v3044
    %v3046 = vsel %vm3035, nan, %v3045
    %v3047 = vand.u32 2147483647, %v765
    %vm3048 = vcmp.le.f32.partialorder %v3047, 0.7853982
    %vm3049 = vcmp.lt.s32.totalorder %v765, 0
    %v3050 = vand.u32 %v765, 2139095040
    %v3051 = vshrl.u32 %v3050, 23
    %v3052 = vsub.s32 %v3051, 127
    %v3053 = vand.u32 2147483647, %v765
    %v3054 = vand.u32 %v3053, 8388607
    %v3055 = vor.u32 %v3054, 8388608
    %v3056 = vsub.s32 0, %v3055
    %v3057 = vadd.s32 %v3052, 1
    %vm3058 = vcmp.gt.s32.totalorder %v3057, 0
    %v3059 = vsel %vm3058, %v3057, 0
    %v3060 = vshrl.u32 %v3059, 5
    %v3061 = vand.u32 %v3059, 31
    %v3062 = vsub.s32 32, %v3061
    %v3063 = vshrl.u32 683565275, %v3062
    %v3064 = vshll.u32 683565275, %v3061
    %v3065 = vshrl.u32 2475754826, %v3062
    %v3066 = vor.u32 %v3064, %v3065
    %v3067 = vshll.u32 2475754826, %v3061
    %v3068 = vshrl.u32 2131351028, %v3062
    %v3069 = vor.u32 %v3067, %v3068
    %v3070 = vshll.u32 2131351028, %v3061
    %v3071 = vshrl.u32 2102212464, %v3062
    %v3072 = vor.u32 %v3070, %v3071
    %v3073 = vshll.u32 2102212464, %v3061
    %v3074 = vshrl.u32 920167782, %v3062
    %v3075 = vor.u32 %v3073, %v3074
    %v3076 = vshll.u32 920167782, %v3061
    %v3077 = vshrl.u32 1326507024, %v3062
    %v3078 = vor.u32 %v3076, %v3077
    %vm3079 = vcmp.lt.s32.totalorder %v3060, 1
    %vm3080 = vcmp.lt.s32.totalorder %v3060, 2
    %vm3081 = vcmp.lt.s32.totalorder %v3060, 3
    %vm3082 = vcmp.lt.s32.totalorder %v3060, 4
    %v3083 = vsel %vm3079, %v3063, %v3066
    %v3084 = vsel %vm3082, %v3072, 2102212464
    %v3085 = vsel %vm3081, %v3069, %v3084
    %v3086 = vsel %vm3080, %v3083, %v3085
    %v3087 = vsel %vm3079, %v3066, %v3069
    %v3088 = vsel %vm3082, %v3075, 920167782
    %v3089 = vsel %vm3081, %v3072, %v3088
    %v3090 = vsel %vm3080, %v3087, %v3089
    %v3091 = vsel %vm3079, %v3069, %v3072
    %v3092 = vsel %vm3082, %v3078, 1326507024
    %v3093 = vsel %vm3081, %v3075, %v3092
    %v3094 = vsel %vm3080, %v3091, %v3093
    %v3095 = vshll.u32 %v3055, 8
    %v3096 = vmul.u32.u64.compose %v3095, %v3094
    %v3097 = vextract.low.u32 %v3096
    %v3098 = vextract.high.u32 %v3096
    %v3099 = vmul.u32.u64.compose %v3095, %v3090
    %v3100 = vextract.low.u32 %v3099
    %v3101 = vextract.high.u32 %v3099
    %v3102 = vmul.u32 %v3095, %v3086
    %v3103 = vadd.s32 %v3098, %v3100
    %vm3104 = vc.u32 %v3098, %v3100
    %v3105 = vadd.s32 %v3101, 1
    %v3106 = vsel %vm3104, %v3105, %v3101
    %v3107 = vadd.s32 %v3102, %v3106
    %v3108 = vadd.s32 %v3107, 536870912
    %v3109 = vshrl.u32 %v3108, 30
    %v3110 = vshll.u32 %v3109, 30
    %v3111 = vsub.s32 %v3107, %v3110
    %vm3112 = vcmp.lt.s32.totalorder %v3111, 0
    %v3113 = vsub.s32 0, %v3111
    %v3114 = vsel %vm3112, %v3113, %v3111
    %v3115 = vclz %v3114
    %v3116 = vsub.s32 %v3115, 2
    %vm3117 = vcmp.gt.s32.totalorder 0, %v3116
    %v3118 = vsel %vm3117, 0, %v3116
    %v3119 = vsub.s32 32, %v3118
    %v3120 = vshll.u32 %v3111, %v3118
    %v3121 = vshrl.u32 %v3103, %v3119
    %v3122 = vor.u32 %v3120, %v3121
    %v3123 = vsub.s32 4294967266, %v3118
    %v3124 = vadd.s32 %v3123, 127
    %v3125 = vshll.u32 %v3124, 23
    %v3126 = vor.u32 4788187, %v3125
    %v3127 = vand.u32 2147483647, %v3126
    %v3129 = vcvt.s32.f32 %v3122
    %v3130 = vmul.f32 %v3129, %v3127
    %v3131 = vxor.u32 %v3130, 2147483648
    %v3132 = vsel %vm3049, %v3131, %v3130
    %v3133 = vsub.s32 4, %v3109
    %v3134 = vsel %vm3049, %v3133, %v3109
    %v3135 = vsel %vm3048, %v765, %v3132
    %v3136 = vsel %vm3048, 0, %v3134
    %v3137 = vcosq.f32.pop %v3135
    %v3138 = vsinq.f32.pop %v3135
    %vm3139 = vweird.f32 %v765
    %v3140 = vadd.s32 %v3136, 3
    %v3141 = vand.u32 %v3140, 3
    %vm3142 = vcmp.lt.s32.totalorder %v3141, 2
    %vm3143 = vcmp.eq.s32.totalorder %v3141, 0
    %v3144 = vxor.u32 %v3138, 2147483648
    %v3145 = vsel %vm3143, %v3137, %v3144
    %vm3146 = vcmp.eq.s32.totalorder %v3141, 2
    %v3147 = vxor.u32 %v3137, 2147483648
    %v3148 = vsel %vm3146, %v3147, %v3138
    %v3149 = vsel %vm3142, %v3145, %v3148
    %v3150 = vsel %vm3139, nan, %v3149
    %v3151 = vand.u32 2147483647, %v766
    %vm3152 = vcmp.le.f32.partialorder %v3151, 0.7853982
    %vm3153 = vcmp.lt.s32.totalorder %v766, 0
    %v3154 = vand.u32 %v766, 2139095040
    %v3155 = vshrl.u32 %v3154, 23
    %v3156 = vsub.s32 %v3155, 127
    %v3157 = vand.u32 2147483647, %v766
    %v3158 = vand.u32 %v3157, 8388607
    %v3159 = vor.u32 %v3158, 8388608
    %v3160 = vsub.s32 0, %v3159
    %v3161 = vadd.s32 %v3156, 1
    %vm3162 = vcmp.gt.s32.totalorder %v3161, 0
    %v3163 = vsel %vm3162, %v3161, 0
    %v3164 = vshrl.u32 %v3163, 5
    %v3165 = vand.u32 %v3163, 31
    %v3166 = vsub.s32 32, %v3165
    %v3167 = vshrl.u32 683565275, %v3166
    %v3168 = vshll.u32 683565275, %v3165
    %v3169 = vshrl.u32 2475754826, %v3166
    %v3170 = vor.u32 %v3168, %v3169
    %v3171 = vshll.u32 2475754826, %v3165
    %v3172 = vshrl.u32 2131351028, %v3166
    %v3173 = vor.u32 %v3171, %v3172
    %v3174 = vshll.u32 2131351028, %v3165
    %v3175 = vshrl.u32 2102212464, %v3166
    %v3176 = vor.u32 %v3174, %v3175
    %v3177 = vshll.u32 2102212464, %v3165
    %v3178 = vshrl.u32 920167782, %v3166
    %v3179 = vor.u32 %v3177, %v3178
    %v3180 = vshll.u32 920167782, %v3165
    %v3181 = vshrl.u32 1326507024, %v3166
    %v3182 = vor.u32 %v3180, %v3181
    %vm3183 = vcmp.lt.s32.totalorder %v3164, 1
    %vm3184 = vcmp.lt.s32.totalorder %v3164, 2
    %vm3185 = vcmp.lt.s32.totalorder %v3164, 3
    %vm3186 = vcmp.lt.s32.totalorder %v3164, 4
    %v3187 = vsel %vm3183, %v3167, %v3170
    %v3188 = vsel %vm3186, %v3176, 2102212464
    %v3189 = vsel %vm3185, %v3173, %v3188
    %v3190 = vsel %vm3184, %v3187, %v3189
    %v3191 = vsel %vm3183, %v3170, %v3173
    %v3192 = vsel %vm3186, %v3179, 920167782
    %v3193 = vsel %vm3185, %v3176, %v3192
    %v3194 = vsel %vm3184, %v3191, %v3193
    %v3195 = vsel %vm3183, %v3173, %v3176
    %v3196 = vsel %vm3186, %v3182, 1326507024
    %v3197 = vsel %vm3185, %v3179, %v3196
    %v3198 = vsel %vm3184, %v3195, %v3197
    %v3199 = vshll.u32 %v3159, 8
    %v3200 = vmul.u32.u64.compose %v3199, %v3198
    %v3201 = vextract.low.u32 %v3200
    %v3202 = vextract.high.u32 %v3200
    %v3203 = vmul.u32.u64.compose %v3199, %v3194
    %v3204 = vextract.low.u32 %v3203
    %v3205 = vextract.high.u32 %v3203
    %v3206 = vmul.u32 %v3199, %v3190
    %v3207 = vadd.s32 %v3202, %v3204
    %vm3208 = vc.u32 %v3202, %v3204
    %v3209 = vadd.s32 %v3205, 1
    %v3210 = vsel %vm3208, %v3209, %v3205
    %v3211 = vadd.s32 %v3206, %v3210
    %v3212 = vadd.s32 %v3211, 536870912
    %v3213 = vshrl.u32 %v3212, 30
    %v3214 = vshll.u32 %v3213, 30
    %v3215 = vsub.s32 %v3211, %v3214
    %vm3216 = vcmp.lt.s32.totalorder %v3215, 0
    %v3217 = vsub.s32 0, %v3215
    %v3218 = vsel %vm3216, %v3217, %v3215
    %v3219 = vclz %v3218
    %v3220 = vsub.s32 %v3219, 2
    %vm3221 = vcmp.gt.s32.totalorder 0, %v3220
    %v3222 = vsel %vm3221, 0, %v3220
    %v3223 = vsub.s32 32, %v3222
    %v3224 = vshll.u32 %v3215, %v3222
    %v3225 = vshrl.u32 %v3207, %v3223
    %v3226 = vor.u32 %v3224, %v3225
    %v3227 = vsub.s32 4294967266, %v3222
    %v3228 = vadd.s32 %v3227, 127
    %v3229 = vshll.u32 %v3228, 23
    %v3230 = vor.u32 4788187, %v3229
    %v3231 = vand.u32 2147483647, %v3230
    %v3233 = vcvt.s32.f32 %v3226
    %v3234 = vmul.f32 %v3233, %v3231
    %v3235 = vxor.u32 %v3234, 2147483648
    %v3236 = vsel %vm3153, %v3235, %v3234
    %v3237 = vsub.s32 4, %v3213
    %v3238 = vsel %vm3153, %v3237, %v3213
    %v3239 = vsel %vm3152, %v766, %v3236
    %v3240 = vsel %vm3152, 0, %v3238
    %v3241 = vcosq.f32.pop %v3239
    %v3242 = vsinq.f32.pop %v3239
    %vm3243 = vweird.f32 %v766
    %v3244 = vadd.s32 %v3240, 3
    %v3245 = vand.u32 %v3244, 3
    %vm3246 = vcmp.lt.s32.totalorder %v3245, 2
    %vm3247 = vcmp.eq.s32.totalorder %v3245, 0
    %v3248 = vxor.u32 %v3242, 2147483648
    %v3249 = vsel %vm3247, %v3241, %v3248
    %vm3250 = vcmp.eq.s32.totalorder %v3245, 2
    %v3251 = vxor.u32 %v3241, 2147483648
    %v3252 = vsel %vm3250, %v3251, %v3242
    %v3253 = vsel %vm3246, %v3249, %v3252
    %v3254 = vsel %vm3243, nan, %v3253
    %v3255 = vand.u32 2147483647, %v767
    %vm3256 = vcmp.le.f32.partialorder %v3255, 0.7853982
    %vm3257 = vcmp.lt.s32.totalorder %v767, 0
    %v3258 = vand.u32 %v767, 2139095040
    %v3259 = vshrl.u32 %v3258, 23
    %v3260 = vsub.s32 %v3259, 127
    %v3261 = vand.u32 2147483647, %v767
    %v3262 = vand.u32 %v3261, 8388607
    %v3263 = vor.u32 %v3262, 8388608
    %v3264 = vsub.s32 0, %v3263
    %v3265 = vadd.s32 %v3260, 1
    %vm3266 = vcmp.gt.s32.totalorder %v3265, 0
    %v3267 = vsel %vm3266, %v3265, 0
    %v3268 = vshrl.u32 %v3267, 5
    %v3269 = vand.u32 %v3267, 31
    %v3270 = vsub.s32 32, %v3269
    %v3271 = vshrl.u32 683565275, %v3270
    %v3272 = vshll.u32 683565275, %v3269
    %v3273 = vshrl.u32 2475754826, %v3270
    %v3274 = vor.u32 %v3272, %v3273
    %v3275 = vshll.u32 2475754826, %v3269
    %v3276 = vshrl.u32 2131351028, %v3270
    %v3277 = vor.u32 %v3275, %v3276
    %v3278 = vshll.u32 2131351028, %v3269
    %v3279 = vshrl.u32 2102212464, %v3270
    %v3280 = vor.u32 %v3278, %v3279
    %v3281 = vshll.u32 2102212464, %v3269
    %v3282 = vshrl.u32 920167782, %v3270
    %v3283 = vor.u32 %v3281, %v3282
    %v3284 = vshll.u32 920167782, %v3269
    %v3285 = vshrl.u32 1326507024, %v3270
    %v3286 = vor.u32 %v3284, %v3285
    %vm3287 = vcmp.lt.s32.totalorder %v3268, 1
    %vm3288 = vcmp.lt.s32.totalorder %v3268, 2
    %vm3289 = vcmp.lt.s32.totalorder %v3268, 3
    %vm3290 = vcmp.lt.s32.totalorder %v3268, 4
    %v3291 = vsel %vm3287, %v3271, %v3274
    %v3292 = vsel %vm3290, %v3280, 2102212464
    %v3293 = vsel %vm3289, %v3277, %v3292
    %v3294 = vsel %vm3288, %v3291, %v3293
    %v3295 = vsel %vm3287, %v3274, %v3277
    %v3296 = vsel %vm3290, %v3283, 920167782
    %v3297 = vsel %vm3289, %v3280, %v3296
    %v3298 = vsel %vm3288, %v3295, %v3297
    %v3299 = vsel %vm3287, %v3277, %v3280
    %v3300 = vsel %vm3290, %v3286, 1326507024
    %v3301 = vsel %vm3289, %v3283, %v3300
    %v3302 = vsel %vm3288, %v3299, %v3301
    %v3303 = vshll.u32 %v3263, 8
    %v3304 = vmul.u32.u64.compose %v3303, %v3302
    %v3305 = vextract.low.u32 %v3304
    %v3306 = vextract.high.u32 %v3304
    %v3307 = vmul.u32.u64.compose %v3303, %v3298
    %v3308 = vextract.low.u32 %v3307
    %v3309 = vextract.high.u32 %v3307
    %v3310 = vmul.u32 %v3303, %v3294
    %v3311 = vadd.s32 %v3306, %v3308
    %vm3312 = vc.u32 %v3306, %v3308
    %v3313 = vadd.s32 %v3309, 1
    %v3314 = vsel %vm3312, %v3313, %v3309
    %v3315 = vadd.s32 %v3310, %v3314
    %v3316 = vadd.s32 %v3315, 536870912
    %v3317 = vshrl.u32 %v3316, 30
    %v3318 = vshll.u32 %v3317, 30
    %v3319 = vsub.s32 %v3315, %v3318
    %vm3320 = vcmp.lt.s32.totalorder %v3319, 0
    %v3321 = vsub.s32 0, %v3319
    %v3322 = vsel %vm3320, %v3321, %v3319
    %v3323 = vclz %v3322
    %v3324 = vsub.s32 %v3323, 2
    %vm3325 = vcmp.gt.s32.totalorder 0, %v3324
    %v3326 = vsel %vm3325, 0, %v3324
    %v3327 = vsub.s32 32, %v3326
    %v3328 = vshll.u32 %v3319, %v3326
    %v3329 = vshrl.u32 %v3311, %v3327
    %v3330 = vor.u32 %v3328, %v3329
    %v3331 = vsub.s32 4294967266, %v3326
    %v3332 = vadd.s32 %v3331, 127
    %v3333 = vshll.u32 %v3332, 23
    %v3334 = vor.u32 4788187, %v3333
    %v3335 = vand.u32 2147483647, %v3334
    %v3337 = vcvt.s32.f32 %v3330
    %v3338 = vmul.f32 %v3337, %v3335
    %v3339 = vxor.u32 %v3338, 2147483648
    %v3340 = vsel %vm3257, %v3339, %v3338
    %v3341 = vsub.s32 4, %v3317
    %v3342 = vsel %vm3257, %v3341, %v3317
    %v3343 = vsel %vm3256, %v767, %v3340
    %v3344 = vsel %vm3256, 0, %v3342
    %v3345 = vcosq.f32.pop %v3343
    %v3346 = vsinq.f32.pop %v3343
    %vm3347 = vweird.f32 %v767
    %v3348 = vadd.s32 %v3344, 3
    %v3349 = vand.u32 %v3348, 3
    %vm3350 = vcmp.lt.s32.totalorder %v3349, 2
    %vm3351 = vcmp.eq.s32.totalorder %v3349, 0
    %v3352 = vxor.u32 %v3346, 2147483648
    %v3353 = vsel %vm3351, %v3345, %v3352
    %vm3354 = vcmp.eq.s32.totalorder %v3349, 2
    %v3355 = vxor.u32 %v3345, 2147483648
    %v3356 = vsel %vm3354, %v3355, %v3346
    %v3357 = vsel %vm3350, %v3353, %v3356
    %v3358 = vsel %vm3347, nan, %v3357
    %v3359 = vand.u32 2147483647, %v768
    %vm3360 = vcmp.le.f32.partialorder %v3359, 0.7853982
    %vm3361 = vcmp.lt.s32.totalorder %v768, 0
    %v3362 = vand.u32 %v768, 2139095040
    %v3363 = vshrl.u32 %v3362, 23
    %v3364 = vsub.s32 %v3363, 127
    %v3365 = vand.u32 2147483647, %v768
    %v3366 = vand.u32 %v3365, 8388607
    %v3367 = vor.u32 %v3366, 8388608
    %v3368 = vsub.s32 0, %v3367
    %v3369 = vadd.s32 %v3364, 1
    %vm3370 = vcmp.gt.s32.totalorder %v3369, 0
    %v3371 = vsel %vm3370, %v3369, 0
    %v3372 = vshrl.u32 %v3371, 5
    %v3373 = vand.u32 %v3371, 31
    %v3374 = vsub.s32 32, %v3373
    %v3375 = vshrl.u32 683565275, %v3374
    %v3376 = vshll.u32 683565275, %v3373
    %v3377 = vshrl.u32 2475754826, %v3374
    %v3378 = vor.u32 %v3376, %v3377
    %v3379 = vshll.u32 2475754826, %v3373
    %v3380 = vshrl.u32 2131351028, %v3374
    %v3381 = vor.u32 %v3379, %v3380
    %v3382 = vshll.u32 2131351028, %v3373
    %v3383 = vshrl.u32 2102212464, %v3374
    %v3384 = vor.u32 %v3382, %v3383
    %v3385 = vshll.u32 2102212464, %v3373
    %v3386 = vshrl.u32 920167782, %v3374
    %v3387 = vor.u32 %v3385, %v3386
    %v3388 = vshll.u32 920167782, %v3373
    %v3389 = vshrl.u32 1326507024, %v3374
    %v3390 = vor.u32 %v3388, %v3389
    %vm3391 = vcmp.lt.s32.totalorder %v3372, 1
    %vm3392 = vcmp.lt.s32.totalorder %v3372, 2
    %vm3393 = vcmp.lt.s32.totalorder %v3372, 3
    %vm3394 = vcmp.lt.s32.totalorder %v3372, 4
    %v3395 = vsel %vm3391, %v3375, %v3378
    %v3396 = vsel %vm3394, %v3384, 2102212464
    %v3397 = vsel %vm3393, %v3381, %v3396
    %v3398 = vsel %vm3392, %v3395, %v3397
    %v3399 = vsel %vm3391, %v3378, %v3381
    %v3400 = vsel %vm3394, %v3387, 920167782
    %v3401 = vsel %vm3393, %v3384, %v3400
    %v3402 = vsel %vm3392, %v3399, %v3401
    %v3403 = vsel %vm3391, %v3381, %v3384
    %v3404 = vsel %vm3394, %v3390, 1326507024
    %v3405 = vsel %vm3393, %v3387, %v3404
    %v3406 = vsel %vm3392, %v3403, %v3405
    %v3407 = vshll.u32 %v3367, 8
    %v3408 = vmul.u32.u64.compose %v3407, %v3406
    %v3409 = vextract.low.u32 %v3408
    %v3410 = vextract.high.u32 %v3408
    %v3411 = vmul.u32.u64.compose %v3407, %v3402
    %v3412 = vextract.low.u32 %v3411
    %v3413 = vextract.high.u32 %v3411
    %v3414 = vmul.u32 %v3407, %v3398
    %v3415 = vadd.s32 %v3410, %v3412
    %vm3416 = vc.u32 %v3410, %v3412
    %v3417 = vadd.s32 %v3413, 1
    %v3418 = vsel %vm3416, %v3417, %v3413
    %v3419 = vadd.s32 %v3414, %v3418
    %v3420 = vadd.s32 %v3419, 536870912
    %v3421 = vshrl.u32 %v3420, 30
    %v3422 = vshll.u32 %v3421, 30
    %v3423 = vsub.s32 %v3419, %v3422
    %vm3424 = vcmp.lt.s32.totalorder %v3423, 0
    %v3425 = vsub.s32 0, %v3423
    %v3426 = vsel %vm3424, %v3425, %v3423
    %v3427 = vclz %v3426
    %v3428 = vsub.s32 %v3427, 2
    %vm3429 = vcmp.gt.s32.totalorder 0, %v3428
    %v3430 = vsel %vm3429, 0, %v3428
    %v3431 = vsub.s32 32, %v3430
    %v3432 = vshll.u32 %v3423, %v3430
    %v3433 = vshrl.u32 %v3415, %v3431
    %v3434 = vor.u32 %v3432, %v3433
    %v3435 = vsub.s32 4294967266, %v3430
    %v3436 = vadd.s32 %v3435, 127
    %v3437 = vshll.u32 %v3436, 23
    %v3438 = vor.u32 4788187, %v3437
    %v3439 = vand.u32 2147483647, %v3438
    %v3441 = vcvt.s32.f32 %v3434
    %v3442 = vmul.f32 %v3441, %v3439
    %v3443 = vxor.u32 %v3442, 2147483648
    %v3444 = vsel %vm3361, %v3443, %v3442
    %v3445 = vsub.s32 4, %v3421
    %v3446 = vsel %vm3361, %v3445, %v3421
    %v3447 = vsel %vm3360, %v768, %v3444
    %v3448 = vsel %vm3360, 0, %v3446
    %v3449 = vcosq.f32.pop %v3447
    %v3450 = vsinq.f32.pop %v3447
    %vm3451 = vweird.f32 %v768
    %v3452 = vadd.s32 %v3448, 3
    %v3453 = vand.u32 %v3452, 3
    %vm3454 = vcmp.lt.s32.totalorder %v3453, 2
    %vm3455 = vcmp.eq.s32.totalorder %v3453, 0
    %v3456 = vxor.u32 %v3450, 2147483648
    %v3457 = vsel %vm3455, %v3449, %v3456
    %vm3458 = vcmp.eq.s32.totalorder %v3453, 2
    %v3459 = vxor.u32 %v3449, 2147483648
    %v3460 = vsel %vm3458, %v3459, %v3450
    %v3461 = vsel %vm3454, %v3457, %v3460
    %v3462 = vsel %vm3451, nan, %v3461
    %v3463 = vand.u32 2147483647, %v769
    %vm3464 = vcmp.le.f32.partialorder %v3463, 0.7853982
    %vm3465 = vcmp.lt.s32.totalorder %v769, 0
    %v3466 = vand.u32 %v769, 2139095040
    %v3467 = vshrl.u32 %v3466, 23
    %v3468 = vsub.s32 %v3467, 127
    %v3469 = vand.u32 2147483647, %v769
    %v3470 = vand.u32 %v3469, 8388607
    %v3471 = vor.u32 %v3470, 8388608
    %v3472 = vsub.s32 0, %v3471
    %v3473 = vadd.s32 %v3468, 1
    %vm3474 = vcmp.gt.s32.totalorder %v3473, 0
    %v3475 = vsel %vm3474, %v3473, 0
    %v3476 = vshrl.u32 %v3475, 5
    %v3477 = vand.u32 %v3475, 31
    %v3478 = vsub.s32 32, %v3477
    %v3479 = vshrl.u32 683565275, %v3478
    %v3480 = vshll.u32 683565275, %v3477
    %v3481 = vshrl.u32 2475754826, %v3478
    %v3482 = vor.u32 %v3480, %v3481
    %v3483 = vshll.u32 2475754826, %v3477
    %v3484 = vshrl.u32 2131351028, %v3478
    %v3485 = vor.u32 %v3483, %v3484
    %v3486 = vshll.u32 2131351028, %v3477
    %v3487 = vshrl.u32 2102212464, %v3478
    %v3488 = vor.u32 %v3486, %v3487
    %v3489 = vshll.u32 2102212464, %v3477
    %v3490 = vshrl.u32 920167782, %v3478
    %v3491 = vor.u32 %v3489, %v3490
    %v3492 = vshll.u32 920167782, %v3477
    %v3493 = vshrl.u32 1326507024, %v3478
    %v3494 = vor.u32 %v3492, %v3493
    %vm3495 = vcmp.lt.s32.totalorder %v3476, 1
    %vm3496 = vcmp.lt.s32.totalorder %v3476, 2
    %vm3497 = vcmp.lt.s32.totalorder %v3476, 3
    %vm3498 = vcmp.lt.s32.totalorder %v3476, 4
    %v3499 = vsel %vm3495, %v3479, %v3482
    %v3500 = vsel %vm3498, %v3488, 2102212464
    %v3501 = vsel %vm3497, %v3485, %v3500
    %v3502 = vsel %vm3496, %v3499, %v3501
    %v3503 = vsel %vm3495, %v3482, %v3485
    %v3504 = vsel %vm3498, %v3491, 920167782
    %v3505 = vsel %vm3497, %v3488, %v3504
    %v3506 = vsel %vm3496, %v3503, %v3505
    %v3507 = vsel %vm3495, %v3485, %v3488
    %v3508 = vsel %vm3498, %v3494, 1326507024
    %v3509 = vsel %vm3497, %v3491, %v3508
    %v3510 = vsel %vm3496, %v3507, %v3509
    %v3511 = vshll.u32 %v3471, 8
    %v3512 = vmul.u32.u64.compose %v3511, %v3510
    %v3513 = vextract.low.u32 %v3512
    %v3514 = vextract.high.u32 %v3512
    %v3515 = vmul.u32.u64.compose %v3511, %v3506
    %v3516 = vextract.low.u32 %v3515
    %v3517 = vextract.high.u32 %v3515
    %v3518 = vmul.u32 %v3511, %v3502
    %v3519 = vadd.s32 %v3514, %v3516
    %vm3520 = vc.u32 %v3514, %v3516
    %v3521 = vadd.s32 %v3517, 1
    %v3522 = vsel %vm3520, %v3521, %v3517
    %v3523 = vadd.s32 %v3518, %v3522
    %v3524 = vadd.s32 %v3523, 536870912
    %v3525 = vshrl.u32 %v3524, 30
    %v3526 = vshll.u32 %v3525, 30
    %v3527 = vsub.s32 %v3523, %v3526
    %vm3528 = vcmp.lt.s32.totalorder %v3527, 0
    %v3529 = vsub.s32 0, %v3527
    %v3530 = vsel %vm3528, %v3529, %v3527
    %v3531 = vclz %v3530
    %v3532 = vsub.s32 %v3531, 2
    %vm3533 = vcmp.gt.s32.totalorder 0, %v3532
    %v3534 = vsel %vm3533, 0, %v3532
    %v3535 = vsub.s32 32, %v3534
    %v3536 = vshll.u32 %v3527, %v3534
    %v3537 = vshrl.u32 %v3519, %v3535
    %v3538 = vor.u32 %v3536, %v3537
    %v3539 = vsub.s32 4294967266, %v3534
    %v3540 = vadd.s32 %v3539, 127
    %v3541 = vshll.u32 %v3540, 23
    %v3542 = vor.u32 4788187, %v3541
    %v3543 = vand.u32 2147483647, %v3542
    %v3545 = vcvt.s32.f32 %v3538
    %v3546 = vmul.f32 %v3545, %v3543
    %v3547 = vxor.u32 %v3546, 2147483648
    %v3548 = vsel %vm3465, %v3547, %v3546
    %v3549 = vsub.s32 4, %v3525
    %v3550 = vsel %vm3465, %v3549, %v3525
    %v3551 = vsel %vm3464, %v769, %v3548
    %v3552 = vsel %vm3464, 0, %v3550
    %v3553 = vcosq.f32.pop %v3551
    %v3554 = vsinq.f32.pop %v3551
    %vm3555 = vweird.f32 %v769
    %v3556 = vadd.s32 %v3552, 3
    %v3557 = vand.u32 %v3556, 3
    %vm3558 = vcmp.lt.s32.totalorder %v3557, 2
    %vm3559 = vcmp.eq.s32.totalorder %v3557, 0
    %v3560 = vxor.u32 %v3554, 2147483648
    %v3561 = vsel %vm3559, %v3553, %v3560
    %vm3562 = vcmp.eq.s32.totalorder %v3557, 2
    %v3563 = vxor.u32 %v3553, 2147483648
    %v3564 = vsel %vm3562, %v3563, %v3554
    %v3565 = vsel %vm3558, %v3561, %v3564
    %v3566 = vsel %vm3555, nan, %v3565
    %v3567 = vand.u32 2147483647, %v770
    %vm3568 = vcmp.le.f32.partialorder %v3567, 0.7853982
    %vm3569 = vcmp.lt.s32.totalorder %v770, 0
    %v3570 = vand.u32 %v770, 2139095040
    %v3571 = vshrl.u32 %v3570, 23
    %v3572 = vsub.s32 %v3571, 127
    %v3573 = vand.u32 2147483647, %v770
    %v3574 = vand.u32 %v3573, 8388607
    %v3575 = vor.u32 %v3574, 8388608
    %v3576 = vsub.s32 0, %v3575
    %v3577 = vadd.s32 %v3572, 1
    %vm3578 = vcmp.gt.s32.totalorder %v3577, 0
    %v3579 = vsel %vm3578, %v3577, 0
    %v3580 = vshrl.u32 %v3579, 5
    %v3581 = vand.u32 %v3579, 31
    %v3582 = vsub.s32 32, %v3581
    %v3583 = vshrl.u32 683565275, %v3582
    %v3584 = vshll.u32 683565275, %v3581
    %v3585 = vshrl.u32 2475754826, %v3582
    %v3586 = vor.u32 %v3584, %v3585
    %v3587 = vshll.u32 2475754826, %v3581
    %v3588 = vshrl.u32 2131351028, %v3582
    %v3589 = vor.u32 %v3587, %v3588
    %v3590 = vshll.u32 2131351028, %v3581
    %v3591 = vshrl.u32 2102212464, %v3582
    %v3592 = vor.u32 %v3590, %v3591
    %v3593 = vshll.u32 2102212464, %v3581
    %v3594 = vshrl.u32 920167782, %v3582
    %v3595 = vor.u32 %v3593, %v3594
    %v3596 = vshll.u32 920167782, %v3581
    %v3597 = vshrl.u32 1326507024, %v3582
    %v3598 = vor.u32 %v3596, %v3597
    %vm3599 = vcmp.lt.s32.totalorder %v3580, 1
    %vm3600 = vcmp.lt.s32.totalorder %v3580, 2
    %vm3601 = vcmp.lt.s32.totalorder %v3580, 3
    %vm3602 = vcmp.lt.s32.totalorder %v3580, 4
    %v3603 = vsel %vm3599, %v3583, %v3586
    %v3604 = vsel %vm3602, %v3592, 2102212464
    %v3605 = vsel %vm3601, %v3589, %v3604
    %v3606 = vsel %vm3600, %v3603, %v3605
    %v3607 = vsel %vm3599, %v3586, %v3589
    %v3608 = vsel %vm3602, %v3595, 920167782
    %v3609 = vsel %vm3601, %v3592, %v3608
    %v3610 = vsel %vm3600, %v3607, %v3609
    %v3611 = vsel %vm3599, %v3589, %v3592
    %v3612 = vsel %vm3602, %v3598, 1326507024
    %v3613 = vsel %vm3601, %v3595, %v3612
    %v3614 = vsel %vm3600, %v3611, %v3613
    %v3615 = vshll.u32 %v3575, 8
    %v3616 = vmul.u32.u64.compose %v3615, %v3614
    %v3617 = vextract.low.u32 %v3616
    %v3618 = vextract.high.u32 %v3616
    %v3619 = vmul.u32.u64.compose %v3615, %v3610
    %v3620 = vextract.low.u32 %v3619
    %v3621 = vextract.high.u32 %v3619
    %v3622 = vmul.u32 %v3615, %v3606
    %v3623 = vadd.s32 %v3618, %v3620
    %vm3624 = vc.u32 %v3618, %v3620
    %v3625 = vadd.s32 %v3621, 1
    %v3626 = vsel %vm3624, %v3625, %v3621
    %v3627 = vadd.s32 %v3622, %v3626
    %v3628 = vadd.s32 %v3627, 536870912
    %v3629 = vshrl.u32 %v3628, 30
    %v3630 = vshll.u32 %v3629, 30
    %v3631 = vsub.s32 %v3627, %v3630
    %vm3632 = vcmp.lt.s32.totalorder %v3631, 0
    %v3633 = vsub.s32 0, %v3631
    %v3634 = vsel %vm3632, %v3633, %v3631
    %v3635 = vclz %v3634
    %v3636 = vsub.s32 %v3635, 2
    %vm3637 = vcmp.gt.s32.totalorder 0, %v3636
    %v3638 = vsel %vm3637, 0, %v3636
    %v3639 = vsub.s32 32, %v3638
    %v3640 = vshll.u32 %v3631, %v3638
    %v3641 = vshrl.u32 %v3623, %v3639
    %v3642 = vor.u32 %v3640, %v3641
    %v3643 = vsub.s32 4294967266, %v3638
    %v3644 = vadd.s32 %v3643, 127
    %v3645 = vshll.u32 %v3644, 23
    %v3646 = vor.u32 4788187, %v3645
    %v3647 = vand.u32 2147483647, %v3646
    %v3649 = vcvt.s32.f32 %v3642
    %v3650 = vmul.f32 %v3649, %v3647
    %v3651 = vxor.u32 %v3650, 2147483648
    %v3652 = vsel %vm3569, %v3651, %v3650
    %v3653 = vsub.s32 4, %v3629
    %v3654 = vsel %vm3569, %v3653, %v3629
    %v3655 = vsel %vm3568, %v770, %v3652
    %v3656 = vsel %vm3568, 0, %v3654
    %v3657 = vcosq.f32.pop %v3655
    %v3658 = vsinq.f32.pop %v3655
    %vm3659 = vweird.f32 %v770
    %v3660 = vadd.s32 %v3656, 3
    %v3661 = vand.u32 %v3660, 3
    %vm3662 = vcmp.lt.s32.totalorder %v3661, 2
    %vm3663 = vcmp.eq.s32.totalorder %v3661, 0
    %v3664 = vxor.u32 %v3658, 2147483648
    %v3665 = vsel %vm3663, %v3657, %v3664
    %vm3666 = vcmp.eq.s32.totalorder %v3661, 2
    %v3667 = vxor.u32 %v3657, 2147483648
    %v3668 = vsel %vm3666, %v3667, %v3658
    %v3669 = vsel %vm3662, %v3665, %v3668
    %v3670 = vsel %vm3659, nan, %v3669
    %v3671 = vand.u32 2147483647, %v771
    %vm3672 = vcmp.le.f32.partialorder %v3671, 0.7853982
    %vm3673 = vcmp.lt.s32.totalorder %v771, 0
    %v3674 = vand.u32 %v771, 2139095040
    %v3675 = vshrl.u32 %v3674, 23
    %v3676 = vsub.s32 %v3675, 127
    %v3677 = vand.u32 2147483647, %v771
    %v3678 = vand.u32 %v3677, 8388607
    %v3679 = vor.u32 %v3678, 8388608
    %v3680 = vsub.s32 0, %v3679
    %v3681 = vadd.s32 %v3676, 1
    %vm3682 = vcmp.gt.s32.totalorder %v3681, 0
    %v3683 = vsel %vm3682, %v3681, 0
    %v3684 = vshrl.u32 %v3683, 5
    %v3685 = vand.u32 %v3683, 31
    %v3686 = vsub.s32 32, %v3685
    %v3687 = vshrl.u32 683565275, %v3686
    %v3688 = vshll.u32 683565275, %v3685
    %v3689 = vshrl.u32 2475754826, %v3686
    %v3690 = vor.u32 %v3688, %v3689
    %v3691 = vshll.u32 2475754826, %v3685
    %v3692 = vshrl.u32 2131351028, %v3686
    %v3693 = vor.u32 %v3691, %v3692
    %v3694 = vshll.u32 2131351028, %v3685
    %v3695 = vshrl.u32 2102212464, %v3686
    %v3696 = vor.u32 %v3694, %v3695
    %v3697 = vshll.u32 2102212464, %v3685
    %v3698 = vshrl.u32 920167782, %v3686
    %v3699 = vor.u32 %v3697, %v3698
    %v3700 = vshll.u32 920167782, %v3685
    %v3701 = vshrl.u32 1326507024, %v3686
    %v3702 = vor.u32 %v3700, %v3701
    %vm3703 = vcmp.lt.s32.totalorder %v3684, 1
    %vm3704 = vcmp.lt.s32.totalorder %v3684, 2
    %vm3705 = vcmp.lt.s32.totalorder %v3684, 3
    %vm3706 = vcmp.lt.s32.totalorder %v3684, 4
    %v3707 = vsel %vm3703, %v3687, %v3690
    %v3708 = vsel %vm3706, %v3696, 2102212464
    %v3709 = vsel %vm3705, %v3693, %v3708
    %v3710 = vsel %vm3704, %v3707, %v3709
    %v3711 = vsel %vm3703, %v3690, %v3693
    %v3712 = vsel %vm3706, %v3699, 920167782
    %v3713 = vsel %vm3705, %v3696, %v3712
    %v3714 = vsel %vm3704, %v3711, %v3713
    %v3715 = vsel %vm3703, %v3693, %v3696
    %v3716 = vsel %vm3706, %v3702, 1326507024
    %v3717 = vsel %vm3705, %v3699, %v3716
    %v3718 = vsel %vm3704, %v3715, %v3717
    %v3719 = vshll.u32 %v3679, 8
    %v3720 = vmul.u32.u64.compose %v3719, %v3718
    %v3721 = vextract.low.u32 %v3720
    %v3722 = vextract.high.u32 %v3720
    %v3723 = vmul.u32.u64.compose %v3719, %v3714
    %v3724 = vextract.low.u32 %v3723
    %v3725 = vextract.high.u32 %v3723
    %v3726 = vmul.u32 %v3719, %v3710
    %v3727 = vadd.s32 %v3722, %v3724
    %vm3728 = vc.u32 %v3722, %v3724
    %v3729 = vadd.s32 %v3725, 1
    %v3730 = vsel %vm3728, %v3729, %v3725
    %v3731 = vadd.s32 %v3726, %v3730
    %v3732 = vadd.s32 %v3731, 536870912
    %v3733 = vshrl.u32 %v3732, 30
    %v3734 = vshll.u32 %v3733, 30
    %v3735 = vsub.s32 %v3731, %v3734
    %vm3736 = vcmp.lt.s32.totalorder %v3735, 0
    %v3737 = vsub.s32 0, %v3735
    %v3738 = vsel %vm3736, %v3737, %v3735
    %v3739 = vclz %v3738
    %v3740 = vsub.s32 %v3739, 2
    %vm3741 = vcmp.gt.s32.totalorder 0, %v3740
    %v3742 = vsel %vm3741, 0, %v3740
    %v3743 = vsub.s32 32, %v3742
    %v3744 = vshll.u32 %v3735, %v3742
    %v3745 = vshrl.u32 %v3727, %v3743
    %v3746 = vor.u32 %v3744, %v3745
    %v3747 = vsub.s32 4294967266, %v3742
    %v3748 = vadd.s32 %v3747, 127
    %v3749 = vshll.u32 %v3748, 23
    %v3750 = vor.u32 4788187, %v3749
    %v3751 = vand.u32 2147483647, %v3750
    %v3753 = vcvt.s32.f32 %v3746
    %v3754 = vmul.f32 %v3753, %v3751
    %v3755 = vxor.u32 %v3754, 2147483648
    %v3756 = vsel %vm3673, %v3755, %v3754
    %v3757 = vsub.s32 4, %v3733
    %v3758 = vsel %vm3673, %v3757, %v3733
    %v3759 = vsel %vm3672, %v771, %v3756
    %v3760 = vsel %vm3672, 0, %v3758
    %v3761 = vcosq.f32.pop %v3759
    %v3762 = vsinq.f32.pop %v3759
    %vm3763 = vweird.f32 %v771
    %v3764 = vadd.s32 %v3760, 3
    %v3765 = vand.u32 %v3764, 3
    %vm3766 = vcmp.lt.s32.totalorder %v3765, 2
    %vm3767 = vcmp.eq.s32.totalorder %v3765, 0
    %v3768 = vxor.u32 %v3762, 2147483648
    %v3769 = vsel %vm3767, %v3761, %v3768
    %vm3770 = vcmp.eq.s32.totalorder %v3765, 2
    %v3771 = vxor.u32 %v3761, 2147483648
    %v3772 = vsel %vm3770, %v3771, %v3762
    %v3773 = vsel %vm3766, %v3769, %v3772
    %v3774 = vsel %vm3763, nan, %v3773
    %v3775 = vand.u32 2147483647, %v772
    %vm3776 = vcmp.le.f32.partialorder %v3775, 0.7853982
    %vm3777 = vcmp.lt.s32.totalorder %v772, 0
    %v3778 = vand.u32 %v772, 2139095040
    %v3779 = vshrl.u32 %v3778, 23
    %v3780 = vsub.s32 %v3779, 127
    %v3781 = vand.u32 2147483647, %v772
    %v3782 = vand.u32 %v3781, 8388607
    %v3783 = vor.u32 %v3782, 8388608
    %v3784 = vsub.s32 0, %v3783
    %v3785 = vadd.s32 %v3780, 1
    %vm3786 = vcmp.gt.s32.totalorder %v3785, 0
    %v3787 = vsel %vm3786, %v3785, 0
    %v3788 = vshrl.u32 %v3787, 5
    %v3789 = vand.u32 %v3787, 31
    %v3790 = vsub.s32 32, %v3789
    %v3791 = vshrl.u32 683565275, %v3790
    %v3792 = vshll.u32 683565275, %v3789
    %v3793 = vshrl.u32 2475754826, %v3790
    %v3794 = vor.u32 %v3792, %v3793
    %v3795 = vshll.u32 2475754826, %v3789
    %v3796 = vshrl.u32 2131351028, %v3790
    %v3797 = vor.u32 %v3795, %v3796
    %v3798 = vshll.u32 2131351028, %v3789
    %v3799 = vshrl.u32 2102212464, %v3790
    %v3800 = vor.u32 %v3798, %v3799
    %v3801 = vshll.u32 2102212464, %v3789
    %v3802 = vshrl.u32 920167782, %v3790
    %v3803 = vor.u32 %v3801, %v3802
    %v3804 = vshll.u32 920167782, %v3789
    %v3805 = vshrl.u32 1326507024, %v3790
    %v3806 = vor.u32 %v3804, %v3805
    %vm3807 = vcmp.lt.s32.totalorder %v3788, 1
    %vm3808 = vcmp.lt.s32.totalorder %v3788, 2
    %vm3809 = vcmp.lt.s32.totalorder %v3788, 3
    %vm3810 = vcmp.lt.s32.totalorder %v3788, 4
    %v3811 = vsel %vm3807, %v3791, %v3794
    %v3812 = vsel %vm3810, %v3800, 2102212464
    %v3813 = vsel %vm3809, %v3797, %v3812
    %v3814 = vsel %vm3808, %v3811, %v3813
    %v3815 = vsel %vm3807, %v3794, %v3797
    %v3816 = vsel %vm3810, %v3803, 920167782
    %v3817 = vsel %vm3809, %v3800, %v3816
    %v3818 = vsel %vm3808, %v3815, %v3817
    %v3819 = vsel %vm3807, %v3797, %v3800
    %v3820 = vsel %vm3810, %v3806, 1326507024
    %v3821 = vsel %vm3809, %v3803, %v3820
    %v3822 = vsel %vm3808, %v3819, %v3821
    %v3823 = vshll.u32 %v3783, 8
    %v3824 = vmul.u32.u64.compose %v3823, %v3822
    %v3825 = vextract.low.u32 %v3824
    %v3826 = vextract.high.u32 %v3824
    %v3827 = vmul.u32.u64.compose %v3823, %v3818
    %v3828 = vextract.low.u32 %v3827
    %v3829 = vextract.high.u32 %v3827
    %v3830 = vmul.u32 %v3823, %v3814
    %v3831 = vadd.s32 %v3826, %v3828
    %vm3832 = vc.u32 %v3826, %v3828
    %v3833 = vadd.s32 %v3829, 1
    %v3834 = vsel %vm3832, %v3833, %v3829
    %v3835 = vadd.s32 %v3830, %v3834
    %v3836 = vadd.s32 %v3835, 536870912
    %v3837 = vshrl.u32 %v3836, 30
    %v3838 = vshll.u32 %v3837, 30
    %v3839 = vsub.s32 %v3835, %v3838
    %vm3840 = vcmp.lt.s32.totalorder %v3839, 0
    %v3841 = vsub.s32 0, %v3839
    %v3842 = vsel %vm3840, %v3841, %v3839
    %v3843 = vclz %v3842
    %v3844 = vsub.s32 %v3843, 2
    %vm3845 = vcmp.gt.s32.totalorder 0, %v3844
    %v3846 = vsel %vm3845, 0, %v3844
    %v3847 = vsub.s32 32, %v3846
    %v3848 = vshll.u32 %v3839, %v3846
    %v3849 = vshrl.u32 %v3831, %v3847
    %v3850 = vor.u32 %v3848, %v3849
    %v3851 = vsub.s32 4294967266, %v3846
    %v3852 = vadd.s32 %v3851, 127
    %v3853 = vshll.u32 %v3852, 23
    %v3854 = vor.u32 4788187, %v3853
    %v3855 = vand.u32 2147483647, %v3854
    %v3857 = vcvt.s32.f32 %v3850
    %v3858 = vmul.f32 %v3857, %v3855
    %v3859 = vxor.u32 %v3858, 2147483648
    %v3860 = vsel %vm3777, %v3859, %v3858
    %v3861 = vsub.s32 4, %v3837
    %v3862 = vsel %vm3777, %v3861, %v3837
    %v3863 = vsel %vm3776, %v772, %v3860
    %v3864 = vsel %vm3776, 0, %v3862
    %v3865 = vcosq.f32.pop %v3863
    %v3866 = vsinq.f32.pop %v3863
    %vm3867 = vweird.f32 %v772
    %v3868 = vadd.s32 %v3864, 3
    %v3869 = vand.u32 %v3868, 3
    %vm3870 = vcmp.lt.s32.totalorder %v3869, 2
    %vm3871 = vcmp.eq.s32.totalorder %v3869, 0
    %v3872 = vxor.u32 %v3866, 2147483648
    %v3873 = vsel %vm3871, %v3865, %v3872
    %vm3874 = vcmp.eq.s32.totalorder %v3869, 2
    %v3875 = vxor.u32 %v3865, 2147483648
    %v3876 = vsel %vm3874, %v3875, %v3866
    %v3877 = vsel %vm3870, %v3873, %v3876
    %v3878 = vsel %vm3867, nan, %v3877
    %v3879 = vand.u32 2147483647, %v773
    %vm3880 = vcmp.le.f32.partialorder %v3879, 0.7853982
    %vm3881 = vcmp.lt.s32.totalorder %v773, 0
    %v3882 = vand.u32 %v773, 2139095040
    %v3883 = vshrl.u32 %v3882, 23
    %v3884 = vsub.s32 %v3883, 127
    %v3885 = vand.u32 2147483647, %v773
    %v3886 = vand.u32 %v3885, 8388607
    %v3887 = vor.u32 %v3886, 8388608
    %v3888 = vsub.s32 0, %v3887
    %v3889 = vadd.s32 %v3884, 1
    %vm3890 = vcmp.gt.s32.totalorder %v3889, 0
    %v3891 = vsel %vm3890, %v3889, 0
    %v3892 = vshrl.u32 %v3891, 5
    %v3893 = vand.u32 %v3891, 31
    %v3894 = vsub.s32 32, %v3893
    %v3895 = vshrl.u32 683565275, %v3894
    %v3896 = vshll.u32 683565275, %v3893
    %v3897 = vshrl.u32 2475754826, %v3894
    %v3898 = vor.u32 %v3896, %v3897
    %v3899 = vshll.u32 2475754826, %v3893
    %v3900 = vshrl.u32 2131351028, %v3894
    %v3901 = vor.u32 %v3899, %v3900
    %v3902 = vshll.u32 2131351028, %v3893
    %v3903 = vshrl.u32 2102212464, %v3894
    %v3904 = vor.u32 %v3902, %v3903
    %v3905 = vshll.u32 2102212464, %v3893
    %v3906 = vshrl.u32 920167782, %v3894
    %v3907 = vor.u32 %v3905, %v3906
    %v3908 = vshll.u32 920167782, %v3893
    %v3909 = vshrl.u32 1326507024, %v3894
    %v3910 = vor.u32 %v3908, %v3909
    %vm3911 = vcmp.lt.s32.totalorder %v3892, 1
    %vm3912 = vcmp.lt.s32.totalorder %v3892, 2
    %vm3913 = vcmp.lt.s32.totalorder %v3892, 3
    %vm3914 = vcmp.lt.s32.totalorder %v3892, 4
    %v3915 = vsel %vm3911, %v3895, %v3898
    %v3916 = vsel %vm3914, %v3904, 2102212464
    %v3917 = vsel %vm3913, %v3901, %v3916
    %v3918 = vsel %vm3912, %v3915, %v3917
    %v3919 = vsel %vm3911, %v3898, %v3901
    %v3920 = vsel %vm3914, %v3907, 920167782
    %v3921 = vsel %vm3913, %v3904, %v3920
    %v3922 = vsel %vm3912, %v3919, %v3921
    %v3923 = vsel %vm3911, %v3901, %v3904
    %v3924 = vsel %vm3914, %v3910, 1326507024
    %v3925 = vsel %vm3913, %v3907, %v3924
    %v3926 = vsel %vm3912, %v3923, %v3925
    %v3927 = vshll.u32 %v3887, 8
    %v3928 = vmul.u32.u64.compose %v3927, %v3926
    %v3929 = vextract.low.u32 %v3928
    %v3930 = vextract.high.u32 %v3928
    %v3931 = vmul.u32.u64.compose %v3927, %v3922
    %v3932 = vextract.low.u32 %v3931
    %v3933 = vextract.high.u32 %v3931
    %v3934 = vmul.u32 %v3927, %v3918
    %v3935 = vadd.s32 %v3930, %v3932
    %vm3936 = vc.u32 %v3930, %v3932
    %v3937 = vadd.s32 %v3933, 1
    %v3938 = vsel %vm3936, %v3937, %v3933
    %v3939 = vadd.s32 %v3934, %v3938
    %v3940 = vadd.s32 %v3939, 536870912
    %v3941 = vshrl.u32 %v3940, 30
    %v3942 = vshll.u32 %v3941, 30
    %v3943 = vsub.s32 %v3939, %v3942
    %vm3944 = vcmp.lt.s32.totalorder %v3943, 0
    %v3945 = vsub.s32 0, %v3943
    %v3946 = vsel %vm3944, %v3945, %v3943
    %v3947 = vclz %v3946
    %v3948 = vsub.s32 %v3947, 2
    %vm3949 = vcmp.gt.s32.totalorder 0, %v3948
    %v3950 = vsel %vm3949, 0, %v3948
    %v3951 = vsub.s32 32, %v3950
    %v3952 = vshll.u32 %v3943, %v3950
    %v3953 = vshrl.u32 %v3935, %v3951
    %v3954 = vor.u32 %v3952, %v3953
    %v3955 = vsub.s32 4294967266, %v3950
    %v3956 = vadd.s32 %v3955, 127
    %v3957 = vshll.u32 %v3956, 23
    %v3958 = vor.u32 4788187, %v3957
    %v3959 = vand.u32 2147483647, %v3958
    %v3961 = vcvt.s32.f32 %v3954
    %v3962 = vmul.f32 %v3961, %v3959
    %v3963 = vxor.u32 %v3962, 2147483648
    %v3964 = vsel %vm3881, %v3963, %v3962
    %v3965 = vsub.s32 4, %v3941
    %v3966 = vsel %vm3881, %v3965, %v3941
    %v3967 = vsel %vm3880, %v773, %v3964
    %v3968 = vsel %vm3880, 0, %v3966
    %v3969 = vcosq.f32.pop %v3967
    %v3970 = vsinq.f32.pop %v3967
    %vm3971 = vweird.f32 %v773
    %v3972 = vadd.s32 %v3968, 3
    %v3973 = vand.u32 %v3972, 3
    %vm3974 = vcmp.lt.s32.totalorder %v3973, 2
    %vm3975 = vcmp.eq.s32.totalorder %v3973, 0
    %v3976 = vxor.u32 %v3970, 2147483648
    %v3977 = vsel %vm3975, %v3969, %v3976
    %vm3978 = vcmp.eq.s32.totalorder %v3973, 2
    %v3979 = vxor.u32 %v3969, 2147483648
    %v3980 = vsel %vm3978, %v3979, %v3970
    %v3981 = vsel %vm3974, %v3977, %v3980
    %v3982 = vsel %vm3971, nan, %v3981
    %v3983 = vand.u32 2147483647, %v774
    %vm3984 = vcmp.le.f32.partialorder %v3983, 0.7853982
    %vm3985 = vcmp.lt.s32.totalorder %v774, 0
    %v3986 = vand.u32 %v774, 2139095040
    %v3987 = vshrl.u32 %v3986, 23
    %v3988 = vsub.s32 %v3987, 127
    %v3989 = vand.u32 2147483647, %v774
    %v3990 = vand.u32 %v3989, 8388607
    %v3991 = vor.u32 %v3990, 8388608
    %v3992 = vsub.s32 0, %v3991
    %v3993 = vadd.s32 %v3988, 1
    %vm3994 = vcmp.gt.s32.totalorder %v3993, 0
    %v3995 = vsel %vm3994, %v3993, 0
    %v3996 = vshrl.u32 %v3995, 5
    %v3997 = vand.u32 %v3995, 31
    %v3998 = vsub.s32 32, %v3997
    %v3999 = vshrl.u32 683565275, %v3998
    %v4000 = vshll.u32 683565275, %v3997
    %v4001 = vshrl.u32 2475754826, %v3998
    %v4002 = vor.u32 %v4000, %v4001
    %v4003 = vshll.u32 2475754826, %v3997
    %v4004 = vshrl.u32 2131351028, %v3998
    %v4005 = vor.u32 %v4003, %v4004
    %v4006 = vshll.u32 2131351028, %v3997
    %v4007 = vshrl.u32 2102212464, %v3998
    %v4008 = vor.u32 %v4006, %v4007
    %v4009 = vshll.u32 2102212464, %v3997
    %v4010 = vshrl.u32 920167782, %v3998
    %v4011 = vor.u32 %v4009, %v4010
    %v4012 = vshll.u32 920167782, %v3997
    %v4013 = vshrl.u32 1326507024, %v3998
    %v4014 = vor.u32 %v4012, %v4013
    %vm4015 = vcmp.lt.s32.totalorder %v3996, 1
    %vm4016 = vcmp.lt.s32.totalorder %v3996, 2
    %vm4017 = vcmp.lt.s32.totalorder %v3996, 3
    %vm4018 = vcmp.lt.s32.totalorder %v3996, 4
    %v4019 = vsel %vm4015, %v3999, %v4002
    %v4020 = vsel %vm4018, %v4008, 2102212464
    %v4021 = vsel %vm4017, %v4005, %v4020
    %v4022 = vsel %vm4016, %v4019, %v4021
    %v4023 = vsel %vm4015, %v4002, %v4005
    %v4024 = vsel %vm4018, %v4011, 920167782
    %v4025 = vsel %vm4017, %v4008, %v4024
    %v4026 = vsel %vm4016, %v4023, %v4025
    %v4027 = vsel %vm4015, %v4005, %v4008
    %v4028 = vsel %vm4018, %v4014, 1326507024
    %v4029 = vsel %vm4017, %v4011, %v4028
    %v4030 = vsel %vm4016, %v4027, %v4029
    %v4031 = vshll.u32 %v3991, 8
    %v4032 = vmul.u32.u64.compose %v4031, %v4030
    %v4033 = vextract.low.u32 %v4032
    %v4034 = vextract.high.u32 %v4032
    %v4035 = vmul.u32.u64.compose %v4031, %v4026
    %v4036 = vextract.low.u32 %v4035
    %v4037 = vextract.high.u32 %v4035
    %v4038 = vmul.u32 %v4031, %v4022
    %v4039 = vadd.s32 %v4034, %v4036
    %vm4040 = vc.u32 %v4034, %v4036
    %v4041 = vadd.s32 %v4037, 1
    %v4042 = vsel %vm4040, %v4041, %v4037
    %v4043 = vadd.s32 %v4038, %v4042
    %v4044 = vadd.s32 %v4043, 536870912
    %v4045 = vshrl.u32 %v4044, 30
    %v4046 = vshll.u32 %v4045, 30
    %v4047 = vsub.s32 %v4043, %v4046
    %vm4048 = vcmp.lt.s32.totalorder %v4047, 0
    %v4049 = vsub.s32 0, %v4047
    %v4050 = vsel %vm4048, %v4049, %v4047
    %v4051 = vclz %v4050
    %v4052 = vsub.s32 %v4051, 2
    %vm4053 = vcmp.gt.s32.totalorder 0, %v4052
    %v4054 = vsel %vm4053, 0, %v4052
    %v4055 = vsub.s32 32, %v4054
    %v4056 = vshll.u32 %v4047, %v4054
    %v4057 = vshrl.u32 %v4039, %v4055
    %v4058 = vor.u32 %v4056, %v4057
    %v4059 = vsub.s32 4294967266, %v4054
    %v4060 = vadd.s32 %v4059, 127
    %v4061 = vshll.u32 %v4060, 23
    %v4062 = vor.u32 4788187, %v4061
    %v4063 = vand.u32 2147483647, %v4062
    %v4065 = vcvt.s32.f32 %v4058
    %v4066 = vmul.f32 %v4065, %v4063
    %v4067 = vxor.u32 %v4066, 2147483648
    %v4068 = vsel %vm3985, %v4067, %v4066
    %v4069 = vsub.s32 4, %v4045
    %v4070 = vsel %vm3985, %v4069, %v4045
    %v4071 = vsel %vm3984, %v774, %v4068
    %v4072 = vsel %vm3984, 0, %v4070
    %v4073 = vcosq.f32.pop %v4071
    %v4074 = vsinq.f32.pop %v4071
    %vm4075 = vweird.f32 %v774
    %v4076 = vadd.s32 %v4072, 3
    %v4077 = vand.u32 %v4076, 3
    %vm4078 = vcmp.lt.s32.totalorder %v4077, 2
    %vm4079 = vcmp.eq.s32.totalorder %v4077, 0
    %v4080 = vxor.u32 %v4074, 2147483648
    %v4081 = vsel %vm4079, %v4073, %v4080
    %vm4082 = vcmp.eq.s32.totalorder %v4077, 2
    %v4083 = vxor.u32 %v4073, 2147483648
    %v4084 = vsel %vm4082, %v4083, %v4074
    %v4085 = vsel %vm4078, %v4081, %v4084
    %v4086 = vsel %vm4075, nan, %v4085
    %4103 = vrot.lane.b32.xlu0 %v697, 1
    %v4104 = vpop.permute.xlu0 %4103
    %4105 = vrot.lane.b32.xlu0 %v700, 1
    %v4106 = vpop.permute.xlu0 %4105
    %4107 = vrot.lane.b32.xlu0 %v705, 1
    %v4108 = vpop.permute.xlu0 %4107
    %4109 = vrot.lane.b32.xlu0 %v708, 1
    %v4110 = vpop.permute.xlu0 %4109
    %4111 = vrot.lane.b32.xlu0 %v713, 1
    %v4112 = vpop.permute.xlu0 %4111
    %4113 = vrot.lane.b32.xlu0 %v716, 1
    %v4114 = vpop.permute.xlu0 %4113
    %4115 = vrot.lane.b32.xlu0 %v721, 1
    %v4116 = vpop.permute.xlu0 %4115
    %4117 = vrot.lane.b32.xlu0 %v724, 1
    %v4118 = vpop.permute.xlu0 %4117
    %4119 = vrot.lane.b32.xlu0 %v729, 1
    %v4120 = vpop.permute.xlu0 %4119
    %4121 = vrot.lane.b32.xlu0 %v732, 1
    %v4122 = vpop.permute.xlu0 %4121
    %4123 = vrot.lane.b32.xlu0 %v737, 1
    %v4124 = vpop.permute.xlu0 %4123
    %4125 = vrot.lane.b32.xlu0 %v740, 1
    %v4126 = vpop.permute.xlu0 %4125
    %4127 = vrot.lane.b32.xlu0 %v745, 1
    %v4128 = vpop.permute.xlu0 %4127
    %4129 = vrot.lane.b32.xlu0 %v748, 1
    %v4130 = vpop.permute.xlu0 %4129
    %4131 = vrot.lane.b32.xlu0 %v753, 1
    %v4132 = vpop.permute.xlu0 %4131
    %4133 = vrot.lane.b32.xlu0 %v756, 1
    %v4134 = vpop.permute.xlu0 %4133
    %v4151 = vmul.f32 %v877, %v4104
    %v4152 = vmul.f32 %v980, %v4106
    %v4153 = vmul.f32 %v1083, %v4108
    %v4154 = vmul.f32 %v1186, %v4110
    %v4155 = vmul.f32 %v1289, %v4112
    %v4156 = vmul.f32 %v1392, %v4114
    %v4157 = vmul.f32 %v1495, %v4116
    %v4158 = vmul.f32 %v1598, %v4118
    %v4159 = vmul.f32 %v1701, %v4120
    %v4160 = vmul.f32 %v1804, %v4122
    %v4161 = vmul.f32 %v1907, %v4124
    %v4162 = vmul.f32 %v2010, %v4126
    %v4163 = vmul.f32 %v2113, %v4128
    %v4164 = vmul.f32 %v2216, %v4130
    %v4165 = vmul.f32 %v2319, %v4132
    %v4166 = vmul.f32 %v2422, %v4134
    %v4167 = vmul.f32 %v2526, %v697
    %v4168 = vmul.f32 %v2630, %v700
    %v4169 = vmul.f32 %v2734, %v705
    %v4170 = vmul.f32 %v2838, %v708
    %v4171 = vmul.f32 %v2942, %v713
    %v4172 = vmul.f32 %v3046, %v716
    %v4173 = vmul.f32 %v3150, %v721
    %v4174 = vmul.f32 %v3254, %v724
    %v4175 = vmul.f32 %v3358, %v729
    %v4176 = vmul.f32 %v3462, %v732
    %v4177 = vmul.f32 %v3566, %v737
    %v4178 = vmul.f32 %v3670, %v740
    %v4179 = vmul.f32 %v3774, %v745
    %v4180 = vmul.f32 %v3878, %v748
    %v4181 = vmul.f32 %v3982, %v753
    %v4182 = vmul.f32 %v4086, %v756
    %v4183 = vsub.f32 %v4151, %v4167
    %v4184 = vsub.f32 %v4152, %v4168
    %v4185 = vsub.f32 %v4153, %v4169
    %v4186 = vsub.f32 %v4154, %v4170
    %v4187 = vsub.f32 %v4155, %v4171
    %v4188 = vsub.f32 %v4156, %v4172
    %v4189 = vsub.f32 %v4157, %v4173
    %v4190 = vsub.f32 %v4158, %v4174
    %v4191 = vsub.f32 %v4159, %v4175
    %v4192 = vsub.f32 %v4160, %v4176
    %v4193 = vsub.f32 %v4161, %v4177
    %v4194 = vsub.f32 %v4162, %v4178
    %v4195 = vsub.f32 %v4163, %v4179
    %v4196 = vsub.f32 %v4164, %v4180
    %v4197 = vsub.f32 %v4165, %v4181
    %v4198 = vsub.f32 %v4166, %v4182
    %v4199 = vmul.f32 %v2526, %v4104
    %v4200 = vmul.f32 %v2630, %v4106
    %v4201 = vmul.f32 %v2734, %v4108
    %v4202 = vmul.f32 %v2838, %v4110
    %v4203 = vmul.f32 %v2942, %v4112
    %v4204 = vmul.f32 %v3046, %v4114
    %v4205 = vmul.f32 %v3150, %v4116
    %v4206 = vmul.f32 %v3254, %v4118
    %v4207 = vmul.f32 %v3358, %v4120
    %v4208 = vmul.f32 %v3462, %v4122
    %v4209 = vmul.f32 %v3566, %v4124
    %v4210 = vmul.f32 %v3670, %v4126
    %v4211 = vmul.f32 %v3774, %v4128
    %v4212 = vmul.f32 %v3878, %v4130
    %v4213 = vmul.f32 %v3982, %v4132
    %v4214 = vmul.f32 %v4086, %v4134
    %v4215 = vmul.f32 %v877, %v697
    %v4216 = vmul.f32 %v980, %v700
    %v4217 = vmul.f32 %v1083, %v705
    %v4218 = vmul.f32 %v1186, %v708
    %v4219 = vmul.f32 %v1289, %v713
    %v4220 = vmul.f32 %v1392, %v716
    %v4221 = vmul.f32 %v1495, %v721
    %v4222 = vmul.f32 %v1598, %v724
    %v4223 = vmul.f32 %v1701, %v729
    %v4224 = vmul.f32 %v1804, %v732
    %v4225 = vmul.f32 %v1907, %v737
    %v4226 = vmul.f32 %v2010, %v740
    %v4227 = vmul.f32 %v2113, %v745
    %v4228 = vmul.f32 %v2216, %v748
    %v4229 = vmul.f32 %v2319, %v753
    %v4230 = vmul.f32 %v2422, %v756
    %v4231 = vadd.f32 %v4199, %v4215
    %v4232 = vadd.f32 %v4200, %v4216
    %v4233 = vadd.f32 %v4201, %v4217
    %v4234 = vadd.f32 %v4202, %v4218
    %v4235 = vadd.f32 %v4203, %v4219
    %v4236 = vadd.f32 %v4204, %v4220
    %v4237 = vadd.f32 %v4205, %v4221
    %v4238 = vadd.f32 %v4206, %v4222
    %v4239 = vadd.f32 %v4207, %v4223
    %v4240 = vadd.f32 %v4208, %v4224
    %v4241 = vadd.f32 %v4209, %v4225
    %v4242 = vadd.f32 %v4210, %v4226
    %v4243 = vadd.f32 %v4211, %v4227
    %v4244 = vadd.f32 %v4212, %v4228
    %v4245 = vadd.f32 %v4213, %v4229
    %v4246 = vadd.f32 %v4214, %v4230
    %4263 = vrot.lane.b32.xlu0 %v4183, 125
    %v4264 = vpop.permute.xlu0 %4263
    %4265 = vrot.lane.b32.xlu0 %v4184, 125
    %v4266 = vpop.permute.xlu0 %4265
    %4267 = vrot.lane.b32.xlu0 %v4185, 125
    %v4268 = vpop.permute.xlu0 %4267
    %4269 = vrot.lane.b32.xlu0 %v4186, 125
    %v4270 = vpop.permute.xlu0 %4269
    %4271 = vrot.lane.b32.xlu0 %v4187, 125
    %v4272 = vpop.permute.xlu0 %4271
    %4273 = vrot.lane.b32.xlu0 %v4188, 125
    %v4274 = vpop.permute.xlu0 %4273
    %4275 = vrot.lane.b32.xlu0 %v4189, 125
    %v4276 = vpop.permute.xlu0 %4275
    %4277 = vrot.lane.b32.xlu0 %v4190, 125
    %v4278 = vpop.permute.xlu0 %4277
    %4279 = vrot.lane.b32.xlu0 %v4191, 125
    %v4280 = vpop.permute.xlu0 %4279
    %4281 = vrot.lane.b32.xlu0 %v4192, 125
    %v4282 = vpop.permute.xlu0 %4281
    %4283 = vrot.lane.b32.xlu0 %v4193, 125
    %v4284 = vpop.permute.xlu0 %4283
    %4285 = vrot.lane.b32.xlu0 %v4194, 125
    %v4286 = vpop.permute.xlu0 %4285
    %4287 = vrot.lane.b32.xlu0 %v4195, 125
    %v4288 = vpop.permute.xlu0 %4287
    %4289 = vrot.lane.b32.xlu0 %v4196, 125
    %v4290 = vpop.permute.xlu0 %4289
    %4291 = vrot.lane.b32.xlu0 %v4197, 125
    %v4292 = vpop.permute.xlu0 %4291
    %4293 = vrot.lane.b32.xlu0 %v4198, 125
    %v4294 = vpop.permute.xlu0 %4293
    %4327 = vrot.lane.b32.xlu0 %v4231, 126
    %v4328 = vpop.permute.xlu0 %4327
    %4329 = vrot.lane.b32.xlu0 %v4232, 126
    %v4330 = vpop.permute.xlu0 %4329
    %4331 = vrot.lane.b32.xlu0 %v4233, 126
    %v4332 = vpop.permute.xlu0 %4331
    %4333 = vrot.lane.b32.xlu0 %v4234, 126
    %v4334 = vpop.permute.xlu0 %4333
    %4335 = vrot.lane.b32.xlu0 %v4235, 126
    %v4336 = vpop.permute.xlu0 %4335
    %4337 = vrot.lane.b32.xlu0 %v4236, 126
    %v4338 = vpop.permute.xlu0 %4337
    %4339 = vrot.lane.b32.xlu0 %v4237, 126
    %v4340 = vpop.permute.xlu0 %4339
    %4341 = vrot.lane.b32.xlu0 %v4238, 126
    %v4342 = vpop.permute.xlu0 %4341
    %4343 = vrot.lane.b32.xlu0 %v4239, 126
    %v4344 = vpop.permute.xlu0 %4343
    %4345 = vrot.lane.b32.xlu0 %v4240, 126
    %v4346 = vpop.permute.xlu0 %4345
    %4347 = vrot.lane.b32.xlu0 %v4241, 126
    %v4348 = vpop.permute.xlu0 %4347
    %4349 = vrot.lane.b32.xlu0 %v4242, 126
    %v4350 = vpop.permute.xlu0 %4349
    %4351 = vrot.lane.b32.xlu0 %v4243, 126
    %v4352 = vpop.permute.xlu0 %4351
    %4353 = vrot.lane.b32.xlu0 %v4244, 126
    %v4354 = vpop.permute.xlu0 %4353
    %4355 = vrot.lane.b32.xlu0 %v4245, 126
    %v4356 = vpop.permute.xlu0 %4355
    %4357 = vrot.lane.b32.xlu0 %v4246, 126
    %v4358 = vpop.permute.xlu0 %4357
    %4375 = vrot.lane.b32.xlu0 %v697, 126
    %v4376 = vpop.permute.xlu0 %4375
    %4377 = vrot.lane.b32.xlu0 %v700, 126
    %v4378 = vpop.permute.xlu0 %4377
    %4379 = vrot.lane.b32.xlu0 %v705, 126
    %v4380 = vpop.permute.xlu0 %4379
    %4381 = vrot.lane.b32.xlu0 %v708, 126
    %v4382 = vpop.permute.xlu0 %4381
    %4383 = vrot.lane.b32.xlu0 %v713, 126
    %v4384 = vpop.permute.xlu0 %4383
    %4385 = vrot.lane.b32.xlu0 %v716, 126
    %v4386 = vpop.permute.xlu0 %4385
    %4387 = vrot.lane.b32.xlu0 %v721, 126
    %v4388 = vpop.permute.xlu0 %4387
    %4389 = vrot.lane.b32.xlu0 %v724, 126
    %v4390 = vpop.permute.xlu0 %4389
    %4391 = vrot.lane.b32.xlu0 %v729, 126
    %v4392 = vpop.permute.xlu0 %4391
    %4393 = vrot.lane.b32.xlu0 %v732, 126
    %v4394 = vpop.permute.xlu0 %4393
    %4395 = vrot.lane.b32.xlu0 %v737, 126
    %v4396 = vpop.permute.xlu0 %4395
    %4397 = vrot.lane.b32.xlu0 %v740, 126
    %v4398 = vpop.permute.xlu0 %4397
    %4399 = vrot.lane.b32.xlu0 %v745, 126
    %v4400 = vpop.permute.xlu0 %4399
    %4401 = vrot.lane.b32.xlu0 %v748, 126
    %v4402 = vpop.permute.xlu0 %4401
    %4403 = vrot.lane.b32.xlu0 %v753, 126
    %v4404 = vpop.permute.xlu0 %4403
    %4405 = vrot.lane.b32.xlu0 %v756, 126
    %v4406 = vpop.permute.xlu0 %4405
    %vm4423 = vcmask 7168
    %v4424 = vsel %vm4423, %v4264, %v4328
    %v4425 = vsel %vm4423, %v4266, %v4330
    %v4426 = vsel %vm4423, %v4268, %v4332
    %v4427 = vsel %vm4423, %v4270, %v4334
    %v4428 = vsel %vm4423, %v4272, %v4336
    %v4429 = vsel %vm4423, %v4274, %v4338
    %v4430 = vsel %vm4423, %v4276, %v4340
    %v4431 = vsel %vm4423, %v4278, %v4342
    %v4432 = vsel %vm4423, %v4280, %v4344
    %v4433 = vsel %vm4423, %v4282, %v4346
    %v4434 = vsel %vm4423, %v4284, %v4348
    %v4435 = vsel %vm4423, %v4286, %v4350
    %v4436 = vsel %vm4423, %v4288, %v4352
    %v4437 = vsel %vm4423, %v4290, %v4354
    %v4438 = vsel %vm4423, %v4292, %v4356
    %v4439 = vsel %vm4423, %v4294, %v4358
    %vm4440 = vcmask 15360
    %v4441 = vsel %vm4440, %v4424, %v4376
    %v4442 = vsel %vm4440, %v4425, %v4378
    %v4443 = vsel %vm4440, %v4426, %v4380
    %v4444 = vsel %vm4440, %v4427, %v4382
    %v4445 = vsel %vm4440, %v4428, %v4384
    %v4446 = vsel %vm4440, %v4429, %v4386
    %v4447 = vsel %vm4440, %v4430, %v4388
    %v4448 = vsel %vm4440, %v4431, %v4390
    %v4449 = vsel %vm4440, %v4432, %v4392
    %v4450 = vsel %vm4440, %v4433, %v4394
    %v4451 = vsel %vm4440, %v4434, %v4396
    %v4452 = vsel %vm4440, %v4435, %v4398
    %v4453 = vsel %vm4440, %v4436, %v4400
    %v4454 = vsel %vm4440, %v4437, %v4402
    %v4455 = vsel %vm4440, %v4438, %v4404
    %v4456 = vsel %vm4440, %v4439, %v4406
    %v4457 = vadd.f32 %v759, %v4441
    %v4458 = vadd.f32 %v760, %v4442
    %v4459 = vadd.f32 %v761, %v4443
    %v4460 = vadd.f32 %v762, %v4444
    %v4461 = vadd.f32 %v763, %v4445
    %v4462 = vadd.f32 %v764, %v4446
    %v4463 = vadd.f32 %v765, %v4447
    %v4464 = vadd.f32 %v766, %v4448
    %v4465 = vadd.f32 %v767, %v4449
    %v4466 = vadd.f32 %v768, %v4450
    %v4467 = vadd.f32 %v769, %v4451
    %v4468 = vadd.f32 %v770, %v4452
    %v4469 = vadd.f32 %v771, %v4453
    %v4470 = vadd.f32 %v772, %v4454
    %v4471 = vadd.f32 %v773, %v4455
    %v4472 = vadd.f32 %v774, %v4456
    %v4473 = vand.u32 2147483647, %v759
    %v4474 = vrcp.pop 6.2831855
    %v4475 = vmul.f32 %v4473, %v4474
    %v4476 = vfloor.f32 %v4475
    %v4477 = vmul.f32 %v4476, 6.2831855
    %v4478 = vsub.f32 %v4473, %v4477
    %vm4479 = vcmp.eq.f32.partialorder %v4478, 6.2831855
    %v4480 = vsel %vm4479, 0.0, %v4478
    %v4481 = vand.u32 2147483647, %v4480
    %v4482 = vand.u32 %v759, 2147483648
    %v4483 = vor.u32 %v4481, %v4482
    %v4484 = vand.u32 2147483647, %v760
    %v4485 = vrcp.pop 6.2831855
    %v4486 = vmul.f32 %v4484, %v4485
    %v4487 = vfloor.f32 %v4486
    %v4488 = vmul.f32 %v4487, 6.2831855
    %v4489 = vsub.f32 %v4484, %v4488
    %vm4490 = vcmp.eq.f32.partialorder %v4489, 6.2831855
    %v4491 = vsel %vm4490, 0.0, %v4489
    %v4492 = vand.u32 2147483647, %v4491
    %v4493 = vand.u32 %v760, 2147483648
    %v4494 = vor.u32 %v4492, %v4493
    %v4495 = vand.u32 2147483647, %v761
    %v4496 = vrcp.pop 6.2831855
    %v4497 = vmul.f32 %v4495, %v4496
    %v4498 = vfloor.f32 %v4497
    %v4499 = vmul.f32 %v4498, 6.2831855
    %v4500 = vsub.f32 %v4495, %v4499
    %vm4501 = vcmp.eq.f32.partialorder %v4500, 6.2831855
    %v4502 = vsel %vm4501, 0.0, %v4500
    %v4503 = vand.u32 2147483647, %v4502
    %v4504 = vand.u32 %v761, 2147483648
    %v4505 = vor.u32 %v4503, %v4504
    %v4506 = vand.u32 2147483647, %v762
    %v4507 = vrcp.pop 6.2831855
    %v4508 = vmul.f32 %v4506, %v4507
    %v4509 = vfloor.f32 %v4508
    %v4510 = vmul.f32 %v4509, 6.2831855
    %v4511 = vsub.f32 %v4506, %v4510
    %vm4512 = vcmp.eq.f32.partialorder %v4511, 6.2831855
    %v4513 = vsel %vm4512, 0.0, %v4511
    %v4514 = vand.u32 2147483647, %v4513
    %v4515 = vand.u32 %v762, 2147483648
    %v4516 = vor.u32 %v4514, %v4515
    %v4517 = vand.u32 2147483647, %v763
    %v4518 = vrcp.pop 6.2831855
    %v4519 = vmul.f32 %v4517, %v4518
    %v4520 = vfloor.f32 %v4519
    %v4521 = vmul.f32 %v4520, 6.2831855
    %v4522 = vsub.f32 %v4517, %v4521
    %vm4523 = vcmp.eq.f32.partialorder %v4522, 6.2831855
    %v4524 = vsel %vm4523, 0.0, %v4522
    %v4525 = vand.u32 2147483647, %v4524
    %v4526 = vand.u32 %v763, 2147483648
    %v4527 = vor.u32 %v4525, %v4526
    %v4528 = vand.u32 2147483647, %v764
    %v4529 = vrcp.pop 6.2831855
    %v4530 = vmul.f32 %v4528, %v4529
    %v4531 = vfloor.f32 %v4530
    %v4532 = vmul.f32 %v4531, 6.2831855
    %v4533 = vsub.f32 %v4528, %v4532
    %vm4534 = vcmp.eq.f32.partialorder %v4533, 6.2831855
    %v4535 = vsel %vm4534, 0.0, %v4533
    %v4536 = vand.u32 2147483647, %v4535
    %v4537 = vand.u32 %v764, 2147483648
    %v4538 = vor.u32 %v4536, %v4537
    %v4539 = vand.u32 2147483647, %v765
    %v4540 = vrcp.pop 6.2831855
    %v4541 = vmul.f32 %v4539, %v4540
    %v4542 = vfloor.f32 %v4541
    %v4543 = vmul.f32 %v4542, 6.2831855
    %v4544 = vsub.f32 %v4539, %v4543
    %vm4545 = vcmp.eq.f32.partialorder %v4544, 6.2831855
    %v4546 = vsel %vm4545, 0.0, %v4544
    %v4547 = vand.u32 2147483647, %v4546
    %v4548 = vand.u32 %v765, 2147483648
    %v4549 = vor.u32 %v4547, %v4548
    %v4550 = vand.u32 2147483647, %v766
    %v4551 = vrcp.pop 6.2831855
    %v4552 = vmul.f32 %v4550, %v4551
    %v4553 = vfloor.f32 %v4552
    %v4554 = vmul.f32 %v4553, 6.2831855
    %v4555 = vsub.f32 %v4550, %v4554
    %vm4556 = vcmp.eq.f32.partialorder %v4555, 6.2831855
    %v4557 = vsel %vm4556, 0.0, %v4555
    %v4558 = vand.u32 2147483647, %v4557
    %v4559 = vand.u32 %v766, 2147483648
    %v4560 = vor.u32 %v4558, %v4559
    %v4561 = vand.u32 2147483647, %v767
    %v4562 = vrcp.pop 6.2831855
    %v4563 = vmul.f32 %v4561, %v4562
    %v4564 = vfloor.f32 %v4563
    %v4565 = vmul.f32 %v4564, 6.2831855
    %v4566 = vsub.f32 %v4561, %v4565
    %vm4567 = vcmp.eq.f32.partialorder %v4566, 6.2831855
    %v4568 = vsel %vm4567, 0.0, %v4566
    %v4569 = vand.u32 2147483647, %v4568
    %v4570 = vand.u32 %v767, 2147483648
    %v4571 = vor.u32 %v4569, %v4570
    %v4572 = vand.u32 2147483647, %v768
    %v4573 = vrcp.pop 6.2831855
    %v4574 = vmul.f32 %v4572, %v4573
    %v4575 = vfloor.f32 %v4574
    %v4576 = vmul.f32 %v4575, 6.2831855
    %v4577 = vsub.f32 %v4572, %v4576
    %vm4578 = vcmp.eq.f32.partialorder %v4577, 6.2831855
    %v4579 = vsel %vm4578, 0.0, %v4577
    %v4580 = vand.u32 2147483647, %v4579
    %v4581 = vand.u32 %v768, 2147483648
    %v4582 = vor.u32 %v4580, %v4581
    %v4583 = vand.u32 2147483647, %v769
    %v4584 = vrcp.pop 6.2831855
    %v4585 = vmul.f32 %v4583, %v4584
    %v4586 = vfloor.f32 %v4585
    %v4587 = vmul.f32 %v4586, 6.2831855
    %v4588 = vsub.f32 %v4583, %v4587
    %vm4589 = vcmp.eq.f32.partialorder %v4588, 6.2831855
    %v4590 = vsel %vm4589, 0.0, %v4588
    %v4591 = vand.u32 2147483647, %v4590
    %v4592 = vand.u32 %v769, 2147483648
    %v4593 = vor.u32 %v4591, %v4592
    %v4594 = vand.u32 2147483647, %v770
    %v4595 = vrcp.pop 6.2831855
    %v4596 = vmul.f32 %v4594, %v4595
    %v4597 = vfloor.f32 %v4596
    %v4598 = vmul.f32 %v4597, 6.2831855
    %v4599 = vsub.f32 %v4594, %v4598
    %vm4600 = vcmp.eq.f32.partialorder %v4599, 6.2831855
    %v4601 = vsel %vm4600, 0.0, %v4599
    %v4602 = vand.u32 2147483647, %v4601
    %v4603 = vand.u32 %v770, 2147483648
    %v4604 = vor.u32 %v4602, %v4603
    %v4605 = vand.u32 2147483647, %v771
    %v4606 = vrcp.pop 6.2831855
    %v4607 = vmul.f32 %v4605, %v4606
    %v4608 = vfloor.f32 %v4607
    %v4609 = vmul.f32 %v4608, 6.2831855
    %v4610 = vsub.f32 %v4605, %v4609
    %vm4611 = vcmp.eq.f32.partialorder %v4610, 6.2831855
    %v4612 = vsel %vm4611, 0.0, %v4610
    %v4613 = vand.u32 2147483647, %v4612
    %v4614 = vand.u32 %v771, 2147483648
    %v4615 = vor.u32 %v4613, %v4614
    %v4616 = vand.u32 2147483647, %v772
    %v4617 = vrcp.pop 6.2831855
    %v4618 = vmul.f32 %v4616, %v4617
    %v4619 = vfloor.f32 %v4618
    %v4620 = vmul.f32 %v4619, 6.2831855
    %v4621 = vsub.f32 %v4616, %v4620
    %vm4622 = vcmp.eq.f32.partialorder %v4621, 6.2831855
    %v4623 = vsel %vm4622, 0.0, %v4621
    %v4624 = vand.u32 2147483647, %v4623
    %v4625 = vand.u32 %v772, 2147483648
    %v4626 = vor.u32 %v4624, %v4625
    %v4627 = vand.u32 2147483647, %v773
    %v4628 = vrcp.pop 6.2831855
    %v4629 = vmul.f32 %v4627, %v4628
    %v4630 = vfloor.f32 %v4629
    %v4631 = vmul.f32 %v4630, 6.2831855
    %v4632 = vsub.f32 %v4627, %v4631
    %vm4633 = vcmp.eq.f32.partialorder %v4632, 6.2831855
    %v4634 = vsel %vm4633, 0.0, %v4632
    %v4635 = vand.u32 2147483647, %v4634
    %v4636 = vand.u32 %v773, 2147483648
    %v4637 = vor.u32 %v4635, %v4636
    %v4638 = vand.u32 2147483647, %v774
    %v4639 = vrcp.pop 6.2831855
    %v4640 = vmul.f32 %v4638, %v4639
    %v4641 = vfloor.f32 %v4640
    %v4642 = vmul.f32 %v4641, 6.2831855
    %v4643 = vsub.f32 %v4638, %v4642
    %vm4644 = vcmp.eq.f32.partialorder %v4643, 6.2831855
    %v4645 = vsel %vm4644, 0.0, %v4643
    %v4646 = vand.u32 2147483647, %v4645
    %v4647 = vand.u32 %v774, 2147483648
    %v4648 = vor.u32 %v4646, %v4647
    %vm4649 = vcmp.ne.f32.partialorder %v4483, 0.0
    %vm4650 = vcmp.ne.f32.partialorder %v4494, 0.0
    %vm4651 = vcmp.ne.f32.partialorder %v4505, 0.0
    %vm4652 = vcmp.ne.f32.partialorder %v4516, 0.0
    %vm4653 = vcmp.ne.f32.partialorder %v4527, 0.0
    %vm4654 = vcmp.ne.f32.partialorder %v4538, 0.0
    %vm4655 = vcmp.ne.f32.partialorder %v4549, 0.0
    %vm4656 = vcmp.ne.f32.partialorder %v4560, 0.0
    %vm4657 = vcmp.ne.f32.partialorder %v4571, 0.0
    %vm4658 = vcmp.ne.f32.partialorder %v4582, 0.0
    %vm4659 = vcmp.ne.f32.partialorder %v4593, 0.0
    %vm4660 = vcmp.ne.f32.partialorder %v4604, 0.0
    %vm4661 = vcmp.ne.f32.partialorder %v4615, 0.0
    %vm4662 = vcmp.ne.f32.partialorder %v4626, 0.0
    %vm4663 = vcmp.ne.f32.partialorder %v4637, 0.0
    %vm4664 = vcmp.ne.f32.partialorder %v4648, 0.0
    %vm4665 = vcmp.lt.f32.partialorder %v4483, 0.0
    %vm4666 = vcmp.lt.f32.partialorder %v4494, 0.0
    %vm4667 = vcmp.lt.f32.partialorder %v4505, 0.0
    %vm4668 = vcmp.lt.f32.partialorder %v4516, 0.0
    %vm4669 = vcmp.lt.f32.partialorder %v4527, 0.0
    %vm4670 = vcmp.lt.f32.partialorder %v4538, 0.0
    %vm4671 = vcmp.lt.f32.partialorder %v4549, 0.0
    %vm4672 = vcmp.lt.f32.partialorder %v4560, 0.0
    %vm4673 = vcmp.lt.f32.partialorder %v4571, 0.0
    %vm4674 = vcmp.lt.f32.partialorder %v4582, 0.0
    %vm4675 = vcmp.lt.f32.partialorder %v4593, 0.0
    %vm4676 = vcmp.lt.f32.partialorder %v4604, 0.0
    %vm4677 = vcmp.lt.f32.partialorder %v4615, 0.0
    %vm4678 = vcmp.lt.f32.partialorder %v4626, 0.0
    %vm4679 = vcmp.lt.f32.partialorder %v4637, 0.0
    %vm4680 = vcmp.lt.f32.partialorder %v4648, 0.0
    %vm4681 = vmand %vm4665, %vm4649
    %vm4682 = vmand %vm4666, %vm4650
    %vm4683 = vmand %vm4667, %vm4651
    %vm4684 = vmand %vm4668, %vm4652
    %vm4685 = vmand %vm4669, %vm4653
    %vm4686 = vmand %vm4670, %vm4654
    %vm4687 = vmand %vm4671, %vm4655
    %vm4688 = vmand %vm4672, %vm4656
    %vm4689 = vmand %vm4673, %vm4657
    %vm4690 = vmand %vm4674, %vm4658
    %vm4691 = vmand %vm4675, %vm4659
    %vm4692 = vmand %vm4676, %vm4660
    %vm4693 = vmand %vm4677, %vm4661
    %vm4694 = vmand %vm4678, %vm4662
    %vm4695 = vmand %vm4679, %vm4663
    %vm4696 = vmand %vm4680, %vm4664
    %v4697 = vadd.f32 %v4483, 6.2831855
    %v4698 = vadd.f32 %v4494, 6.2831855
    %v4699 = vadd.f32 %v4505, 6.2831855
    %v4700 = vadd.f32 %v4516, 6.2831855
    %v4701 = vadd.f32 %v4527, 6.2831855
    %v4702 = vadd.f32 %v4538, 6.2831855
    %v4703 = vadd.f32 %v4549, 6.2831855
    %v4704 = vadd.f32 %v4560, 6.2831855
    %v4705 = vadd.f32 %v4571, 6.2831855
    %v4706 = vadd.f32 %v4582, 6.2831855
    %v4707 = vadd.f32 %v4593, 6.2831855
    %v4708 = vadd.f32 %v4604, 6.2831855
    %v4709 = vadd.f32 %v4615, 6.2831855
    %v4710 = vadd.f32 %v4626, 6.2831855
    %v4711 = vadd.f32 %v4637, 6.2831855
    %v4712 = vadd.f32 %v4648, 6.2831855
    %v4713 = vsel %vm4681, %v4697, %v4483
    %v4714 = vsel %vm4682, %v4698, %v4494
    %v4715 = vsel %vm4683, %v4699, %v4505
    %v4716 = vsel %vm4684, %v4700, %v4516
    %v4717 = vsel %vm4685, %v4701, %v4527
    %v4718 = vsel %vm4686, %v4702, %v4538
    %v4719 = vsel %vm4687, %v4703, %v4549
    %v4720 = vsel %vm4688, %v4704, %v4560
    %v4721 = vsel %vm4689, %v4705, %v4571
    %v4722 = vsel %vm4690, %v4706, %v4582
    %v4723 = vsel %vm4691, %v4707, %v4593
    %v4724 = vsel %vm4692, %v4708, %v4604
    %v4725 = vsel %vm4693, %v4709, %v4615
    %v4726 = vsel %vm4694, %v4710, %v4626
    %v4727 = vsel %vm4695, %v4711, %v4637
    %v4728 = vsel %vm4696, %v4712, %v4648
    %v4729 = vadd.f32 %v4713, 0.2617994
    %v4730 = vadd.f32 %v4714, 0.2617994
    %v4731 = vadd.f32 %v4715, 0.2617994
    %v4732 = vadd.f32 %v4716, 0.2617994
    %v4733 = vadd.f32 %v4717, 0.2617994
    %v4734 = vadd.f32 %v4718, 0.2617994
    %v4735 = vadd.f32 %v4719, 0.2617994
    %v4736 = vadd.f32 %v4720, 0.2617994
    %v4737 = vadd.f32 %v4721, 0.2617994
    %v4738 = vadd.f32 %v4722, 0.2617994
    %v4739 = vadd.f32 %v4723, 0.2617994
    %v4740 = vadd.f32 %v4724, 0.2617994
    %v4741 = vadd.f32 %v4725, 0.2617994
    %v4742 = vadd.f32 %v4726, 0.2617994
    %v4743 = vadd.f32 %v4727, 0.2617994
    %v4744 = vadd.f32 %v4728, 0.2617994
    %v4745 = vand.u32 2147483647, %v4729
    %v4746 = vrcp.pop 6.2831855
    %v4747 = vmul.f32 %v4745, %v4746
    %v4748 = vfloor.f32 %v4747
    %v4749 = vmul.f32 %v4748, 6.2831855
    %v4750 = vsub.f32 %v4745, %v4749
    %vm4751 = vcmp.eq.f32.partialorder %v4750, 6.2831855
    %v4752 = vsel %vm4751, 0.0, %v4750
    %v4753 = vand.u32 2147483647, %v4752
    %v4754 = vand.u32 %v4729, 2147483648
    %v4755 = vor.u32 %v4753, %v4754
    %v4756 = vand.u32 2147483647, %v4730
    %v4757 = vrcp.pop 6.2831855
    %v4758 = vmul.f32 %v4756, %v4757
    %v4759 = vfloor.f32 %v4758
    %v4760 = vmul.f32 %v4759, 6.2831855
    %v4761 = vsub.f32 %v4756, %v4760
    %vm4762 = vcmp.eq.f32.partialorder %v4761, 6.2831855
    %v4763 = vsel %vm4762, 0.0, %v4761
    %v4764 = vand.u32 2147483647, %v4763
    %v4765 = vand.u32 %v4730, 2147483648
    %v4766 = vor.u32 %v4764, %v4765
    %v4767 = vand.u32 2147483647, %v4731
    %v4768 = vrcp.pop 6.2831855
    %v4769 = vmul.f32 %v4767, %v4768
    %v4770 = vfloor.f32 %v4769
    %v4771 = vmul.f32 %v4770, 6.2831855
    %v4772 = vsub.f32 %v4767, %v4771
    %vm4773 = vcmp.eq.f32.partialorder %v4772, 6.2831855
    %v4774 = vsel %vm4773, 0.0, %v4772
    %v4775 = vand.u32 2147483647, %v4774
    %v4776 = vand.u32 %v4731, 2147483648
    %v4777 = vor.u32 %v4775, %v4776
    %v4778 = vand.u32 2147483647, %v4732
    %v4779 = vrcp.pop 6.2831855
    %v4780 = vmul.f32 %v4778, %v4779
    %v4781 = vfloor.f32 %v4780
    %v4782 = vmul.f32 %v4781, 6.2831855
    %v4783 = vsub.f32 %v4778, %v4782
    %vm4784 = vcmp.eq.f32.partialorder %v4783, 6.2831855
    %v4785 = vsel %vm4784, 0.0, %v4783
    %v4786 = vand.u32 2147483647, %v4785
    %v4787 = vand.u32 %v4732, 2147483648
    %v4788 = vor.u32 %v4786, %v4787
    %v4789 = vand.u32 2147483647, %v4733
    %v4790 = vrcp.pop 6.2831855
    %v4791 = vmul.f32 %v4789, %v4790
    %v4792 = vfloor.f32 %v4791
    %v4793 = vmul.f32 %v4792, 6.2831855
    %v4794 = vsub.f32 %v4789, %v4793
    %vm4795 = vcmp.eq.f32.partialorder %v4794, 6.2831855
    %v4796 = vsel %vm4795, 0.0, %v4794
    %v4797 = vand.u32 2147483647, %v4796
    %v4798 = vand.u32 %v4733, 2147483648
    %v4799 = vor.u32 %v4797, %v4798
    %v4800 = vand.u32 2147483647, %v4734
    %v4801 = vrcp.pop 6.2831855
    %v4802 = vmul.f32 %v4800, %v4801
    %v4803 = vfloor.f32 %v4802
    %v4804 = vmul.f32 %v4803, 6.2831855
    %v4805 = vsub.f32 %v4800, %v4804
    %vm4806 = vcmp.eq.f32.partialorder %v4805, 6.2831855
    %v4807 = vsel %vm4806, 0.0, %v4805
    %v4808 = vand.u32 2147483647, %v4807
    %v4809 = vand.u32 %v4734, 2147483648
    %v4810 = vor.u32 %v4808, %v4809
    %v4811 = vand.u32 2147483647, %v4735
    %v4812 = vrcp.pop 6.2831855
    %v4813 = vmul.f32 %v4811, %v4812
    %v4814 = vfloor.f32 %v4813
    %v4815 = vmul.f32 %v4814, 6.2831855
    %v4816 = vsub.f32 %v4811, %v4815
    %vm4817 = vcmp.eq.f32.partialorder %v4816, 6.2831855
    %v4818 = vsel %vm4817, 0.0, %v4816
    %v4819 = vand.u32 2147483647, %v4818
    %v4820 = vand.u32 %v4735, 2147483648
    %v4821 = vor.u32 %v4819, %v4820
    %v4822 = vand.u32 2147483647, %v4736
    %v4823 = vrcp.pop 6.2831855
    %v4824 = vmul.f32 %v4822, %v4823
    %v4825 = vfloor.f32 %v4824
    %v4826 = vmul.f32 %v4825, 6.2831855
    %v4827 = vsub.f32 %v4822, %v4826
    %vm4828 = vcmp.eq.f32.partialorder %v4827, 6.2831855
    %v4829 = vsel %vm4828, 0.0, %v4827
    %v4830 = vand.u32 2147483647, %v4829
    %v4831 = vand.u32 %v4736, 2147483648
    %v4832 = vor.u32 %v4830, %v4831
    %v4833 = vand.u32 2147483647, %v4737
    %v4834 = vrcp.pop 6.2831855
    %v4835 = vmul.f32 %v4833, %v4834
    %v4836 = vfloor.f32 %v4835
    %v4837 = vmul.f32 %v4836, 6.2831855
    %v4838 = vsub.f32 %v4833, %v4837
    %vm4839 = vcmp.eq.f32.partialorder %v4838, 6.2831855
    %v4840 = vsel %vm4839, 0.0, %v4838
    %v4841 = vand.u32 2147483647, %v4840
    %v4842 = vand.u32 %v4737, 2147483648
    %v4843 = vor.u32 %v4841, %v4842
    %v4844 = vand.u32 2147483647, %v4738
    %v4845 = vrcp.pop 6.2831855
    %v4846 = vmul.f32 %v4844, %v4845
    %v4847 = vfloor.f32 %v4846
    %v4848 = vmul.f32 %v4847, 6.2831855
    %v4849 = vsub.f32 %v4844, %v4848
    %vm4850 = vcmp.eq.f32.partialorder %v4849, 6.2831855
    %v4851 = vsel %vm4850, 0.0, %v4849
    %v4852 = vand.u32 2147483647, %v4851
    %v4853 = vand.u32 %v4738, 2147483648
    %v4854 = vor.u32 %v4852, %v4853
    %v4855 = vand.u32 2147483647, %v4739
    %v4856 = vrcp.pop 6.2831855
    %v4857 = vmul.f32 %v4855, %v4856
    %v4858 = vfloor.f32 %v4857
    %v4859 = vmul.f32 %v4858, 6.2831855
    %v4860 = vsub.f32 %v4855, %v4859
    %vm4861 = vcmp.eq.f32.partialorder %v4860, 6.2831855
    %v4862 = vsel %vm4861, 0.0, %v4860
    %v4863 = vand.u32 2147483647, %v4862
    %v4864 = vand.u32 %v4739, 2147483648
    %v4865 = vor.u32 %v4863, %v4864
    %v4866 = vand.u32 2147483647, %v4740
    %v4867 = vrcp.pop 6.2831855
    %v4868 = vmul.f32 %v4866, %v4867
    %v4869 = vfloor.f32 %v4868
    %v4870 = vmul.f32 %v4869, 6.2831855
    %v4871 = vsub.f32 %v4866, %v4870
    %vm4872 = vcmp.eq.f32.partialorder %v4871, 6.2831855
    %v4873 = vsel %vm4872, 0.0, %v4871
    %v4874 = vand.u32 2147483647, %v4873
    %v4875 = vand.u32 %v4740, 2147483648
    %v4876 = vor.u32 %v4874, %v4875
    %v4877 = vand.u32 2147483647, %v4741
    %v4878 = vrcp.pop 6.2831855
    %v4879 = vmul.f32 %v4877, %v4878
    %v4880 = vfloor.f32 %v4879
    %v4881 = vmul.f32 %v4880, 6.2831855
    %v4882 = vsub.f32 %v4877, %v4881
    %vm4883 = vcmp.eq.f32.partialorder %v4882, 6.2831855
    %v4884 = vsel %vm4883, 0.0, %v4882
    %v4885 = vand.u32 2147483647, %v4884
    %v4886 = vand.u32 %v4741, 2147483648
    %v4887 = vor.u32 %v4885, %v4886
    %v4888 = vand.u32 2147483647, %v4742
    %v4889 = vrcp.pop 6.2831855
    %v4890 = vmul.f32 %v4888, %v4889
    %v4891 = vfloor.f32 %v4890
    %v4892 = vmul.f32 %v4891, 6.2831855
    %v4893 = vsub.f32 %v4888, %v4892
    %vm4894 = vcmp.eq.f32.partialorder %v4893, 6.2831855
    %v4895 = vsel %vm4894, 0.0, %v4893
    %v4896 = vand.u32 2147483647, %v4895
    %v4897 = vand.u32 %v4742, 2147483648
    %v4898 = vor.u32 %v4896, %v4897
    %v4899 = vand.u32 2147483647, %v4743
    %v4900 = vrcp.pop 6.2831855
    %v4901 = vmul.f32 %v4899, %v4900
    %v4902 = vfloor.f32 %v4901
    %v4903 = vmul.f32 %v4902, 6.2831855
    %v4904 = vsub.f32 %v4899, %v4903
    %vm4905 = vcmp.eq.f32.partialorder %v4904, 6.2831855
    %v4906 = vsel %vm4905, 0.0, %v4904
    %v4907 = vand.u32 2147483647, %v4906
    %v4908 = vand.u32 %v4743, 2147483648
    %v4909 = vor.u32 %v4907, %v4908
    %v4910 = vand.u32 2147483647, %v4744
    %v4911 = vrcp.pop 6.2831855
    %v4912 = vmul.f32 %v4910, %v4911
    %v4913 = vfloor.f32 %v4912
    %v4914 = vmul.f32 %v4913, 6.2831855
    %v4915 = vsub.f32 %v4910, %v4914
    %vm4916 = vcmp.eq.f32.partialorder %v4915, 6.2831855
    %v4917 = vsel %vm4916, 0.0, %v4915
    %v4918 = vand.u32 2147483647, %v4917
    %v4919 = vand.u32 %v4744, 2147483648
    %v4920 = vor.u32 %v4918, %v4919
    %vm4921 = vcmp.ne.f32.partialorder %v4755, 0.0
    %vm4922 = vcmp.ne.f32.partialorder %v4766, 0.0
    %vm4923 = vcmp.ne.f32.partialorder %v4777, 0.0
    %vm4924 = vcmp.ne.f32.partialorder %v4788, 0.0
    %vm4925 = vcmp.ne.f32.partialorder %v4799, 0.0
    %vm4926 = vcmp.ne.f32.partialorder %v4810, 0.0
    %vm4927 = vcmp.ne.f32.partialorder %v4821, 0.0
    %vm4928 = vcmp.ne.f32.partialorder %v4832, 0.0
    %vm4929 = vcmp.ne.f32.partialorder %v4843, 0.0
    %vm4930 = vcmp.ne.f32.partialorder %v4854, 0.0
    %vm4931 = vcmp.ne.f32.partialorder %v4865, 0.0
    %vm4932 = vcmp.ne.f32.partialorder %v4876, 0.0
    %vm4933 = vcmp.ne.f32.partialorder %v4887, 0.0
    %vm4934 = vcmp.ne.f32.partialorder %v4898, 0.0
    %vm4935 = vcmp.ne.f32.partialorder %v4909, 0.0
    %vm4936 = vcmp.ne.f32.partialorder %v4920, 0.0
    %vm4937 = vcmp.lt.f32.partialorder %v4755, 0.0
    %vm4938 = vcmp.lt.f32.partialorder %v4766, 0.0
    %vm4939 = vcmp.lt.f32.partialorder %v4777, 0.0
    %vm4940 = vcmp.lt.f32.partialorder %v4788, 0.0
    %vm4941 = vcmp.lt.f32.partialorder %v4799, 0.0
    %vm4942 = vcmp.lt.f32.partialorder %v4810, 0.0
    %vm4943 = vcmp.lt.f32.partialorder %v4821, 0.0
    %vm4944 = vcmp.lt.f32.partialorder %v4832, 0.0
    %vm4945 = vcmp.lt.f32.partialorder %v4843, 0.0
    %vm4946 = vcmp.lt.f32.partialorder %v4854, 0.0
    %vm4947 = vcmp.lt.f32.partialorder %v4865, 0.0
    %vm4948 = vcmp.lt.f32.partialorder %v4876, 0.0
    %vm4949 = vcmp.lt.f32.partialorder %v4887, 0.0
    %vm4950 = vcmp.lt.f32.partialorder %v4898, 0.0
    %vm4951 = vcmp.lt.f32.partialorder %v4909, 0.0
    %vm4952 = vcmp.lt.f32.partialorder %v4920, 0.0
    %vm4953 = vmand %vm4937, %vm4921
    %vm4954 = vmand %vm4938, %vm4922
    %vm4955 = vmand %vm4939, %vm4923
    %vm4956 = vmand %vm4940, %vm4924
    %vm4957 = vmand %vm4941, %vm4925
    %vm4958 = vmand %vm4942, %vm4926
    %vm4959 = vmand %vm4943, %vm4927
    %vm4960 = vmand %vm4944, %vm4928
    %vm4961 = vmand %vm4945, %vm4929
    %vm4962 = vmand %vm4946, %vm4930
    %vm4963 = vmand %vm4947, %vm4931
    %vm4964 = vmand %vm4948, %vm4932
    %vm4965 = vmand %vm4949, %vm4933
    %vm4966 = vmand %vm4950, %vm4934
    %vm4967 = vmand %vm4951, %vm4935
    %vm4968 = vmand %vm4952, %vm4936
    %v4969 = vadd.f32 %v4755, 6.2831855
    %v4970 = vadd.f32 %v4766, 6.2831855
    %v4971 = vadd.f32 %v4777, 6.2831855
    %v4972 = vadd.f32 %v4788, 6.2831855
    %v4973 = vadd.f32 %v4799, 6.2831855
    %v4974 = vadd.f32 %v4810, 6.2831855
    %v4975 = vadd.f32 %v4821, 6.2831855
    %v4976 = vadd.f32 %v4832, 6.2831855
    %v4977 = vadd.f32 %v4843, 6.2831855
    %v4978 = vadd.f32 %v4854, 6.2831855
    %v4979 = vadd.f32 %v4865, 6.2831855
    %v4980 = vadd.f32 %v4876, 6.2831855
    %v4981 = vadd.f32 %v4887, 6.2831855
    %v4982 = vadd.f32 %v4898, 6.2831855
    %v4983 = vadd.f32 %v4909, 6.2831855
    %v4984 = vadd.f32 %v4920, 6.2831855
    %v4985 = vsel %vm4953, %v4969, %v4755
    %v4986 = vsel %vm4954, %v4970, %v4766
    %v4987 = vsel %vm4955, %v4971, %v4777
    %v4988 = vsel %vm4956, %v4972, %v4788
    %v4989 = vsel %vm4957, %v4973, %v4799
    %v4990 = vsel %vm4958, %v4974, %v4810
    %v4991 = vsel %vm4959, %v4975, %v4821
    %v4992 = vsel %vm4960, %v4976, %v4832
    %v4993 = vsel %vm4961, %v4977, %v4843
    %v4994 = vsel %vm4962, %v4978, %v4854
    %v4995 = vsel %vm4963, %v4979, %v4865
    %v4996 = vsel %vm4964, %v4980, %v4876
    %v4997 = vsel %vm4965, %v4981, %v4887
    %v4998 = vsel %vm4966, %v4982, %v4898
    %v4999 = vsel %vm4967, %v4983, %v4909
    %v5000 = vsel %vm4968, %v4984, %v4920
    %v5001 = vrcp.pop 0.5235988
    %v5002 = vmul.f32 %v4985, %v5001
    %v5003 = vmul.f32 %v4986, %v5001
    %v5004 = vmul.f32 %v4987, %v5001
    %v5005 = vmul.f32 %v4988, %v5001
    %v5006 = vmul.f32 %v4989, %v5001
    %v5007 = vmul.f32 %v4990, %v5001
    %v5008 = vmul.f32 %v4991, %v5001
    %v5009 = vmul.f32 %v4992, %v5001
    %v5010 = vmul.f32 %v4993, %v5001
    %v5011 = vmul.f32 %v4994, %v5001
    %v5012 = vmul.f32 %v4995, %v5001
    %v5013 = vmul.f32 %v4996, %v5001
    %v5014 = vmul.f32 %v4997, %v5001
    %v5015 = vmul.f32 %v4998, %v5001
    %v5016 = vmul.f32 %v4999, %v5001
    %v5017 = vmul.f32 %v5000, %v5001
    %v5018 = vfloor.f32 %v5002
    %v5019 = vfloor.f32 %v5003
    %v5020 = vfloor.f32 %v5004
    %v5021 = vfloor.f32 %v5005
    %v5022 = vfloor.f32 %v5006
    %v5023 = vfloor.f32 %v5007
    %v5024 = vfloor.f32 %v5008
    %v5025 = vfloor.f32 %v5009
    %v5026 = vfloor.f32 %v5010
    %v5027 = vfloor.f32 %v5011
    %v5028 = vfloor.f32 %v5012
    %v5029 = vfloor.f32 %v5013
    %v5030 = vfloor.f32 %v5014
    %v5031 = vfloor.f32 %v5015
    %v5032 = vfloor.f32 %v5016
    %v5033 = vfloor.f32 %v5017
    %v5034 = vmax.f32 %v5018, 0.0
    %v5035 = vmax.f32 %v5019, 0.0
    %v5036 = vmax.f32 %v5020, 0.0
    %v5037 = vmax.f32 %v5021, 0.0
    %v5038 = vmax.f32 %v5022, 0.0
    %v5039 = vmax.f32 %v5023, 0.0
    %v5040 = vmax.f32 %v5024, 0.0
    %v5041 = vmax.f32 %v5025, 0.0
    %v5042 = vmax.f32 %v5026, 0.0
    %v5043 = vmax.f32 %v5027, 0.0
    %v5044 = vmax.f32 %v5028, 0.0
    %v5045 = vmax.f32 %v5029, 0.0
    %v5046 = vmax.f32 %v5030, 0.0
    %v5047 = vmax.f32 %v5031, 0.0
    %v5048 = vmax.f32 %v5032, 0.0
    %v5049 = vmax.f32 %v5033, 0.0
    %v5050 = vmin.f32 %v5034, 11.0
    %v5051 = vmin.f32 %v5035, 11.0
    %v5052 = vmin.f32 %v5036, 11.0
    %v5053 = vmin.f32 %v5037, 11.0
    %v5054 = vmin.f32 %v5038, 11.0
    %v5055 = vmin.f32 %v5039, 11.0
    %v5056 = vmin.f32 %v5040, 11.0
    %v5057 = vmin.f32 %v5041, 11.0
    %v5058 = vmin.f32 %v5042, 11.0
    %v5059 = vmin.f32 %v5043, 11.0
    %v5060 = vmin.f32 %v5044, 11.0
    %v5061 = vmin.f32 %v5045, 11.0
    %v5062 = vmin.f32 %v5046, 11.0
    %v5063 = vmin.f32 %v5047, 11.0
    %v5064 = vmin.f32 %v5048, 11.0
    %v5065 = vmin.f32 %v5049, 11.0
    %v5066 = vcvt.f32.s32.to.zero.pseudo %v5050
    %v5067 = vcvt.f32.s32.to.zero.pseudo %v5051
    %v5068 = vcvt.f32.s32.to.zero.pseudo %v5052
    %v5069 = vcvt.f32.s32.to.zero.pseudo %v5053
    %v5070 = vcvt.f32.s32.to.zero.pseudo %v5054
    %v5071 = vcvt.f32.s32.to.zero.pseudo %v5055
    %v5072 = vcvt.f32.s32.to.zero.pseudo %v5056
    %v5073 = vcvt.f32.s32.to.zero.pseudo %v5057
    %v5074 = vcvt.f32.s32.to.zero.pseudo %v5058
    %v5075 = vcvt.f32.s32.to.zero.pseudo %v5059
    %v5076 = vcvt.f32.s32.to.zero.pseudo %v5060
    %v5077 = vcvt.f32.s32.to.zero.pseudo %v5061
    %v5078 = vcvt.f32.s32.to.zero.pseudo %v5062
    %v5079 = vcvt.f32.s32.to.zero.pseudo %v5063
    %v5080 = vcvt.f32.s32.to.zero.pseudo %v5064
    %v5081 = vcvt.f32.s32.to.zero.pseudo %v5065
    %v5082 = vlaneseq
    %v5083 = vand.u32 %v5082, 127
    %5084 = vset.pattern.permute.xlu0 3
    %5085 = vperm.xlu0 %5084, %v5066
    %v5086 = vpop.permute.xlu0 %5085
    %5087 = vset.pattern.permute.xlu0 3
    %5088 = vperm.xlu0 %5087, %v5067
    %v5089 = vpop.permute.xlu0 %5088
    %5090 = vset.pattern.permute.xlu0 3
    %5091 = vperm.xlu0 %5090, %v5068
    %v5092 = vpop.permute.xlu0 %5091
    %5093 = vset.pattern.permute.xlu0 3
    %5094 = vperm.xlu0 %5093, %v5069
    %v5095 = vpop.permute.xlu0 %5094
    %5096 = vset.pattern.permute.xlu0 3
    %5097 = vperm.xlu0 %5096, %v5070
    %v5098 = vpop.permute.xlu0 %5097
    %5099 = vset.pattern.permute.xlu0 3
    %5100 = vperm.xlu0 %5099, %v5071
    %v5101 = vpop.permute.xlu0 %5100
    %5102 = vset.pattern.permute.xlu0 3
    %5103 = vperm.xlu0 %5102, %v5072
    %v5104 = vpop.permute.xlu0 %5103
    %5105 = vset.pattern.permute.xlu0 3
    %5106 = vperm.xlu0 %5105, %v5073
    %v5107 = vpop.permute.xlu0 %5106
    %5108 = vset.pattern.permute.xlu0 3
    %5109 = vperm.xlu0 %5108, %v5074
    %v5110 = vpop.permute.xlu0 %5109
    %5111 = vset.pattern.permute.xlu0 3
    %5112 = vperm.xlu0 %5111, %v5075
    %v5113 = vpop.permute.xlu0 %5112
    %5114 = vset.pattern.permute.xlu0 3
    %5115 = vperm.xlu0 %5114, %v5076
    %v5116 = vpop.permute.xlu0 %5115
    %5117 = vset.pattern.permute.xlu0 3
    %5118 = vperm.xlu0 %5117, %v5077
    %v5119 = vpop.permute.xlu0 %5118
    %5120 = vset.pattern.permute.xlu0 3
    %5121 = vperm.xlu0 %5120, %v5078
    %v5122 = vpop.permute.xlu0 %5121
    %5123 = vset.pattern.permute.xlu0 3
    %5124 = vperm.xlu0 %5123, %v5079
    %v5125 = vpop.permute.xlu0 %5124
    %5126 = vset.pattern.permute.xlu0 3
    %5127 = vperm.xlu0 %5126, %v5080
    %v5128 = vpop.permute.xlu0 %5127
    %5129 = vset.pattern.permute.xlu0 3
    %5130 = vperm.xlu0 %5129, %v5081
    %v5131 = vpop.permute.xlu0 %5130
    %v5132 = vsub.s32 %v5083, %v5086
    %v5133 = vsub.s32 %v5083, %v5089
    %v5134 = vsub.s32 %v5083, %v5092
    %v5135 = vsub.s32 %v5083, %v5095
    %v5136 = vsub.s32 %v5083, %v5098
    %v5137 = vsub.s32 %v5083, %v5101
    %v5138 = vsub.s32 %v5083, %v5104
    %v5139 = vsub.s32 %v5083, %v5107
    %v5140 = vsub.s32 %v5083, %v5110
    %v5141 = vsub.s32 %v5083, %v5113
    %v5142 = vsub.s32 %v5083, %v5116
    %v5143 = vsub.s32 %v5083, %v5119
    %v5144 = vsub.s32 %v5083, %v5122
    %v5145 = vsub.s32 %v5083, %v5125
    %v5146 = vsub.s32 %v5083, %v5128
    %v5147 = vsub.s32 %v5083, %v5131
    %vm5148 = vcmp.lt.s32.totalorder %v5132, 0
    %vm5149 = vcmp.lt.s32.totalorder %v5133, 0
    %vm5150 = vcmp.lt.s32.totalorder %v5134, 0
    %vm5151 = vcmp.lt.s32.totalorder %v5135, 0
    %vm5152 = vcmp.lt.s32.totalorder %v5136, 0
    %vm5153 = vcmp.lt.s32.totalorder %v5137, 0
    %vm5154 = vcmp.lt.s32.totalorder %v5138, 0
    %vm5155 = vcmp.lt.s32.totalorder %v5139, 0
    %vm5156 = vcmp.lt.s32.totalorder %v5140, 0
    %vm5157 = vcmp.lt.s32.totalorder %v5141, 0
    %vm5158 = vcmp.lt.s32.totalorder %v5142, 0
    %vm5159 = vcmp.lt.s32.totalorder %v5143, 0
    %vm5160 = vcmp.lt.s32.totalorder %v5144, 0
    %vm5161 = vcmp.lt.s32.totalorder %v5145, 0
    %vm5162 = vcmp.lt.s32.totalorder %v5146, 0
    %vm5163 = vcmp.lt.s32.totalorder %v5147, 0
    %v5164 = vadd.s32 %v5132, 12
    %v5165 = vadd.s32 %v5133, 12
    %v5166 = vadd.s32 %v5134, 12
    %v5167 = vadd.s32 %v5135, 12
    %v5168 = vadd.s32 %v5136, 12
    %v5169 = vadd.s32 %v5137, 12
    %v5170 = vadd.s32 %v5138, 12
    %v5171 = vadd.s32 %v5139, 12
    %v5172 = vadd.s32 %v5140, 12
    %v5173 = vadd.s32 %v5141, 12
    %v5174 = vadd.s32 %v5142, 12
    %v5175 = vadd.s32 %v5143, 12
    %v5176 = vadd.s32 %v5144, 12
    %v5177 = vadd.s32 %v5145, 12
    %v5178 = vadd.s32 %v5146, 12
    %v5179 = vadd.s32 %v5147, 12
    %v5180 = vsel %vm5148, %v5164, %v5132
    %v5181 = vsel %vm5149, %v5165, %v5133
    %v5182 = vsel %vm5150, %v5166, %v5134
    %v5183 = vsel %vm5151, %v5167, %v5135
    %v5184 = vsel %vm5152, %v5168, %v5136
    %v5185 = vsel %vm5153, %v5169, %v5137
    %v5186 = vsel %vm5154, %v5170, %v5138
    %v5187 = vsel %vm5155, %v5171, %v5139
    %v5188 = vsel %vm5156, %v5172, %v5140
    %v5189 = vsel %vm5157, %v5173, %v5141
    %v5190 = vsel %vm5158, %v5174, %v5142
    %v5191 = vsel %vm5159, %v5175, %v5143
    %v5192 = vsel %vm5160, %v5176, %v5144
    %v5193 = vsel %vm5161, %v5177, %v5145
    %v5194 = vsel %vm5162, %v5178, %v5146
    %v5195 = vsel %vm5163, %v5179, %v5147
    %vm5196 = vcmp.eq.s32.totalorder %v5180, 0
    %vm5197 = vcmp.eq.s32.totalorder %v5181, 0
    %vm5198 = vcmp.eq.s32.totalorder %v5182, 0
    %vm5199 = vcmp.eq.s32.totalorder %v5183, 0
    %vm5200 = vcmp.eq.s32.totalorder %v5184, 0
    %vm5201 = vcmp.eq.s32.totalorder %v5185, 0
    %vm5202 = vcmp.eq.s32.totalorder %v5186, 0
    %vm5203 = vcmp.eq.s32.totalorder %v5187, 0
    %vm5204 = vcmp.eq.s32.totalorder %v5188, 0
    %vm5205 = vcmp.eq.s32.totalorder %v5189, 0
    %vm5206 = vcmp.eq.s32.totalorder %v5190, 0
    %vm5207 = vcmp.eq.s32.totalorder %v5191, 0
    %vm5208 = vcmp.eq.s32.totalorder %v5192, 0
    %vm5209 = vcmp.eq.s32.totalorder %v5193, 0
    %vm5210 = vcmp.eq.s32.totalorder %v5194, 0
    %vm5211 = vcmp.eq.s32.totalorder %v5195, 0
    %5212 = vset.pattern.permute.xlu0 5
    %5213 = vperm.xlu0 %5212, %v697
    %v5214 = vpop.permute.xlu0 %5213
    %5216 = vset.pattern.permute.xlu0 5
    %5217 = vperm.xlu0 %5216, %v700
    %v5218 = vpop.permute.xlu0 %5217
    %5220 = vset.pattern.permute.xlu0 5
    %5221 = vperm.xlu0 %5220, %v705
    %v5222 = vpop.permute.xlu0 %5221
    %5224 = vset.pattern.permute.xlu0 5
    %5225 = vperm.xlu0 %5224, %v708
    %v5226 = vpop.permute.xlu0 %5225
    %5228 = vset.pattern.permute.xlu0 5
    %5229 = vperm.xlu0 %5228, %v713
    %v5230 = vpop.permute.xlu0 %5229
    %5232 = vset.pattern.permute.xlu0 5
    %5233 = vperm.xlu0 %5232, %v716
    %v5234 = vpop.permute.xlu0 %5233
    %5236 = vset.pattern.permute.xlu0 5
    %5237 = vperm.xlu0 %5236, %v721
    %v5238 = vpop.permute.xlu0 %5237
    %5240 = vset.pattern.permute.xlu0 5
    %5241 = vperm.xlu0 %5240, %v724
    %v5242 = vpop.permute.xlu0 %5241
    %5244 = vset.pattern.permute.xlu0 5
    %5245 = vperm.xlu0 %5244, %v729
    %v5246 = vpop.permute.xlu0 %5245
    %5248 = vset.pattern.permute.xlu0 5
    %5249 = vperm.xlu0 %5248, %v732
    %v5250 = vpop.permute.xlu0 %5249
    %5252 = vset.pattern.permute.xlu0 5
    %5253 = vperm.xlu0 %5252, %v737
    %v5254 = vpop.permute.xlu0 %5253
    %5256 = vset.pattern.permute.xlu0 5
    %5257 = vperm.xlu0 %5256, %v740
    %v5258 = vpop.permute.xlu0 %5257
    %5260 = vset.pattern.permute.xlu0 5
    %5261 = vperm.xlu0 %5260, %v745
    %v5262 = vpop.permute.xlu0 %5261
    %5264 = vset.pattern.permute.xlu0 5
    %5265 = vperm.xlu0 %5264, %v748
    %v5266 = vpop.permute.xlu0 %5265
    %5268 = vset.pattern.permute.xlu0 5
    %5269 = vperm.xlu0 %5268, %v753
    %v5270 = vpop.permute.xlu0 %5269
    %5272 = vset.pattern.permute.xlu0 5
    %5273 = vperm.xlu0 %5272, %v756
    %v5274 = vpop.permute.xlu0 %5273
    %v5276 = vsel %vm5196, %v5214, 0.0
    %v5277 = vsel %vm5197, %v5218, 0.0
    %v5278 = vsel %vm5198, %v5222, 0.0
    %v5279 = vsel %vm5199, %v5226, 0.0
    %v5280 = vsel %vm5200, %v5230, 0.0
    %v5281 = vsel %vm5201, %v5234, 0.0
    %v5282 = vsel %vm5202, %v5238, 0.0
    %v5283 = vsel %vm5203, %v5242, 0.0
    %v5284 = vsel %vm5204, %v5246, 0.0
    %v5285 = vsel %vm5205, %v5250, 0.0
    %v5286 = vsel %vm5206, %v5254, 0.0
    %v5287 = vsel %vm5207, %v5258, 0.0
    %v5288 = vsel %vm5208, %v5262, 0.0
    %v5289 = vsel %vm5209, %v5266, 0.0
    %v5290 = vsel %vm5210, %v5270, 0.0
    %v5291 = vsel %vm5211, %v5274, 0.0
    %v5292 = vadd.f32 %v5276, 0.0
    %v5293 = vadd.f32 %v5277, 0.0
    %v5294 = vadd.f32 %v5278, 0.0
    %v5295 = vadd.f32 %v5279, 0.0
    %v5296 = vadd.f32 %v5280, 0.0
    %v5297 = vadd.f32 %v5281, 0.0
    %v5298 = vadd.f32 %v5282, 0.0
    %v5299 = vadd.f32 %v5283, 0.0
    %v5300 = vadd.f32 %v5284, 0.0
    %v5301 = vadd.f32 %v5285, 0.0
    %v5302 = vadd.f32 %v5286, 0.0
    %v5303 = vadd.f32 %v5287, 0.0
    %v5304 = vadd.f32 %v5288, 0.0
    %v5305 = vadd.f32 %v5289, 0.0
    %v5306 = vadd.f32 %v5290, 0.0
    %v5307 = vadd.f32 %v5291, 0.0
    %5308 = vset.pattern.permute.xlu0 17
    %5309 = vperm.xlu0 %5308, %v697
    %v5310 = vpop.permute.xlu0 %5309
    %5312 = vset.pattern.permute.xlu0 17
    %5313 = vperm.xlu0 %5312, %v700
    %v5314 = vpop.permute.xlu0 %5313
    %5316 = vset.pattern.permute.xlu0 17
    %5317 = vperm.xlu0 %5316, %v705
    %v5318 = vpop.permute.xlu0 %5317
    %5320 = vset.pattern.permute.xlu0 17
    %5321 = vperm.xlu0 %5320, %v708
    %v5322 = vpop.permute.xlu0 %5321
    %5324 = vset.pattern.permute.xlu0 17
    %5325 = vperm.xlu0 %5324, %v713
    %v5326 = vpop.permute.xlu0 %5325
    %5328 = vset.pattern.permute.xlu0 17
    %5329 = vperm.xlu0 %5328, %v716
    %v5330 = vpop.permute.xlu0 %5329
    %5332 = vset.pattern.permute.xlu0 17
    %5333 = vperm.xlu0 %5332, %v721
    %v5334 = vpop.permute.xlu0 %5333
    %5336 = vset.pattern.permute.xlu0 17
    %5337 = vperm.xlu0 %5336, %v724
    %v5338 = vpop.permute.xlu0 %5337
    %5340 = vset.pattern.permute.xlu0 17
    %5341 = vperm.xlu0 %5340, %v729
    %v5342 = vpop.permute.xlu0 %5341
    %5344 = vset.pattern.permute.xlu0 17
    %5345 = vperm.xlu0 %5344, %v732
    %v5346 = vpop.permute.xlu0 %5345
    %5348 = vset.pattern.permute.xlu0 17
    %5349 = vperm.xlu0 %5348, %v737
    %v5350 = vpop.permute.xlu0 %5349
    %5352 = vset.pattern.permute.xlu0 17
    %5353 = vperm.xlu0 %5352, %v740
    %v5354 = vpop.permute.xlu0 %5353
    %5356 = vset.pattern.permute.xlu0 17
    %5357 = vperm.xlu0 %5356, %v745
    %v5358 = vpop.permute.xlu0 %5357
    %5360 = vset.pattern.permute.xlu0 17
    %5361 = vperm.xlu0 %5360, %v748
    %v5362 = vpop.permute.xlu0 %5361
    %5364 = vset.pattern.permute.xlu0 17
    %5365 = vperm.xlu0 %5364, %v753
    %v5366 = vpop.permute.xlu0 %5365
    %5368 = vset.pattern.permute.xlu0 17
    %5369 = vperm.xlu0 %5368, %v756
    %v5370 = vpop.permute.xlu0 %5369
    %v5372 = vsel %vm5196, %v5310, 0.0
    %v5373 = vsel %vm5197, %v5314, 0.0
    %v5374 = vsel %vm5198, %v5318, 0.0
    %v5375 = vsel %vm5199, %v5322, 0.0
    %v5376 = vsel %vm5200, %v5326, 0.0
    %v5377 = vsel %vm5201, %v5330, 0.0
    %v5378 = vsel %vm5202, %v5334, 0.0
    %v5379 = vsel %vm5203, %v5338, 0.0
    %v5380 = vsel %vm5204, %v5342, 0.0
    %v5381 = vsel %vm5205, %v5346, 0.0
    %v5382 = vsel %vm5206, %v5350, 0.0
    %v5383 = vsel %vm5207, %v5354, 0.0
    %v5384 = vsel %vm5208, %v5358, 0.0
    %v5385 = vsel %vm5209, %v5362, 0.0
    %v5386 = vsel %vm5210, %v5366, 0.0
    %v5387 = vsel %vm5211, %v5370, 0.0
    %v5388 = vadd.f32 %v5372, 0.0
    %v5389 = vadd.f32 %v5373, 0.0
    %v5390 = vadd.f32 %v5374, 0.0
    %v5391 = vadd.f32 %v5375, 0.0
    %v5392 = vadd.f32 %v5376, 0.0
    %v5393 = vadd.f32 %v5377, 0.0
    %v5394 = vadd.f32 %v5378, 0.0
    %v5395 = vadd.f32 %v5379, 0.0
    %v5396 = vadd.f32 %v5380, 0.0
    %v5397 = vadd.f32 %v5381, 0.0
    %v5398 = vadd.f32 %v5382, 0.0
    %v5399 = vadd.f32 %v5383, 0.0
    %v5400 = vadd.f32 %v5384, 0.0
    %v5401 = vadd.f32 %v5385, 0.0
    %v5402 = vadd.f32 %v5386, 0.0
    %v5403 = vadd.f32 %v5387, 0.0
    %vm5404 = vcmp.eq.s32.totalorder %v5180, 1
    %vm5405 = vcmp.eq.s32.totalorder %v5181, 1
    %vm5406 = vcmp.eq.s32.totalorder %v5182, 1
    %vm5407 = vcmp.eq.s32.totalorder %v5183, 1
    %vm5408 = vcmp.eq.s32.totalorder %v5184, 1
    %vm5409 = vcmp.eq.s32.totalorder %v5185, 1
    %vm5410 = vcmp.eq.s32.totalorder %v5186, 1
    %vm5411 = vcmp.eq.s32.totalorder %v5187, 1
    %vm5412 = vcmp.eq.s32.totalorder %v5188, 1
    %vm5413 = vcmp.eq.s32.totalorder %v5189, 1
    %vm5414 = vcmp.eq.s32.totalorder %v5190, 1
    %vm5415 = vcmp.eq.s32.totalorder %v5191, 1
    %vm5416 = vcmp.eq.s32.totalorder %v5192, 1
    %vm5417 = vcmp.eq.s32.totalorder %v5193, 1
    %vm5418 = vcmp.eq.s32.totalorder %v5194, 1
    %vm5419 = vcmp.eq.s32.totalorder %v5195, 1
    %5420 = vset.pattern.permute.xlu0 6
    %5421 = vperm.xlu0 %5420, %v697
    %v5422 = vpop.permute.xlu0 %5421
    %5424 = vset.pattern.permute.xlu0 6
    %5425 = vperm.xlu0 %5424, %v700
    %v5426 = vpop.permute.xlu0 %5425
    %5428 = vset.pattern.permute.xlu0 6
    %5429 = vperm.xlu0 %5428, %v705
    %v5430 = vpop.permute.xlu0 %5429
    %5432 = vset.pattern.permute.xlu0 6
    %5433 = vperm.xlu0 %5432, %v708
    %v5434 = vpop.permute.xlu0 %5433
    %5436 = vset.pattern.permute.xlu0 6
    %5437 = vperm.xlu0 %5436, %v713
    %v5438 = vpop.permute.xlu0 %5437
    %5440 = vset.pattern.permute.xlu0 6
    %5441 = vperm.xlu0 %5440, %v716
    %v5442 = vpop.permute.xlu0 %5441
    %5444 = vset.pattern.permute.xlu0 6
    %5445 = vperm.xlu0 %5444, %v721
    %v5446 = vpop.permute.xlu0 %5445
    %5448 = vset.pattern.permute.xlu0 6
    %5449 = vperm.xlu0 %5448, %v724
    %v5450 = vpop.permute.xlu0 %5449
    %5452 = vset.pattern.permute.xlu0 6
    %5453 = vperm.xlu0 %5452, %v729
    %v5454 = vpop.permute.xlu0 %5453
    %5456 = vset.pattern.permute.xlu0 6
    %5457 = vperm.xlu0 %5456, %v732
    %v5458 = vpop.permute.xlu0 %5457
    %5460 = vset.pattern.permute.xlu0 6
    %5461 = vperm.xlu0 %5460, %v737
    %v5462 = vpop.permute.xlu0 %5461
    %5464 = vset.pattern.permute.xlu0 6
    %5465 = vperm.xlu0 %5464, %v740
    %v5466 = vpop.permute.xlu0 %5465
    %5468 = vset.pattern.permute.xlu0 6
    %5469 = vperm.xlu0 %5468, %v745
    %v5470 = vpop.permute.xlu0 %5469
    %5472 = vset.pattern.permute.xlu0 6
    %5473 = vperm.xlu0 %5472, %v748
    %v5474 = vpop.permute.xlu0 %5473
    %5476 = vset.pattern.permute.xlu0 6
    %5477 = vperm.xlu0 %5476, %v753
    %v5478 = vpop.permute.xlu0 %5477
    %5480 = vset.pattern.permute.xlu0 6
    %5481 = vperm.xlu0 %5480, %v756
    %v5482 = vpop.permute.xlu0 %5481
    %v5484 = vsel %vm5404, %v5422, 0.0
    %v5485 = vsel %vm5405, %v5426, 0.0
    %v5486 = vsel %vm5406, %v5430, 0.0
    %v5487 = vsel %vm5407, %v5434, 0.0
    %v5488 = vsel %vm5408, %v5438, 0.0
    %v5489 = vsel %vm5409, %v5442, 0.0
    %v5490 = vsel %vm5410, %v5446, 0.0
    %v5491 = vsel %vm5411, %v5450, 0.0
    %v5492 = vsel %vm5412, %v5454, 0.0
    %v5493 = vsel %vm5413, %v5458, 0.0
    %v5494 = vsel %vm5414, %v5462, 0.0
    %v5495 = vsel %vm5415, %v5466, 0.0
    %v5496 = vsel %vm5416, %v5470, 0.0
    %v5497 = vsel %vm5417, %v5474, 0.0
    %v5498 = vsel %vm5418, %v5478, 0.0
    %v5499 = vsel %vm5419, %v5482, 0.0
    %v5500 = vadd.f32 %v5292, %v5484
    %v5501 = vadd.f32 %v5293, %v5485
    %v5502 = vadd.f32 %v5294, %v5486
    %v5503 = vadd.f32 %v5295, %v5487
    %v5504 = vadd.f32 %v5296, %v5488
    %v5505 = vadd.f32 %v5297, %v5489
    %v5506 = vadd.f32 %v5298, %v5490
    %v5507 = vadd.f32 %v5299, %v5491
    %v5508 = vadd.f32 %v5300, %v5492
    %v5509 = vadd.f32 %v5301, %v5493
    %v5510 = vadd.f32 %v5302, %v5494
    %v5511 = vadd.f32 %v5303, %v5495
    %v5512 = vadd.f32 %v5304, %v5496
    %v5513 = vadd.f32 %v5305, %v5497
    %v5514 = vadd.f32 %v5306, %v5498
    %v5515 = vadd.f32 %v5307, %v5499
    %5516 = vset.pattern.permute.xlu0 18
    %5517 = vperm.xlu0 %5516, %v697
    %v5518 = vpop.permute.xlu0 %5517
    %5520 = vset.pattern.permute.xlu0 18
    %5521 = vperm.xlu0 %5520, %v700
    %v5522 = vpop.permute.xlu0 %5521
    %5524 = vset.pattern.permute.xlu0 18
    %5525 = vperm.xlu0 %5524, %v705
    %v5526 = vpop.permute.xlu0 %5525
    %5528 = vset.pattern.permute.xlu0 18
    %5529 = vperm.xlu0 %5528, %v708
    %v5530 = vpop.permute.xlu0 %5529
    %5532 = vset.pattern.permute.xlu0 18
    %5533 = vperm.xlu0 %5532, %v713
    %v5534 = vpop.permute.xlu0 %5533
    %5536 = vset.pattern.permute.xlu0 18
    %5537 = vperm.xlu0 %5536, %v716
    %v5538 = vpop.permute.xlu0 %5537
    %5540 = vset.pattern.permute.xlu0 18
    %5541 = vperm.xlu0 %5540, %v721
    %v5542 = vpop.permute.xlu0 %5541
    %5544 = vset.pattern.permute.xlu0 18
    %5545 = vperm.xlu0 %5544, %v724
    %v5546 = vpop.permute.xlu0 %5545
    %5548 = vset.pattern.permute.xlu0 18
    %5549 = vperm.xlu0 %5548, %v729
    %v5550 = vpop.permute.xlu0 %5549
    %5552 = vset.pattern.permute.xlu0 18
    %5553 = vperm.xlu0 %5552, %v732
    %v5554 = vpop.permute.xlu0 %5553
    %5556 = vset.pattern.permute.xlu0 18
    %5557 = vperm.xlu0 %5556, %v737
    %v5558 = vpop.permute.xlu0 %5557
    %5560 = vset.pattern.permute.xlu0 18
    %5561 = vperm.xlu0 %5560, %v740
    %v5562 = vpop.permute.xlu0 %5561
    %5564 = vset.pattern.permute.xlu0 18
    %5565 = vperm.xlu0 %5564, %v745
    %v5566 = vpop.permute.xlu0 %5565
    %5568 = vset.pattern.permute.xlu0 18
    %5569 = vperm.xlu0 %5568, %v748
    %v5570 = vpop.permute.xlu0 %5569
    %5572 = vset.pattern.permute.xlu0 18
    %5573 = vperm.xlu0 %5572, %v753
    %v5574 = vpop.permute.xlu0 %5573
    %5576 = vset.pattern.permute.xlu0 18
    %5577 = vperm.xlu0 %5576, %v756
    %v5578 = vpop.permute.xlu0 %5577
    %v5580 = vsel %vm5404, %v5518, 0.0
    %v5581 = vsel %vm5405, %v5522, 0.0
    %v5582 = vsel %vm5406, %v5526, 0.0
    %v5583 = vsel %vm5407, %v5530, 0.0
    %v5584 = vsel %vm5408, %v5534, 0.0
    %v5585 = vsel %vm5409, %v5538, 0.0
    %v5586 = vsel %vm5410, %v5542, 0.0
    %v5587 = vsel %vm5411, %v5546, 0.0
    %v5588 = vsel %vm5412, %v5550, 0.0
    %v5589 = vsel %vm5413, %v5554, 0.0
    %v5590 = vsel %vm5414, %v5558, 0.0
    %v5591 = vsel %vm5415, %v5562, 0.0
    %v5592 = vsel %vm5416, %v5566, 0.0
    %v5593 = vsel %vm5417, %v5570, 0.0
    %v5594 = vsel %vm5418, %v5574, 0.0
    %v5595 = vsel %vm5419, %v5578, 0.0
    %v5596 = vadd.f32 %v5388, %v5580
    %v5597 = vadd.f32 %v5389, %v5581
    %v5598 = vadd.f32 %v5390, %v5582
    %v5599 = vadd.f32 %v5391, %v5583
    %v5600 = vadd.f32 %v5392, %v5584
    %v5601 = vadd.f32 %v5393, %v5585
    %v5602 = vadd.f32 %v5394, %v5586
    %v5603 = vadd.f32 %v5395, %v5587
    %v5604 = vadd.f32 %v5396, %v5588
    %v5605 = vadd.f32 %v5397, %v5589
    %v5606 = vadd.f32 %v5398, %v5590
    %v5607 = vadd.f32 %v5399, %v5591
    %v5608 = vadd.f32 %v5400, %v5592
    %v5609 = vadd.f32 %v5401, %v5593
    %v5610 = vadd.f32 %v5402, %v5594
    %v5611 = vadd.f32 %v5403, %v5595
    %vm5612 = vcmp.eq.s32.totalorder %v5180, 2
    %vm5613 = vcmp.eq.s32.totalorder %v5181, 2
    %vm5614 = vcmp.eq.s32.totalorder %v5182, 2
    %vm5615 = vcmp.eq.s32.totalorder %v5183, 2
    %vm5616 = vcmp.eq.s32.totalorder %v5184, 2
    %vm5617 = vcmp.eq.s32.totalorder %v5185, 2
    %vm5618 = vcmp.eq.s32.totalorder %v5186, 2
    %vm5619 = vcmp.eq.s32.totalorder %v5187, 2
    %vm5620 = vcmp.eq.s32.totalorder %v5188, 2
    %vm5621 = vcmp.eq.s32.totalorder %v5189, 2
    %vm5622 = vcmp.eq.s32.totalorder %v5190, 2
    %vm5623 = vcmp.eq.s32.totalorder %v5191, 2
    %vm5624 = vcmp.eq.s32.totalorder %v5192, 2
    %vm5625 = vcmp.eq.s32.totalorder %v5193, 2
    %vm5626 = vcmp.eq.s32.totalorder %v5194, 2
    %vm5627 = vcmp.eq.s32.totalorder %v5195, 2
    %5628 = vset.pattern.permute.xlu0 7
    %5629 = vperm.xlu0 %5628, %v697
    %v5630 = vpop.permute.xlu0 %5629
    %5632 = vset.pattern.permute.xlu0 7
    %5633 = vperm.xlu0 %5632, %v700
    %v5634 = vpop.permute.xlu0 %5633
    %5636 = vset.pattern.permute.xlu0 7
    %5637 = vperm.xlu0 %5636, %v705
    %v5638 = vpop.permute.xlu0 %5637
    %5640 = vset.pattern.permute.xlu0 7
    %5641 = vperm.xlu0 %5640, %v708
    %v5642 = vpop.permute.xlu0 %5641
    %5644 = vset.pattern.permute.xlu0 7
    %5645 = vperm.xlu0 %5644, %v713
    %v5646 = vpop.permute.xlu0 %5645
    %5648 = vset.pattern.permute.xlu0 7
    %5649 = vperm.xlu0 %5648, %v716
    %v5650 = vpop.permute.xlu0 %5649
    %5652 = vset.pattern.permute.xlu0 7
    %5653 = vperm.xlu0 %5652, %v721
    %v5654 = vpop.permute.xlu0 %5653
    %5656 = vset.pattern.permute.xlu0 7
    %5657 = vperm.xlu0 %5656, %v724
    %v5658 = vpop.permute.xlu0 %5657
    %5660 = vset.pattern.permute.xlu0 7
    %5661 = vperm.xlu0 %5660, %v729
    %v5662 = vpop.permute.xlu0 %5661
    %5664 = vset.pattern.permute.xlu0 7
    %5665 = vperm.xlu0 %5664, %v732
    %v5666 = vpop.permute.xlu0 %5665
    %5668 = vset.pattern.permute.xlu0 7
    %5669 = vperm.xlu0 %5668, %v737
    %v5670 = vpop.permute.xlu0 %5669
    %5672 = vset.pattern.permute.xlu0 7
    %5673 = vperm.xlu0 %5672, %v740
    %v5674 = vpop.permute.xlu0 %5673
    %5676 = vset.pattern.permute.xlu0 7
    %5677 = vperm.xlu0 %5676, %v745
    %v5678 = vpop.permute.xlu0 %5677
    %5680 = vset.pattern.permute.xlu0 7
    %5681 = vperm.xlu0 %5680, %v748
    %v5682 = vpop.permute.xlu0 %5681
    %5684 = vset.pattern.permute.xlu0 7
    %5685 = vperm.xlu0 %5684, %v753
    %v5686 = vpop.permute.xlu0 %5685
    %5688 = vset.pattern.permute.xlu0 7
    %5689 = vperm.xlu0 %5688, %v756
    %v5690 = vpop.permute.xlu0 %5689
    %v5692 = vsel %vm5612, %v5630, 0.0
    %v5693 = vsel %vm5613, %v5634, 0.0
    %v5694 = vsel %vm5614, %v5638, 0.0
    %v5695 = vsel %vm5615, %v5642, 0.0
    %v5696 = vsel %vm5616, %v5646, 0.0
    %v5697 = vsel %vm5617, %v5650, 0.0
    %v5698 = vsel %vm5618, %v5654, 0.0
    %v5699 = vsel %vm5619, %v5658, 0.0
    %v5700 = vsel %vm5620, %v5662, 0.0
    %v5701 = vsel %vm5621, %v5666, 0.0
    %v5702 = vsel %vm5622, %v5670, 0.0
    %v5703 = vsel %vm5623, %v5674, 0.0
    %v5704 = vsel %vm5624, %v5678, 0.0
    %v5705 = vsel %vm5625, %v5682, 0.0
    %v5706 = vsel %vm5626, %v5686, 0.0
    %v5707 = vsel %vm5627, %v5690, 0.0
    %v5708 = vadd.f32 %v5500, %v5692
    %v5709 = vadd.f32 %v5501, %v5693
    %v5710 = vadd.f32 %v5502, %v5694
    %v5711 = vadd.f32 %v5503, %v5695
    %v5712 = vadd.f32 %v5504, %v5696
    %v5713 = vadd.f32 %v5505, %v5697
    %v5714 = vadd.f32 %v5506, %v5698
    %v5715 = vadd.f32 %v5507, %v5699
    %v5716 = vadd.f32 %v5508, %v5700
    %v5717 = vadd.f32 %v5509, %v5701
    %v5718 = vadd.f32 %v5510, %v5702
    %v5719 = vadd.f32 %v5511, %v5703
    %v5720 = vadd.f32 %v5512, %v5704
    %v5721 = vadd.f32 %v5513, %v5705
    %v5722 = vadd.f32 %v5514, %v5706
    %v5723 = vadd.f32 %v5515, %v5707
    %5724 = vset.pattern.permute.xlu0 19
    %5725 = vperm.xlu0 %5724, %v697
    %v5726 = vpop.permute.xlu0 %5725
    %5728 = vset.pattern.permute.xlu0 19
    %5729 = vperm.xlu0 %5728, %v700
    %v5730 = vpop.permute.xlu0 %5729
    %5732 = vset.pattern.permute.xlu0 19
    %5733 = vperm.xlu0 %5732, %v705
    %v5734 = vpop.permute.xlu0 %5733
    %5736 = vset.pattern.permute.xlu0 19
    %5737 = vperm.xlu0 %5736, %v708
    %v5738 = vpop.permute.xlu0 %5737
    %5740 = vset.pattern.permute.xlu0 19
    %5741 = vperm.xlu0 %5740, %v713
    %v5742 = vpop.permute.xlu0 %5741
    %5744 = vset.pattern.permute.xlu0 19
    %5745 = vperm.xlu0 %5744, %v716
    %v5746 = vpop.permute.xlu0 %5745
    %5748 = vset.pattern.permute.xlu0 19
    %5749 = vperm.xlu0 %5748, %v721
    %v5750 = vpop.permute.xlu0 %5749
    %5752 = vset.pattern.permute.xlu0 19
    %5753 = vperm.xlu0 %5752, %v724
    %v5754 = vpop.permute.xlu0 %5753
    %5756 = vset.pattern.permute.xlu0 19
    %5757 = vperm.xlu0 %5756, %v729
    %v5758 = vpop.permute.xlu0 %5757
    %5760 = vset.pattern.permute.xlu0 19
    %5761 = vperm.xlu0 %5760, %v732
    %v5762 = vpop.permute.xlu0 %5761
    %5764 = vset.pattern.permute.xlu0 19
    %5765 = vperm.xlu0 %5764, %v737
    %v5766 = vpop.permute.xlu0 %5765
    %5768 = vset.pattern.permute.xlu0 19
    %5769 = vperm.xlu0 %5768, %v740
    %v5770 = vpop.permute.xlu0 %5769
    %5772 = vset.pattern.permute.xlu0 19
    %5773 = vperm.xlu0 %5772, %v745
    %v5774 = vpop.permute.xlu0 %5773
    %5776 = vset.pattern.permute.xlu0 19
    %5777 = vperm.xlu0 %5776, %v748
    %v5778 = vpop.permute.xlu0 %5777
    %5780 = vset.pattern.permute.xlu0 19
    %5781 = vperm.xlu0 %5780, %v753
    %v5782 = vpop.permute.xlu0 %5781
    %5784 = vset.pattern.permute.xlu0 19
    %5785 = vperm.xlu0 %5784, %v756
    %v5786 = vpop.permute.xlu0 %5785
    %v5788 = vsel %vm5612, %v5726, 0.0
    %v5789 = vsel %vm5613, %v5730, 0.0
    %v5790 = vsel %vm5614, %v5734, 0.0
    %v5791 = vsel %vm5615, %v5738, 0.0
    %v5792 = vsel %vm5616, %v5742, 0.0
    %v5793 = vsel %vm5617, %v5746, 0.0
    %v5794 = vsel %vm5618, %v5750, 0.0
    %v5795 = vsel %vm5619, %v5754, 0.0
    %v5796 = vsel %vm5620, %v5758, 0.0
    %v5797 = vsel %vm5621, %v5762, 0.0
    %v5798 = vsel %vm5622, %v5766, 0.0
    %v5799 = vsel %vm5623, %v5770, 0.0
    %v5800 = vsel %vm5624, %v5774, 0.0
    %v5801 = vsel %vm5625, %v5778, 0.0
    %v5802 = vsel %vm5626, %v5782, 0.0
    %v5803 = vsel %vm5627, %v5786, 0.0
    %v5804 = vadd.f32 %v5596, %v5788
    %v5805 = vadd.f32 %v5597, %v5789
    %v5806 = vadd.f32 %v5598, %v5790
    %v5807 = vadd.f32 %v5599, %v5791
    %v5808 = vadd.f32 %v5600, %v5792
    %v5809 = vadd.f32 %v5601, %v5793
    %v5810 = vadd.f32 %v5602, %v5794
    %v5811 = vadd.f32 %v5603, %v5795
    %v5812 = vadd.f32 %v5604, %v5796
    %v5813 = vadd.f32 %v5605, %v5797
    %v5814 = vadd.f32 %v5606, %v5798
    %v5815 = vadd.f32 %v5607, %v5799
    %v5816 = vadd.f32 %v5608, %v5800
    %v5817 = vadd.f32 %v5609, %v5801
    %v5818 = vadd.f32 %v5610, %v5802
    %v5819 = vadd.f32 %v5611, %v5803
    %vm5820 = vcmp.eq.s32.totalorder %v5180, 3
    %vm5821 = vcmp.eq.s32.totalorder %v5181, 3
    %vm5822 = vcmp.eq.s32.totalorder %v5182, 3
    %vm5823 = vcmp.eq.s32.totalorder %v5183, 3
    %vm5824 = vcmp.eq.s32.totalorder %v5184, 3
    %vm5825 = vcmp.eq.s32.totalorder %v5185, 3
    %vm5826 = vcmp.eq.s32.totalorder %v5186, 3
    %vm5827 = vcmp.eq.s32.totalorder %v5187, 3
    %vm5828 = vcmp.eq.s32.totalorder %v5188, 3
    %vm5829 = vcmp.eq.s32.totalorder %v5189, 3
    %vm5830 = vcmp.eq.s32.totalorder %v5190, 3
    %vm5831 = vcmp.eq.s32.totalorder %v5191, 3
    %vm5832 = vcmp.eq.s32.totalorder %v5192, 3
    %vm5833 = vcmp.eq.s32.totalorder %v5193, 3
    %vm5834 = vcmp.eq.s32.totalorder %v5194, 3
    %vm5835 = vcmp.eq.s32.totalorder %v5195, 3
    %5836 = vset.pattern.permute.xlu0 8
    %5837 = vperm.xlu0 %5836, %v697
    %v5838 = vpop.permute.xlu0 %5837
    %5840 = vset.pattern.permute.xlu0 8
    %5841 = vperm.xlu0 %5840, %v700
    %v5842 = vpop.permute.xlu0 %5841
    %5844 = vset.pattern.permute.xlu0 8
    %5845 = vperm.xlu0 %5844, %v705
    %v5846 = vpop.permute.xlu0 %5845
    %5848 = vset.pattern.permute.xlu0 8
    %5849 = vperm.xlu0 %5848, %v708
    %v5850 = vpop.permute.xlu0 %5849
    %5852 = vset.pattern.permute.xlu0 8
    %5853 = vperm.xlu0 %5852, %v713
    %v5854 = vpop.permute.xlu0 %5853
    %5856 = vset.pattern.permute.xlu0 8
    %5857 = vperm.xlu0 %5856, %v716
    %v5858 = vpop.permute.xlu0 %5857
    %5860 = vset.pattern.permute.xlu0 8
    %5861 = vperm.xlu0 %5860, %v721
    %v5862 = vpop.permute.xlu0 %5861
    %5864 = vset.pattern.permute.xlu0 8
    %5865 = vperm.xlu0 %5864, %v724
    %v5866 = vpop.permute.xlu0 %5865
    %5868 = vset.pattern.permute.xlu0 8
    %5869 = vperm.xlu0 %5868, %v729
    %v5870 = vpop.permute.xlu0 %5869
    %5872 = vset.pattern.permute.xlu0 8
    %5873 = vperm.xlu0 %5872, %v732
    %v5874 = vpop.permute.xlu0 %5873
    %5876 = vset.pattern.permute.xlu0 8
    %5877 = vperm.xlu0 %5876, %v737
    %v5878 = vpop.permute.xlu0 %5877
    %5880 = vset.pattern.permute.xlu0 8
    %5881 = vperm.xlu0 %5880, %v740
    %v5882 = vpop.permute.xlu0 %5881
    %5884 = vset.pattern.permute.xlu0 8
    %5885 = vperm.xlu0 %5884, %v745
    %v5886 = vpop.permute.xlu0 %5885
    %5888 = vset.pattern.permute.xlu0 8
    %5889 = vperm.xlu0 %5888, %v748
    %v5890 = vpop.permute.xlu0 %5889
    %5892 = vset.pattern.permute.xlu0 8
    %5893 = vperm.xlu0 %5892, %v753
    %v5894 = vpop.permute.xlu0 %5893
    %5896 = vset.pattern.permute.xlu0 8
    %5897 = vperm.xlu0 %5896, %v756
    %v5898 = vpop.permute.xlu0 %5897
    %v5900 = vsel %vm5820, %v5838, 0.0
    %v5901 = vsel %vm5821, %v5842, 0.0
    %v5902 = vsel %vm5822, %v5846, 0.0
    %v5903 = vsel %vm5823, %v5850, 0.0
    %v5904 = vsel %vm5824, %v5854, 0.0
    %v5905 = vsel %vm5825, %v5858, 0.0
    %v5906 = vsel %vm5826, %v5862, 0.0
    %v5907 = vsel %vm5827, %v5866, 0.0
    %v5908 = vsel %vm5828, %v5870, 0.0
    %v5909 = vsel %vm5829, %v5874, 0.0
    %v5910 = vsel %vm5830, %v5878, 0.0
    %v5911 = vsel %vm5831, %v5882, 0.0
    %v5912 = vsel %vm5832, %v5886, 0.0
    %v5913 = vsel %vm5833, %v5890, 0.0
    %v5914 = vsel %vm5834, %v5894, 0.0
    %v5915 = vsel %vm5835, %v5898, 0.0
    %v5916 = vadd.f32 %v5708, %v5900
    %v5917 = vadd.f32 %v5709, %v5901
    %v5918 = vadd.f32 %v5710, %v5902
    %v5919 = vadd.f32 %v5711, %v5903
    %v5920 = vadd.f32 %v5712, %v5904
    %v5921 = vadd.f32 %v5713, %v5905
    %v5922 = vadd.f32 %v5714, %v5906
    %v5923 = vadd.f32 %v5715, %v5907
    %v5924 = vadd.f32 %v5716, %v5908
    %v5925 = vadd.f32 %v5717, %v5909
    %v5926 = vadd.f32 %v5718, %v5910
    %v5927 = vadd.f32 %v5719, %v5911
    %v5928 = vadd.f32 %v5720, %v5912
    %v5929 = vadd.f32 %v5721, %v5913
    %v5930 = vadd.f32 %v5722, %v5914
    %v5931 = vadd.f32 %v5723, %v5915
    %5932 = vset.pattern.permute.xlu0 20
    %5933 = vperm.xlu0 %5932, %v697
    %v5934 = vpop.permute.xlu0 %5933
    %5936 = vset.pattern.permute.xlu0 20
    %5937 = vperm.xlu0 %5936, %v700
    %v5938 = vpop.permute.xlu0 %5937
    %5940 = vset.pattern.permute.xlu0 20
    %5941 = vperm.xlu0 %5940, %v705
    %v5942 = vpop.permute.xlu0 %5941
    %5944 = vset.pattern.permute.xlu0 20
    %5945 = vperm.xlu0 %5944, %v708
    %v5946 = vpop.permute.xlu0 %5945
    %5948 = vset.pattern.permute.xlu0 20
    %5949 = vperm.xlu0 %5948, %v713
    %v5950 = vpop.permute.xlu0 %5949
    %5952 = vset.pattern.permute.xlu0 20
    %5953 = vperm.xlu0 %5952, %v716
    %v5954 = vpop.permute.xlu0 %5953
    %5956 = vset.pattern.permute.xlu0 20
    %5957 = vperm.xlu0 %5956, %v721
    %v5958 = vpop.permute.xlu0 %5957
    %5960 = vset.pattern.permute.xlu0 20
    %5961 = vperm.xlu0 %5960, %v724
    %v5962 = vpop.permute.xlu0 %5961
    %5964 = vset.pattern.permute.xlu0 20
    %5965 = vperm.xlu0 %5964, %v729
    %v5966 = vpop.permute.xlu0 %5965
    %5968 = vset.pattern.permute.xlu0 20
    %5969 = vperm.xlu0 %5968, %v732
    %v5970 = vpop.permute.xlu0 %5969
    %5972 = vset.pattern.permute.xlu0 20
    %5973 = vperm.xlu0 %5972, %v737
    %v5974 = vpop.permute.xlu0 %5973
    %5976 = vset.pattern.permute.xlu0 20
    %5977 = vperm.xlu0 %5976, %v740
    %v5978 = vpop.permute.xlu0 %5977
    %5980 = vset.pattern.permute.xlu0 20
    %5981 = vperm.xlu0 %5980, %v745
    %v5982 = vpop.permute.xlu0 %5981
    %5984 = vset.pattern.permute.xlu0 20
    %5985 = vperm.xlu0 %5984, %v748
    %v5986 = vpop.permute.xlu0 %5985
    %5988 = vset.pattern.permute.xlu0 20
    %5989 = vperm.xlu0 %5988, %v753
    %v5990 = vpop.permute.xlu0 %5989
    %5992 = vset.pattern.permute.xlu0 20
    %5993 = vperm.xlu0 %5992, %v756
    %v5994 = vpop.permute.xlu0 %5993
    %v5996 = vsel %vm5820, %v5934, 0.0
    %v5997 = vsel %vm5821, %v5938, 0.0
    %v5998 = vsel %vm5822, %v5942, 0.0
    %v5999 = vsel %vm5823, %v5946, 0.0
    %v6000 = vsel %vm5824, %v5950, 0.0
    %v6001 = vsel %vm5825, %v5954, 0.0
    %v6002 = vsel %vm5826, %v5958, 0.0
    %v6003 = vsel %vm5827, %v5962, 0.0
    %v6004 = vsel %vm5828, %v5966, 0.0
    %v6005 = vsel %vm5829, %v5970, 0.0
    %v6006 = vsel %vm5830, %v5974, 0.0
    %v6007 = vsel %vm5831, %v5978, 0.0
    %v6008 = vsel %vm5832, %v5982, 0.0
    %v6009 = vsel %vm5833, %v5986, 0.0
    %v6010 = vsel %vm5834, %v5990, 0.0
    %v6011 = vsel %vm5835, %v5994, 0.0
    %v6012 = vadd.f32 %v5804, %v5996
    %v6013 = vadd.f32 %v5805, %v5997
    %v6014 = vadd.f32 %v5806, %v5998
    %v6015 = vadd.f32 %v5807, %v5999
    %v6016 = vadd.f32 %v5808, %v6000
    %v6017 = vadd.f32 %v5809, %v6001
    %v6018 = vadd.f32 %v5810, %v6002
    %v6019 = vadd.f32 %v5811, %v6003
    %v6020 = vadd.f32 %v5812, %v6004
    %v6021 = vadd.f32 %v5813, %v6005
    %v6022 = vadd.f32 %v5814, %v6006
    %v6023 = vadd.f32 %v5815, %v6007
    %v6024 = vadd.f32 %v5816, %v6008
    %v6025 = vadd.f32 %v5817, %v6009
    %v6026 = vadd.f32 %v5818, %v6010
    %v6027 = vadd.f32 %v5819, %v6011
    %vm6028 = vcmp.eq.s32.totalorder %v5180, 4
    %vm6029 = vcmp.eq.s32.totalorder %v5181, 4
    %vm6030 = vcmp.eq.s32.totalorder %v5182, 4
    %vm6031 = vcmp.eq.s32.totalorder %v5183, 4
    %vm6032 = vcmp.eq.s32.totalorder %v5184, 4
    %vm6033 = vcmp.eq.s32.totalorder %v5185, 4
    %vm6034 = vcmp.eq.s32.totalorder %v5186, 4
    %vm6035 = vcmp.eq.s32.totalorder %v5187, 4
    %vm6036 = vcmp.eq.s32.totalorder %v5188, 4
    %vm6037 = vcmp.eq.s32.totalorder %v5189, 4
    %vm6038 = vcmp.eq.s32.totalorder %v5190, 4
    %vm6039 = vcmp.eq.s32.totalorder %v5191, 4
    %vm6040 = vcmp.eq.s32.totalorder %v5192, 4
    %vm6041 = vcmp.eq.s32.totalorder %v5193, 4
    %vm6042 = vcmp.eq.s32.totalorder %v5194, 4
    %vm6043 = vcmp.eq.s32.totalorder %v5195, 4
    %6044 = vset.pattern.permute.xlu0 9
    %6045 = vperm.xlu0 %6044, %v697
    %v6046 = vpop.permute.xlu0 %6045
    %6048 = vset.pattern.permute.xlu0 9
    %6049 = vperm.xlu0 %6048, %v700
    %v6050 = vpop.permute.xlu0 %6049
    %6052 = vset.pattern.permute.xlu0 9
    %6053 = vperm.xlu0 %6052, %v705
    %v6054 = vpop.permute.xlu0 %6053
    %6056 = vset.pattern.permute.xlu0 9
    %6057 = vperm.xlu0 %6056, %v708
    %v6058 = vpop.permute.xlu0 %6057
    %6060 = vset.pattern.permute.xlu0 9
    %6061 = vperm.xlu0 %6060, %v713
    %v6062 = vpop.permute.xlu0 %6061
    %6064 = vset.pattern.permute.xlu0 9
    %6065 = vperm.xlu0 %6064, %v716
    %v6066 = vpop.permute.xlu0 %6065
    %6068 = vset.pattern.permute.xlu0 9
    %6069 = vperm.xlu0 %6068, %v721
    %v6070 = vpop.permute.xlu0 %6069
    %6072 = vset.pattern.permute.xlu0 9
    %6073 = vperm.xlu0 %6072, %v724
    %v6074 = vpop.permute.xlu0 %6073
    %6076 = vset.pattern.permute.xlu0 9
    %6077 = vperm.xlu0 %6076, %v729
    %v6078 = vpop.permute.xlu0 %6077
    %6080 = vset.pattern.permute.xlu0 9
    %6081 = vperm.xlu0 %6080, %v732
    %v6082 = vpop.permute.xlu0 %6081
    %6084 = vset.pattern.permute.xlu0 9
    %6085 = vperm.xlu0 %6084, %v737
    %v6086 = vpop.permute.xlu0 %6085
    %6088 = vset.pattern.permute.xlu0 9
    %6089 = vperm.xlu0 %6088, %v740
    %v6090 = vpop.permute.xlu0 %6089
    %6092 = vset.pattern.permute.xlu0 9
    %6093 = vperm.xlu0 %6092, %v745
    %v6094 = vpop.permute.xlu0 %6093
    %6096 = vset.pattern.permute.xlu0 9
    %6097 = vperm.xlu0 %6096, %v748
    %v6098 = vpop.permute.xlu0 %6097
    %6100 = vset.pattern.permute.xlu0 9
    %6101 = vperm.xlu0 %6100, %v753
    %v6102 = vpop.permute.xlu0 %6101
    %6104 = vset.pattern.permute.xlu0 9
    %6105 = vperm.xlu0 %6104, %v756
    %v6106 = vpop.permute.xlu0 %6105
    %v6108 = vsel %vm6028, %v6046, 0.0
    %v6109 = vsel %vm6029, %v6050, 0.0
    %v6110 = vsel %vm6030, %v6054, 0.0
    %v6111 = vsel %vm6031, %v6058, 0.0
    %v6112 = vsel %vm6032, %v6062, 0.0
    %v6113 = vsel %vm6033, %v6066, 0.0
    %v6114 = vsel %vm6034, %v6070, 0.0
    %v6115 = vsel %vm6035, %v6074, 0.0
    %v6116 = vsel %vm6036, %v6078, 0.0
    %v6117 = vsel %vm6037, %v6082, 0.0
    %v6118 = vsel %vm6038, %v6086, 0.0
    %v6119 = vsel %vm6039, %v6090, 0.0
    %v6120 = vsel %vm6040, %v6094, 0.0
    %v6121 = vsel %vm6041, %v6098, 0.0
    %v6122 = vsel %vm6042, %v6102, 0.0
    %v6123 = vsel %vm6043, %v6106, 0.0
    %v6124 = vadd.f32 %v5916, %v6108
    %v6125 = vadd.f32 %v5917, %v6109
    %v6126 = vadd.f32 %v5918, %v6110
    %v6127 = vadd.f32 %v5919, %v6111
    %v6128 = vadd.f32 %v5920, %v6112
    %v6129 = vadd.f32 %v5921, %v6113
    %v6130 = vadd.f32 %v5922, %v6114
    %v6131 = vadd.f32 %v5923, %v6115
    %v6132 = vadd.f32 %v5924, %v6116
    %v6133 = vadd.f32 %v5925, %v6117
    %v6134 = vadd.f32 %v5926, %v6118
    %v6135 = vadd.f32 %v5927, %v6119
    %v6136 = vadd.f32 %v5928, %v6120
    %v6137 = vadd.f32 %v5929, %v6121
    %v6138 = vadd.f32 %v5930, %v6122
    %v6139 = vadd.f32 %v5931, %v6123
    %6140 = vset.pattern.permute.xlu0 21
    %6141 = vperm.xlu0 %6140, %v697
    %v6142 = vpop.permute.xlu0 %6141
    %6144 = vset.pattern.permute.xlu0 21
    %6145 = vperm.xlu0 %6144, %v700
    %v6146 = vpop.permute.xlu0 %6145
    %6148 = vset.pattern.permute.xlu0 21
    %6149 = vperm.xlu0 %6148, %v705
    %v6150 = vpop.permute.xlu0 %6149
    %6152 = vset.pattern.permute.xlu0 21
    %6153 = vperm.xlu0 %6152, %v708
    %v6154 = vpop.permute.xlu0 %6153
    %6156 = vset.pattern.permute.xlu0 21
    %6157 = vperm.xlu0 %6156, %v713
    %v6158 = vpop.permute.xlu0 %6157
    %6160 = vset.pattern.permute.xlu0 21
    %6161 = vperm.xlu0 %6160, %v716
    %v6162 = vpop.permute.xlu0 %6161
    %6164 = vset.pattern.permute.xlu0 21
    %6165 = vperm.xlu0 %6164, %v721
    %v6166 = vpop.permute.xlu0 %6165
    %6168 = vset.pattern.permute.xlu0 21
    %6169 = vperm.xlu0 %6168, %v724
    %v6170 = vpop.permute.xlu0 %6169
    %6172 = vset.pattern.permute.xlu0 21
    %6173 = vperm.xlu0 %6172, %v729
    %v6174 = vpop.permute.xlu0 %6173
    %6176 = vset.pattern.permute.xlu0 21
    %6177 = vperm.xlu0 %6176, %v732
    %v6178 = vpop.permute.xlu0 %6177
    %6180 = vset.pattern.permute.xlu0 21
    %6181 = vperm.xlu0 %6180, %v737
    %v6182 = vpop.permute.xlu0 %6181
    %6184 = vset.pattern.permute.xlu0 21
    %6185 = vperm.xlu0 %6184, %v740
    %v6186 = vpop.permute.xlu0 %6185
    %6188 = vset.pattern.permute.xlu0 21
    %6189 = vperm.xlu0 %6188, %v745
    %v6190 = vpop.permute.xlu0 %6189
    %6192 = vset.pattern.permute.xlu0 21
    %6193 = vperm.xlu0 %6192, %v748
    %v6194 = vpop.permute.xlu0 %6193
    %6196 = vset.pattern.permute.xlu0 21
    %6197 = vperm.xlu0 %6196, %v753
    %v6198 = vpop.permute.xlu0 %6197
    %6200 = vset.pattern.permute.xlu0 21
    %6201 = vperm.xlu0 %6200, %v756
    %v6202 = vpop.permute.xlu0 %6201
    %v6204 = vsel %vm6028, %v6142, 0.0
    %v6205 = vsel %vm6029, %v6146, 0.0
    %v6206 = vsel %vm6030, %v6150, 0.0
    %v6207 = vsel %vm6031, %v6154, 0.0
    %v6208 = vsel %vm6032, %v6158, 0.0
    %v6209 = vsel %vm6033, %v6162, 0.0
    %v6210 = vsel %vm6034, %v6166, 0.0
    %v6211 = vsel %vm6035, %v6170, 0.0
    %v6212 = vsel %vm6036, %v6174, 0.0
    %v6213 = vsel %vm6037, %v6178, 0.0
    %v6214 = vsel %vm6038, %v6182, 0.0
    %v6215 = vsel %vm6039, %v6186, 0.0
    %v6216 = vsel %vm6040, %v6190, 0.0
    %v6217 = vsel %vm6041, %v6194, 0.0
    %v6218 = vsel %vm6042, %v6198, 0.0
    %v6219 = vsel %vm6043, %v6202, 0.0
    %v6220 = vadd.f32 %v6012, %v6204
    %v6221 = vadd.f32 %v6013, %v6205
    %v6222 = vadd.f32 %v6014, %v6206
    %v6223 = vadd.f32 %v6015, %v6207
    %v6224 = vadd.f32 %v6016, %v6208
    %v6225 = vadd.f32 %v6017, %v6209
    %v6226 = vadd.f32 %v6018, %v6210
    %v6227 = vadd.f32 %v6019, %v6211
    %v6228 = vadd.f32 %v6020, %v6212
    %v6229 = vadd.f32 %v6021, %v6213
    %v6230 = vadd.f32 %v6022, %v6214
    %v6231 = vadd.f32 %v6023, %v6215
    %v6232 = vadd.f32 %v6024, %v6216
    %v6233 = vadd.f32 %v6025, %v6217
    %v6234 = vadd.f32 %v6026, %v6218
    %v6235 = vadd.f32 %v6027, %v6219
    %vm6236 = vcmp.eq.s32.totalorder %v5180, 5
    %vm6237 = vcmp.eq.s32.totalorder %v5181, 5
    %vm6238 = vcmp.eq.s32.totalorder %v5182, 5
    %vm6239 = vcmp.eq.s32.totalorder %v5183, 5
    %vm6240 = vcmp.eq.s32.totalorder %v5184, 5
    %vm6241 = vcmp.eq.s32.totalorder %v5185, 5
    %vm6242 = vcmp.eq.s32.totalorder %v5186, 5
    %vm6243 = vcmp.eq.s32.totalorder %v5187, 5
    %vm6244 = vcmp.eq.s32.totalorder %v5188, 5
    %vm6245 = vcmp.eq.s32.totalorder %v5189, 5
    %vm6246 = vcmp.eq.s32.totalorder %v5190, 5
    %vm6247 = vcmp.eq.s32.totalorder %v5191, 5
    %vm6248 = vcmp.eq.s32.totalorder %v5192, 5
    %vm6249 = vcmp.eq.s32.totalorder %v5193, 5
    %vm6250 = vcmp.eq.s32.totalorder %v5194, 5
    %vm6251 = vcmp.eq.s32.totalorder %v5195, 5
    %6252 = vset.pattern.permute.xlu0 10
    %6253 = vperm.xlu0 %6252, %v697
    %v6254 = vpop.permute.xlu0 %6253
    %6256 = vset.pattern.permute.xlu0 10
    %6257 = vperm.xlu0 %6256, %v700
    %v6258 = vpop.permute.xlu0 %6257
    %6260 = vset.pattern.permute.xlu0 10
    %6261 = vperm.xlu0 %6260, %v705
    %v6262 = vpop.permute.xlu0 %6261
    %6264 = vset.pattern.permute.xlu0 10
    %6265 = vperm.xlu0 %6264, %v708
    %v6266 = vpop.permute.xlu0 %6265
    %6268 = vset.pattern.permute.xlu0 10
    %6269 = vperm.xlu0 %6268, %v713
    %v6270 = vpop.permute.xlu0 %6269
    %6272 = vset.pattern.permute.xlu0 10
    %6273 = vperm.xlu0 %6272, %v716
    %v6274 = vpop.permute.xlu0 %6273
    %6276 = vset.pattern.permute.xlu0 10
    %6277 = vperm.xlu0 %6276, %v721
    %v6278 = vpop.permute.xlu0 %6277
    %6280 = vset.pattern.permute.xlu0 10
    %6281 = vperm.xlu0 %6280, %v724
    %v6282 = vpop.permute.xlu0 %6281
    %6284 = vset.pattern.permute.xlu0 10
    %6285 = vperm.xlu0 %6284, %v729
    %v6286 = vpop.permute.xlu0 %6285
    %6288 = vset.pattern.permute.xlu0 10
    %6289 = vperm.xlu0 %6288, %v732
    %v6290 = vpop.permute.xlu0 %6289
    %6292 = vset.pattern.permute.xlu0 10
    %6293 = vperm.xlu0 %6292, %v737
    %v6294 = vpop.permute.xlu0 %6293
    %6296 = vset.pattern.permute.xlu0 10
    %6297 = vperm.xlu0 %6296, %v740
    %v6298 = vpop.permute.xlu0 %6297
    %6300 = vset.pattern.permute.xlu0 10
    %6301 = vperm.xlu0 %6300, %v745
    %v6302 = vpop.permute.xlu0 %6301
    %6304 = vset.pattern.permute.xlu0 10
    %6305 = vperm.xlu0 %6304, %v748
    %v6306 = vpop.permute.xlu0 %6305
    %6308 = vset.pattern.permute.xlu0 10
    %6309 = vperm.xlu0 %6308, %v753
    %v6310 = vpop.permute.xlu0 %6309
    %6312 = vset.pattern.permute.xlu0 10
    %6313 = vperm.xlu0 %6312, %v756
    %v6314 = vpop.permute.xlu0 %6313
    %v6316 = vsel %vm6236, %v6254, 0.0
    %v6317 = vsel %vm6237, %v6258, 0.0
    %v6318 = vsel %vm6238, %v6262, 0.0
    %v6319 = vsel %vm6239, %v6266, 0.0
    %v6320 = vsel %vm6240, %v6270, 0.0
    %v6321 = vsel %vm6241, %v6274, 0.0
    %v6322 = vsel %vm6242, %v6278, 0.0
    %v6323 = vsel %vm6243, %v6282, 0.0
    %v6324 = vsel %vm6244, %v6286, 0.0
    %v6325 = vsel %vm6245, %v6290, 0.0
    %v6326 = vsel %vm6246, %v6294, 0.0
    %v6327 = vsel %vm6247, %v6298, 0.0
    %v6328 = vsel %vm6248, %v6302, 0.0
    %v6329 = vsel %vm6249, %v6306, 0.0
    %v6330 = vsel %vm6250, %v6310, 0.0
    %v6331 = vsel %vm6251, %v6314, 0.0
    %v6332 = vadd.f32 %v6124, %v6316
    %v6333 = vadd.f32 %v6125, %v6317
    %v6334 = vadd.f32 %v6126, %v6318
    %v6335 = vadd.f32 %v6127, %v6319
    %v6336 = vadd.f32 %v6128, %v6320
    %v6337 = vadd.f32 %v6129, %v6321
    %v6338 = vadd.f32 %v6130, %v6322
    %v6339 = vadd.f32 %v6131, %v6323
    %v6340 = vadd.f32 %v6132, %v6324
    %v6341 = vadd.f32 %v6133, %v6325
    %v6342 = vadd.f32 %v6134, %v6326
    %v6343 = vadd.f32 %v6135, %v6327
    %v6344 = vadd.f32 %v6136, %v6328
    %v6345 = vadd.f32 %v6137, %v6329
    %v6346 = vadd.f32 %v6138, %v6330
    %v6347 = vadd.f32 %v6139, %v6331
    %6348 = vset.pattern.permute.xlu0 22
    %6349 = vperm.xlu0 %6348, %v697
    %v6350 = vpop.permute.xlu0 %6349
    %6352 = vset.pattern.permute.xlu0 22
    %6353 = vperm.xlu0 %6352, %v700
    %v6354 = vpop.permute.xlu0 %6353
    %6356 = vset.pattern.permute.xlu0 22
    %6357 = vperm.xlu0 %6356, %v705
    %v6358 = vpop.permute.xlu0 %6357
    %6360 = vset.pattern.permute.xlu0 22
    %6361 = vperm.xlu0 %6360, %v708
    %v6362 = vpop.permute.xlu0 %6361
    %6364 = vset.pattern.permute.xlu0 22
    %6365 = vperm.xlu0 %6364, %v713
    %v6366 = vpop.permute.xlu0 %6365
    %6368 = vset.pattern.permute.xlu0 22
    %6369 = vperm.xlu0 %6368, %v716
    %v6370 = vpop.permute.xlu0 %6369
    %6372 = vset.pattern.permute.xlu0 22
    %6373 = vperm.xlu0 %6372, %v721
    %v6374 = vpop.permute.xlu0 %6373
    %6376 = vset.pattern.permute.xlu0 22
    %6377 = vperm.xlu0 %6376, %v724
    %v6378 = vpop.permute.xlu0 %6377
    %6380 = vset.pattern.permute.xlu0 22
    %6381 = vperm.xlu0 %6380, %v729
    %v6382 = vpop.permute.xlu0 %6381
    %6384 = vset.pattern.permute.xlu0 22
    %6385 = vperm.xlu0 %6384, %v732
    %v6386 = vpop.permute.xlu0 %6385
    %6388 = vset.pattern.permute.xlu0 22
    %6389 = vperm.xlu0 %6388, %v737
    %v6390 = vpop.permute.xlu0 %6389
    %6392 = vset.pattern.permute.xlu0 22
    %6393 = vperm.xlu0 %6392, %v740
    %v6394 = vpop.permute.xlu0 %6393
    %6396 = vset.pattern.permute.xlu0 22
    %6397 = vperm.xlu0 %6396, %v745
    %v6398 = vpop.permute.xlu0 %6397
    %6400 = vset.pattern.permute.xlu0 22
    %6401 = vperm.xlu0 %6400, %v748
    %v6402 = vpop.permute.xlu0 %6401
    %6404 = vset.pattern.permute.xlu0 22
    %6405 = vperm.xlu0 %6404, %v753
    %v6406 = vpop.permute.xlu0 %6405
    %6408 = vset.pattern.permute.xlu0 22
    %6409 = vperm.xlu0 %6408, %v756
    %v6410 = vpop.permute.xlu0 %6409
    %v6412 = vsel %vm6236, %v6350, 0.0
    %v6413 = vsel %vm6237, %v6354, 0.0
    %v6414 = vsel %vm6238, %v6358, 0.0
    %v6415 = vsel %vm6239, %v6362, 0.0
    %v6416 = vsel %vm6240, %v6366, 0.0
    %v6417 = vsel %vm6241, %v6370, 0.0
    %v6418 = vsel %vm6242, %v6374, 0.0
    %v6419 = vsel %vm6243, %v6378, 0.0
    %v6420 = vsel %vm6244, %v6382, 0.0
    %v6421 = vsel %vm6245, %v6386, 0.0
    %v6422 = vsel %vm6246, %v6390, 0.0
    %v6423 = vsel %vm6247, %v6394, 0.0
    %v6424 = vsel %vm6248, %v6398, 0.0
    %v6425 = vsel %vm6249, %v6402, 0.0
    %v6426 = vsel %vm6250, %v6406, 0.0
    %v6427 = vsel %vm6251, %v6410, 0.0
    %v6428 = vadd.f32 %v6220, %v6412
    %v6429 = vadd.f32 %v6221, %v6413
    %v6430 = vadd.f32 %v6222, %v6414
    %v6431 = vadd.f32 %v6223, %v6415
    %v6432 = vadd.f32 %v6224, %v6416
    %v6433 = vadd.f32 %v6225, %v6417
    %v6434 = vadd.f32 %v6226, %v6418
    %v6435 = vadd.f32 %v6227, %v6419
    %v6436 = vadd.f32 %v6228, %v6420
    %v6437 = vadd.f32 %v6229, %v6421
    %v6438 = vadd.f32 %v6230, %v6422
    %v6439 = vadd.f32 %v6231, %v6423
    %v6440 = vadd.f32 %v6232, %v6424
    %v6441 = vadd.f32 %v6233, %v6425
    %v6442 = vadd.f32 %v6234, %v6426
    %v6443 = vadd.f32 %v6235, %v6427
    %vm6444 = vcmp.eq.s32.totalorder %v5180, 6
    %vm6445 = vcmp.eq.s32.totalorder %v5181, 6
    %vm6446 = vcmp.eq.s32.totalorder %v5182, 6
    %vm6447 = vcmp.eq.s32.totalorder %v5183, 6
    %vm6448 = vcmp.eq.s32.totalorder %v5184, 6
    %vm6449 = vcmp.eq.s32.totalorder %v5185, 6
    %vm6450 = vcmp.eq.s32.totalorder %v5186, 6
    %vm6451 = vcmp.eq.s32.totalorder %v5187, 6
    %vm6452 = vcmp.eq.s32.totalorder %v5188, 6
    %vm6453 = vcmp.eq.s32.totalorder %v5189, 6
    %vm6454 = vcmp.eq.s32.totalorder %v5190, 6
    %vm6455 = vcmp.eq.s32.totalorder %v5191, 6
    %vm6456 = vcmp.eq.s32.totalorder %v5192, 6
    %vm6457 = vcmp.eq.s32.totalorder %v5193, 6
    %vm6458 = vcmp.eq.s32.totalorder %v5194, 6
    %vm6459 = vcmp.eq.s32.totalorder %v5195, 6
    %6460 = vset.pattern.permute.xlu0 11
    %6461 = vperm.xlu0 %6460, %v697
    %v6462 = vpop.permute.xlu0 %6461
    %6464 = vset.pattern.permute.xlu0 11
    %6465 = vperm.xlu0 %6464, %v700
    %v6466 = vpop.permute.xlu0 %6465
    %6468 = vset.pattern.permute.xlu0 11
    %6469 = vperm.xlu0 %6468, %v705
    %v6470 = vpop.permute.xlu0 %6469
    %6472 = vset.pattern.permute.xlu0 11
    %6473 = vperm.xlu0 %6472, %v708
    %v6474 = vpop.permute.xlu0 %6473
    %6476 = vset.pattern.permute.xlu0 11
    %6477 = vperm.xlu0 %6476, %v713
    %v6478 = vpop.permute.xlu0 %6477
    %6480 = vset.pattern.permute.xlu0 11
    %6481 = vperm.xlu0 %6480, %v716
    %v6482 = vpop.permute.xlu0 %6481
    %6484 = vset.pattern.permute.xlu0 11
    %6485 = vperm.xlu0 %6484, %v721
    %v6486 = vpop.permute.xlu0 %6485
    %6488 = vset.pattern.permute.xlu0 11
    %6489 = vperm.xlu0 %6488, %v724
    %v6490 = vpop.permute.xlu0 %6489
    %6492 = vset.pattern.permute.xlu0 11
    %6493 = vperm.xlu0 %6492, %v729
    %v6494 = vpop.permute.xlu0 %6493
    %6496 = vset.pattern.permute.xlu0 11
    %6497 = vperm.xlu0 %6496, %v732
    %v6498 = vpop.permute.xlu0 %6497
    %6500 = vset.pattern.permute.xlu0 11
    %6501 = vperm.xlu0 %6500, %v737
    %v6502 = vpop.permute.xlu0 %6501
    %6504 = vset.pattern.permute.xlu0 11
    %6505 = vperm.xlu0 %6504, %v740
    %v6506 = vpop.permute.xlu0 %6505
    %6508 = vset.pattern.permute.xlu0 11
    %6509 = vperm.xlu0 %6508, %v745
    %v6510 = vpop.permute.xlu0 %6509
    %6512 = vset.pattern.permute.xlu0 11
    %6513 = vperm.xlu0 %6512, %v748
    %v6514 = vpop.permute.xlu0 %6513
    %6516 = vset.pattern.permute.xlu0 11
    %6517 = vperm.xlu0 %6516, %v753
    %v6518 = vpop.permute.xlu0 %6517
    %6520 = vset.pattern.permute.xlu0 11
    %6521 = vperm.xlu0 %6520, %v756
    %v6522 = vpop.permute.xlu0 %6521
    %v6524 = vsel %vm6444, %v6462, 0.0
    %v6525 = vsel %vm6445, %v6466, 0.0
    %v6526 = vsel %vm6446, %v6470, 0.0
    %v6527 = vsel %vm6447, %v6474, 0.0
    %v6528 = vsel %vm6448, %v6478, 0.0
    %v6529 = vsel %vm6449, %v6482, 0.0
    %v6530 = vsel %vm6450, %v6486, 0.0
    %v6531 = vsel %vm6451, %v6490, 0.0
    %v6532 = vsel %vm6452, %v6494, 0.0
    %v6533 = vsel %vm6453, %v6498, 0.0
    %v6534 = vsel %vm6454, %v6502, 0.0
    %v6535 = vsel %vm6455, %v6506, 0.0
    %v6536 = vsel %vm6456, %v6510, 0.0
    %v6537 = vsel %vm6457, %v6514, 0.0
    %v6538 = vsel %vm6458, %v6518, 0.0
    %v6539 = vsel %vm6459, %v6522, 0.0
    %v6540 = vadd.f32 %v6332, %v6524
    %v6541 = vadd.f32 %v6333, %v6525
    %v6542 = vadd.f32 %v6334, %v6526
    %v6543 = vadd.f32 %v6335, %v6527
    %v6544 = vadd.f32 %v6336, %v6528
    %v6545 = vadd.f32 %v6337, %v6529
    %v6546 = vadd.f32 %v6338, %v6530
    %v6547 = vadd.f32 %v6339, %v6531
    %v6548 = vadd.f32 %v6340, %v6532
    %v6549 = vadd.f32 %v6341, %v6533
    %v6550 = vadd.f32 %v6342, %v6534
    %v6551 = vadd.f32 %v6343, %v6535
    %v6552 = vadd.f32 %v6344, %v6536
    %v6553 = vadd.f32 %v6345, %v6537
    %v6554 = vadd.f32 %v6346, %v6538
    %v6555 = vadd.f32 %v6347, %v6539
    %6556 = vset.pattern.permute.xlu0 23
    %6557 = vperm.xlu0 %6556, %v697
    %v6558 = vpop.permute.xlu0 %6557
    %6560 = vset.pattern.permute.xlu0 23
    %6561 = vperm.xlu0 %6560, %v700
    %v6562 = vpop.permute.xlu0 %6561
    %6564 = vset.pattern.permute.xlu0 23
    %6565 = vperm.xlu0 %6564, %v705
    %v6566 = vpop.permute.xlu0 %6565
    %6568 = vset.pattern.permute.xlu0 23
    %6569 = vperm.xlu0 %6568, %v708
    %v6570 = vpop.permute.xlu0 %6569
    %6572 = vset.pattern.permute.xlu0 23
    %6573 = vperm.xlu0 %6572, %v713
    %v6574 = vpop.permute.xlu0 %6573
    %6576 = vset.pattern.permute.xlu0 23
    %6577 = vperm.xlu0 %6576, %v716
    %v6578 = vpop.permute.xlu0 %6577
    %6580 = vset.pattern.permute.xlu0 23
    %6581 = vperm.xlu0 %6580, %v721
    %v6582 = vpop.permute.xlu0 %6581
    %6584 = vset.pattern.permute.xlu0 23
    %6585 = vperm.xlu0 %6584, %v724
    %v6586 = vpop.permute.xlu0 %6585
    %6588 = vset.pattern.permute.xlu0 23
    %6589 = vperm.xlu0 %6588, %v729
    %v6590 = vpop.permute.xlu0 %6589
    %6592 = vset.pattern.permute.xlu0 23
    %6593 = vperm.xlu0 %6592, %v732
    %v6594 = vpop.permute.xlu0 %6593
    %6596 = vset.pattern.permute.xlu0 23
    %6597 = vperm.xlu0 %6596, %v737
    %v6598 = vpop.permute.xlu0 %6597
    %6600 = vset.pattern.permute.xlu0 23
    %6601 = vperm.xlu0 %6600, %v740
    %v6602 = vpop.permute.xlu0 %6601
    %6604 = vset.pattern.permute.xlu0 23
    %6605 = vperm.xlu0 %6604, %v745
    %v6606 = vpop.permute.xlu0 %6605
    %6608 = vset.pattern.permute.xlu0 23
    %6609 = vperm.xlu0 %6608, %v748
    %v6610 = vpop.permute.xlu0 %6609
    %6612 = vset.pattern.permute.xlu0 23
    %6613 = vperm.xlu0 %6612, %v753
    %v6614 = vpop.permute.xlu0 %6613
    %6616 = vset.pattern.permute.xlu0 23
    %6617 = vperm.xlu0 %6616, %v756
    %v6618 = vpop.permute.xlu0 %6617
    %v6620 = vsel %vm6444, %v6558, 0.0
    %v6621 = vsel %vm6445, %v6562, 0.0
    %v6622 = vsel %vm6446, %v6566, 0.0
    %v6623 = vsel %vm6447, %v6570, 0.0
    %v6624 = vsel %vm6448, %v6574, 0.0
    %v6625 = vsel %vm6449, %v6578, 0.0
    %v6626 = vsel %vm6450, %v6582, 0.0
    %v6627 = vsel %vm6451, %v6586, 0.0
    %v6628 = vsel %vm6452, %v6590, 0.0
    %v6629 = vsel %vm6453, %v6594, 0.0
    %v6630 = vsel %vm6454, %v6598, 0.0
    %v6631 = vsel %vm6455, %v6602, 0.0
    %v6632 = vsel %vm6456, %v6606, 0.0
    %v6633 = vsel %vm6457, %v6610, 0.0
    %v6634 = vsel %vm6458, %v6614, 0.0
    %v6635 = vsel %vm6459, %v6618, 0.0
    %v6636 = vadd.f32 %v6428, %v6620
    %v6637 = vadd.f32 %v6429, %v6621
    %v6638 = vadd.f32 %v6430, %v6622
    %v6639 = vadd.f32 %v6431, %v6623
    %v6640 = vadd.f32 %v6432, %v6624
    %v6641 = vadd.f32 %v6433, %v6625
    %v6642 = vadd.f32 %v6434, %v6626
    %v6643 = vadd.f32 %v6435, %v6627
    %v6644 = vadd.f32 %v6436, %v6628
    %v6645 = vadd.f32 %v6437, %v6629
    %v6646 = vadd.f32 %v6438, %v6630
    %v6647 = vadd.f32 %v6439, %v6631
    %v6648 = vadd.f32 %v6440, %v6632
    %v6649 = vadd.f32 %v6441, %v6633
    %v6650 = vadd.f32 %v6442, %v6634
    %v6651 = vadd.f32 %v6443, %v6635
    %vm6652 = vcmp.eq.s32.totalorder %v5180, 7
    %vm6653 = vcmp.eq.s32.totalorder %v5181, 7
    %vm6654 = vcmp.eq.s32.totalorder %v5182, 7
    %vm6655 = vcmp.eq.s32.totalorder %v5183, 7
    %vm6656 = vcmp.eq.s32.totalorder %v5184, 7
    %vm6657 = vcmp.eq.s32.totalorder %v5185, 7
    %vm6658 = vcmp.eq.s32.totalorder %v5186, 7
    %vm6659 = vcmp.eq.s32.totalorder %v5187, 7
    %vm6660 = vcmp.eq.s32.totalorder %v5188, 7
    %vm6661 = vcmp.eq.s32.totalorder %v5189, 7
    %vm6662 = vcmp.eq.s32.totalorder %v5190, 7
    %vm6663 = vcmp.eq.s32.totalorder %v5191, 7
    %vm6664 = vcmp.eq.s32.totalorder %v5192, 7
    %vm6665 = vcmp.eq.s32.totalorder %v5193, 7
    %vm6666 = vcmp.eq.s32.totalorder %v5194, 7
    %vm6667 = vcmp.eq.s32.totalorder %v5195, 7
    %6668 = vset.pattern.permute.xlu0 12
    %6669 = vperm.xlu0 %6668, %v697
    %v6670 = vpop.permute.xlu0 %6669
    %6672 = vset.pattern.permute.xlu0 12
    %6673 = vperm.xlu0 %6672, %v700
    %v6674 = vpop.permute.xlu0 %6673
    %6676 = vset.pattern.permute.xlu0 12
    %6677 = vperm.xlu0 %6676, %v705
    %v6678 = vpop.permute.xlu0 %6677
    %6680 = vset.pattern.permute.xlu0 12
    %6681 = vperm.xlu0 %6680, %v708
    %v6682 = vpop.permute.xlu0 %6681
    %6684 = vset.pattern.permute.xlu0 12
    %6685 = vperm.xlu0 %6684, %v713
    %v6686 = vpop.permute.xlu0 %6685
    %6688 = vset.pattern.permute.xlu0 12
    %6689 = vperm.xlu0 %6688, %v716
    %v6690 = vpop.permute.xlu0 %6689
    %6692 = vset.pattern.permute.xlu0 12
    %6693 = vperm.xlu0 %6692, %v721
    %v6694 = vpop.permute.xlu0 %6693
    %6696 = vset.pattern.permute.xlu0 12
    %6697 = vperm.xlu0 %6696, %v724
    %v6698 = vpop.permute.xlu0 %6697
    %6700 = vset.pattern.permute.xlu0 12
    %6701 = vperm.xlu0 %6700, %v729
    %v6702 = vpop.permute.xlu0 %6701
    %6704 = vset.pattern.permute.xlu0 12
    %6705 = vperm.xlu0 %6704, %v732
    %v6706 = vpop.permute.xlu0 %6705
    %6708 = vset.pattern.permute.xlu0 12
    %6709 = vperm.xlu0 %6708, %v737
    %v6710 = vpop.permute.xlu0 %6709
    %6712 = vset.pattern.permute.xlu0 12
    %6713 = vperm.xlu0 %6712, %v740
    %v6714 = vpop.permute.xlu0 %6713
    %6716 = vset.pattern.permute.xlu0 12
    %6717 = vperm.xlu0 %6716, %v745
    %v6718 = vpop.permute.xlu0 %6717
    %6720 = vset.pattern.permute.xlu0 12
    %6721 = vperm.xlu0 %6720, %v748
    %v6722 = vpop.permute.xlu0 %6721
    %6724 = vset.pattern.permute.xlu0 12
    %6725 = vperm.xlu0 %6724, %v753
    %v6726 = vpop.permute.xlu0 %6725
    %6728 = vset.pattern.permute.xlu0 12
    %6729 = vperm.xlu0 %6728, %v756
    %v6730 = vpop.permute.xlu0 %6729
    %v6732 = vsel %vm6652, %v6670, 0.0
    %v6733 = vsel %vm6653, %v6674, 0.0
    %v6734 = vsel %vm6654, %v6678, 0.0
    %v6735 = vsel %vm6655, %v6682, 0.0
    %v6736 = vsel %vm6656, %v6686, 0.0
    %v6737 = vsel %vm6657, %v6690, 0.0
    %v6738 = vsel %vm6658, %v6694, 0.0
    %v6739 = vsel %vm6659, %v6698, 0.0
    %v6740 = vsel %vm6660, %v6702, 0.0
    %v6741 = vsel %vm6661, %v6706, 0.0
    %v6742 = vsel %vm6662, %v6710, 0.0
    %v6743 = vsel %vm6663, %v6714, 0.0
    %v6744 = vsel %vm6664, %v6718, 0.0
    %v6745 = vsel %vm6665, %v6722, 0.0
    %v6746 = vsel %vm6666, %v6726, 0.0
    %v6747 = vsel %vm6667, %v6730, 0.0
    %v6748 = vadd.f32 %v6540, %v6732
    %v6749 = vadd.f32 %v6541, %v6733
    %v6750 = vadd.f32 %v6542, %v6734
    %v6751 = vadd.f32 %v6543, %v6735
    %v6752 = vadd.f32 %v6544, %v6736
    %v6753 = vadd.f32 %v6545, %v6737
    %v6754 = vadd.f32 %v6546, %v6738
    %v6755 = vadd.f32 %v6547, %v6739
    %v6756 = vadd.f32 %v6548, %v6740
    %v6757 = vadd.f32 %v6549, %v6741
    %v6758 = vadd.f32 %v6550, %v6742
    %v6759 = vadd.f32 %v6551, %v6743
    %v6760 = vadd.f32 %v6552, %v6744
    %v6761 = vadd.f32 %v6553, %v6745
    %v6762 = vadd.f32 %v6554, %v6746
    %v6763 = vadd.f32 %v6555, %v6747
    %6764 = vset.pattern.permute.xlu0 24
    %6765 = vperm.xlu0 %6764, %v697
    %v6766 = vpop.permute.xlu0 %6765
    %6768 = vset.pattern.permute.xlu0 24
    %6769 = vperm.xlu0 %6768, %v700
    %v6770 = vpop.permute.xlu0 %6769
    %6772 = vset.pattern.permute.xlu0 24
    %6773 = vperm.xlu0 %6772, %v705
    %v6774 = vpop.permute.xlu0 %6773
    %6776 = vset.pattern.permute.xlu0 24
    %6777 = vperm.xlu0 %6776, %v708
    %v6778 = vpop.permute.xlu0 %6777
    %6780 = vset.pattern.permute.xlu0 24
    %6781 = vperm.xlu0 %6780, %v713
    %v6782 = vpop.permute.xlu0 %6781
    %6784 = vset.pattern.permute.xlu0 24
    %6785 = vperm.xlu0 %6784, %v716
    %v6786 = vpop.permute.xlu0 %6785
    %6788 = vset.pattern.permute.xlu0 24
    %6789 = vperm.xlu0 %6788, %v721
    %v6790 = vpop.permute.xlu0 %6789
    %6792 = vset.pattern.permute.xlu0 24
    %6793 = vperm.xlu0 %6792, %v724
    %v6794 = vpop.permute.xlu0 %6793
    %6796 = vset.pattern.permute.xlu0 24
    %6797 = vperm.xlu0 %6796, %v729
    %v6798 = vpop.permute.xlu0 %6797
    %6800 = vset.pattern.permute.xlu0 24
    %6801 = vperm.xlu0 %6800, %v732
    %v6802 = vpop.permute.xlu0 %6801
    %6804 = vset.pattern.permute.xlu0 24
    %6805 = vperm.xlu0 %6804, %v737
    %v6806 = vpop.permute.xlu0 %6805
    %6808 = vset.pattern.permute.xlu0 24
    %6809 = vperm.xlu0 %6808, %v740
    %v6810 = vpop.permute.xlu0 %6809
    %6812 = vset.pattern.permute.xlu0 24
    %6813 = vperm.xlu0 %6812, %v745
    %v6814 = vpop.permute.xlu0 %6813
    %6816 = vset.pattern.permute.xlu0 24
    %6817 = vperm.xlu0 %6816, %v748
    %v6818 = vpop.permute.xlu0 %6817
    %6820 = vset.pattern.permute.xlu0 24
    %6821 = vperm.xlu0 %6820, %v753
    %v6822 = vpop.permute.xlu0 %6821
    %6824 = vset.pattern.permute.xlu0 24
    %6825 = vperm.xlu0 %6824, %v756
    %v6826 = vpop.permute.xlu0 %6825
    %v6828 = vsel %vm6652, %v6766, 0.0
    %v6829 = vsel %vm6653, %v6770, 0.0
    %v6830 = vsel %vm6654, %v6774, 0.0
    %v6831 = vsel %vm6655, %v6778, 0.0
    %v6832 = vsel %vm6656, %v6782, 0.0
    %v6833 = vsel %vm6657, %v6786, 0.0
    %v6834 = vsel %vm6658, %v6790, 0.0
    %v6835 = vsel %vm6659, %v6794, 0.0
    %v6836 = vsel %vm6660, %v6798, 0.0
    %v6837 = vsel %vm6661, %v6802, 0.0
    %v6838 = vsel %vm6662, %v6806, 0.0
    %v6839 = vsel %vm6663, %v6810, 0.0
    %v6840 = vsel %vm6664, %v6814, 0.0
    %v6841 = vsel %vm6665, %v6818, 0.0
    %v6842 = vsel %vm6666, %v6822, 0.0
    %v6843 = vsel %vm6667, %v6826, 0.0
    %v6844 = vadd.f32 %v6636, %v6828
    %v6845 = vadd.f32 %v6637, %v6829
    %v6846 = vadd.f32 %v6638, %v6830
    %v6847 = vadd.f32 %v6639, %v6831
    %v6848 = vadd.f32 %v6640, %v6832
    %v6849 = vadd.f32 %v6641, %v6833
    %v6850 = vadd.f32 %v6642, %v6834
    %v6851 = vadd.f32 %v6643, %v6835
    %v6852 = vadd.f32 %v6644, %v6836
    %v6853 = vadd.f32 %v6645, %v6837
    %v6854 = vadd.f32 %v6646, %v6838
    %v6855 = vadd.f32 %v6647, %v6839
    %v6856 = vadd.f32 %v6648, %v6840
    %v6857 = vadd.f32 %v6649, %v6841
    %v6858 = vadd.f32 %v6650, %v6842
    %v6859 = vadd.f32 %v6651, %v6843
    %vm6860 = vcmp.eq.s32.totalorder %v5180, 8
    %vm6861 = vcmp.eq.s32.totalorder %v5181, 8
    %vm6862 = vcmp.eq.s32.totalorder %v5182, 8
    %vm6863 = vcmp.eq.s32.totalorder %v5183, 8
    %vm6864 = vcmp.eq.s32.totalorder %v5184, 8
    %vm6865 = vcmp.eq.s32.totalorder %v5185, 8
    %vm6866 = vcmp.eq.s32.totalorder %v5186, 8
    %vm6867 = vcmp.eq.s32.totalorder %v5187, 8
    %vm6868 = vcmp.eq.s32.totalorder %v5188, 8
    %vm6869 = vcmp.eq.s32.totalorder %v5189, 8
    %vm6870 = vcmp.eq.s32.totalorder %v5190, 8
    %vm6871 = vcmp.eq.s32.totalorder %v5191, 8
    %vm6872 = vcmp.eq.s32.totalorder %v5192, 8
    %vm6873 = vcmp.eq.s32.totalorder %v5193, 8
    %vm6874 = vcmp.eq.s32.totalorder %v5194, 8
    %vm6875 = vcmp.eq.s32.totalorder %v5195, 8
    %6876 = vset.pattern.permute.xlu0 13
    %6877 = vperm.xlu0 %6876, %v697
    %v6878 = vpop.permute.xlu0 %6877
    %6880 = vset.pattern.permute.xlu0 13
    %6881 = vperm.xlu0 %6880, %v700
    %v6882 = vpop.permute.xlu0 %6881
    %6884 = vset.pattern.permute.xlu0 13
    %6885 = vperm.xlu0 %6884, %v705
    %v6886 = vpop.permute.xlu0 %6885
    %6888 = vset.pattern.permute.xlu0 13
    %6889 = vperm.xlu0 %6888, %v708
    %v6890 = vpop.permute.xlu0 %6889
    %6892 = vset.pattern.permute.xlu0 13
    %6893 = vperm.xlu0 %6892, %v713
    %v6894 = vpop.permute.xlu0 %6893
    %6896 = vset.pattern.permute.xlu0 13
    %6897 = vperm.xlu0 %6896, %v716
    %v6898 = vpop.permute.xlu0 %6897
    %6900 = vset.pattern.permute.xlu0 13
    %6901 = vperm.xlu0 %6900, %v721
    %v6902 = vpop.permute.xlu0 %6901
    %6904 = vset.pattern.permute.xlu0 13
    %6905 = vperm.xlu0 %6904, %v724
    %v6906 = vpop.permute.xlu0 %6905
    %6908 = vset.pattern.permute.xlu0 13
    %6909 = vperm.xlu0 %6908, %v729
    %v6910 = vpop.permute.xlu0 %6909
    %6912 = vset.pattern.permute.xlu0 13
    %6913 = vperm.xlu0 %6912, %v732
    %v6914 = vpop.permute.xlu0 %6913
    %6916 = vset.pattern.permute.xlu0 13
    %6917 = vperm.xlu0 %6916, %v737
    %v6918 = vpop.permute.xlu0 %6917
    %6920 = vset.pattern.permute.xlu0 13
    %6921 = vperm.xlu0 %6920, %v740
    %v6922 = vpop.permute.xlu0 %6921
    %6924 = vset.pattern.permute.xlu0 13
    %6925 = vperm.xlu0 %6924, %v745
    %v6926 = vpop.permute.xlu0 %6925
    %6928 = vset.pattern.permute.xlu0 13
    %6929 = vperm.xlu0 %6928, %v748
    %v6930 = vpop.permute.xlu0 %6929
    %6932 = vset.pattern.permute.xlu0 13
    %6933 = vperm.xlu0 %6932, %v753
    %v6934 = vpop.permute.xlu0 %6933
    %6936 = vset.pattern.permute.xlu0 13
    %6937 = vperm.xlu0 %6936, %v756
    %v6938 = vpop.permute.xlu0 %6937
    %v6940 = vsel %vm6860, %v6878, 0.0
    %v6941 = vsel %vm6861, %v6882, 0.0
    %v6942 = vsel %vm6862, %v6886, 0.0
    %v6943 = vsel %vm6863, %v6890, 0.0
    %v6944 = vsel %vm6864, %v6894, 0.0
    %v6945 = vsel %vm6865, %v6898, 0.0
    %v6946 = vsel %vm6866, %v6902, 0.0
    %v6947 = vsel %vm6867, %v6906, 0.0
    %v6948 = vsel %vm6868, %v6910, 0.0
    %v6949 = vsel %vm6869, %v6914, 0.0
    %v6950 = vsel %vm6870, %v6918, 0.0
    %v6951 = vsel %vm6871, %v6922, 0.0
    %v6952 = vsel %vm6872, %v6926, 0.0
    %v6953 = vsel %vm6873, %v6930, 0.0
    %v6954 = vsel %vm6874, %v6934, 0.0
    %v6955 = vsel %vm6875, %v6938, 0.0
    %v6956 = vadd.f32 %v6748, %v6940
    %v6957 = vadd.f32 %v6749, %v6941
    %v6958 = vadd.f32 %v6750, %v6942
    %v6959 = vadd.f32 %v6751, %v6943
    %v6960 = vadd.f32 %v6752, %v6944
    %v6961 = vadd.f32 %v6753, %v6945
    %v6962 = vadd.f32 %v6754, %v6946
    %v6963 = vadd.f32 %v6755, %v6947
    %v6964 = vadd.f32 %v6756, %v6948
    %v6965 = vadd.f32 %v6757, %v6949
    %v6966 = vadd.f32 %v6758, %v6950
    %v6967 = vadd.f32 %v6759, %v6951
    %v6968 = vadd.f32 %v6760, %v6952
    %v6969 = vadd.f32 %v6761, %v6953
    %v6970 = vadd.f32 %v6762, %v6954
    %v6971 = vadd.f32 %v6763, %v6955
    %6972 = vset.pattern.permute.xlu0 25
    %6973 = vperm.xlu0 %6972, %v697
    %v6974 = vpop.permute.xlu0 %6973
    %6976 = vset.pattern.permute.xlu0 25
    %6977 = vperm.xlu0 %6976, %v700
    %v6978 = vpop.permute.xlu0 %6977
    %6980 = vset.pattern.permute.xlu0 25
    %6981 = vperm.xlu0 %6980, %v705
    %v6982 = vpop.permute.xlu0 %6981
    %6984 = vset.pattern.permute.xlu0 25
    %6985 = vperm.xlu0 %6984, %v708
    %v6986 = vpop.permute.xlu0 %6985
    %6988 = vset.pattern.permute.xlu0 25
    %6989 = vperm.xlu0 %6988, %v713
    %v6990 = vpop.permute.xlu0 %6989
    %6992 = vset.pattern.permute.xlu0 25
    %6993 = vperm.xlu0 %6992, %v716
    %v6994 = vpop.permute.xlu0 %6993
    %6996 = vset.pattern.permute.xlu0 25
    %6997 = vperm.xlu0 %6996, %v721
    %v6998 = vpop.permute.xlu0 %6997
    %7000 = vset.pattern.permute.xlu0 25
    %7001 = vperm.xlu0 %7000, %v724
    %v7002 = vpop.permute.xlu0 %7001
    %7004 = vset.pattern.permute.xlu0 25
    %7005 = vperm.xlu0 %7004, %v729
    %v7006 = vpop.permute.xlu0 %7005
    %7008 = vset.pattern.permute.xlu0 25
    %7009 = vperm.xlu0 %7008, %v732
    %v7010 = vpop.permute.xlu0 %7009
    %7012 = vset.pattern.permute.xlu0 25
    %7013 = vperm.xlu0 %7012, %v737
    %v7014 = vpop.permute.xlu0 %7013
    %7016 = vset.pattern.permute.xlu0 25
    %7017 = vperm.xlu0 %7016, %v740
    %v7018 = vpop.permute.xlu0 %7017
    %7020 = vset.pattern.permute.xlu0 25
    %7021 = vperm.xlu0 %7020, %v745
    %v7022 = vpop.permute.xlu0 %7021
    %7024 = vset.pattern.permute.xlu0 25
    %7025 = vperm.xlu0 %7024, %v748
    %v7026 = vpop.permute.xlu0 %7025
    %7028 = vset.pattern.permute.xlu0 25
    %7029 = vperm.xlu0 %7028, %v753
    %v7030 = vpop.permute.xlu0 %7029
    %7032 = vset.pattern.permute.xlu0 25
    %7033 = vperm.xlu0 %7032, %v756
    %v7034 = vpop.permute.xlu0 %7033
    %v7036 = vsel %vm6860, %v6974, 0.0
    %v7037 = vsel %vm6861, %v6978, 0.0
    %v7038 = vsel %vm6862, %v6982, 0.0
    %v7039 = vsel %vm6863, %v6986, 0.0
    %v7040 = vsel %vm6864, %v6990, 0.0
    %v7041 = vsel %vm6865, %v6994, 0.0
    %v7042 = vsel %vm6866, %v6998, 0.0
    %v7043 = vsel %vm6867, %v7002, 0.0
    %v7044 = vsel %vm6868, %v7006, 0.0
    %v7045 = vsel %vm6869, %v7010, 0.0
    %v7046 = vsel %vm6870, %v7014, 0.0
    %v7047 = vsel %vm6871, %v7018, 0.0
    %v7048 = vsel %vm6872, %v7022, 0.0
    %v7049 = vsel %vm6873, %v7026, 0.0
    %v7050 = vsel %vm6874, %v7030, 0.0
    %v7051 = vsel %vm6875, %v7034, 0.0
    %v7052 = vadd.f32 %v6844, %v7036
    %v7053 = vadd.f32 %v6845, %v7037
    %v7054 = vadd.f32 %v6846, %v7038
    %v7055 = vadd.f32 %v6847, %v7039
    %v7056 = vadd.f32 %v6848, %v7040
    %v7057 = vadd.f32 %v6849, %v7041
    %v7058 = vadd.f32 %v6850, %v7042
    %v7059 = vadd.f32 %v6851, %v7043
    %v7060 = vadd.f32 %v6852, %v7044
    %v7061 = vadd.f32 %v6853, %v7045
    %v7062 = vadd.f32 %v6854, %v7046
    %v7063 = vadd.f32 %v6855, %v7047
    %v7064 = vadd.f32 %v6856, %v7048
    %v7065 = vadd.f32 %v6857, %v7049
    %v7066 = vadd.f32 %v6858, %v7050
    %v7067 = vadd.f32 %v6859, %v7051
    %vm7068 = vcmp.eq.s32.totalorder %v5180, 9
    %vm7069 = vcmp.eq.s32.totalorder %v5181, 9
    %vm7070 = vcmp.eq.s32.totalorder %v5182, 9
    %vm7071 = vcmp.eq.s32.totalorder %v5183, 9
    %vm7072 = vcmp.eq.s32.totalorder %v5184, 9
    %vm7073 = vcmp.eq.s32.totalorder %v5185, 9
    %vm7074 = vcmp.eq.s32.totalorder %v5186, 9
    %vm7075 = vcmp.eq.s32.totalorder %v5187, 9
    %vm7076 = vcmp.eq.s32.totalorder %v5188, 9
    %vm7077 = vcmp.eq.s32.totalorder %v5189, 9
    %vm7078 = vcmp.eq.s32.totalorder %v5190, 9
    %vm7079 = vcmp.eq.s32.totalorder %v5191, 9
    %vm7080 = vcmp.eq.s32.totalorder %v5192, 9
    %vm7081 = vcmp.eq.s32.totalorder %v5193, 9
    %vm7082 = vcmp.eq.s32.totalorder %v5194, 9
    %vm7083 = vcmp.eq.s32.totalorder %v5195, 9
    %7084 = vset.pattern.permute.xlu0 14
    %7085 = vperm.xlu0 %7084, %v697
    %v7086 = vpop.permute.xlu0 %7085
    %7088 = vset.pattern.permute.xlu0 14
    %7089 = vperm.xlu0 %7088, %v700
    %v7090 = vpop.permute.xlu0 %7089
    %7092 = vset.pattern.permute.xlu0 14
    %7093 = vperm.xlu0 %7092, %v705
    %v7094 = vpop.permute.xlu0 %7093
    %7096 = vset.pattern.permute.xlu0 14
    %7097 = vperm.xlu0 %7096, %v708
    %v7098 = vpop.permute.xlu0 %7097
    %7100 = vset.pattern.permute.xlu0 14
    %7101 = vperm.xlu0 %7100, %v713
    %v7102 = vpop.permute.xlu0 %7101
    %7104 = vset.pattern.permute.xlu0 14
    %7105 = vperm.xlu0 %7104, %v716
    %v7106 = vpop.permute.xlu0 %7105
    %7108 = vset.pattern.permute.xlu0 14
    %7109 = vperm.xlu0 %7108, %v721
    %v7110 = vpop.permute.xlu0 %7109
    %7112 = vset.pattern.permute.xlu0 14
    %7113 = vperm.xlu0 %7112, %v724
    %v7114 = vpop.permute.xlu0 %7113
    %7116 = vset.pattern.permute.xlu0 14
    %7117 = vperm.xlu0 %7116, %v729
    %v7118 = vpop.permute.xlu0 %7117
    %7120 = vset.pattern.permute.xlu0 14
    %7121 = vperm.xlu0 %7120, %v732
    %v7122 = vpop.permute.xlu0 %7121
    %7124 = vset.pattern.permute.xlu0 14
    %7125 = vperm.xlu0 %7124, %v737
    %v7126 = vpop.permute.xlu0 %7125
    %7128 = vset.pattern.permute.xlu0 14
    %7129 = vperm.xlu0 %7128, %v740
    %v7130 = vpop.permute.xlu0 %7129
    %7132 = vset.pattern.permute.xlu0 14
    %7133 = vperm.xlu0 %7132, %v745
    %v7134 = vpop.permute.xlu0 %7133
    %7136 = vset.pattern.permute.xlu0 14
    %7137 = vperm.xlu0 %7136, %v748
    %v7138 = vpop.permute.xlu0 %7137
    %7140 = vset.pattern.permute.xlu0 14
    %7141 = vperm.xlu0 %7140, %v753
    %v7142 = vpop.permute.xlu0 %7141
    %7144 = vset.pattern.permute.xlu0 14
    %7145 = vperm.xlu0 %7144, %v756
    %v7146 = vpop.permute.xlu0 %7145
    %v7148 = vsel %vm7068, %v7086, 0.0
    %v7149 = vsel %vm7069, %v7090, 0.0
    %v7150 = vsel %vm7070, %v7094, 0.0
    %v7151 = vsel %vm7071, %v7098, 0.0
    %v7152 = vsel %vm7072, %v7102, 0.0
    %v7153 = vsel %vm7073, %v7106, 0.0
    %v7154 = vsel %vm7074, %v7110, 0.0
    %v7155 = vsel %vm7075, %v7114, 0.0
    %v7156 = vsel %vm7076, %v7118, 0.0
    %v7157 = vsel %vm7077, %v7122, 0.0
    %v7158 = vsel %vm7078, %v7126, 0.0
    %v7159 = vsel %vm7079, %v7130, 0.0
    %v7160 = vsel %vm7080, %v7134, 0.0
    %v7161 = vsel %vm7081, %v7138, 0.0
    %v7162 = vsel %vm7082, %v7142, 0.0
    %v7163 = vsel %vm7083, %v7146, 0.0
    %v7164 = vadd.f32 %v6956, %v7148
    %v7165 = vadd.f32 %v6957, %v7149
    %v7166 = vadd.f32 %v6958, %v7150
    %v7167 = vadd.f32 %v6959, %v7151
    %v7168 = vadd.f32 %v6960, %v7152
    %v7169 = vadd.f32 %v6961, %v7153
    %v7170 = vadd.f32 %v6962, %v7154
    %v7171 = vadd.f32 %v6963, %v7155
    %v7172 = vadd.f32 %v6964, %v7156
    %v7173 = vadd.f32 %v6965, %v7157
    %v7174 = vadd.f32 %v6966, %v7158
    %v7175 = vadd.f32 %v6967, %v7159
    %v7176 = vadd.f32 %v6968, %v7160
    %v7177 = vadd.f32 %v6969, %v7161
    %v7178 = vadd.f32 %v6970, %v7162
    %v7179 = vadd.f32 %v6971, %v7163
    %7180 = vset.pattern.permute.xlu0 26
    %7181 = vperm.xlu0 %7180, %v697
    %v7182 = vpop.permute.xlu0 %7181
    %7184 = vset.pattern.permute.xlu0 26
    %7185 = vperm.xlu0 %7184, %v700
    %v7186 = vpop.permute.xlu0 %7185
    %7188 = vset.pattern.permute.xlu0 26
    %7189 = vperm.xlu0 %7188, %v705
    %v7190 = vpop.permute.xlu0 %7189
    %7192 = vset.pattern.permute.xlu0 26
    %7193 = vperm.xlu0 %7192, %v708
    %v7194 = vpop.permute.xlu0 %7193
    %7196 = vset.pattern.permute.xlu0 26
    %7197 = vperm.xlu0 %7196, %v713
    %v7198 = vpop.permute.xlu0 %7197
    %7200 = vset.pattern.permute.xlu0 26
    %7201 = vperm.xlu0 %7200, %v716
    %v7202 = vpop.permute.xlu0 %7201
    %7204 = vset.pattern.permute.xlu0 26
    %7205 = vperm.xlu0 %7204, %v721
    %v7206 = vpop.permute.xlu0 %7205
    %7208 = vset.pattern.permute.xlu0 26
    %7209 = vperm.xlu0 %7208, %v724
    %v7210 = vpop.permute.xlu0 %7209
    %7212 = vset.pattern.permute.xlu0 26
    %7213 = vperm.xlu0 %7212, %v729
    %v7214 = vpop.permute.xlu0 %7213
    %7216 = vset.pattern.permute.xlu0 26
    %7217 = vperm.xlu0 %7216, %v732
    %v7218 = vpop.permute.xlu0 %7217
    %7220 = vset.pattern.permute.xlu0 26
    %7221 = vperm.xlu0 %7220, %v737
    %v7222 = vpop.permute.xlu0 %7221
    %7224 = vset.pattern.permute.xlu0 26
    %7225 = vperm.xlu0 %7224, %v740
    %v7226 = vpop.permute.xlu0 %7225
    %7228 = vset.pattern.permute.xlu0 26
    %7229 = vperm.xlu0 %7228, %v745
    %v7230 = vpop.permute.xlu0 %7229
    %7232 = vset.pattern.permute.xlu0 26
    %7233 = vperm.xlu0 %7232, %v748
    %v7234 = vpop.permute.xlu0 %7233
    %7236 = vset.pattern.permute.xlu0 26
    %7237 = vperm.xlu0 %7236, %v753
    %v7238 = vpop.permute.xlu0 %7237
    %7240 = vset.pattern.permute.xlu0 26
    %7241 = vperm.xlu0 %7240, %v756
    %v7242 = vpop.permute.xlu0 %7241
    %v7244 = vsel %vm7068, %v7182, 0.0
    %v7245 = vsel %vm7069, %v7186, 0.0
    %v7246 = vsel %vm7070, %v7190, 0.0
    %v7247 = vsel %vm7071, %v7194, 0.0
    %v7248 = vsel %vm7072, %v7198, 0.0
    %v7249 = vsel %vm7073, %v7202, 0.0
    %v7250 = vsel %vm7074, %v7206, 0.0
    %v7251 = vsel %vm7075, %v7210, 0.0
    %v7252 = vsel %vm7076, %v7214, 0.0
    %v7253 = vsel %vm7077, %v7218, 0.0
    %v7254 = vsel %vm7078, %v7222, 0.0
    %v7255 = vsel %vm7079, %v7226, 0.0
    %v7256 = vsel %vm7080, %v7230, 0.0
    %v7257 = vsel %vm7081, %v7234, 0.0
    %v7258 = vsel %vm7082, %v7238, 0.0
    %v7259 = vsel %vm7083, %v7242, 0.0
    %v7260 = vadd.f32 %v7052, %v7244
    %v7261 = vadd.f32 %v7053, %v7245
    %v7262 = vadd.f32 %v7054, %v7246
    %v7263 = vadd.f32 %v7055, %v7247
    %v7264 = vadd.f32 %v7056, %v7248
    %v7265 = vadd.f32 %v7057, %v7249
    %v7266 = vadd.f32 %v7058, %v7250
    %v7267 = vadd.f32 %v7059, %v7251
    %v7268 = vadd.f32 %v7060, %v7252
    %v7269 = vadd.f32 %v7061, %v7253
    %v7270 = vadd.f32 %v7062, %v7254
    %v7271 = vadd.f32 %v7063, %v7255
    %v7272 = vadd.f32 %v7064, %v7256
    %v7273 = vadd.f32 %v7065, %v7257
    %v7274 = vadd.f32 %v7066, %v7258
    %v7275 = vadd.f32 %v7067, %v7259
    %vm7276 = vcmp.eq.s32.totalorder %v5180, 10
    %vm7277 = vcmp.eq.s32.totalorder %v5181, 10
    %vm7278 = vcmp.eq.s32.totalorder %v5182, 10
    %vm7279 = vcmp.eq.s32.totalorder %v5183, 10
    %vm7280 = vcmp.eq.s32.totalorder %v5184, 10
    %vm7281 = vcmp.eq.s32.totalorder %v5185, 10
    %vm7282 = vcmp.eq.s32.totalorder %v5186, 10
    %vm7283 = vcmp.eq.s32.totalorder %v5187, 10
    %vm7284 = vcmp.eq.s32.totalorder %v5188, 10
    %vm7285 = vcmp.eq.s32.totalorder %v5189, 10
    %vm7286 = vcmp.eq.s32.totalorder %v5190, 10
    %vm7287 = vcmp.eq.s32.totalorder %v5191, 10
    %vm7288 = vcmp.eq.s32.totalorder %v5192, 10
    %vm7289 = vcmp.eq.s32.totalorder %v5193, 10
    %vm7290 = vcmp.eq.s32.totalorder %v5194, 10
    %vm7291 = vcmp.eq.s32.totalorder %v5195, 10
    %7292 = vset.pattern.permute.xlu0 15
    %7293 = vperm.xlu0 %7292, %v697
    %v7294 = vpop.permute.xlu0 %7293
    %7296 = vset.pattern.permute.xlu0 15
    %7297 = vperm.xlu0 %7296, %v700
    %v7298 = vpop.permute.xlu0 %7297
    %7300 = vset.pattern.permute.xlu0 15
    %7301 = vperm.xlu0 %7300, %v705
    %v7302 = vpop.permute.xlu0 %7301
    %7304 = vset.pattern.permute.xlu0 15
    %7305 = vperm.xlu0 %7304, %v708
    %v7306 = vpop.permute.xlu0 %7305
    %7308 = vset.pattern.permute.xlu0 15
    %7309 = vperm.xlu0 %7308, %v713
    %v7310 = vpop.permute.xlu0 %7309
    %7312 = vset.pattern.permute.xlu0 15
    %7313 = vperm.xlu0 %7312, %v716
    %v7314 = vpop.permute.xlu0 %7313
    %7316 = vset.pattern.permute.xlu0 15
    %7317 = vperm.xlu0 %7316, %v721
    %v7318 = vpop.permute.xlu0 %7317
    %7320 = vset.pattern.permute.xlu0 15
    %7321 = vperm.xlu0 %7320, %v724
    %v7322 = vpop.permute.xlu0 %7321
    %7324 = vset.pattern.permute.xlu0 15
    %7325 = vperm.xlu0 %7324, %v729
    %v7326 = vpop.permute.xlu0 %7325
    %7328 = vset.pattern.permute.xlu0 15
    %7329 = vperm.xlu0 %7328, %v732
    %v7330 = vpop.permute.xlu0 %7329
    %7332 = vset.pattern.permute.xlu0 15
    %7333 = vperm.xlu0 %7332, %v737
    %v7334 = vpop.permute.xlu0 %7333
    %7336 = vset.pattern.permute.xlu0 15
    %7337 = vperm.xlu0 %7336, %v740
    %v7338 = vpop.permute.xlu0 %7337
    %7340 = vset.pattern.permute.xlu0 15
    %7341 = vperm.xlu0 %7340, %v745
    %v7342 = vpop.permute.xlu0 %7341
    %7344 = vset.pattern.permute.xlu0 15
    %7345 = vperm.xlu0 %7344, %v748
    %v7346 = vpop.permute.xlu0 %7345
    %7348 = vset.pattern.permute.xlu0 15
    %7349 = vperm.xlu0 %7348, %v753
    %v7350 = vpop.permute.xlu0 %7349
    %7352 = vset.pattern.permute.xlu0 15
    %7353 = vperm.xlu0 %7352, %v756
    %v7354 = vpop.permute.xlu0 %7353
    %v7356 = vsel %vm7276, %v7294, 0.0
    %v7357 = vsel %vm7277, %v7298, 0.0
    %v7358 = vsel %vm7278, %v7302, 0.0
    %v7359 = vsel %vm7279, %v7306, 0.0
    %v7360 = vsel %vm7280, %v7310, 0.0
    %v7361 = vsel %vm7281, %v7314, 0.0
    %v7362 = vsel %vm7282, %v7318, 0.0
    %v7363 = vsel %vm7283, %v7322, 0.0
    %v7364 = vsel %vm7284, %v7326, 0.0
    %v7365 = vsel %vm7285, %v7330, 0.0
    %v7366 = vsel %vm7286, %v7334, 0.0
    %v7367 = vsel %vm7287, %v7338, 0.0
    %v7368 = vsel %vm7288, %v7342, 0.0
    %v7369 = vsel %vm7289, %v7346, 0.0
    %v7370 = vsel %vm7290, %v7350, 0.0
    %v7371 = vsel %vm7291, %v7354, 0.0
    %v7372 = vadd.f32 %v7164, %v7356
    %v7373 = vadd.f32 %v7165, %v7357
    %v7374 = vadd.f32 %v7166, %v7358
    %v7375 = vadd.f32 %v7167, %v7359
    %v7376 = vadd.f32 %v7168, %v7360
    %v7377 = vadd.f32 %v7169, %v7361
    %v7378 = vadd.f32 %v7170, %v7362
    %v7379 = vadd.f32 %v7171, %v7363
    %v7380 = vadd.f32 %v7172, %v7364
    %v7381 = vadd.f32 %v7173, %v7365
    %v7382 = vadd.f32 %v7174, %v7366
    %v7383 = vadd.f32 %v7175, %v7367
    %v7384 = vadd.f32 %v7176, %v7368
    %v7385 = vadd.f32 %v7177, %v7369
    %v7386 = vadd.f32 %v7178, %v7370
    %v7387 = vadd.f32 %v7179, %v7371
    %7388 = vset.pattern.permute.xlu0 27
    %7389 = vperm.xlu0 %7388, %v697
    %v7390 = vpop.permute.xlu0 %7389
    %7392 = vset.pattern.permute.xlu0 27
    %7393 = vperm.xlu0 %7392, %v700
    %v7394 = vpop.permute.xlu0 %7393
    %7396 = vset.pattern.permute.xlu0 27
    %7397 = vperm.xlu0 %7396, %v705
    %v7398 = vpop.permute.xlu0 %7397
    %7400 = vset.pattern.permute.xlu0 27
    %7401 = vperm.xlu0 %7400, %v708
    %v7402 = vpop.permute.xlu0 %7401
    %7404 = vset.pattern.permute.xlu0 27
    %7405 = vperm.xlu0 %7404, %v713
    %v7406 = vpop.permute.xlu0 %7405
    %7408 = vset.pattern.permute.xlu0 27
    %7409 = vperm.xlu0 %7408, %v716
    %v7410 = vpop.permute.xlu0 %7409
    %7412 = vset.pattern.permute.xlu0 27
    %7413 = vperm.xlu0 %7412, %v721
    %v7414 = vpop.permute.xlu0 %7413
    %7416 = vset.pattern.permute.xlu0 27
    %7417 = vperm.xlu0 %7416, %v724
    %v7418 = vpop.permute.xlu0 %7417
    %7420 = vset.pattern.permute.xlu0 27
    %7421 = vperm.xlu0 %7420, %v729
    %v7422 = vpop.permute.xlu0 %7421
    %7424 = vset.pattern.permute.xlu0 27
    %7425 = vperm.xlu0 %7424, %v732
    %v7426 = vpop.permute.xlu0 %7425
    %7428 = vset.pattern.permute.xlu0 27
    %7429 = vperm.xlu0 %7428, %v737
    %v7430 = vpop.permute.xlu0 %7429
    %7432 = vset.pattern.permute.xlu0 27
    %7433 = vperm.xlu0 %7432, %v740
    %v7434 = vpop.permute.xlu0 %7433
    %7436 = vset.pattern.permute.xlu0 27
    %7437 = vperm.xlu0 %7436, %v745
    %v7438 = vpop.permute.xlu0 %7437
    %7440 = vset.pattern.permute.xlu0 27
    %7441 = vperm.xlu0 %7440, %v748
    %v7442 = vpop.permute.xlu0 %7441
    %7444 = vset.pattern.permute.xlu0 27
    %7445 = vperm.xlu0 %7444, %v753
    %v7446 = vpop.permute.xlu0 %7445
    %7448 = vset.pattern.permute.xlu0 27
    %7449 = vperm.xlu0 %7448, %v756
    %v7450 = vpop.permute.xlu0 %7449
    %v7452 = vsel %vm7276, %v7390, 0.0
    %v7453 = vsel %vm7277, %v7394, 0.0
    %v7454 = vsel %vm7278, %v7398, 0.0
    %v7455 = vsel %vm7279, %v7402, 0.0
    %v7456 = vsel %vm7280, %v7406, 0.0
    %v7457 = vsel %vm7281, %v7410, 0.0
    %v7458 = vsel %vm7282, %v7414, 0.0
    %v7459 = vsel %vm7283, %v7418, 0.0
    %v7460 = vsel %vm7284, %v7422, 0.0
    %v7461 = vsel %vm7285, %v7426, 0.0
    %v7462 = vsel %vm7286, %v7430, 0.0
    %v7463 = vsel %vm7287, %v7434, 0.0
    %v7464 = vsel %vm7288, %v7438, 0.0
    %v7465 = vsel %vm7289, %v7442, 0.0
    %v7466 = vsel %vm7290, %v7446, 0.0
    %v7467 = vsel %vm7291, %v7450, 0.0
    %v7468 = vadd.f32 %v7260, %v7452
    %v7469 = vadd.f32 %v7261, %v7453
    %v7470 = vadd.f32 %v7262, %v7454
    %v7471 = vadd.f32 %v7263, %v7455
    %v7472 = vadd.f32 %v7264, %v7456
    %v7473 = vadd.f32 %v7265, %v7457
    %v7474 = vadd.f32 %v7266, %v7458
    %v7475 = vadd.f32 %v7267, %v7459
    %v7476 = vadd.f32 %v7268, %v7460
    %v7477 = vadd.f32 %v7269, %v7461
    %v7478 = vadd.f32 %v7270, %v7462
    %v7479 = vadd.f32 %v7271, %v7463
    %v7480 = vadd.f32 %v7272, %v7464
    %v7481 = vadd.f32 %v7273, %v7465
    %v7482 = vadd.f32 %v7274, %v7466
    %v7483 = vadd.f32 %v7275, %v7467
    %vm7484 = vcmp.eq.s32.totalorder %v5180, 11
    %vm7485 = vcmp.eq.s32.totalorder %v5181, 11
    %vm7486 = vcmp.eq.s32.totalorder %v5182, 11
    %vm7487 = vcmp.eq.s32.totalorder %v5183, 11
    %vm7488 = vcmp.eq.s32.totalorder %v5184, 11
    %vm7489 = vcmp.eq.s32.totalorder %v5185, 11
    %vm7490 = vcmp.eq.s32.totalorder %v5186, 11
    %vm7491 = vcmp.eq.s32.totalorder %v5187, 11
    %vm7492 = vcmp.eq.s32.totalorder %v5188, 11
    %vm7493 = vcmp.eq.s32.totalorder %v5189, 11
    %vm7494 = vcmp.eq.s32.totalorder %v5190, 11
    %vm7495 = vcmp.eq.s32.totalorder %v5191, 11
    %vm7496 = vcmp.eq.s32.totalorder %v5192, 11
    %vm7497 = vcmp.eq.s32.totalorder %v5193, 11
    %vm7498 = vcmp.eq.s32.totalorder %v5194, 11
    %vm7499 = vcmp.eq.s32.totalorder %v5195, 11
    %7500 = vset.pattern.permute.xlu0 16
    %7501 = vperm.xlu0 %7500, %v697
    %v7502 = vpop.permute.xlu0 %7501
    %7504 = vset.pattern.permute.xlu0 16
    %7505 = vperm.xlu0 %7504, %v700
    %v7506 = vpop.permute.xlu0 %7505
    %7508 = vset.pattern.permute.xlu0 16
    %7509 = vperm.xlu0 %7508, %v705
    %v7510 = vpop.permute.xlu0 %7509
    %7512 = vset.pattern.permute.xlu0 16
    %7513 = vperm.xlu0 %7512, %v708
    %v7514 = vpop.permute.xlu0 %7513
    %7516 = vset.pattern.permute.xlu0 16
    %7517 = vperm.xlu0 %7516, %v713
    %v7518 = vpop.permute.xlu0 %7517
    %7520 = vset.pattern.permute.xlu0 16
    %7521 = vperm.xlu0 %7520, %v716
    %v7522 = vpop.permute.xlu0 %7521
    %7524 = vset.pattern.permute.xlu0 16
    %7525 = vperm.xlu0 %7524, %v721
    %v7526 = vpop.permute.xlu0 %7525
    %7528 = vset.pattern.permute.xlu0 16
    %7529 = vperm.xlu0 %7528, %v724
    %v7530 = vpop.permute.xlu0 %7529
    %7532 = vset.pattern.permute.xlu0 16
    %7533 = vperm.xlu0 %7532, %v729
    %v7534 = vpop.permute.xlu0 %7533
    %7536 = vset.pattern.permute.xlu0 16
    %7537 = vperm.xlu0 %7536, %v732
    %v7538 = vpop.permute.xlu0 %7537
    %7540 = vset.pattern.permute.xlu0 16
    %7541 = vperm.xlu0 %7540, %v737
    %v7542 = vpop.permute.xlu0 %7541
    %7544 = vset.pattern.permute.xlu0 16
    %7545 = vperm.xlu0 %7544, %v740
    %v7546 = vpop.permute.xlu0 %7545
    %7548 = vset.pattern.permute.xlu0 16
    %7549 = vperm.xlu0 %7548, %v745
    %v7550 = vpop.permute.xlu0 %7549
    %7552 = vset.pattern.permute.xlu0 16
    %7553 = vperm.xlu0 %7552, %v748
    %v7554 = vpop.permute.xlu0 %7553
    %7556 = vset.pattern.permute.xlu0 16
    %7557 = vperm.xlu0 %7556, %v753
    %v7558 = vpop.permute.xlu0 %7557
    %7560 = vset.pattern.permute.xlu0 16
    %7561 = vperm.xlu0 %7560, %v756
    %v7562 = vpop.permute.xlu0 %7561
    %v7564 = vsel %vm7484, %v7502, 0.0
    %v7565 = vsel %vm7485, %v7506, 0.0
    %v7566 = vsel %vm7486, %v7510, 0.0
    %v7567 = vsel %vm7487, %v7514, 0.0
    %v7568 = vsel %vm7488, %v7518, 0.0
    %v7569 = vsel %vm7489, %v7522, 0.0
    %v7570 = vsel %vm7490, %v7526, 0.0
    %v7571 = vsel %vm7491, %v7530, 0.0
    %v7572 = vsel %vm7492, %v7534, 0.0
    %v7573 = vsel %vm7493, %v7538, 0.0
    %v7574 = vsel %vm7494, %v7542, 0.0
    %v7575 = vsel %vm7495, %v7546, 0.0
    %v7576 = vsel %vm7496, %v7550, 0.0
    %v7577 = vsel %vm7497, %v7554, 0.0
    %v7578 = vsel %vm7498, %v7558, 0.0
    %v7579 = vsel %vm7499, %v7562, 0.0
    %v7580 = vadd.f32 %v7372, %v7564
    %v7581 = vadd.f32 %v7373, %v7565
    %v7582 = vadd.f32 %v7374, %v7566
    %v7583 = vadd.f32 %v7375, %v7567
    %v7584 = vadd.f32 %v7376, %v7568
    %v7585 = vadd.f32 %v7377, %v7569
    %v7586 = vadd.f32 %v7378, %v7570
    %v7587 = vadd.f32 %v7379, %v7571
    %v7588 = vadd.f32 %v7380, %v7572
    %v7589 = vadd.f32 %v7381, %v7573
    %v7590 = vadd.f32 %v7382, %v7574
    %v7591 = vadd.f32 %v7383, %v7575
    %v7592 = vadd.f32 %v7384, %v7576
    %v7593 = vadd.f32 %v7385, %v7577
    %v7594 = vadd.f32 %v7386, %v7578
    %v7595 = vadd.f32 %v7387, %v7579
    %7596 = vset.pattern.permute.xlu0 28
    %7597 = vperm.xlu0 %7596, %v697
    %v7598 = vpop.permute.xlu0 %7597
    %7600 = vset.pattern.permute.xlu0 28
    %7601 = vperm.xlu0 %7600, %v700
    %v7602 = vpop.permute.xlu0 %7601
    %7604 = vset.pattern.permute.xlu0 28
    %7605 = vperm.xlu0 %7604, %v705
    %v7606 = vpop.permute.xlu0 %7605
    %7608 = vset.pattern.permute.xlu0 28
    %7609 = vperm.xlu0 %7608, %v708
    %v7610 = vpop.permute.xlu0 %7609
    %7612 = vset.pattern.permute.xlu0 28
    %7613 = vperm.xlu0 %7612, %v713
    %v7614 = vpop.permute.xlu0 %7613
    %7616 = vset.pattern.permute.xlu0 28
    %7617 = vperm.xlu0 %7616, %v716
    %v7618 = vpop.permute.xlu0 %7617
    %7620 = vset.pattern.permute.xlu0 28
    %7621 = vperm.xlu0 %7620, %v721
    %v7622 = vpop.permute.xlu0 %7621
    %7624 = vset.pattern.permute.xlu0 28
    %7625 = vperm.xlu0 %7624, %v724
    %v7626 = vpop.permute.xlu0 %7625
    %7628 = vset.pattern.permute.xlu0 28
    %7629 = vperm.xlu0 %7628, %v729
    %v7630 = vpop.permute.xlu0 %7629
    %7632 = vset.pattern.permute.xlu0 28
    %7633 = vperm.xlu0 %7632, %v732
    %v7634 = vpop.permute.xlu0 %7633
    %7636 = vset.pattern.permute.xlu0 28
    %7637 = vperm.xlu0 %7636, %v737
    %v7638 = vpop.permute.xlu0 %7637
    %7640 = vset.pattern.permute.xlu0 28
    %7641 = vperm.xlu0 %7640, %v740
    %v7642 = vpop.permute.xlu0 %7641
    %7644 = vset.pattern.permute.xlu0 28
    %7645 = vperm.xlu0 %7644, %v745
    %v7646 = vpop.permute.xlu0 %7645
    %7648 = vset.pattern.permute.xlu0 28
    %7649 = vperm.xlu0 %7648, %v748
    %v7650 = vpop.permute.xlu0 %7649
    %7652 = vset.pattern.permute.xlu0 28
    %7653 = vperm.xlu0 %7652, %v753
    %v7654 = vpop.permute.xlu0 %7653
    %7656 = vset.pattern.permute.xlu0 28
    %7657 = vperm.xlu0 %7656, %v756
    %v7658 = vpop.permute.xlu0 %7657
    %v7660 = vsel %vm7484, %v7598, 0.0
    %v7661 = vsel %vm7485, %v7602, 0.0
    %v7662 = vsel %vm7486, %v7606, 0.0
    %v7663 = vsel %vm7487, %v7610, 0.0
    %v7664 = vsel %vm7488, %v7614, 0.0
    %v7665 = vsel %vm7489, %v7618, 0.0
    %v7666 = vsel %vm7490, %v7622, 0.0
    %v7667 = vsel %vm7491, %v7626, 0.0
    %v7668 = vsel %vm7492, %v7630, 0.0
    %v7669 = vsel %vm7493, %v7634, 0.0
    %v7670 = vsel %vm7494, %v7638, 0.0
    %v7671 = vsel %vm7495, %v7642, 0.0
    %v7672 = vsel %vm7496, %v7646, 0.0
    %v7673 = vsel %vm7497, %v7650, 0.0
    %v7674 = vsel %vm7498, %v7654, 0.0
    %v7675 = vsel %vm7499, %v7658, 0.0
    %v7676 = vadd.f32 %v7468, %v7660
    %v7677 = vadd.f32 %v7469, %v7661
    %v7678 = vadd.f32 %v7470, %v7662
    %v7679 = vadd.f32 %v7471, %v7663
    %v7680 = vadd.f32 %v7472, %v7664
    %v7681 = vadd.f32 %v7473, %v7665
    %v7682 = vadd.f32 %v7474, %v7666
    %v7683 = vadd.f32 %v7475, %v7667
    %v7684 = vadd.f32 %v7476, %v7668
    %v7685 = vadd.f32 %v7477, %v7669
    %v7686 = vadd.f32 %v7478, %v7670
    %v7687 = vadd.f32 %v7479, %v7671
    %v7688 = vadd.f32 %v7480, %v7672
    %v7689 = vadd.f32 %v7481, %v7673
    %v7690 = vadd.f32 %v7482, %v7674
    %v7691 = vadd.f32 %v7483, %v7675
    %7692 = vst [vmem:[#allocation7] sm:$0xff] %v697
    %7693 = vst [vmem:[#allocation7 + $0x8] sm:$0xff] %v700
    %7694 = vst [vmem:[#allocation7 + $0x10] sm:$0xff] %v705
    %7695 = vst [vmem:[#allocation7 + $0x18] sm:$0xff] %v708
    %7696 = vst [vmem:[#allocation7 + $0x20] sm:$0xff] %v713
    %7697 = vst [vmem:[#allocation7 + $0x28] sm:$0xff] %v716
    %7698 = vst [vmem:[#allocation7 + $0x30] sm:$0xff] %v721
    %7699 = vst [vmem:[#allocation7 + $0x38] sm:$0xff] %v724
    %7700 = vst [vmem:[#allocation7 + $0x40] sm:$0xff] %v729
    %7701 = vst [vmem:[#allocation7 + $0x48] sm:$0xff] %v732
    %7702 = vst [vmem:[#allocation7 + $0x50] sm:$0xff] %v737
    %7703 = vst [vmem:[#allocation7 + $0x58] sm:$0xff] %v740
    %7704 = vst [vmem:[#allocation7 + $0x60] sm:$0xff] %v745
    %7705 = vst [vmem:[#allocation7 + $0x68] sm:$0xff] %v748
    %7706 = vst [vmem:[#allocation7 + $0x70] sm:$0xff] %v753
    %7707 = vst [vmem:[#allocation7 + $0x78] sm:$0xff] %v756
    %7724 = vrot.lane.b32.xlu0 %v4457, 2
    %v7725 = vpop.permute.xlu0 %7724
    %7726 = vrot.lane.b32.xlu0 %v4458, 2
    %v7727 = vpop.permute.xlu0 %7726
    %7728 = vrot.lane.b32.xlu0 %v4459, 2
    %v7729 = vpop.permute.xlu0 %7728
    %7730 = vrot.lane.b32.xlu0 %v4460, 2
    %v7731 = vpop.permute.xlu0 %7730
    %7732 = vrot.lane.b32.xlu0 %v4461, 2
    %v7733 = vpop.permute.xlu0 %7732
    %7734 = vrot.lane.b32.xlu0 %v4462, 2
    %v7735 = vpop.permute.xlu0 %7734
    %7736 = vrot.lane.b32.xlu0 %v4463, 2
    %v7737 = vpop.permute.xlu0 %7736
    %7738 = vrot.lane.b32.xlu0 %v4464, 2
    %v7739 = vpop.permute.xlu0 %7738
    %7740 = vrot.lane.b32.xlu0 %v4465, 2
    %v7741 = vpop.permute.xlu0 %7740
    %7742 = vrot.lane.b32.xlu0 %v4466, 2
    %v7743 = vpop.permute.xlu0 %7742
    %7744 = vrot.lane.b32.xlu0 %v4467, 2
    %v7745 = vpop.permute.xlu0 %7744
    %7746 = vrot.lane.b32.xlu0 %v4468, 2
    %v7747 = vpop.permute.xlu0 %7746
    %7748 = vrot.lane.b32.xlu0 %v4469, 2
    %v7749 = vpop.permute.xlu0 %7748
    %7750 = vrot.lane.b32.xlu0 %v4470, 2
    %v7751 = vpop.permute.xlu0 %7750
    %7752 = vrot.lane.b32.xlu0 %v4471, 2
    %v7753 = vpop.permute.xlu0 %7752
    %7754 = vrot.lane.b32.xlu0 %v4472, 2
    %v7755 = vpop.permute.xlu0 %7754
    %vm7772 = vcmask 39952
    %7773 = vst.msk [vmem:[#allocation7] sm:$0xff] %vm7772, %v7725
    %7774 = vst.msk [vmem:[#allocation7 + $0x8] sm:$0xff] %vm7772, %v7727
    %7775 = vst.msk [vmem:[#allocation7 + $0x10] sm:$0xff] %vm7772, %v7729
    %7776 = vst.msk [vmem:[#allocation7 + $0x18] sm:$0xff] %vm7772, %v7731
    %7777 = vst.msk [vmem:[#allocation7 + $0x20] sm:$0xff] %vm7772, %v7733
    %7778 = vst.msk [vmem:[#allocation7 + $0x28] sm:$0xff] %vm7772, %v7735
    %7779 = vst.msk [vmem:[#allocation7 + $0x30] sm:$0xff] %vm7772, %v7737
    %7780 = vst.msk [vmem:[#allocation7 + $0x38] sm:$0xff] %vm7772, %v7739
    %7781 = vst.msk [vmem:[#allocation7 + $0x40] sm:$0xff] %vm7772, %v7741
    %7782 = vst.msk [vmem:[#allocation7 + $0x48] sm:$0xff] %vm7772, %v7743
    %7783 = vst.msk [vmem:[#allocation7 + $0x50] sm:$0xff] %vm7772, %v7745
    %7784 = vst.msk [vmem:[#allocation7 + $0x58] sm:$0xff] %vm7772, %v7747
    %7785 = vst.msk [vmem:[#allocation7 + $0x60] sm:$0xff] %vm7772, %v7749
    %7786 = vst.msk [vmem:[#allocation7 + $0x68] sm:$0xff] %vm7772, %v7751
    %7787 = vst.msk [vmem:[#allocation7 + $0x70] sm:$0xff] %vm7772, %v7753
    %7788 = vst.msk [vmem:[#allocation7 + $0x78] sm:$0xff] %vm7772, %v7755
    %7805 = vrot.lane.b32.xlu0 %v7580, 5
    %v7806 = vpop.permute.xlu0 %7805
    %7807 = vrot.lane.b32.xlu0 %v7581, 5
    %v7808 = vpop.permute.xlu0 %7807
    %7809 = vrot.lane.b32.xlu0 %v7582, 5
    %v7810 = vpop.permute.xlu0 %7809
    %7811 = vrot.lane.b32.xlu0 %v7583, 5
    %v7812 = vpop.permute.xlu0 %7811
    %7813 = vrot.lane.b32.xlu0 %v7584, 5
    %v7814 = vpop.permute.xlu0 %7813
    %7815 = vrot.lane.b32.xlu0 %v7585, 5
    %v7816 = vpop.permute.xlu0 %7815
    %7817 = vrot.lane.b32.xlu0 %v7586, 5
    %v7818 = vpop.permute.xlu0 %7817
    %7819 = vrot.lane.b32.xlu0 %v7587, 5
    %v7820 = vpop.permute.xlu0 %7819
    %7821 = vrot.lane.b32.xlu0 %v7588, 5
    %v7822 = vpop.permute.xlu0 %7821
    %7823 = vrot.lane.b32.xlu0 %v7589, 5
    %v7824 = vpop.permute.xlu0 %7823
    %7825 = vrot.lane.b32.xlu0 %v7590, 5
    %v7826 = vpop.permute.xlu0 %7825
    %7827 = vrot.lane.b32.xlu0 %v7591, 5
    %v7828 = vpop.permute.xlu0 %7827
    %7829 = vrot.lane.b32.xlu0 %v7592, 5
    %v7830 = vpop.permute.xlu0 %7829
    %7831 = vrot.lane.b32.xlu0 %v7593, 5
    %v7832 = vpop.permute.xlu0 %7831
    %7833 = vrot.lane.b32.xlu0 %v7594, 5
    %v7834 = vpop.permute.xlu0 %7833
    %7835 = vrot.lane.b32.xlu0 %v7595, 5
    %v7836 = vpop.permute.xlu0 %7835
    %vm7853 = vcmask 138280
    %7854 = vst.msk [vmem:[#allocation7] sm:$0xff] %vm7853, %v7806
    %7855 = vst.msk [vmem:[#allocation7 + $0x8] sm:$0xff] %vm7853, %v7808
    %7856 = vst.msk [vmem:[#allocation7 + $0x10] sm:$0xff] %vm7853, %v7810
    %7857 = vst.msk [vmem:[#allocation7 + $0x18] sm:$0xff] %vm7853, %v7812
    %7858 = vst.msk [vmem:[#allocation7 + $0x20] sm:$0xff] %vm7853, %v7814
    %7859 = vst.msk [vmem:[#allocation7 + $0x28] sm:$0xff] %vm7853, %v7816
    %7860 = vst.msk [vmem:[#allocation7 + $0x30] sm:$0xff] %vm7853, %v7818
    %7861 = vst.msk [vmem:[#allocation7 + $0x38] sm:$0xff] %vm7853, %v7820
    %7862 = vst.msk [vmem:[#allocation7 + $0x40] sm:$0xff] %vm7853, %v7822
    %7863 = vst.msk [vmem:[#allocation7 + $0x48] sm:$0xff] %vm7853, %v7824
    %7864 = vst.msk [vmem:[#allocation7 + $0x50] sm:$0xff] %vm7853, %v7826
    %7865 = vst.msk [vmem:[#allocation7 + $0x58] sm:$0xff] %vm7853, %v7828
    %7866 = vst.msk [vmem:[#allocation7 + $0x60] sm:$0xff] %vm7853, %v7830
    %7867 = vst.msk [vmem:[#allocation7 + $0x68] sm:$0xff] %vm7853, %v7832
    %7868 = vst.msk [vmem:[#allocation7 + $0x70] sm:$0xff] %vm7853, %v7834
    %7869 = vst.msk [vmem:[#allocation7 + $0x78] sm:$0xff] %vm7853, %v7836
    %7886 = vrot.lane.b32.xlu0 %v7676, 17
    %v7887 = vpop.permute.xlu0 %7886
    %7888 = vrot.lane.b32.xlu0 %v7677, 17
    %v7889 = vpop.permute.xlu0 %7888
    %7890 = vrot.lane.b32.xlu0 %v7678, 17
    %v7891 = vpop.permute.xlu0 %7890
    %7892 = vrot.lane.b32.xlu0 %v7679, 17
    %v7893 = vpop.permute.xlu0 %7892
    %7894 = vrot.lane.b32.xlu0 %v7680, 17
    %v7895 = vpop.permute.xlu0 %7894
    %7896 = vrot.lane.b32.xlu0 %v7681, 17
    %v7897 = vpop.permute.xlu0 %7896
    %7898 = vrot.lane.b32.xlu0 %v7682, 17
    %v7899 = vpop.permute.xlu0 %7898
    %7900 = vrot.lane.b32.xlu0 %v7683, 17
    %v7901 = vpop.permute.xlu0 %7900
    %7902 = vrot.lane.b32.xlu0 %v7684, 17
    %v7903 = vpop.permute.xlu0 %7902
    %7904 = vrot.lane.b32.xlu0 %v7685, 17
    %v7905 = vpop.permute.xlu0 %7904
    %7906 = vrot.lane.b32.xlu0 %v7686, 17
    %v7907 = vpop.permute.xlu0 %7906
    %7908 = vrot.lane.b32.xlu0 %v7687, 17
    %v7909 = vpop.permute.xlu0 %7908
    %7910 = vrot.lane.b32.xlu0 %v7688, 17
    %v7911 = vpop.permute.xlu0 %7910
    %7912 = vrot.lane.b32.xlu0 %v7689, 17
    %v7913 = vpop.permute.xlu0 %7912
    %7914 = vrot.lane.b32.xlu0 %v7690, 17
    %v7915 = vpop.permute.xlu0 %7914
    %7916 = vrot.lane.b32.xlu0 %v7691, 17
    %v7917 = vpop.permute.xlu0 %7916
    %vm7934 = vcmask 236680
    %7935 = vst.msk [vmem:[#allocation7] sm:$0xff] %vm7934, %v7887
    %7936 = vst.msk [vmem:[#allocation7 + $0x8] sm:$0xff] %vm7934, %v7889
    %7937 = vst.msk [vmem:[#allocation7 + $0x10] sm:$0xff] %vm7934, %v7891
    %7938 = vst.msk [vmem:[#allocation7 + $0x18] sm:$0xff] %vm7934, %v7893
    %7939 = vst.msk [vmem:[#allocation7 + $0x20] sm:$0xff] %vm7934, %v7895
    %7940 = vst.msk [vmem:[#allocation7 + $0x28] sm:$0xff] %vm7934, %v7897
    %7941 = vst.msk [vmem:[#allocation7 + $0x30] sm:$0xff] %vm7934, %v7899
    %7942 = vst.msk [vmem:[#allocation7 + $0x38] sm:$0xff] %vm7934, %v7901
    %7943 = vst.msk [vmem:[#allocation7 + $0x40] sm:$0xff] %vm7934, %v7903
    %7944 = vst.msk [vmem:[#allocation7 + $0x48] sm:$0xff] %vm7934, %v7905
    %7945 = vst.msk [vmem:[#allocation7 + $0x50] sm:$0xff] %vm7934, %v7907
    %7946 = vst.msk [vmem:[#allocation7 + $0x58] sm:$0xff] %vm7934, %v7909
    %7947 = vst.msk [vmem:[#allocation7 + $0x60] sm:$0xff] %vm7934, %v7911
    %7948 = vst.msk [vmem:[#allocation7 + $0x68] sm:$0xff] %vm7934, %v7913
    %7949 = vst.msk [vmem:[#allocation7 + $0x70] sm:$0xff] %vm7934, %v7915
    %7950 = vst.msk [vmem:[#allocation7 + $0x78] sm:$0xff] %vm7934, %v7917
    // Predicated region
    $region50: #{tpu_custom_call.1} parent=1 // pred_check
      _
    $region51: #{tpu_custom_call.1} parent=1 // pred_check_branch
      %7952 = sbr.rel (0) target = $region53
    $region52: #{tpu_custom_call.1} parent=1 // pred_region
      %s7954 = ssub.s32 2048, 2048
      %7955 = vsyncadd [#allocation4], %s7954
      %s7956 = sshll.u32 [#allocation7], 4
      %s7957 = int_to_ptr.vmem [resolvable:$true] %s7956
      %7962 = dma.vmem_to_hbm [thread:$0]  %s7957, 2048, %s10, [#allocation4], 128, 128, 8
    $region53: #{tpu_custom_call.1} parent=1 // pred_fallthru
      _
    // Predicated region
    $region54: #{tpu_custom_call.1} parent=1 // pred_check
      _
    $region55: #{tpu_custom_call.1} parent=1 // pred_check_branch
      %7964 = sbr.rel (0) target = $region57
    $region56: #{tpu_custom_call.1} parent=1 // pred_region
      %7965 = dma.done [#allocation4], 2048
    $region57: #{tpu_custom_call.1} parent=1 // pred_fallthru
      _
    %7966 = vsyncpa [#allocation3], 1
    %7967 = vsyncpa [#allocation6], 1
    %7968 = vsyncpa [#allocation4], 1

</llo_original>
